<compile_context>
chip_gen: v6e
topology: v6e:2x2x1
jax: 0.10.0
libtpu: 0.0.40
codegen_flags: <defaults>
</compile_context>

<pallas_src>
import numpy as np
import jax
import jax.numpy as jnp
from jax.experimental import pallas as pl
from jax.experimental.pallas import tpu as pltpu

WINDOW_SIZE = 11
SIGMA = 1.5
C1 = 0.01 ** 2
C2 = 0.03 ** 2


def _gaussian_1d(window_size, sigma):
    g = np.exp(-((np.arange(window_size) - window_size // 2) ** 2)
               / (2.0 * sigma ** 2))
    return g / g.sum()


def _band_matrix(n, window_size, sigma):
    """Banded matrix B with B[i, j] = g[j - i + pad] for |j - i| <= pad.

    Left-multiplying (Gv @ x) by this matrix is exactly the zero-padded 1-D
    vertical Gaussian convolution; right-multiplying by its transpose
    (x @ Gh, Gh = B.T) is the horizontal pass.  Together they reproduce
    F.conv2d(x, g g^T, padding=window_size//2, groups=C).
    """
    g = _gaussian_1d(window_size, sigma)
    pad = window_size // 2
    m = np.zeros((n, n), np.float64)
    for i in range(n):
        for j in range(max(0, i - pad), min(n, i + pad + 1)):
            m[i, j] = g[j - i + pad]
    return m.astype(np.float32)


def _make_ssim_kernel(P, H, W):
    def kernel(x1_ref, x2_ref, gv_ref, gh_ref, out_ref):
        gv = gv_ref[...]          # (H, H) vertical Gaussian band
        gh = gh_ref[...]          # (W, W) horizontal Gaussian band

        def blur(z):              # (H, W) -> (H, W); both matmuls on the MXU
            h = jnp.dot(z, gh, preferred_element_type=jnp.float32)
            return jnp.dot(gv, h, preferred_element_type=jnp.float32)

        sums = []
        for p in range(P):        # static unroll over the planes in this block
            x1 = x1_ref[p].astype(jnp.float32)   # (H, W)
            x2 = x2_ref[p].astype(jnp.float32)

            mu1 = blur(x1)
            mu2 = blur(x2)
            mu1_sq = mu1 * mu1
            mu2_sq = mu2 * mu2
            mu1_mu2 = mu1 * mu2

            sigma1_sq = blur(x1 * x1) - mu1_sq
            sigma2_sq = blur(x2 * x2) - mu2_sq
            sigma12 = blur(x1 * x2) - mu1_mu2

            num = (2.0 * mu1_mu2 + C1) * (2.0 * sigma12 + C2)
            den = (mu1_sq + mu2_sq + C1) * (sigma1_sq + sigma2_sq + C2)
            ssim_map = num / den                 # exact divide keeps 1e-5 tol

            sums.append(jnp.sum(ssim_map).reshape(1, 1))

        row = jnp.concatenate(sums, axis=1)      # (1, P) per-plane sums
        out_ref[...] = row.reshape(1, 1, P)

    return kernel


def _planes_per_step(n):
    if n <= 8:
        return n
    for cand in (8, 4, 2):
        if n % cand == 0:
            return cand
    return 1


def ssim_pallas(img1, img2, window_size=WINDOW_SIZE, size_average=True):
    B, C, H, W = img1.shape
    N = B * C
    P = _planes_per_step(N)
    G = N // P

    x1 = img1.astype(jnp.float32).reshape(N, H, W)
    x2 = img2.astype(jnp.float32).reshape(N, H, W)

    gv = jnp.asarray(_band_matrix(H, window_size, SIGMA))      # (H, H)
    gh = jnp.asarray(_band_matrix(W, window_size, SIGMA).T)    # (W, W)

    plane_bytes = H * W * 4
    vmem_est = (2 * 2 * P * plane_bytes          # double-buffered image blocks
                + 2 * (H * H + W * W) * 4        # Gaussian band matrices
                + 24 * plane_bytes               # live per-plane intermediates
                + 2 * 4 * P)                     # output block
    vmem_limit = int(min(max(2 * vmem_est, 16 << 20), 64 << 20))

    kernel = _make_ssim_kernel(P, H, W)
    sums = pl.pallas_call(
        kernel,
        out_shape=jax.ShapeDtypeStruct((G, 1, P), jnp.float32),
        grid=(G,),
        in_specs=[
            pl.BlockSpec((P, H, W), lambda i: (i, 0, 0)),
            pl.BlockSpec((P, H, W), lambda i: (i, 0, 0)),
            pl.BlockSpec((H, H), lambda i: (0, 0)),
            pl.BlockSpec((W, W), lambda i: (0, 0)),
        ],
        out_specs=pl.BlockSpec((1, 1, P), lambda i: (i, 0, 0)),
        compiler_params=pltpu.CompilerParams(
            dimension_semantics=("parallel",),
            vmem_limit_bytes=vmem_limit),
    )(x1, x2, gv, gh)

    per_plane = sums.reshape(B, C)               # sum of ssim_map per (b, c)
    if size_average:
        return jnp.sum(per_plane) / (B * C * H * W)
    return jnp.sum(per_plane, axis=1) / (C * H * W)


def ssim_reference_np(img1, img2, window_size=WINDOW_SIZE, size_average=True):
    """float64 NumPy reference matching torch F.conv2d(groups=C) semantics."""
    x1 = np.asarray(img1, np.float64)
    x2 = np.asarray(img2, np.float64)
    B, C, H, W = x1.shape
    g = _gaussian_1d(window_size, SIGMA)
    pad = window_size // 2

    def blur(x):
        xp = np.pad(x, ((0, 0), (0, 0), (pad, pad), (pad, pad)))
        h = np.zeros((B, C, H + 2 * pad, W))
        for k in range(window_size):
            h += g[k] * xp[:, :, :, k:k + W]
        v = np.zeros((B, C, H, W))
        for k in range(window_size):
            v += g[k] * h[:, :, k:k + H, :]
        return v

    mu1, mu2 = blur(x1), blur(x2)
    mu1_sq, mu2_sq, mu1_mu2 = mu1 * mu1, mu2 * mu2, mu1 * mu2
    s1 = blur(x1 * x1) - mu1_sq
    s2 = blur(x2 * x2) - mu2_sq
    s12 = blur(x1 * x2) - mu1_mu2
    ssim_map = ((2 * mu1_mu2 + C1) * (2 * s12 + C2)
                / ((mu1_sq + mu2_sq + C1) * (s1 + s2 + C2)))
    if size_average:
        return ssim_map.mean()
    return ssim_map.mean(axis=(1, 2, 3))


if __name__ == "__main__":
    key = jax.random.PRNGKey(0)
    k1, k2 = jax.random.split(key)
    B, C, H, W = 2, 4, 16, 16
    img1 = jax.random.uniform(k1, (B, C, H, W), dtype=jnp.float32)
    img2 = jax.random.uniform(k2, (B, C, H, W), dtype=jnp.float32)

    out = jax.block_until_ready(ssim_pallas(img1, img2))
    ref = ssim_reference_np(np.asarray(img1), np.asarray(img2))
    assert np.isfinite(float(out))
    np.testing.assert_allclose(float(out), float(ref), rtol=1e-5, atol=1e-5)

    out_b = jax.block_until_ready(ssim_pallas(img1, img2, size_average=False))
    ref_b = ssim_reference_np(np.asarray(img1), np.asarray(img2),
                              size_average=False)
    np.testing.assert_allclose(np.asarray(out_b), np.asarray(ref_b),
                               rtol=1e-5, atol=1e-5)

    print("KERNEL_OK")
</pallas_src>

<mosaic_0001>
module attributes {stable_mosaic.version = 11 : i64} {
  func.func @kernel(%arg0: i32, %arg1: memref<8x16x16xf32, #tpu.memory_space<vmem>>, %arg2: memref<8x16x16xf32, #tpu.memory_space<vmem>>, %arg3: memref<16x16xf32, #tpu.memory_space<vmem>>, %arg4: memref<16x16xf32, #tpu.memory_space<vmem>>, %arg5: memref<1x1x8xf32, #tpu.memory_space<vmem>>) attributes {dimension_semantics = [#tpu.dimension_semantics<parallel>], iteration_bounds = array<i64: 1>, scalar_prefetch = 0 : i64, scratch_operands = 0 : i64, tpu.core_type = #tpu.core_type<tc>, window_params = [{transform_indices = @transform_0, window_bounds = array<i64: 8, 16, 16>}, {transform_indices = @transform_1, window_bounds = array<i64: 8, 16, 16>}, {pipeline_mode = #tpu.pipeline_mode<synchronous>, transform_indices = @transform_2, window_bounds = array<i64: 16, 16>}, {pipeline_mode = #tpu.pipeline_mode<synchronous>, transform_indices = @transform_3, window_bounds = array<i64: 16, 16>}, {transform_indices = @transform_4, window_bounds = array<i64: 1, 1, 8>}]} {
    %c0 = arith.constant 0 : index
    %c0_0 = arith.constant 0 : index
    %0 = vector.load %arg3[%c0, %c0_0] : memref<16x16xf32, #tpu.memory_space<vmem>>, vector<16x16xf32>
    %c0_1 = arith.constant 0 : index
    %c0_2 = arith.constant 0 : index
    %1 = vector.load %arg4[%c0_1, %c0_2] : memref<16x16xf32, #tpu.memory_space<vmem>>, vector<16x16xf32>
    %c0_3 = arith.constant 0 : index
    %c0_4 = arith.constant 0 : index
    %c0_5 = arith.constant 0 : index
    %2 = vector.load %arg1[%c0_3, %c0_4, %c0_5] : memref<8x16x16xf32, #tpu.memory_space<vmem>>, vector<1x16x16xf32>
    %3 = vector.shape_cast %2 : vector<1x16x16xf32> to vector<16x16xf32>
    %c0_6 = arith.constant 0 : index
    %c0_7 = arith.constant 0 : index
    %c0_8 = arith.constant 0 : index
    %4 = vector.load %arg2[%c0_6, %c0_7, %c0_8] : memref<8x16x16xf32, #tpu.memory_space<vmem>>, vector<1x16x16xf32>
    %5 = vector.shape_cast %4 : vector<1x16x16xf32> to vector<16x16xf32>
    %cst = arith.constant dense<0.000000e+00> : vector<16x16xf32>
    %6 = tpu.matmul %3, %1, %cst {dimension_numbers = #tpu.dot_dimension_numbers<[1], [0], [0], [1], [0, 0, 1, 1], [], []>} : vector<16x16xf32>, vector<16x16xf32>, vector<16x16xf32> -> vector<16x16xf32>
    %cst_9 = arith.constant dense<0.000000e+00> : vector<16x16xf32>
    %7 = tpu.matmul %0, %6, %cst_9 {dimension_numbers = #tpu.dot_dimension_numbers<[1], [0], [0], [1], [0, 0, 1, 1], [], []>} : vector<16x16xf32>, vector<16x16xf32>, vector<16x16xf32> -> vector<16x16xf32>
    %cst_10 = arith.constant dense<0.000000e+00> : vector<16x16xf32>
    %8 = tpu.matmul %5, %1, %cst_10 {dimension_numbers = #tpu.dot_dimension_numbers<[1], [0], [0], [1], [0, 0, 1, 1], [], []>} : vector<16x16xf32>, vector<16x16xf32>, vector<16x16xf32> -> vector<16x16xf32>
    %cst_11 = arith.constant dense<0.000000e+00> : vector<16x16xf32>
    %9 = tpu.matmul %0, %8, %cst_11 {dimension_numbers = #tpu.dot_dimension_numbers<[1], [0], [0], [1], [0, 0, 1, 1], [], []>} : vector<16x16xf32>, vector<16x16xf32>, vector<16x16xf32> -> vector<16x16xf32>
    %10 = arith.mulf %7, %7 : vector<16x16xf32>
    %11 = arith.mulf %9, %9 : vector<16x16xf32>
    %12 = arith.mulf %7, %9 : vector<16x16xf32>
    %13 = arith.mulf %3, %3 : vector<16x16xf32>
    %cst_12 = arith.constant dense<0.000000e+00> : vector<16x16xf32>
    %14 = tpu.matmul %13, %1, %cst_12 {dimension_numbers = #tpu.dot_dimension_numbers<[1], [0], [0], [1], [0, 0, 1, 1], [], []>} : vector<16x16xf32>, vector<16x16xf32>, vector<16x16xf32> -> vector<16x16xf32>
    %cst_13 = arith.constant dense<0.000000e+00> : vector<16x16xf32>
    %15 = tpu.matmul %0, %14, %cst_13 {dimension_numbers = #tpu.dot_dimension_numbers<[1], [0], [0], [1], [0, 0, 1, 1], [], []>} : vector<16x16xf32>, vector<16x16xf32>, vector<16x16xf32> -> vector<16x16xf32>
    %16 = arith.subf %15, %10 : vector<16x16xf32>
    %17 = arith.mulf %5, %5 : vector<16x16xf32>
    %cst_14 = arith.constant dense<0.000000e+00> : vector<16x16xf32>
    %18 = tpu.matmul %17, %1, %cst_14 {dimension_numbers = #tpu.dot_dimension_numbers<[1], [0], [0], [1], [0, 0, 1, 1], [], []>} : vector<16x16xf32>, vector<16x16xf32>, vector<16x16xf32> -> vector<16x16xf32>
    %cst_15 = arith.constant dense<0.000000e+00> : vector<16x16xf32>
    %19 = tpu.matmul %0, %18, %cst_15 {dimension_numbers = #tpu.dot_dimension_numbers<[1], [0], [0], [1], [0, 0, 1, 1], [], []>} : vector<16x16xf32>, vector<16x16xf32>, vector<16x16xf32> -> vector<16x16xf32>
    %20 = arith.subf %19, %11 : vector<16x16xf32>
    %21 = arith.mulf %3, %5 : vector<16x16xf32>
    %cst_16 = arith.constant dense<0.000000e+00> : vector<16x16xf32>
    %22 = tpu.matmul %21, %1, %cst_16 {dimension_numbers = #tpu.dot_dimension_numbers<[1], [0], [0], [1], [0, 0, 1, 1], [], []>} : vector<16x16xf32>, vector<16x16xf32>, vector<16x16xf32> -> vector<16x16xf32>
    %cst_17 = arith.constant dense<0.000000e+00> : vector<16x16xf32>
    %23 = tpu.matmul %0, %22, %cst_17 {dimension_numbers = #tpu.dot_dimension_numbers<[1], [0], [0], [1], [0, 0, 1, 1], [], []>} : vector<16x16xf32>, vector<16x16xf32>, vector<16x16xf32> -> vector<16x16xf32>
    %24 = arith.subf %23, %12 : vector<16x16xf32>
    %cst_18 = arith.constant 2.000000e+00 : f32
    %25 = vector.broadcast %cst_18 : f32 to vector<16x16xf32>
    %26 = arith.mulf %25, %12 : vector<16x16xf32>
    %cst_19 = arith.constant 9.99999974E-5 : f32
    %27 = vector.broadcast %cst_19 : f32 to vector<16x16xf32>
    %28 = arith.addf %26, %27 : vector<16x16xf32>
    %cst_20 = arith.constant 2.000000e+00 : f32
    %29 = vector.broadcast %cst_20 : f32 to vector<16x16xf32>
    %30 = arith.mulf %29, %24 : vector<16x16xf32>
    %cst_21 = arith.constant 8.99999984E-4 : f32
    %31 = vector.broadcast %cst_21 : f32 to vector<16x16xf32>
    %32 = arith.addf %30, %31 : vector<16x16xf32>
    %33 = arith.mulf %28, %32 : vector<16x16xf32>
    %34 = arith.addf %10, %11 : vector<16x16xf32>
    %cst_22 = arith.constant 9.99999974E-5 : f32
    %35 = vector.broadcast %cst_22 : f32 to vector<16x16xf32>
    %36 = arith.addf %34, %35 : vector<16x16xf32>
    %37 = arith.addf %16, %20 : vector<16x16xf32>
    %cst_23 = arith.constant 8.99999984E-4 : f32
    %38 = vector.broadcast %cst_23 : f32 to vector<16x16xf32>
    %39 = arith.addf %37, %38 : vector<16x16xf32>
    %40 = arith.mulf %36, %39 : vector<16x16xf32>
    %41 = arith.divf %33, %40 : vector<16x16xf32>
    %42 = vector.shape_cast %41 : vector<16x16xf32> to vector<1x16x16xf32>
    %cst_24 = arith.constant dense<0.000000e+00> : vector<1xf32>
    %43 = vector.multi_reduction <add>, %42, %cst_24 [1, 2] : vector<1x16x16xf32> to vector<1xf32>
    %44 = vector.shape_cast %43 : vector<1xf32> to vector<1x1x1xf32>
    %45 = vector.extract %44[0, 0, 0] : f32 from vector<1x1x1xf32>
    %46 = vector.broadcast %45 : f32 to vector<1x1xf32>
    %c1 = arith.constant 1 : index
    %c0_25 = arith.constant 0 : index
    %c0_26 = arith.constant 0 : index
    %47 = vector.load %arg1[%c1, %c0_25, %c0_26] : memref<8x16x16xf32, #tpu.memory_space<vmem>>, vector<1x16x16xf32>
    %48 = vector.shape_cast %47 : vector<1x16x16xf32> to vector<16x16xf32>
    %c1_27 = arith.constant 1 : index
    %c0_28 = arith.constant 0 : index
    %c0_29 = arith.constant 0 : index
    %49 = vector.load %arg2[%c1_27, %c0_28, %c0_29] : memref<8x16x16xf32, #tpu.memory_space<vmem>>, vector<1x16x16xf32>
    %50 = vector.shape_cast %49 : vector<1x16x16xf32> to vector<16x16xf32>
    %cst_30 = arith.constant dense<0.000000e+00> : vector<16x16xf32>
    %51 = tpu.matmul %48, %1, %cst_30 {dimension_numbers = #tpu.dot_dimension_numbers<[1], [0], [0], [1], [0, 0, 1, 1], [], []>} : vector<16x16xf32>, vector<16x16xf32>, vector<16x16xf32> -> vector<16x16xf32>
    %cst_31 = arith.constant dense<0.000000e+00> : vector<16x16xf32>
    %52 = tpu.matmul %0, %51, %cst_31 {dimension_numbers = #tpu.dot_dimension_numbers<[1], [0], [0], [1], [0, 0, 1, 1], [], []>} : vector<16x16xf32>, vector<16x16xf32>, vector<16x16xf32> -> vector<16x16xf32>
    %cst_32 = arith.constant dense<0.000000e+00> : vector<16x16xf32>
    %53 = tpu.matmul %50, %1, %cst_32 {dimension_numbers = #tpu.dot_dimension_numbers<[1], [0], [0], [1], [0, 0, 1, 1], [], []>} : vector<16x16xf32>, vector<16x16xf32>, vector<16x16xf32> -> vector<16x16xf32>
    %cst_33 = arith.constant dense<0.000000e+00> : vector<16x16xf32>
    %54 = tpu.matmul %0, %53, %cst_33 {dimension_numbers = #tpu.dot_dimension_numbers<[1], [0], [0], [1], [0, 0, 1, 1], [], []>} : vector<16x16xf32>, vector<16x16xf32>, vector<16x16xf32> -> vector<16x16xf32>
    %55 = arith.mulf %52, %52 : vector<16x16xf32>
    %56 = arith.mulf %54, %54 : vector<16x16xf32>
    %57 = arith.mulf %52, %54 : vector<16x16xf32>
    %58 = arith.mulf %48, %48 : vector<16x16xf32>
    %cst_34 = arith.constant dense<0.000000e+00> : vector<16x16xf32>
    %59 = tpu.matmul %58, %1, %cst_34 {dimension_numbers = #tpu.dot_dimension_numbers<[1], [0], [0], [1], [0, 0, 1, 1], [], []>} : vector<16x16xf32>, vector<16x16xf32>, vector<16x16xf32> -> vector<16x16xf32>
    %cst_35 = arith.constant dense<0.000000e+00> : vector<16x16xf32>
    %60 = tpu.matmul %0, %59, %cst_35 {dimension_numbers = #tpu.dot_dimension_numbers<[1], [0], [0], [1], [0, 0, 1, 1], [], []>} : vector<16x16xf32>, vector<16x16xf32>, vector<16x16xf32> -> vector<16x16xf32>
    %61 = arith.subf %60, %55 : vector<16x16xf32>
    %62 = arith.mulf %50, %50 : vector<16x16xf32>
    %cst_36 = arith.constant dense<0.000000e+00> : vector<16x16xf32>
    %63 = tpu.matmul %62, %1, %cst_36 {dimension_numbers = #tpu.dot_dimension_numbers<[1], [0], [0], [1], [0, 0, 1, 1], [], []>} : vector<16x16xf32>, vector<16x16xf32>, vector<16x16xf32> -> vector<16x16xf32>
    %cst_37 = arith.constant dense<0.000000e+00> : vector<16x16xf32>
    %64 = tpu.matmul %0, %63, %cst_37 {dimension_numbers = #tpu.dot_dimension_numbers<[1], [0], [0], [1], [0, 0, 1, 1], [], []>} : vector<16x16xf32>, vector<16x16xf32>, vector<16x16xf32> -> vector<16x16xf32>
    %65 = arith.subf %64, %56 : vector<16x16xf32>
    %66 = arith.mulf %48, %50 : vector<16x16xf32>
    %cst_38 = arith.constant dense<0.000000e+00> : vector<16x16xf32>
    %67 = tpu.matmul %66, %1, %cst_38 {dimension_numbers = #tpu.dot_dimension_numbers<[1], [0], [0], [1], [0, 0, 1, 1], [], []>} : vector<16x16xf32>, vector<16x16xf32>, vector<16x16xf32> -> vector<16x16xf32>
    %cst_39 = arith.constant dense<0.000000e+00> : vector<16x16xf32>
    %68 = tpu.matmul %0, %67, %cst_39 {dimension_numbers = #tpu.dot_dimension_numbers<[1], [0], [0], [1], [0, 0, 1, 1], [], []>} : vector<16x16xf32>, vector<16x16xf32>, vector<16x16xf32> -> vector<16x16xf32>
    %69 = arith.subf %68, %57 : vector<16x16xf32>
    %cst_40 = arith.constant 2.000000e+00 : f32
    %70 = vector.broadcast %cst_40 : f32 to vector<16x16xf32>
    %71 = arith.mulf %70, %57 : vector<16x16xf32>
    %cst_41 = arith.constant 9.99999974E-5 : f32
    %72 = vector.broadcast %cst_41 : f32 to vector<16x16xf32>
    %73 = arith.addf %71, %72 : vector<16x16xf32>
    %cst_42 = arith.constant 2.000000e+00 : f32
    %74 = vector.broadcast %cst_42 : f32 to vector<16x16xf32>
    %75 = arith.mulf %74, %69 : vector<16x16xf32>
    %cst_43 = arith.constant 8.99999984E-4 : f32
    %76 = vector.broadcast %cst_43 : f32 to vector<16x16xf32>
    %77 = arith.addf %75, %76 : vector<16x16xf32>
    %78 = arith.mulf %73, %77 : vector<16x16xf32>
    %79 = arith.addf %55, %56 : vector<16x16xf32>
    %cst_44 = arith.constant 9.99999974E-5 : f32
    %80 = vector.broadcast %cst_44 : f32 to vector<16x16xf32>
    %81 = arith.addf %79, %80 : vector<16x16xf32>
    %82 = arith.addf %61, %65 : vector<16x16xf32>
    %cst_45 = arith.constant 8.99999984E-4 : f32
    %83 = vector.broadcast %cst_45 : f32 to vector<16x16xf32>
    %84 = arith.addf %82, %83 : vector<16x16xf32>
    %85 = arith.mulf %81, %84 : vector<16x16xf32>
    %86 = arith.divf %78, %85 : vector<16x16xf32>
    %87 = vector.shape_cast %86 : vector<16x16xf32> to vector<1x16x16xf32>
    %cst_46 = arith.constant dense<0.000000e+00> : vector<1xf32>
    %88 = vector.multi_reduction <add>, %87, %cst_46 [1, 2] : vector<1x16x16xf32> to vector<1xf32>
    %89 = vector.shape_cast %88 : vector<1xf32> to vector<1x1x1xf32>
    %90 = vector.extract %89[0, 0, 0] : f32 from vector<1x1x1xf32>
    %91 = vector.broadcast %90 : f32 to vector<1x1xf32>
    %c2 = arith.constant 2 : index
    %c0_47 = arith.constant 0 : index
    %c0_48 = arith.constant 0 : index
    %92 = vector.load %arg1[%c2, %c0_47, %c0_48] : memref<8x16x16xf32, #tpu.memory_space<vmem>>, vector<1x16x16xf32>
    %93 = vector.shape_cast %92 : vector<1x16x16xf32> to vector<16x16xf32>
    %c2_49 = arith.constant 2 : index
    %c0_50 = arith.constant 0 : index
    %c0_51 = arith.constant 0 : index
    %94 = vector.load %arg2[%c2_49, %c0_50, %c0_51] : memref<8x16x16xf32, #tpu.memory_space<vmem>>, vector<1x16x16xf32>
    %95 = vector.shape_cast %94 : vector<1x16x16xf32> to vector<16x16xf32>
    %cst_52 = arith.constant dense<0.000000e+00> : vector<16x16xf32>
    %96 = tpu.matmul %93, %1, %cst_52 {dimension_numbers = #tpu.dot_dimension_numbers<[1], [0], [0], [1], [0, 0, 1, 1], [], []>} : vector<16x16xf32>, vector<16x16xf32>, vector<16x16xf32> -> vector<16x16xf32>
    %cst_53 = arith.constant dense<0.000000e+00> : vector<16x16xf32>
    %97 = tpu.matmul %0, %96, %cst_53 {dimension_numbers = #tpu.dot_dimension_numbers<[1], [0], [0], [1], [0, 0, 1, 1], [], []>} : vector<16x16xf32>, vector<16x16xf32>, vector<16x16xf32> -> vector<16x16xf32>
    %cst_54 = arith.constant dense<0.000000e+00> : vector<16x16xf32>
    %98 = tpu.matmul %95, %1, %cst_54 {dimension_numbers = #tpu.dot_dimension_numbers<[1], [0], [0], [1], [0, 0, 1, 1], [], []>} : vector<16x16xf32>, vector<16x16xf32>, vector<16x16xf32> -> vector<16x16xf32>
    %cst_55 = arith.constant dense<0.000000e+00> : vector<16x16xf32>
    %99 = tpu.matmul %0, %98, %cst_55 {dimension_numbers = #tpu.dot_dimension_numbers<[1], [0], [0], [1], [0, 0, 1, 1], [], []>} : vector<16x16xf32>, vector<16x16xf32>, vector<16x16xf32> -> vector<16x16xf32>
    %100 = arith.mulf %97, %97 : vector<16x16xf32>
    %101 = arith.mulf %99, %99 : vector<16x16xf32>
    %102 = arith.mulf %97, %99 : vector<16x16xf32>
    %103 = arith.mulf %93, %93 : vector<16x16xf32>
    %cst_56 = arith.constant dense<0.000000e+00> : vector<16x16xf32>
    %104 = tpu.matmul %103, %1, %cst_56 {dimension_numbers = #tpu.dot_dimension_numbers<[1], [0], [0], [1], [0, 0, 1, 1], [], []>} : vector<16x16xf32>, vector<16x16xf32>, vector<16x16xf32> -> vector<16x16xf32>
    %cst_57 = arith.constant dense<0.000000e+00> : vector<16x16xf32>
    %105 = tpu.matmul %0, %104, %cst_57 {dimension_numbers = #tpu.dot_dimension_numbers<[1], [0], [0], [1], [0, 0, 1, 1], [], []>} : vector<16x16xf32>, vector<16x16xf32>, vector<16x16xf32> -> vector<16x16xf32>
    %106 = arith.subf %105, %100 : vector<16x16xf32>
    %107 = arith.mulf %95, %95 : vector<16x16xf32>
    %cst_58 = arith.constant dense<0.000000e+00> : vector<16x16xf32>
    %108 = tpu.matmul %107, %1, %cst_58 {dimension_numbers = #tpu.dot_dimension_numbers<[1], [0], [0], [1], [0, 0, 1, 1], [], []>} : vector<16x16xf32>, vector<16x16xf32>, vector<16x16xf32> -> vector<16x16xf32>
    %cst_59 = arith.constant dense<0.000000e+00> : vector<16x16xf32>
    %109 = tpu.matmul %0, %108, %cst_59 {dimension_numbers = #tpu.dot_dimension_numbers<[1], [0], [0], [1], [0, 0, 1, 1], [], []>} : vector<16x16xf32>, vector<16x16xf32>, vector<16x16xf32> -> vector<16x16xf32>
    %110 = arith.subf %109, %101 : vector<16x16xf32>
    %111 = arith.mulf %93, %95 : vector<16x16xf32>
    %cst_60 = arith.constant dense<0.000000e+00> : vector<16x16xf32>
    %112 = tpu.matmul %111, %1, %cst_60 {dimension_numbers = #tpu.dot_dimension_numbers<[1], [0], [0], [1], [0, 0, 1, 1], [], []>} : vector<16x16xf32>, vector<16x16xf32>, vector<16x16xf32> -> vector<16x16xf32>
    %cst_61 = arith.constant dense<0.000000e+00> : vector<16x16xf32>
    %113 = tpu.matmul %0, %112, %cst_61 {dimension_numbers = #tpu.dot_dimension_numbers<[1], [0], [0], [1], [0, 0, 1, 1], [], []>} : vector<16x16xf32>, vector<16x16xf32>, vector<16x16xf32> -> vector<16x16xf32>
    %114 = arith.subf %113, %102 : vector<16x16xf32>
    %cst_62 = arith.constant 2.000000e+00 : f32
    %115 = vector.broadcast %cst_62 : f32 to vector<16x16xf32>
    %116 = arith.mulf %115, %102 : vector<16x16xf32>
    %cst_63 = arith.constant 9.99999974E-5 : f32
    %117 = vector.broadcast %cst_63 : f32 to vector<16x16xf32>
    %118 = arith.addf %116, %117 : vector<16x16xf32>
    %cst_64 = arith.constant 2.000000e+00 : f32
    %119 = vector.broadcast %cst_64 : f32 to vector<16x16xf32>
    %120 = arith.mulf %119, %114 : vector<16x16xf32>
    %cst_65 = arith.constant 8.99999984E-4 : f32
    %121 = vector.broadcast %cst_65 : f32 to vector<16x16xf32>
    %122 = arith.addf %120, %121 : vector<16x16xf32>
    %123 = arith.mulf %118, %122 : vector<16x16xf32>
    %124 = arith.addf %100, %101 : vector<16x16xf32>
    %cst_66 = arith.constant 9.99999974E-5 : f32
    %125 = vector.broadcast %cst_66 : f32 to vector<16x16xf32>
    %126 = arith.addf %124, %125 : vector<16x16xf32>
    %127 = arith.addf %106, %110 : vector<16x16xf32>
    %cst_67 = arith.constant 8.99999984E-4 : f32
    %128 = vector.broadcast %cst_67 : f32 to vector<16x16xf32>
    %129 = arith.addf %127, %128 : vector<16x16xf32>
    %130 = arith.mulf %126, %129 : vector<16x16xf32>
    %131 = arith.divf %123, %130 : vector<16x16xf32>
    %132 = vector.shape_cast %131 : vector<16x16xf32> to vector<1x16x16xf32>
    %cst_68 = arith.constant dense<0.000000e+00> : vector<1xf32>
    %133 = vector.multi_reduction <add>, %132, %cst_68 [1, 2] : vector<1x16x16xf32> to vector<1xf32>
    %134 = vector.shape_cast %133 : vector<1xf32> to vector<1x1x1xf32>
    %135 = vector.extract %134[0, 0, 0] : f32 from vector<1x1x1xf32>
    %136 = vector.broadcast %135 : f32 to vector<1x1xf32>
    %c3 = arith.constant 3 : index
    %c0_69 = arith.constant 0 : index
    %c0_70 = arith.constant 0 : index
    %137 = vector.load %arg1[%c3, %c0_69, %c0_70] : memref<8x16x16xf32, #tpu.memory_space<vmem>>, vector<1x16x16xf32>
    %138 = vector.shape_cast %137 : vector<1x16x16xf32> to vector<16x16xf32>
    %c3_71 = arith.constant 3 : index
    %c0_72 = arith.constant 0 : index
    %c0_73 = arith.constant 0 : index
    %139 = vector.load %arg2[%c3_71, %c0_72, %c0_73] : memref<8x16x16xf32, #tpu.memory_space<vmem>>, vector<1x16x16xf32>
    %140 = vector.shape_cast %139 : vector<1x16x16xf32> to vector<16x16xf32>
    %cst_74 = arith.constant dense<0.000000e+00> : vector<16x16xf32>
    %141 = tpu.matmul %138, %1, %cst_74 {dimension_numbers = #tpu.dot_dimension_numbers<[1], [0], [0], [1], [0, 0, 1, 1], [], []>} : vector<16x16xf32>, vector<16x16xf32>, vector<16x16xf32> -> vector<16x16xf32>
    %cst_75 = arith.constant dense<0.000000e+00> : vector<16x16xf32>
    %142 = tpu.matmul %0, %141, %cst_75 {dimension_numbers = #tpu.dot_dimension_numbers<[1], [0], [0], [1], [0, 0, 1, 1], [], []>} : vector<16x16xf32>, vector<16x16xf32>, vector<16x16xf32> -> vector<16x16xf32>
    %cst_76 = arith.constant dense<0.000000e+00> : vector<16x16xf32>
    %143 = tpu.matmul %140, %1, %cst_76 {dimension_numbers = #tpu.dot_dimension_numbers<[1], [0], [0], [1], [0, 0, 1, 1], [], []>} : vector<16x16xf32>, vector<16x16xf32>, vector<16x16xf32> -> vector<16x16xf32>
    %cst_77 = arith.constant dense<0.000000e+00> : vector<16x16xf32>
    %144 = tpu.matmul %0, %143, %cst_77 {dimension_numbers = #tpu.dot_dimension_numbers<[1], [0], [0], [1], [0, 0, 1, 1], [], []>} : vector<16x16xf32>, vector<16x16xf32>, vector<16x16xf32> -> vector<16x16xf32>
    %145 = arith.mulf %142, %142 : vector<16x16xf32>
    %146 = arith.mulf %144, %144 : vector<16x16xf32>
    %147 = arith.mulf %142, %144 : vector<16x16xf32>
    %148 = arith.mulf %138, %138 : vector<16x16xf32>
    %cst_78 = arith.constant dense<0.000000e+00> : vector<16x16xf32>
    %149 = tpu.matmul %148, %1, %cst_78 {dimension_numbers = #tpu.dot_dimension_numbers<[1], [0], [0], [1], [0, 0, 1, 1], [], []>} : vector<16x16xf32>, vector<16x16xf32>, vector<16x16xf32> -> vector<16x16xf32>
    %cst_79 = arith.constant dense<0.000000e+00> : vector<16x16xf32>
    %150 = tpu.matmul %0, %149, %cst_79 {dimension_numbers = #tpu.dot_dimension_numbers<[1], [0], [0], [1], [0, 0, 1, 1], [], []>} : vector<16x16xf32>, vector<16x16xf32>, vector<16x16xf32> -> vector<16x16xf32>
    %151 = arith.subf %150, %145 : vector<16x16xf32>
    %152 = arith.mulf %140, %140 : vector<16x16xf32>
    %cst_80 = arith.constant dense<0.000000e+00> : vector<16x16xf32>
    %153 = tpu.matmul %152, %1, %cst_80 {dimension_numbers = #tpu.dot_dimension_numbers<[1], [0], [0], [1], [0, 0, 1, 1], [], []>} : vector<16x16xf32>, vector<16x16xf32>, vector<16x16xf32> -> vector<16x16xf32>
    %cst_81 = arith.constant dense<0.000000e+00> : vector<16x16xf32>
    %154 = tpu.matmul %0, %153, %cst_81 {dimension_numbers = #tpu.dot_dimension_numbers<[1], [0], [0], [1], [0, 0, 1, 1], [], []>} : vector<16x16xf32>, vector<16x16xf32>, vector<16x16xf32> -> vector<16x16xf32>
    %155 = arith.subf %154, %146 : vector<16x16xf32>
    %156 = arith.mulf %138, %140 : vector<16x16xf32>
    %cst_82 = arith.constant dense<0.000000e+00> : vector<16x16xf32>
    %157 = tpu.matmul %156, %1, %cst_82 {dimension_numbers = #tpu.dot_dimension_numbers<[1], [0], [0], [1], [0, 0, 1, 1], [], []>} : vector<16x16xf32>, vector<16x16xf32>, vector<16x16xf32> -> vector<16x16xf32>
    %cst_83 = arith.constant dense<0.000000e+00> : vector<16x16xf32>
    %158 = tpu.matmul %0, %157, %cst_83 {dimension_numbers = #tpu.dot_dimension_numbers<[1], [0], [0], [1], [0, 0, 1, 1], [], []>} : vector<16x16xf32>, vector<16x16xf32>, vector<16x16xf32> -> vector<16x16xf32>
    %159 = arith.subf %158, %147 : vector<16x16xf32>
    %cst_84 = arith.constant 2.000000e+00 : f32
    %160 = vector.broadcast %cst_84 : f32 to vector<16x16xf32>
    %161 = arith.mulf %160, %147 : vector<16x16xf32>
    %cst_85 = arith.constant 9.99999974E-5 : f32
    %162 = vector.broadcast %cst_85 : f32 to vector<16x16xf32>
    %163 = arith.addf %161, %162 : vector<16x16xf32>
    %cst_86 = arith.constant 2.000000e+00 : f32
    %164 = vector.broadcast %cst_86 : f32 to vector<16x16xf32>
    %165 = arith.mulf %164, %159 : vector<16x16xf32>
    %cst_87 = arith.constant 8.99999984E-4 : f32
    %166 = vector.broadcast %cst_87 : f32 to vector<16x16xf32>
    %167 = arith.addf %165, %166 : vector<16x16xf32>
    %168 = arith.mulf %163, %167 : vector<16x16xf32>
    %169 = arith.addf %145, %146 : vector<16x16xf32>
    %cst_88 = arith.constant 9.99999974E-5 : f32
    %170 = vector.broadcast %cst_88 : f32 to vector<16x16xf32>
    %171 = arith.addf %169, %170 : vector<16x16xf32>
    %172 = arith.addf %151, %155 : vector<16x16xf32>
    %cst_89 = arith.constant 8.99999984E-4 : f32
    %173 = vector.broadcast %cst_89 : f32 to vector<16x16xf32>
    %174 = arith.addf %172, %173 : vector<16x16xf32>
    %175 = arith.mulf %171, %174 : vector<16x16xf32>
    %176 = arith.divf %168, %175 : vector<16x16xf32>
    %177 = vector.shape_cast %176 : vector<16x16xf32> to vector<1x16x16xf32>
    %cst_90 = arith.constant dense<0.000000e+00> : vector<1xf32>
    %178 = vector.multi_reduction <add>, %177, %cst_90 [1, 2] : vector<1x16x16xf32> to vector<1xf32>
    %179 = vector.shape_cast %178 : vector<1xf32> to vector<1x1x1xf32>
    %180 = vector.extract %179[0, 0, 0] : f32 from vector<1x1x1xf32>
    %181 = vector.broadcast %180 : f32 to vector<1x1xf32>
    %c4 = arith.constant 4 : index
    %c0_91 = arith.constant 0 : index
    %c0_92 = arith.constant 0 : index
    %182 = vector.load %arg1[%c4, %c0_91, %c0_92] : memref<8x16x16xf32, #tpu.memory_space<vmem>>, vector<1x16x16xf32>
    %183 = vector.shape_cast %182 : vector<1x16x16xf32> to vector<16x16xf32>
    %c4_93 = arith.constant 4 : index
    %c0_94 = arith.constant 0 : index
    %c0_95 = arith.constant 0 : index
    %184 = vector.load %arg2[%c4_93, %c0_94, %c0_95] : memref<8x16x16xf32, #tpu.memory_space<vmem>>, vector<1x16x16xf32>
    %185 = vector.shape_cast %184 : vector<1x16x16xf32> to vector<16x16xf32>
    %cst_96 = arith.constant dense<0.000000e+00> : vector<16x16xf32>
    %186 = tpu.matmul %183, %1, %cst_96 {dimension_numbers = #tpu.dot_dimension_numbers<[1], [0], [0], [1], [0, 0, 1, 1], [], []>} : vector<16x16xf32>, vector<16x16xf32>, vector<16x16xf32> -> vector<16x16xf32>
    %cst_97 = arith.constant dense<0.000000e+00> : vector<16x16xf32>
    %187 = tpu.matmul %0, %186, %cst_97 {dimension_numbers = #tpu.dot_dimension_numbers<[1], [0], [0], [1], [0, 0, 1, 1], [], []>} : vector<16x16xf32>, vector<16x16xf32>, vector<16x16xf32> -> vector<16x16xf32>
    %cst_98 = arith.constant dense<0.000000e+00> : vector<16x16xf32>
    %188 = tpu.matmul %185, %1, %cst_98 {dimension_numbers = #tpu.dot_dimension_numbers<[1], [0], [0], [1], [0, 0, 1, 1], [], []>} : vector<16x16xf32>, vector<16x16xf32>, vector<16x16xf32> -> vector<16x16xf32>
    %cst_99 = arith.constant dense<0.000000e+00> : vector<16x16xf32>
    %189 = tpu.matmul %0, %188, %cst_99 {dimension_numbers = #tpu.dot_dimension_numbers<[1], [0], [0], [1], [0, 0, 1, 1], [], []>} : vector<16x16xf32>, vector<16x16xf32>, vector<16x16xf32> -> vector<16x16xf32>
    %190 = arith.mulf %187, %187 : vector<16x16xf32>
    %191 = arith.mulf %189, %189 : vector<16x16xf32>
    %192 = arith.mulf %187, %189 : vector<16x16xf32>
    %193 = arith.mulf %183, %183 : vector<16x16xf32>
    %cst_100 = arith.constant dense<0.000000e+00> : vector<16x16xf32>
    %194 = tpu.matmul %193, %1, %cst_100 {dimension_numbers = #tpu.dot_dimension_numbers<[1], [0], [0], [1], [0, 0, 1, 1], [], []>} : vector<16x16xf32>, vector<16x16xf32>, vector<16x16xf32> -> vector<16x16xf32>
    %cst_101 = arith.constant dense<0.000000e+00> : vector<16x16xf32>
    %195 = tpu.matmul %0, %194, %cst_101 {dimension_numbers = #tpu.dot_dimension_numbers<[1], [0], [0], [1], [0, 0, 1, 1], [], []>} : vector<16x16xf32>, vector<16x16xf32>, vector<16x16xf32> -> vector<16x16xf32>
    %196 = arith.subf %195, %190 : vector<16x16xf32>
    %197 = arith.mulf %185, %185 : vector<16x16xf32>
    %cst_102 = arith.constant dense<0.000000e+00> : vector<16x16xf32>
    %198 = tpu.matmul %197, %1, %cst_102 {dimension_numbers = #tpu.dot_dimension_numbers<[1], [0], [0], [1], [0, 0, 1, 1], [], []>} : vector<16x16xf32>, vector<16x16xf32>, vector<16x16xf32> -> vector<16x16xf32>
    %cst_103 = arith.constant dense<0.000000e+00> : vector<16x16xf32>
    %199 = tpu.matmul %0, %198, %cst_103 {dimension_numbers = #tpu.dot_dimension_numbers<[1], [0], [0], [1], [0, 0, 1, 1], [], []>} : vector<16x16xf32>, vector<16x16xf32>, vector<16x16xf32> -> vector<16x16xf32>
    %200 = arith.subf %199, %191 : vector<16x16xf32>
    %201 = arith.mulf %183, %185 : vector<16x16xf32>
    %cst_104 = arith.constant dense<0.000000e+00> : vector<16x16xf32>
    %202 = tpu.matmul %201, %1, %cst_104 {dimension_numbers = #tpu.dot_dimension_numbers<[1], [0], [0], [1], [0, 0, 1, 1], [], []>} : vector<16x16xf32>, vector<16x16xf32>, vector<16x16xf32> -> vector<16x16xf32>
    %cst_105 = arith.constant dense<0.000000e+00> : vector<16x16xf32>
    %203 = tpu.matmul %0, %202, %cst_105 {dimension_numbers = #tpu.dot_dimension_numbers<[1], [0], [0], [1], [0, 0, 1, 1], [], []>} : vector<16x16xf32>, vector<16x16xf32>, vector<16x16xf32> -> vector<16x16xf32>
    %204 = arith.subf %203, %192 : vector<16x16xf32>
    %cst_106 = arith.constant 2.000000e+00 : f32
    %205 = vector.broadcast %cst_106 : f32 to vector<16x16xf32>
    %206 = arith.mulf %205, %192 : vector<16x16xf32>
    %cst_107 = arith.constant 9.99999974E-5 : f32
    %207 = vector.broadcast %cst_107 : f32 to vector<16x16xf32>
    %208 = arith.addf %206, %207 : vector<16x16xf32>
    %cst_108 = arith.constant 2.000000e+00 : f32
    %209 = vector.broadcast %cst_108 : f32 to vector<16x16xf32>
    %210 = arith.mulf %209, %204 : vector<16x16xf32>
    %cst_109 = arith.constant 8.99999984E-4 : f32
    %211 = vector.broadcast %cst_109 : f32 to vector<16x16xf32>
    %212 = arith.addf %210, %211 : vector<16x16xf32>
    %213 = arith.mulf %208, %212 : vector<16x16xf32>
    %214 = arith.addf %190, %191 : vector<16x16xf32>
    %cst_110 = arith.constant 9.99999974E-5 : f32
    %215 = vector.broadcast %cst_110 : f32 to vector<16x16xf32>
    %216 = arith.addf %214, %215 : vector<16x16xf32>
    %217 = arith.addf %196, %200 : vector<16x16xf32>
    %cst_111 = arith.constant 8.99999984E-4 : f32
    %218 = vector.broadcast %cst_111 : f32 to vector<16x16xf32>
    %219 = arith.addf %217, %218 : vector<16x16xf32>
    %220 = arith.mulf %216, %219 : vector<16x16xf32>
    %221 = arith.divf %213, %220 : vector<16x16xf32>
    %222 = vector.shape_cast %221 : vector<16x16xf32> to vector<1x16x16xf32>
    %cst_112 = arith.constant dense<0.000000e+00> : vector<1xf32>
    %223 = vector.multi_reduction <add>, %222, %cst_112 [1, 2] : vector<1x16x16xf32> to vector<1xf32>
    %224 = vector.shape_cast %223 : vector<1xf32> to vector<1x1x1xf32>
    %225 = vector.extract %224[0, 0, 0] : f32 from vector<1x1x1xf32>
    %226 = vector.broadcast %225 : f32 to vector<1x1xf32>
    %c5 = arith.constant 5 : index
    %c0_113 = arith.constant 0 : index
    %c0_114 = arith.constant 0 : index
    %227 = vector.load %arg1[%c5, %c0_113, %c0_114] : memref<8x16x16xf32, #tpu.memory_space<vmem>>, vector<1x16x16xf32>
    %228 = vector.shape_cast %227 : vector<1x16x16xf32> to vector<16x16xf32>
    %c5_115 = arith.constant 5 : index
    %c0_116 = arith.constant 0 : index
    %c0_117 = arith.constant 0 : index
    %229 = vector.load %arg2[%c5_115, %c0_116, %c0_117] : memref<8x16x16xf32, #tpu.memory_space<vmem>>, vector<1x16x16xf32>
    %230 = vector.shape_cast %229 : vector<1x16x16xf32> to vector<16x16xf32>
    %cst_118 = arith.constant dense<0.000000e+00> : vector<16x16xf32>
    %231 = tpu.matmul %228, %1, %cst_118 {dimension_numbers = #tpu.dot_dimension_numbers<[1], [0], [0], [1], [0, 0, 1, 1], [], []>} : vector<16x16xf32>, vector<16x16xf32>, vector<16x16xf32> -> vector<16x16xf32>
    %cst_119 = arith.constant dense<0.000000e+00> : vector<16x16xf32>
    %232 = tpu.matmul %0, %231, %cst_119 {dimension_numbers = #tpu.dot_dimension_numbers<[1], [0], [0], [1], [0, 0, 1, 1], [], []>} : vector<16x16xf32>, vector<16x16xf32>, vector<16x16xf32> -> vector<16x16xf32>
    %cst_120 = arith.constant dense<0.000000e+00> : vector<16x16xf32>
    %233 = tpu.matmul %230, %1, %cst_120 {dimension_numbers = #tpu.dot_dimension_numbers<[1], [0], [0], [1], [0, 0, 1, 1], [], []>} : vector<16x16xf32>, vector<16x16xf32>, vector<16x16xf32> -> vector<16x16xf32>
    %cst_121 = arith.constant dense<0.000000e+00> : vector<16x16xf32>
    %234 = tpu.matmul %0, %233, %cst_121 {dimension_numbers = #tpu.dot_dimension_numbers<[1], [0], [0], [1], [0, 0, 1, 1], [], []>} : vector<16x16xf32>, vector<16x16xf32>, vector<16x16xf32> -> vector<16x16xf32>
    %235 = arith.mulf %232, %232 : vector<16x16xf32>
    %236 = arith.mulf %234, %234 : vector<16x16xf32>
    %237 = arith.mulf %232, %234 : vector<16x16xf32>
    %238 = arith.mulf %228, %228 : vector<16x16xf32>
    %cst_122 = arith.constant dense<0.000000e+00> : vector<16x16xf32>
    %239 = tpu.matmul %238, %1, %cst_122 {dimension_numbers = #tpu.dot_dimension_numbers<[1], [0], [0], [1], [0, 0, 1, 1], [], []>} : vector<16x16xf32>, vector<16x16xf32>, vector<16x16xf32> -> vector<16x16xf32>
    %cst_123 = arith.constant dense<0.000000e+00> : vector<16x16xf32>
    %240 = tpu.matmul %0, %239, %cst_123 {dimension_numbers = #tpu.dot_dimension_numbers<[1], [0], [0], [1], [0, 0, 1, 1], [], []>} : vector<16x16xf32>, vector<16x16xf32>, vector<16x16xf32> -> vector<16x16xf32>
    %241 = arith.subf %240, %235 : vector<16x16xf32>
    %242 = arith.mulf %230, %230 : vector<16x16xf32>
    %cst_124 = arith.constant dense<0.000000e+00> : vector<16x16xf32>
    %243 = tpu.matmul %242, %1, %cst_124 {dimension_numbers = #tpu.dot_dimension_numbers<[1], [0], [0], [1], [0, 0, 1, 1], [], []>} : vector<16x16xf32>, vector<16x16xf32>, vector<16x16xf32> -> vector<16x16xf32>
    %cst_125 = arith.constant dense<0.000000e+00> : vector<16x16xf32>
    %244 = tpu.matmul %0, %243, %cst_125 {dimension_numbers = #tpu.dot_dimension_numbers<[1], [0], [0], [1], [0, 0, 1, 1], [], []>} : vector<16x16xf32>, vector<16x16xf32>, vector<16x16xf32> -> vector<16x16xf32>
    %245 = arith.subf %244, %236 : vector<16x16xf32>
    %246 = arith.mulf %228, %230 : vector<16x16xf32>
    %cst_126 = arith.constant dense<0.000000e+00> : vector<16x16xf32>
    %247 = tpu.matmul %246, %1, %cst_126 {dimension_numbers = #tpu.dot_dimension_numbers<[1], [0], [0], [1], [0, 0, 1, 1], [], []>} : vector<16x16xf32>, vector<16x16xf32>, vector<16x16xf32> -> vector<16x16xf32>
    %cst_127 = arith.constant dense<0.000000e+00> : vector<16x16xf32>
    %248 = tpu.matmul %0, %247, %cst_127 {dimension_numbers = #tpu.dot_dimension_numbers<[1], [0], [0], [1], [0, 0, 1, 1], [], []>} : vector<16x16xf32>, vector<16x16xf32>, vector<16x16xf32> -> vector<16x16xf32>
    %249 = arith.subf %248, %237 : vector<16x16xf32>
    %cst_128 = arith.constant 2.000000e+00 : f32
    %250 = vector.broadcast %cst_128 : f32 to vector<16x16xf32>
    %251 = arith.mulf %250, %237 : vector<16x16xf32>
    %cst_129 = arith.constant 9.99999974E-5 : f32
    %252 = vector.broadcast %cst_129 : f32 to vector<16x16xf32>
    %253 = arith.addf %251, %252 : vector<16x16xf32>
    %cst_130 = arith.constant 2.000000e+00 : f32
    %254 = vector.broadcast %cst_130 : f32 to vector<16x16xf32>
    %255 = arith.mulf %254, %249 : vector<16x16xf32>
    %cst_131 = arith.constant 8.99999984E-4 : f32
    %256 = vector.broadcast %cst_131 : f32 to vector<16x16xf32>
    %257 = arith.addf %255, %256 : vector<16x16xf32>
    %258 = arith.mulf %253, %257 : vector<16x16xf32>
    %259 = arith.addf %235, %236 : vector<16x16xf32>
    %cst_132 = arith.constant 9.99999974E-5 : f32
    %260 = vector.broadcast %cst_132 : f32 to vector<16x16xf32>
    %261 = arith.addf %259, %260 : vector<16x16xf32>
    %262 = arith.addf %241, %245 : vector<16x16xf32>
    %cst_133 = arith.constant 8.99999984E-4 : f32
    %263 = vector.broadcast %cst_133 : f32 to vector<16x16xf32>
    %264 = arith.addf %262, %263 : vector<16x16xf32>
    %265 = arith.mulf %261, %264 : vector<16x16xf32>
    %266 = arith.divf %258, %265 : vector<16x16xf32>
    %267 = vector.shape_cast %266 : vector<16x16xf32> to vector<1x16x16xf32>
    %cst_134 = arith.constant dense<0.000000e+00> : vector<1xf32>
    %268 = vector.multi_reduction <add>, %267, %cst_134 [1, 2] : vector<1x16x16xf32> to vector<1xf32>
    %269 = vector.shape_cast %268 : vector<1xf32> to vector<1x1x1xf32>
    %270 = vector.extract %269[0, 0, 0] : f32 from vector<1x1x1xf32>
    %271 = vector.broadcast %270 : f32 to vector<1x1xf32>
    %c6 = arith.constant 6 : index
    %c0_135 = arith.constant 0 : index
    %c0_136 = arith.constant 0 : index
    %272 = vector.load %arg1[%c6, %c0_135, %c0_136] : memref<8x16x16xf32, #tpu.memory_space<vmem>>, vector<1x16x16xf32>
    %273 = vector.shape_cast %272 : vector<1x16x16xf32> to vector<16x16xf32>
    %c6_137 = arith.constant 6 : index
    %c0_138 = arith.constant 0 : index
    %c0_139 = arith.constant 0 : index
    %274 = vector.load %arg2[%c6_137, %c0_138, %c0_139] : memref<8x16x16xf32, #tpu.memory_space<vmem>>, vector<1x16x16xf32>
    %275 = vector.shape_cast %274 : vector<1x16x16xf32> to vector<16x16xf32>
    %cst_140 = arith.constant dense<0.000000e+00> : vector<16x16xf32>
    %276 = tpu.matmul %273, %1, %cst_140 {dimension_numbers = #tpu.dot_dimension_numbers<[1], [0], [0], [1], [0, 0, 1, 1], [], []>} : vector<16x16xf32>, vector<16x16xf32>, vector<16x16xf32> -> vector<16x16xf32>
    %cst_141 = arith.constant dense<0.000000e+00> : vector<16x16xf32>
    %277 = tpu.matmul %0, %276, %cst_141 {dimension_numbers = #tpu.dot_dimension_numbers<[1], [0], [0], [1], [0, 0, 1, 1], [], []>} : vector<16x16xf32>, vector<16x16xf32>, vector<16x16xf32> -> vector<16x16xf32>
    %cst_142 = arith.constant dense<0.000000e+00> : vector<16x16xf32>
    %278 = tpu.matmul %275, %1, %cst_142 {dimension_numbers = #tpu.dot_dimension_numbers<[1], [0], [0], [1], [0, 0, 1, 1], [], []>} : vector<16x16xf32>, vector<16x16xf32>, vector<16x16xf32> -> vector<16x16xf32>
    %cst_143 = arith.constant dense<0.000000e+00> : vector<16x16xf32>
    %279 = tpu.matmul %0, %278, %cst_143 {dimension_numbers = #tpu.dot_dimension_numbers<[1], [0], [0], [1], [0, 0, 1, 1], [], []>} : vector<16x16xf32>, vector<16x16xf32>, vector<16x16xf32> -> vector<16x16xf32>
    %280 = arith.mulf %277, %277 : vector<16x16xf32>
    %281 = arith.mulf %279, %279 : vector<16x16xf32>
    %282 = arith.mulf %277, %279 : vector<16x16xf32>
    %283 = arith.mulf %273, %273 : vector<16x16xf32>
    %cst_144 = arith.constant dense<0.000000e+00> : vector<16x16xf32>
    %284 = tpu.matmul %283, %1, %cst_144 {dimension_numbers = #tpu.dot_dimension_numbers<[1], [0], [0], [1], [0, 0, 1, 1], [], []>} : vector<16x16xf32>, vector<16x16xf32>, vector<16x16xf32> -> vector<16x16xf32>
    %cst_145 = arith.constant dense<0.000000e+00> : vector<16x16xf32>
    %285 = tpu.matmul %0, %284, %cst_145 {dimension_numbers = #tpu.dot_dimension_numbers<[1], [0], [0], [1], [0, 0, 1, 1], [], []>} : vector<16x16xf32>, vector<16x16xf32>, vector<16x16xf32> -> vector<16x16xf32>
    %286 = arith.subf %285, %280 : vector<16x16xf32>
    %287 = arith.mulf %275, %275 : vector<16x16xf32>
    %cst_146 = arith.constant dense<0.000000e+00> : vector<16x16xf32>
    %288 = tpu.matmul %287, %1, %cst_146 {dimension_numbers = #tpu.dot_dimension_numbers<[1], [0], [0], [1], [0, 0, 1, 1], [], []>} : vector<16x16xf32>, vector<16x16xf32>, vector<16x16xf32> -> vector<16x16xf32>
    %cst_147 = arith.constant dense<0.000000e+00> : vector<16x16xf32>
    %289 = tpu.matmul %0, %288, %cst_147 {dimension_numbers = #tpu.dot_dimension_numbers<[1], [0], [0], [1], [0, 0, 1, 1], [], []>} : vector<16x16xf32>, vector<16x16xf32>, vector<16x16xf32> -> vector<16x16xf32>
    %290 = arith.subf %289, %281 : vector<16x16xf32>
    %291 = arith.mulf %273, %275 : vector<16x16xf32>
    %cst_148 = arith.constant dense<0.000000e+00> : vector<16x16xf32>
    %292 = tpu.matmul %291, %1, %cst_148 {dimension_numbers = #tpu.dot_dimension_numbers<[1], [0], [0], [1], [0, 0, 1, 1], [], []>} : vector<16x16xf32>, vector<16x16xf32>, vector<16x16xf32> -> vector<16x16xf32>
    %cst_149 = arith.constant dense<0.000000e+00> : vector<16x16xf32>
    %293 = tpu.matmul %0, %292, %cst_149 {dimension_numbers = #tpu.dot_dimension_numbers<[1], [0], [0], [1], [0, 0, 1, 1], [], []>} : vector<16x16xf32>, vector<16x16xf32>, vector<16x16xf32> -> vector<16x16xf32>
    %294 = arith.subf %293, %282 : vector<16x16xf32>
    %cst_150 = arith.constant 2.000000e+00 : f32
    %295 = vector.broadcast %cst_150 : f32 to vector<16x16xf32>
    %296 = arith.mulf %295, %282 : vector<16x16xf32>
    %cst_151 = arith.constant 9.99999974E-5 : f32
    %297 = vector.broadcast %cst_151 : f32 to vector<16x16xf32>
    %298 = arith.addf %296, %297 : vector<16x16xf32>
    %cst_152 = arith.constant 2.000000e+00 : f32
    %299 = vector.broadcast %cst_152 : f32 to vector<16x16xf32>
    %300 = arith.mulf %299, %294 : vector<16x16xf32>
    %cst_153 = arith.constant 8.99999984E-4 : f32
    %301 = vector.broadcast %cst_153 : f32 to vector<16x16xf32>
    %302 = arith.addf %300, %301 : vector<16x16xf32>
    %303 = arith.mulf %298, %302 : vector<16x16xf32>
    %304 = arith.addf %280, %281 : vector<16x16xf32>
    %cst_154 = arith.constant 9.99999974E-5 : f32
    %305 = vector.broadcast %cst_154 : f32 to vector<16x16xf32>
    %306 = arith.addf %304, %305 : vector<16x16xf32>
    %307 = arith.addf %286, %290 : vector<16x16xf32>
    %cst_155 = arith.constant 8.99999984E-4 : f32
    %308 = vector.broadcast %cst_155 : f32 to vector<16x16xf32>
    %309 = arith.addf %307, %308 : vector<16x16xf32>
    %310 = arith.mulf %306, %309 : vector<16x16xf32>
    %311 = arith.divf %303, %310 : vector<16x16xf32>
    %312 = vector.shape_cast %311 : vector<16x16xf32> to vector<1x16x16xf32>
    %cst_156 = arith.constant dense<0.000000e+00> : vector<1xf32>
    %313 = vector.multi_reduction <add>, %312, %cst_156 [1, 2] : vector<1x16x16xf32> to vector<1xf32>
    %314 = vector.shape_cast %313 : vector<1xf32> to vector<1x1x1xf32>
    %315 = vector.extract %314[0, 0, 0] : f32 from vector<1x1x1xf32>
    %316 = vector.broadcast %315 : f32 to vector<1x1xf32>
    %c7 = arith.constant 7 : index
    %c0_157 = arith.constant 0 : index
    %c0_158 = arith.constant 0 : index
    %317 = vector.load %arg1[%c7, %c0_157, %c0_158] : memref<8x16x16xf32, #tpu.memory_space<vmem>>, vector<1x16x16xf32>
    %318 = vector.shape_cast %317 : vector<1x16x16xf32> to vector<16x16xf32>
    %c7_159 = arith.constant 7 : index
    %c0_160 = arith.constant 0 : index
    %c0_161 = arith.constant 0 : index
    %319 = vector.load %arg2[%c7_159, %c0_160, %c0_161] : memref<8x16x16xf32, #tpu.memory_space<vmem>>, vector<1x16x16xf32>
    %320 = vector.shape_cast %319 : vector<1x16x16xf32> to vector<16x16xf32>
    %cst_162 = arith.constant dense<0.000000e+00> : vector<16x16xf32>
    %321 = tpu.matmul %318, %1, %cst_162 {dimension_numbers = #tpu.dot_dimension_numbers<[1], [0], [0], [1], [0, 0, 1, 1], [], []>} : vector<16x16xf32>, vector<16x16xf32>, vector<16x16xf32> -> vector<16x16xf32>
    %cst_163 = arith.constant dense<0.000000e+00> : vector<16x16xf32>
    %322 = tpu.matmul %0, %321, %cst_163 {dimension_numbers = #tpu.dot_dimension_numbers<[1], [0], [0], [1], [0, 0, 1, 1], [], []>} : vector<16x16xf32>, vector<16x16xf32>, vector<16x16xf32> -> vector<16x16xf32>
    %cst_164 = arith.constant dense<0.000000e+00> : vector<16x16xf32>
    %323 = tpu.matmul %320, %1, %cst_164 {dimension_numbers = #tpu.dot_dimension_numbers<[1], [0], [0], [1], [0, 0, 1, 1], [], []>} : vector<16x16xf32>, vector<16x16xf32>, vector<16x16xf32> -> vector<16x16xf32>
    %cst_165 = arith.constant dense<0.000000e+00> : vector<16x16xf32>
    %324 = tpu.matmul %0, %323, %cst_165 {dimension_numbers = #tpu.dot_dimension_numbers<[1], [0], [0], [1], [0, 0, 1, 1], [], []>} : vector<16x16xf32>, vector<16x16xf32>, vector<16x16xf32> -> vector<16x16xf32>
    %325 = arith.mulf %322, %322 : vector<16x16xf32>
    %326 = arith.mulf %324, %324 : vector<16x16xf32>
    %327 = arith.mulf %322, %324 : vector<16x16xf32>
    %328 = arith.mulf %318, %318 : vector<16x16xf32>
    %cst_166 = arith.constant dense<0.000000e+00> : vector<16x16xf32>
    %329 = tpu.matmul %328, %1, %cst_166 {dimension_numbers = #tpu.dot_dimension_numbers<[1], [0], [0], [1], [0, 0, 1, 1], [], []>} : vector<16x16xf32>, vector<16x16xf32>, vector<16x16xf32> -> vector<16x16xf32>
    %cst_167 = arith.constant dense<0.000000e+00> : vector<16x16xf32>
    %330 = tpu.matmul %0, %329, %cst_167 {dimension_numbers = #tpu.dot_dimension_numbers<[1], [0], [0], [1], [0, 0, 1, 1], [], []>} : vector<16x16xf32>, vector<16x16xf32>, vector<16x16xf32> -> vector<16x16xf32>
    %331 = arith.subf %330, %325 : vector<16x16xf32>
    %332 = arith.mulf %320, %320 : vector<16x16xf32>
    %cst_168 = arith.constant dense<0.000000e+00> : vector<16x16xf32>
    %333 = tpu.matmul %332, %1, %cst_168 {dimension_numbers = #tpu.dot_dimension_numbers<[1], [0], [0], [1], [0, 0, 1, 1], [], []>} : vector<16x16xf32>, vector<16x16xf32>, vector<16x16xf32> -> vector<16x16xf32>
    %cst_169 = arith.constant dense<0.000000e+00> : vector<16x16xf32>
    %334 = tpu.matmul %0, %333, %cst_169 {dimension_numbers = #tpu.dot_dimension_numbers<[1], [0], [0], [1], [0, 0, 1, 1], [], []>} : vector<16x16xf32>, vector<16x16xf32>, vector<16x16xf32> -> vector<16x16xf32>
    %335 = arith.subf %334, %326 : vector<16x16xf32>
    %336 = arith.mulf %318, %320 : vector<16x16xf32>
    %cst_170 = arith.constant dense<0.000000e+00> : vector<16x16xf32>
    %337 = tpu.matmul %336, %1, %cst_170 {dimension_numbers = #tpu.dot_dimension_numbers<[1], [0], [0], [1], [0, 0, 1, 1], [], []>} : vector<16x16xf32>, vector<16x16xf32>, vector<16x16xf32> -> vector<16x16xf32>
    %cst_171 = arith.constant dense<0.000000e+00> : vector<16x16xf32>
    %338 = tpu.matmul %0, %337, %cst_171 {dimension_numbers = #tpu.dot_dimension_numbers<[1], [0], [0], [1], [0, 0, 1, 1], [], []>} : vector<16x16xf32>, vector<16x16xf32>, vector<16x16xf32> -> vector<16x16xf32>
    %339 = arith.subf %338, %327 : vector<16x16xf32>
    %cst_172 = arith.constant 2.000000e+00 : f32
    %340 = vector.broadcast %cst_172 : f32 to vector<16x16xf32>
    %341 = arith.mulf %340, %327 : vector<16x16xf32>
    %cst_173 = arith.constant 9.99999974E-5 : f32
    %342 = vector.broadcast %cst_173 : f32 to vector<16x16xf32>
    %343 = arith.addf %341, %342 : vector<16x16xf32>
    %cst_174 = arith.constant 2.000000e+00 : f32
    %344 = vector.broadcast %cst_174 : f32 to vector<16x16xf32>
    %345 = arith.mulf %344, %339 : vector<16x16xf32>
    %cst_175 = arith.constant 8.99999984E-4 : f32
    %346 = vector.broadcast %cst_175 : f32 to vector<16x16xf32>
    %347 = arith.addf %345, %346 : vector<16x16xf32>
    %348 = arith.mulf %343, %347 : vector<16x16xf32>
    %349 = arith.addf %325, %326 : vector<16x16xf32>
    %cst_176 = arith.constant 9.99999974E-5 : f32
    %350 = vector.broadcast %cst_176 : f32 to vector<16x16xf32>
    %351 = arith.addf %349, %350 : vector<16x16xf32>
    %352 = arith.addf %331, %335 : vector<16x16xf32>
    %cst_177 = arith.constant 8.99999984E-4 : f32
    %353 = vector.broadcast %cst_177 : f32 to vector<16x16xf32>
    %354 = arith.addf %352, %353 : vector<16x16xf32>
    %355 = arith.mulf %351, %354 : vector<16x16xf32>
    %356 = arith.divf %348, %355 : vector<16x16xf32>
    %357 = vector.shape_cast %356 : vector<16x16xf32> to vector<1x16x16xf32>
    %cst_178 = arith.constant dense<0.000000e+00> : vector<1xf32>
    %358 = vector.multi_reduction <add>, %357, %cst_178 [1, 2] : vector<1x16x16xf32> to vector<1xf32>
    %359 = vector.shape_cast %358 : vector<1xf32> to vector<1x1x1xf32>
    %360 = vector.extract %359[0, 0, 0] : f32 from vector<1x1x1xf32>
    %361 = vector.broadcast %360 : f32 to vector<1x1xf32>
    %362 = tpu.concatenate %46, %91, %136, %181, %226, %271, %316, %361 in 1 : vector<1x1xf32>, vector<1x1xf32>, vector<1x1xf32>, vector<1x1xf32>, vector<1x1xf32>, vector<1x1xf32>, vector<1x1xf32>, vector<1x1xf32> -> vector<1x8xf32>
    %363 = vector.shape_cast %362 : vector<1x8xf32> to vector<1x1x8xf32>
    %c0_179 = arith.constant 0 : index
    %c0_180 = arith.constant 0 : index
    %c0_181 = arith.constant 0 : index
    %364 = vector.load %arg5[%c0_179, %c0_180, %c0_181] : memref<1x1x8xf32, #tpu.memory_space<vmem>>, vector<1x1x8xf32>
    tpu.vector_store %arg5[%c0_179, %c0_180, %c0_181], %363 {strides = array<i32>} : memref<1x1x8xf32, #tpu.memory_space<vmem>>, vector<1x1x8xf32>,
    return
  }
  func.func @transform_0(%arg0: i32) -> (i32, i32, i32) {
    %c0_i32 = arith.constant 0 : i32
    %c0_i32_0 = arith.constant 0 : i32
    %c0_i32_1 = arith.constant 0 : i32
    return %arg0, %c0_i32, %c0_i32_0 : i32, i32, i32
  }
  func.func @transform_1(%arg0: i32) -> (i32, i32, i32) {
    %c0_i32 = arith.constant 0 : i32
    %c0_i32_0 = arith.constant 0 : i32
    %c0_i32_1 = arith.constant 0 : i32
    return %arg0, %c0_i32, %c0_i32_0 : i32, i32, i32
  }
  func.func @transform_2(%arg0: i32) -> (i32, i32) {
    %c0_i32 = arith.constant 0 : i32
    %c0_i32_0 = arith.constant 0 : i32
    %c0_i32_1 = arith.constant 0 : i32
    return %c0_i32, %c0_i32_0 : i32, i32
  }
  func.func @transform_3(%arg0: i32) -> (i32, i32) {
    %c0_i32 = arith.constant 0 : i32
    %c0_i32_0 = arith.constant 0 : i32
    %c0_i32_1 = arith.constant 0 : i32
    return %c0_i32, %c0_i32_0 : i32, i32
  }
  func.func @transform_4(%arg0: i32) -> (i32, i32, i32) {
    %c0_i32 = arith.constant 0 : i32
    %c0_i32_0 = arith.constant 0 : i32
    %c0_i32_1 = arith.constant 0 : i32
    return %arg0, %c0_i32, %c0_i32_0 : i32, i32, i32
  }
}

</mosaic_0001>

<llo_original>
// kernel: tpu_custom_call.1
$region0: #{tpu_custom_call.1}
  #allocation0 [shape = 'u32[]', space=smem, size = 0x4, offset = 0x4, fixed_abs, tag = 'smem constant byte address 0x4 - core index']
  #allocation1 [shape = 'u32[144,128]{1,0:T(1,128)}', space=vmem, size = 0x12000, scoped, tag = 'internal scratch']
  %s0 = inlined_call_operand.hbm [shape: f32[8,16,16], index: 0, kind: input, shape index: {}]
  %s1 = inlined_call_operand.hbm [shape: f32[8,16,16], index: 1, kind: input, shape index: {}]
  %s2 = inlined_call_operand.hbm [shape: f32[16,16], index: 2, kind: input, shape index: {}]
  %s3 = inlined_call_operand.hbm [shape: f32[16,16], index: 3, kind: input, shape index: {}]
  %s4 = inlined_call_operand.hbm [shape: f32[1,1,8], index: 4, kind: output, shape index: {}]
  %s5 = sld [smem:[#allocation0]]
  $region42: #{tpu_custom_call.1} parent=0
    _
  %s7 = ssub.s32 1, %s5
  %s8 = scalar_select 0, %s7, %s5
  $region1: #{tpu_custom_call.1} parent=0
    #allocation2 [shape = 'u8[65536]{0}', space=vmem, size = 0x10000, scoped, tag = 'input window, operand 0, single buffered']
    #allocation3 [shape = 's32[1]{0}', space=sflag, size = 0x4, scoped, tag = 'scoped memory for tpu_custom_call.1']
    #allocation4 [shape = 's32[1]{0}', space=sflag, size = 0x4, scoped, tag = 'scoped memory for tpu_custom_call.1']
    #allocation5 [shape = 'u8[65536]{0}', space=vmem, size = 0x10000, scoped, tag = 'input window, operand 1, single buffered']
    #allocation6 [shape = 's32[1]{0}', space=sflag, size = 0x4, scoped, tag = 'scoped memory for tpu_custom_call.1']
    #allocation7 [shape = 'u8[8192]{0}', space=vmem, size = 0x2000, scoped, tag = 'input window, operand 2, single buffered']
    #allocation8 [shape = 'u8[8192]{0}', space=vmem, size = 0x2000, scoped, tag = 'input window, operand 3, single buffered']
    #allocation9 [shape = 's32[1]{0}', space=sflag, size = 0x4, scoped, tag = 'scoped memory for tpu_custom_call.1']
    #allocation10 [shape = 'u8[512]{0}', space=vmem, size = 0x400, scoped, tag = 'output window, operand 0, single buffered']
    %9 = vsyncpa [#allocation3], 0
    %10 = vsyncpa [#allocation6], 0
    %11 = vsyncpa [#allocation9], 0
    %12 = vsyncpa [#allocation4], 0
    // Predicated region
    $region2: #{tpu_custom_call.1} parent=1 // pred_check
      _
    $region3: #{tpu_custom_call.1} parent=1 // pred_check_branch
      %14 = sbr.rel (0) target = $region5
    $region4: #{tpu_custom_call.1} parent=1 // pred_region
      %s16 = ssub.s32 2048, 2048
      %17 = vsyncadd [#allocation3], %s16
      %s18 = sshll.u32 [#allocation2], 4
      %s19 = int_to_ptr.vmem [resolvable:$true] %s18
      %24 = dma.hbm_to_vmem [thread:$0]  %s0, 2048, %s19, [#allocation3], 128, 128, 8
    $region5: #{tpu_custom_call.1} parent=1 // pred_fallthru
      _
    // Predicated region
    $region6: #{tpu_custom_call.1} parent=1 // pred_check
      _
    $region7: #{tpu_custom_call.1} parent=1 // pred_check_branch
      %26 = sbr.rel (0) target = $region9
    $region8: #{tpu_custom_call.1} parent=1 // pred_region
      %s28 = ssub.s32 2048, 2048
      %29 = vsyncadd [#allocation6], %s28
      %s30 = sshll.u32 [#allocation5], 4
      %s31 = int_to_ptr.vmem [resolvable:$true] %s30
      %36 = dma.hbm_to_vmem [thread:$0]  %s1, 2048, %s31, [#allocation6], 128, 128, 8
    $region9: #{tpu_custom_call.1} parent=1 // pred_fallthru
      _
    // Predicated region
    $region10: #{tpu_custom_call.1} parent=1 // pred_check
      _
    $region11: #{tpu_custom_call.1} parent=1 // pred_check_branch
      %38 = sbr.rel (0) target = $region13
    $region12: #{tpu_custom_call.1} parent=1 // pred_region
      %s40 = ssub.s32 256, 256
      %41 = vsyncadd [#allocation6], %s40
      %s42 = sshll.u32 [#allocation7], 4
      %s43 = int_to_ptr.vmem [resolvable:$true] %s42
      %48 = dma.hbm_to_vmem [thread:$0]  %s2, 256, %s43, [#allocation6], 128, 128, 8
    $region13: #{tpu_custom_call.1} parent=1 // pred_fallthru
      _
    // Predicated region
    $region14: #{tpu_custom_call.1} parent=1 // pred_check
      _
    $region15: #{tpu_custom_call.1} parent=1 // pred_check_branch
      %50 = sbr.rel (0) target = $region17
    $region16: #{tpu_custom_call.1} parent=1 // pred_region
      %s52 = ssub.s32 256, 256
      %53 = vsyncadd [#allocation9], %s52
      %s54 = sshll.u32 [#allocation8], 4
      %s55 = int_to_ptr.vmem [resolvable:$true] %s54
      %60 = dma.hbm_to_vmem [thread:$0]  %s3, 256, %s55, [#allocation9], 128, 128, 8
    $region17: #{tpu_custom_call.1} parent=1 // pred_fallthru
      _
    // Predicated region
    $region18: #{tpu_custom_call.1} parent=1 // pred_check
      _
    $region19: #{tpu_custom_call.1} parent=1 // pred_check_branch
      %62 = sbr.rel (0) target = $region21
    $region20: #{tpu_custom_call.1} parent=1 // pred_region
      %63 = dma.done [#allocation3], 2048
    $region21: #{tpu_custom_call.1} parent=1 // pred_fallthru
      _
    // Predicated region
    $region22: #{tpu_custom_call.1} parent=1 // pred_check
      _
    $region23: #{tpu_custom_call.1} parent=1 // pred_check_branch
      %65 = sbr.rel (0) target = $region25
    $region24: #{tpu_custom_call.1} parent=1 // pred_region
      %66 = dma.done [#allocation6], 2048
    $region25: #{tpu_custom_call.1} parent=1 // pred_fallthru
      _
    // Predicated region
    $region26: #{tpu_custom_call.1} parent=1 // pred_check
      _
    $region27: #{tpu_custom_call.1} parent=1 // pred_check_branch
      %68 = sbr.rel (0) target = $region29
    $region28: #{tpu_custom_call.1} parent=1 // pred_region
      %69 = dma.done [#allocation6], 256
    $region29: #{tpu_custom_call.1} parent=1 // pred_fallthru
      _
    // Predicated region
    $region30: #{tpu_custom_call.1} parent=1 // pred_check
      _
    $region31: #{tpu_custom_call.1} parent=1 // pred_check_branch
      %71 = sbr.rel (0) target = $region33
    $region32: #{tpu_custom_call.1} parent=1 // pred_region
      %72 = dma.done [#allocation9], 256
    $region33: #{tpu_custom_call.1} parent=1 // pred_fallthru
      _
    %v73 = vld [vmem:[#allocation7] sm:$0xff]
    %v74 = vld [vmem:[#allocation7 + $0x8] sm:$0xff]
    %v75 = vld [vmem:[#allocation8] sm:$0xff]
    %v76 = vld [vmem:[#allocation8 + $0x8] sm:$0xff]
    %v77 = vld [vmem:[#allocation2] sm:$0xff]
    %v78 = vld [vmem:[#allocation2 + $0x8] sm:$0xff]
    %v79 = vld [vmem:[#allocation5] sm:$0xff]
    %v80 = vld [vmem:[#allocation5 + $0x8] sm:$0xff]
    %vm81 = vcmask 130048
    %v83 = vsel %vm81, %v77, 0
    %v86 = vsel %vm81, %v78, 0
    %88 = vmatprep.subr.mxu0 0.0
    %89 = vmatpush1.msra.mxu0 0.0
    %90 = vmatprep.subr.mxu0 0.0
    %91 = vmatpush1.msra.mxu0 0.0
    %92 = vmatprep.subr.mxu0 0.0
    %93 = vmatpush1.msra.mxu0 0.0
    %94 = vmatprep.subr.mxu0 0.0
    %95 = vmatpush1.msra.mxu0 0.0
    %96 = vmatprep.subr.mxu0 0.0
    %97 = vmatpush1.msra.mxu0 0.0
    %98 = vmatprep.subr.mxu0 0.0
    %99 = vmatpush1.msra.mxu0 0.0
    %100 = vmatprep.subr.mxu0 0.0
    %101 = vmatpush1.msra.mxu0 0.0
    %102 = vmatprep.subr.mxu0 0.0
    %103 = vmatpush1.msra.mxu0 0.0
    %104 = vmatprep.subr.mxu0 0.0
    %105 = vmatpush1.msra.mxu0 0.0
    %106 = vmatprep.subr.mxu0 0.0
    %107 = vmatpush1.msra.mxu0 0.0
    %108 = vmatprep.subr.mxu0 0.0
    %109 = vmatpush1.msra.mxu0 0.0
    %110 = vmatprep.subr.mxu0 0.0
    %111 = vmatpush1.msra.mxu0 0.0
    %112 = vmatprep.subr.mxu0 0.0
    %113 = vmatpush1.msra.mxu0 0.0
    %114 = vmatprep.subr.mxu0 0.0
    %115 = vmatpush1.msra.mxu0 0.0
    %116 = vmatprep.subr.mxu0 0.0
    %117 = vmatpush1.msra.mxu0 %v76
    %118 = vmatprep.subr.mxu0 0.0
    %119 = vmatpush1.msra.mxu0 %v75
    %120 = vmatprep.subr.mxu0 0.0
    %121 = vmatpush2.msra.mxu0 0.0
    %122 = vmatprep.subr.mxu0 0.0
    %123 = vmatpush2.msra.mxu0 0.0
    %124 = vmatprep.subr.mxu0 0.0
    %125 = vmatpush2.msra.mxu0 0.0
    %126 = vmatprep.subr.mxu0 0.0
    %127 = vmatpush2.msra.mxu0 0.0
    %128 = vmatprep.subr.mxu0 0.0
    %129 = vmatpush2.msra.mxu0 0.0
    %130 = vmatprep.subr.mxu0 0.0
    %131 = vmatpush2.msra.mxu0 0.0
    %132 = vmatprep.subr.mxu0 0.0
    %133 = vmatpush2.msra.mxu0 0.0
    %134 = vmatprep.subr.mxu0 0.0
    %135 = vmatpush2.msra.mxu0 0.0
    %136 = vmatprep.subr.mxu0 0.0
    %137 = vmatpush2.msra.mxu0 0.0
    %138 = vmatprep.subr.mxu0 0.0
    %139 = vmatpush2.msra.mxu0 0.0
    %140 = vmatprep.subr.mxu0 0.0
    %141 = vmatpush2.msra.mxu0 0.0
    %142 = vmatprep.subr.mxu0 0.0
    %143 = vmatpush2.msra.mxu0 0.0
    %144 = vmatprep.subr.mxu0 0.0
    %145 = vmatpush2.msra.mxu0 0.0
    %146 = vmatprep.subr.mxu0 0.0
    %147 = vmatpush2.msra.mxu0 0.0
    %148 = vmatprep.subr.mxu0 0.0
    %149 = vmatpush2.msra.mxu0 0.0
    %150 = vmatprep.subr.mxu0 0.0
    %151 = vmatpush2.msra.mxu0 0.0
    %152 = vmatprep.mubr.f32.mxu0 0.0
    %153 = vmatmul.mubr.f32.gmra.mxu0 %v83
    %v154 = vpop.f32.mrf.mxu0
    %v155 = vadd.f32 0.0, %v154
    %v156 = vpop.f32.mrf.mxu0
    %157 = vmatprep.mubr.f32.mxu0 0.0
    %158 = vmatmul.mubr.f32.gmra.mxu0 %v86
    %v159 = vpop.f32.mrf.mxu0
    %v160 = vadd.f32 0.0, %v159
    %v161 = vpop.f32.mrf.mxu0
    %162 = vdwg.mxu0
    %v164 = vsel %vm81, %v73, 0
    %v167 = vsel %vm81, %v74, 0
    %169 = vmatprep.subr.mxu0 0.0
    %170 = vmatpush1.msra.mxu0 0.0
    %171 = vmatprep.subr.mxu0 0.0
    %172 = vmatpush1.msra.mxu0 0.0
    %173 = vmatprep.subr.mxu0 0.0
    %174 = vmatpush1.msra.mxu0 0.0
    %175 = vmatprep.subr.mxu0 0.0
    %176 = vmatpush1.msra.mxu0 0.0
    %177 = vmatprep.subr.mxu0 0.0
    %178 = vmatpush1.msra.mxu0 0.0
    %179 = vmatprep.subr.mxu0 0.0
    %180 = vmatpush1.msra.mxu0 0.0
    %181 = vmatprep.subr.mxu0 0.0
    %182 = vmatpush1.msra.mxu0 0.0
    %183 = vmatprep.subr.mxu0 0.0
    %184 = vmatpush1.msra.mxu0 0.0
    %185 = vmatprep.subr.mxu0 0.0
    %186 = vmatpush1.msra.mxu0 0.0
    %187 = vmatprep.subr.mxu0 0.0
    %188 = vmatpush1.msra.mxu0 0.0
    %189 = vmatprep.subr.mxu0 0.0
    %190 = vmatpush1.msra.mxu0 0.0
    %191 = vmatprep.subr.mxu0 0.0
    %192 = vmatpush1.msra.mxu0 0.0
    %193 = vmatprep.subr.mxu0 0.0
    %194 = vmatpush1.msra.mxu0 0.0
    %195 = vmatprep.subr.mxu0 0.0
    %196 = vmatpush1.msra.mxu0 0.0
    %197 = vmatprep.subr.mxu0 0.0
    %198 = vmatpush1.msra.mxu0 %v160
    %199 = vmatprep.subr.mxu0 0.0
    %200 = vmatpush1.msra.mxu0 %v155
    %201 = vmatprep.subr.mxu0 0.0
    %202 = vmatpush2.msra.mxu0 0.0
    %203 = vmatprep.subr.mxu0 0.0
    %204 = vmatpush2.msra.mxu0 0.0
    %205 = vmatprep.subr.mxu0 0.0
    %206 = vmatpush2.msra.mxu0 0.0
    %207 = vmatprep.subr.mxu0 0.0
    %208 = vmatpush2.msra.mxu0 0.0
    %209 = vmatprep.subr.mxu0 0.0
    %210 = vmatpush2.msra.mxu0 0.0
    %211 = vmatprep.subr.mxu0 0.0
    %212 = vmatpush2.msra.mxu0 0.0
    %213 = vmatprep.subr.mxu0 0.0
    %214 = vmatpush2.msra.mxu0 0.0
    %215 = vmatprep.subr.mxu0 0.0
    %216 = vmatpush2.msra.mxu0 0.0
    %217 = vmatprep.subr.mxu0 0.0
    %218 = vmatpush2.msra.mxu0 0.0
    %219 = vmatprep.subr.mxu0 0.0
    %220 = vmatpush2.msra.mxu0 0.0
    %221 = vmatprep.subr.mxu0 0.0
    %222 = vmatpush2.msra.mxu0 0.0
    %223 = vmatprep.subr.mxu0 0.0
    %224 = vmatpush2.msra.mxu0 0.0
    %225 = vmatprep.subr.mxu0 0.0
    %226 = vmatpush2.msra.mxu0 0.0
    %227 = vmatprep.subr.mxu0 0.0
    %228 = vmatpush2.msra.mxu0 0.0
    %229 = vmatprep.subr.mxu0 0.0
    %230 = vmatpush2.msra.mxu0 0.0
    %231 = vmatprep.subr.mxu0 0.0
    %232 = vmatpush2.msra.mxu0 0.0
    %233 = vmatprep.mubr.f32.mxu0 0.0
    %234 = vmatmul.mubr.f32.gmra.mxu0 %v164
    %v235 = vpop.f32.mrf.mxu0
    %v236 = vadd.f32 0.0, %v235
    %v237 = vpop.f32.mrf.mxu0
    %238 = vmatprep.mubr.f32.mxu0 0.0
    %239 = vmatmul.mubr.f32.gmra.mxu0 %v167
    %v240 = vpop.f32.mrf.mxu0
    %v241 = vadd.f32 0.0, %v240
    %v242 = vpop.f32.mrf.mxu0
    %243 = vdwg.mxu0
    %v245 = vsel %vm81, %v79, 0
    %v248 = vsel %vm81, %v80, 0
    %250 = vmatprep.subr.mxu0 0.0
    %251 = vmatpush1.msra.mxu0 0.0
    %252 = vmatprep.subr.mxu0 0.0
    %253 = vmatpush1.msra.mxu0 0.0
    %254 = vmatprep.subr.mxu0 0.0
    %255 = vmatpush1.msra.mxu0 0.0
    %256 = vmatprep.subr.mxu0 0.0
    %257 = vmatpush1.msra.mxu0 0.0
    %258 = vmatprep.subr.mxu0 0.0
    %259 = vmatpush1.msra.mxu0 0.0
    %260 = vmatprep.subr.mxu0 0.0
    %261 = vmatpush1.msra.mxu0 0.0
    %262 = vmatprep.subr.mxu0 0.0
    %263 = vmatpush1.msra.mxu0 0.0
    %264 = vmatprep.subr.mxu0 0.0
    %265 = vmatpush1.msra.mxu0 0.0
    %266 = vmatprep.subr.mxu0 0.0
    %267 = vmatpush1.msra.mxu0 0.0
    %268 = vmatprep.subr.mxu0 0.0
    %269 = vmatpush1.msra.mxu0 0.0
    %270 = vmatprep.subr.mxu0 0.0
    %271 = vmatpush1.msra.mxu0 0.0
    %272 = vmatprep.subr.mxu0 0.0
    %273 = vmatpush1.msra.mxu0 0.0
    %274 = vmatprep.subr.mxu0 0.0
    %275 = vmatpush1.msra.mxu0 0.0
    %276 = vmatprep.subr.mxu0 0.0
    %277 = vmatpush1.msra.mxu0 0.0
    %278 = vmatprep.subr.mxu0 0.0
    %279 = vmatpush1.msra.mxu0 %v76
    %280 = vmatprep.subr.mxu0 0.0
    %281 = vmatpush1.msra.mxu0 %v75
    %282 = vmatprep.subr.mxu0 0.0
    %283 = vmatpush2.msra.mxu0 0.0
    %284 = vmatprep.subr.mxu0 0.0
    %285 = vmatpush2.msra.mxu0 0.0
    %286 = vmatprep.subr.mxu0 0.0
    %287 = vmatpush2.msra.mxu0 0.0
    %288 = vmatprep.subr.mxu0 0.0
    %289 = vmatpush2.msra.mxu0 0.0
    %290 = vmatprep.subr.mxu0 0.0
    %291 = vmatpush2.msra.mxu0 0.0
    %292 = vmatprep.subr.mxu0 0.0
    %293 = vmatpush2.msra.mxu0 0.0
    %294 = vmatprep.subr.mxu0 0.0
    %295 = vmatpush2.msra.mxu0 0.0
    %296 = vmatprep.subr.mxu0 0.0
    %297 = vmatpush2.msra.mxu0 0.0
    %298 = vmatprep.subr.mxu0 0.0
    %299 = vmatpush2.msra.mxu0 0.0
    %300 = vmatprep.subr.mxu0 0.0
    %301 = vmatpush2.msra.mxu0 0.0
    %302 = vmatprep.subr.mxu0 0.0
    %303 = vmatpush2.msra.mxu0 0.0
    %304 = vmatprep.subr.mxu0 0.0
    %305 = vmatpush2.msra.mxu0 0.0
    %306 = vmatprep.subr.mxu0 0.0
    %307 = vmatpush2.msra.mxu0 0.0
    %308 = vmatprep.subr.mxu0 0.0
    %309 = vmatpush2.msra.mxu0 0.0
    %310 = vmatprep.subr.mxu0 0.0
    %311 = vmatpush2.msra.mxu0 0.0
    %312 = vmatprep.subr.mxu0 0.0
    %313 = vmatpush2.msra.mxu0 0.0
    %314 = vmatprep.mubr.f32.mxu0 0.0
    %315 = vmatmul.mubr.f32.gmra.mxu0 %v245
    %v316 = vpop.f32.mrf.mxu0
    %v317 = vadd.f32 0.0, %v316
    %v318 = vpop.f32.mrf.mxu0
    %319 = vmatprep.mubr.f32.mxu0 0.0
    %320 = vmatmul.mubr.f32.gmra.mxu0 %v248
    %v321 = vpop.f32.mrf.mxu0
    %v322 = vadd.f32 0.0, %v321
    %v323 = vpop.f32.mrf.mxu0
    %324 = vdwg.mxu0
    %325 = vmatprep.subr.mxu0 0.0
    %326 = vmatpush1.msra.mxu0 0.0
    %327 = vmatprep.subr.mxu0 0.0
    %328 = vmatpush1.msra.mxu0 0.0
    %329 = vmatprep.subr.mxu0 0.0
    %330 = vmatpush1.msra.mxu0 0.0
    %331 = vmatprep.subr.mxu0 0.0
    %332 = vmatpush1.msra.mxu0 0.0
    %333 = vmatprep.subr.mxu0 0.0
    %334 = vmatpush1.msra.mxu0 0.0
    %335 = vmatprep.subr.mxu0 0.0
    %336 = vmatpush1.msra.mxu0 0.0
    %337 = vmatprep.subr.mxu0 0.0
    %338 = vmatpush1.msra.mxu0 0.0
    %339 = vmatprep.subr.mxu0 0.0
    %340 = vmatpush1.msra.mxu0 0.0
    %341 = vmatprep.subr.mxu0 0.0
    %342 = vmatpush1.msra.mxu0 0.0
    %343 = vmatprep.subr.mxu0 0.0
    %344 = vmatpush1.msra.mxu0 0.0
    %345 = vmatprep.subr.mxu0 0.0
    %346 = vmatpush1.msra.mxu0 0.0
    %347 = vmatprep.subr.mxu0 0.0
    %348 = vmatpush1.msra.mxu0 0.0
    %349 = vmatprep.subr.mxu0 0.0
    %350 = vmatpush1.msra.mxu0 0.0
    %351 = vmatprep.subr.mxu0 0.0
    %352 = vmatpush1.msra.mxu0 0.0
    %353 = vmatprep.subr.mxu0 0.0
    %354 = vmatpush1.msra.mxu0 %v322
    %355 = vmatprep.subr.mxu0 0.0
    %356 = vmatpush1.msra.mxu0 %v317
    %357 = vmatprep.subr.mxu0 0.0
    %358 = vmatpush2.msra.mxu0 0.0
    %359 = vmatprep.subr.mxu0 0.0
    %360 = vmatpush2.msra.mxu0 0.0
    %361 = vmatprep.subr.mxu0 0.0
    %362 = vmatpush2.msra.mxu0 0.0
    %363 = vmatprep.subr.mxu0 0.0
    %364 = vmatpush2.msra.mxu0 0.0
    %365 = vmatprep.subr.mxu0 0.0
    %366 = vmatpush2.msra.mxu0 0.0
    %367 = vmatprep.subr.mxu0 0.0
    %368 = vmatpush2.msra.mxu0 0.0
    %369 = vmatprep.subr.mxu0 0.0
    %370 = vmatpush2.msra.mxu0 0.0
    %371 = vmatprep.subr.mxu0 0.0
    %372 = vmatpush2.msra.mxu0 0.0
    %373 = vmatprep.subr.mxu0 0.0
    %374 = vmatpush2.msra.mxu0 0.0
    %375 = vmatprep.subr.mxu0 0.0
    %376 = vmatpush2.msra.mxu0 0.0
    %377 = vmatprep.subr.mxu0 0.0
    %378 = vmatpush2.msra.mxu0 0.0
    %379 = vmatprep.subr.mxu0 0.0
    %380 = vmatpush2.msra.mxu0 0.0
    %381 = vmatprep.subr.mxu0 0.0
    %382 = vmatpush2.msra.mxu0 0.0
    %383 = vmatprep.subr.mxu0 0.0
    %384 = vmatpush2.msra.mxu0 0.0
    %385 = vmatprep.subr.mxu0 0.0
    %386 = vmatpush2.msra.mxu0 0.0
    %387 = vmatprep.subr.mxu0 0.0
    %388 = vmatpush2.msra.mxu0 0.0
    %389 = vmatprep.mubr.f32.mxu0 0.0
    %390 = vmatmul.mubr.f32.gmra.mxu0 %v164
    %v391 = vpop.f32.mrf.mxu0
    %v392 = vadd.f32 0.0, %v391
    %v393 = vpop.f32.mrf.mxu0
    %394 = vmatprep.mubr.f32.mxu0 0.0
    %395 = vmatmul.mubr.f32.gmra.mxu0 %v167
    %v396 = vpop.f32.mrf.mxu0
    %v397 = vadd.f32 0.0, %v396
    %v398 = vpop.f32.mrf.mxu0
    %399 = vdwg.mxu0
    %v400 = vmul.f32 %v236, %v236
    %v401 = vmul.f32 %v241, %v241
    %v402 = vmul.f32 %v392, %v392
    %v403 = vmul.f32 %v397, %v397
    %v404 = vmul.f32 %v236, %v392
    %v405 = vmul.f32 %v241, %v397
    %v406 = vmul.f32 %v77, %v77
    %v407 = vmul.f32 %v78, %v78
    %v409 = vsel %vm81, %v406, 0
    %v412 = vsel %vm81, %v407, 0
    %414 = vmatprep.subr.mxu0 0.0
    %415 = vmatpush1.msra.mxu0 0.0
    %416 = vmatprep.subr.mxu0 0.0
    %417 = vmatpush1.msra.mxu0 0.0
    %418 = vmatprep.subr.mxu0 0.0
    %419 = vmatpush1.msra.mxu0 0.0
    %420 = vmatprep.subr.mxu0 0.0
    %421 = vmatpush1.msra.mxu0 0.0
    %422 = vmatprep.subr.mxu0 0.0
    %423 = vmatpush1.msra.mxu0 0.0
    %424 = vmatprep.subr.mxu0 0.0
    %425 = vmatpush1.msra.mxu0 0.0
    %426 = vmatprep.subr.mxu0 0.0
    %427 = vmatpush1.msra.mxu0 0.0
    %428 = vmatprep.subr.mxu0 0.0
    %429 = vmatpush1.msra.mxu0 0.0
    %430 = vmatprep.subr.mxu0 0.0
    %431 = vmatpush1.msra.mxu0 0.0
    %432 = vmatprep.subr.mxu0 0.0
    %433 = vmatpush1.msra.mxu0 0.0
    %434 = vmatprep.subr.mxu0 0.0
    %435 = vmatpush1.msra.mxu0 0.0
    %436 = vmatprep.subr.mxu0 0.0
    %437 = vmatpush1.msra.mxu0 0.0
    %438 = vmatprep.subr.mxu0 0.0
    %439 = vmatpush1.msra.mxu0 0.0
    %440 = vmatprep.subr.mxu0 0.0
    %441 = vmatpush1.msra.mxu0 0.0
    %442 = vmatprep.subr.mxu0 0.0
    %443 = vmatpush1.msra.mxu0 %v76
    %444 = vmatprep.subr.mxu0 0.0
    %445 = vmatpush1.msra.mxu0 %v75
    %446 = vmatprep.subr.mxu0 0.0
    %447 = vmatpush2.msra.mxu0 0.0
    %448 = vmatprep.subr.mxu0 0.0
    %449 = vmatpush2.msra.mxu0 0.0
    %450 = vmatprep.subr.mxu0 0.0
    %451 = vmatpush2.msra.mxu0 0.0
    %452 = vmatprep.subr.mxu0 0.0
    %453 = vmatpush2.msra.mxu0 0.0
    %454 = vmatprep.subr.mxu0 0.0
    %455 = vmatpush2.msra.mxu0 0.0
    %456 = vmatprep.subr.mxu0 0.0
    %457 = vmatpush2.msra.mxu0 0.0
    %458 = vmatprep.subr.mxu0 0.0
    %459 = vmatpush2.msra.mxu0 0.0
    %460 = vmatprep.subr.mxu0 0.0
    %461 = vmatpush2.msra.mxu0 0.0
    %462 = vmatprep.subr.mxu0 0.0
    %463 = vmatpush2.msra.mxu0 0.0
    %464 = vmatprep.subr.mxu0 0.0
    %465 = vmatpush2.msra.mxu0 0.0
    %466 = vmatprep.subr.mxu0 0.0
    %467 = vmatpush2.msra.mxu0 0.0
    %468 = vmatprep.subr.mxu0 0.0
    %469 = vmatpush2.msra.mxu0 0.0
    %470 = vmatprep.subr.mxu0 0.0
    %471 = vmatpush2.msra.mxu0 0.0
    %472 = vmatprep.subr.mxu0 0.0
    %473 = vmatpush2.msra.mxu0 0.0
    %474 = vmatprep.subr.mxu0 0.0
    %475 = vmatpush2.msra.mxu0 0.0
    %476 = vmatprep.subr.mxu0 0.0
    %477 = vmatpush2.msra.mxu0 0.0
    %478 = vmatprep.mubr.f32.mxu0 0.0
    %479 = vmatmul.mubr.f32.gmra.mxu0 %v409
    %v480 = vpop.f32.mrf.mxu0
    %v481 = vadd.f32 0.0, %v480
    %v482 = vpop.f32.mrf.mxu0
    %483 = vmatprep.mubr.f32.mxu0 0.0
    %484 = vmatmul.mubr.f32.gmra.mxu0 %v412
    %v485 = vpop.f32.mrf.mxu0
    %v486 = vadd.f32 0.0, %v485
    %v487 = vpop.f32.mrf.mxu0
    %488 = vdwg.mxu0
    %489 = vmatprep.subr.mxu0 0.0
    %490 = vmatpush1.msra.mxu0 0.0
    %491 = vmatprep.subr.mxu0 0.0
    %492 = vmatpush1.msra.mxu0 0.0
    %493 = vmatprep.subr.mxu0 0.0
    %494 = vmatpush1.msra.mxu0 0.0
    %495 = vmatprep.subr.mxu0 0.0
    %496 = vmatpush1.msra.mxu0 0.0
    %497 = vmatprep.subr.mxu0 0.0
    %498 = vmatpush1.msra.mxu0 0.0
    %499 = vmatprep.subr.mxu0 0.0
    %500 = vmatpush1.msra.mxu0 0.0
    %501 = vmatprep.subr.mxu0 0.0
    %502 = vmatpush1.msra.mxu0 0.0
    %503 = vmatprep.subr.mxu0 0.0
    %504 = vmatpush1.msra.mxu0 0.0
    %505 = vmatprep.subr.mxu0 0.0
    %506 = vmatpush1.msra.mxu0 0.0
    %507 = vmatprep.subr.mxu0 0.0
    %508 = vmatpush1.msra.mxu0 0.0
    %509 = vmatprep.subr.mxu0 0.0
    %510 = vmatpush1.msra.mxu0 0.0
    %511 = vmatprep.subr.mxu0 0.0
    %512 = vmatpush1.msra.mxu0 0.0
    %513 = vmatprep.subr.mxu0 0.0
    %514 = vmatpush1.msra.mxu0 0.0
    %515 = vmatprep.subr.mxu0 0.0
    %516 = vmatpush1.msra.mxu0 0.0
    %517 = vmatprep.subr.mxu0 0.0
    %518 = vmatpush1.msra.mxu0 %v486
    %519 = vmatprep.subr.mxu0 0.0
    %520 = vmatpush1.msra.mxu0 %v481
    %521 = vmatprep.subr.mxu0 0.0
    %522 = vmatpush2.msra.mxu0 0.0
    %523 = vmatprep.subr.mxu0 0.0
    %524 = vmatpush2.msra.mxu0 0.0
    %525 = vmatprep.subr.mxu0 0.0
    %526 = vmatpush2.msra.mxu0 0.0
    %527 = vmatprep.subr.mxu0 0.0
    %528 = vmatpush2.msra.mxu0 0.0
    %529 = vmatprep.subr.mxu0 0.0
    %530 = vmatpush2.msra.mxu0 0.0
    %531 = vmatprep.subr.mxu0 0.0
    %532 = vmatpush2.msra.mxu0 0.0
    %533 = vmatprep.subr.mxu0 0.0
    %534 = vmatpush2.msra.mxu0 0.0
    %535 = vmatprep.subr.mxu0 0.0
    %536 = vmatpush2.msra.mxu0 0.0
    %537 = vmatprep.subr.mxu0 0.0
    %538 = vmatpush2.msra.mxu0 0.0
    %539 = vmatprep.subr.mxu0 0.0
    %540 = vmatpush2.msra.mxu0 0.0
    %541 = vmatprep.subr.mxu0 0.0
    %542 = vmatpush2.msra.mxu0 0.0
    %543 = vmatprep.subr.mxu0 0.0
    %544 = vmatpush2.msra.mxu0 0.0
    %545 = vmatprep.subr.mxu0 0.0
    %546 = vmatpush2.msra.mxu0 0.0
    %547 = vmatprep.subr.mxu0 0.0
    %548 = vmatpush2.msra.mxu0 0.0
    %549 = vmatprep.subr.mxu0 0.0
    %550 = vmatpush2.msra.mxu0 0.0
    %551 = vmatprep.subr.mxu0 0.0
    %552 = vmatpush2.msra.mxu0 0.0
    %553 = vmatprep.mubr.f32.mxu0 0.0
    %554 = vmatmul.mubr.f32.gmra.mxu0 %v164
    %v555 = vpop.f32.mrf.mxu0
    %v556 = vadd.f32 0.0, %v555
    %v557 = vpop.f32.mrf.mxu0
    %558 = vmatprep.mubr.f32.mxu0 0.0
    %559 = vmatmul.mubr.f32.gmra.mxu0 %v167
    %v560 = vpop.f32.mrf.mxu0
    %v561 = vadd.f32 0.0, %v560
    %v562 = vpop.f32.mrf.mxu0
    %563 = vdwg.mxu0
    %v564 = vsub.f32 %v556, %v400
    %v565 = vsub.f32 %v561, %v401
    %v566 = vmul.f32 %v79, %v79
    %v567 = vmul.f32 %v80, %v80
    %v569 = vsel %vm81, %v566, 0
    %v572 = vsel %vm81, %v567, 0
    %574 = vmatprep.subr.mxu0 0.0
    %575 = vmatpush1.msra.mxu0 0.0
    %576 = vmatprep.subr.mxu0 0.0
    %577 = vmatpush1.msra.mxu0 0.0
    %578 = vmatprep.subr.mxu0 0.0
    %579 = vmatpush1.msra.mxu0 0.0
    %580 = vmatprep.subr.mxu0 0.0
    %581 = vmatpush1.msra.mxu0 0.0
    %582 = vmatprep.subr.mxu0 0.0
    %583 = vmatpush1.msra.mxu0 0.0
    %584 = vmatprep.subr.mxu0 0.0
    %585 = vmatpush1.msra.mxu0 0.0
    %586 = vmatprep.subr.mxu0 0.0
    %587 = vmatpush1.msra.mxu0 0.0
    %588 = vmatprep.subr.mxu0 0.0
    %589 = vmatpush1.msra.mxu0 0.0
    %590 = vmatprep.subr.mxu0 0.0
    %591 = vmatpush1.msra.mxu0 0.0
    %592 = vmatprep.subr.mxu0 0.0
    %593 = vmatpush1.msra.mxu0 0.0
    %594 = vmatprep.subr.mxu0 0.0
    %595 = vmatpush1.msra.mxu0 0.0
    %596 = vmatprep.subr.mxu0 0.0
    %597 = vmatpush1.msra.mxu0 0.0
    %598 = vmatprep.subr.mxu0 0.0
    %599 = vmatpush1.msra.mxu0 0.0
    %600 = vmatprep.subr.mxu0 0.0
    %601 = vmatpush1.msra.mxu0 0.0
    %602 = vmatprep.subr.mxu0 0.0
    %603 = vmatpush1.msra.mxu0 %v76
    %604 = vmatprep.subr.mxu0 0.0
    %605 = vmatpush1.msra.mxu0 %v75
    %606 = vmatprep.subr.mxu0 0.0
    %607 = vmatpush2.msra.mxu0 0.0
    %608 = vmatprep.subr.mxu0 0.0
    %609 = vmatpush2.msra.mxu0 0.0
    %610 = vmatprep.subr.mxu0 0.0
    %611 = vmatpush2.msra.mxu0 0.0
    %612 = vmatprep.subr.mxu0 0.0
    %613 = vmatpush2.msra.mxu0 0.0
    %614 = vmatprep.subr.mxu0 0.0
    %615 = vmatpush2.msra.mxu0 0.0
    %616 = vmatprep.subr.mxu0 0.0
    %617 = vmatpush2.msra.mxu0 0.0
    %618 = vmatprep.subr.mxu0 0.0
    %619 = vmatpush2.msra.mxu0 0.0
    %620 = vmatprep.subr.mxu0 0.0
    %621 = vmatpush2.msra.mxu0 0.0
    %622 = vmatprep.subr.mxu0 0.0
    %623 = vmatpush2.msra.mxu0 0.0
    %624 = vmatprep.subr.mxu0 0.0
    %625 = vmatpush2.msra.mxu0 0.0
    %626 = vmatprep.subr.mxu0 0.0
    %627 = vmatpush2.msra.mxu0 0.0
    %628 = vmatprep.subr.mxu0 0.0
    %629 = vmatpush2.msra.mxu0 0.0
    %630 = vmatprep.subr.mxu0 0.0
    %631 = vmatpush2.msra.mxu0 0.0
    %632 = vmatprep.subr.mxu0 0.0
    %633 = vmatpush2.msra.mxu0 0.0
    %634 = vmatprep.subr.mxu0 0.0
    %635 = vmatpush2.msra.mxu0 0.0
    %636 = vmatprep.subr.mxu0 0.0
    %637 = vmatpush2.msra.mxu0 0.0
    %638 = vmatprep.mubr.f32.mxu0 0.0
    %639 = vmatmul.mubr.f32.gmra.mxu0 %v569
    %v640 = vpop.f32.mrf.mxu0
    %v641 = vadd.f32 0.0, %v640
    %v642 = vpop.f32.mrf.mxu0
    %643 = vmatprep.mubr.f32.mxu0 0.0
    %644 = vmatmul.mubr.f32.gmra.mxu0 %v572
    %v645 = vpop.f32.mrf.mxu0
    %v646 = vadd.f32 0.0, %v645
    %v647 = vpop.f32.mrf.mxu0
    %648 = vdwg.mxu0
    %649 = vmatprep.subr.mxu0 0.0
    %650 = vmatpush1.msra.mxu0 0.0
    %651 = vmatprep.subr.mxu0 0.0
    %652 = vmatpush1.msra.mxu0 0.0
    %653 = vmatprep.subr.mxu0 0.0
    %654 = vmatpush1.msra.mxu0 0.0
    %655 = vmatprep.subr.mxu0 0.0
    %656 = vmatpush1.msra.mxu0 0.0
    %657 = vmatprep.subr.mxu0 0.0
    %658 = vmatpush1.msra.mxu0 0.0
    %659 = vmatprep.subr.mxu0 0.0
    %660 = vmatpush1.msra.mxu0 0.0
    %661 = vmatprep.subr.mxu0 0.0
    %662 = vmatpush1.msra.mxu0 0.0
    %663 = vmatprep.subr.mxu0 0.0
    %664 = vmatpush1.msra.mxu0 0.0
    %665 = vmatprep.subr.mxu0 0.0
    %666 = vmatpush1.msra.mxu0 0.0
    %667 = vmatprep.subr.mxu0 0.0
    %668 = vmatpush1.msra.mxu0 0.0
    %669 = vmatprep.subr.mxu0 0.0
    %670 = vmatpush1.msra.mxu0 0.0
    %671 = vmatprep.subr.mxu0 0.0
    %672 = vmatpush1.msra.mxu0 0.0
    %673 = vmatprep.subr.mxu0 0.0
    %674 = vmatpush1.msra.mxu0 0.0
    %675 = vmatprep.subr.mxu0 0.0
    %676 = vmatpush1.msra.mxu0 0.0
    %677 = vmatprep.subr.mxu0 0.0
    %678 = vmatpush1.msra.mxu0 %v646
    %679 = vmatprep.subr.mxu0 0.0
    %680 = vmatpush1.msra.mxu0 %v641
    %681 = vmatprep.subr.mxu0 0.0
    %682 = vmatpush2.msra.mxu0 0.0
    %683 = vmatprep.subr.mxu0 0.0
    %684 = vmatpush2.msra.mxu0 0.0
    %685 = vmatprep.subr.mxu0 0.0
    %686 = vmatpush2.msra.mxu0 0.0
    %687 = vmatprep.subr.mxu0 0.0
    %688 = vmatpush2.msra.mxu0 0.0
    %689 = vmatprep.subr.mxu0 0.0
    %690 = vmatpush2.msra.mxu0 0.0
    %691 = vmatprep.subr.mxu0 0.0
    %692 = vmatpush2.msra.mxu0 0.0
    %693 = vmatprep.subr.mxu0 0.0
    %694 = vmatpush2.msra.mxu0 0.0
    %695 = vmatprep.subr.mxu0 0.0
    %696 = vmatpush2.msra.mxu0 0.0
    %697 = vmatprep.subr.mxu0 0.0
    %698 = vmatpush2.msra.mxu0 0.0
    %699 = vmatprep.subr.mxu0 0.0
    %700 = vmatpush2.msra.mxu0 0.0
    %701 = vmatprep.subr.mxu0 0.0
    %702 = vmatpush2.msra.mxu0 0.0
    %703 = vmatprep.subr.mxu0 0.0
    %704 = vmatpush2.msra.mxu0 0.0
    %705 = vmatprep.subr.mxu0 0.0
    %706 = vmatpush2.msra.mxu0 0.0
    %707 = vmatprep.subr.mxu0 0.0
    %708 = vmatpush2.msra.mxu0 0.0
    %709 = vmatprep.subr.mxu0 0.0
    %710 = vmatpush2.msra.mxu0 0.0
    %711 = vmatprep.subr.mxu0 0.0
    %712 = vmatpush2.msra.mxu0 0.0
    %713 = vmatprep.mubr.f32.mxu0 0.0
    %714 = vmatmul.mubr.f32.gmra.mxu0 %v164
    %v715 = vpop.f32.mrf.mxu0
    %v716 = vadd.f32 0.0, %v715
    %v717 = vpop.f32.mrf.mxu0
    %718 = vmatprep.mubr.f32.mxu0 0.0
    %719 = vmatmul.mubr.f32.gmra.mxu0 %v167
    %v720 = vpop.f32.mrf.mxu0
    %v721 = vadd.f32 0.0, %v720
    %v722 = vpop.f32.mrf.mxu0
    %723 = vdwg.mxu0
    %v724 = vsub.f32 %v716, %v402
    %v725 = vsub.f32 %v721, %v403
    %v726 = vmul.f32 %v77, %v79
    %v727 = vmul.f32 %v78, %v80
    %v729 = vsel %vm81, %v726, 0
    %v732 = vsel %vm81, %v727, 0
    %734 = vmatprep.subr.mxu0 0.0
    %735 = vmatpush1.msra.mxu0 0.0
    %736 = vmatprep.subr.mxu0 0.0
    %737 = vmatpush1.msra.mxu0 0.0
    %738 = vmatprep.subr.mxu0 0.0
    %739 = vmatpush1.msra.mxu0 0.0
    %740 = vmatprep.subr.mxu0 0.0
    %741 = vmatpush1.msra.mxu0 0.0
    %742 = vmatprep.subr.mxu0 0.0
    %743 = vmatpush1.msra.mxu0 0.0
    %744 = vmatprep.subr.mxu0 0.0
    %745 = vmatpush1.msra.mxu0 0.0
    %746 = vmatprep.subr.mxu0 0.0
    %747 = vmatpush1.msra.mxu0 0.0
    %748 = vmatprep.subr.mxu0 0.0
    %749 = vmatpush1.msra.mxu0 0.0
    %750 = vmatprep.subr.mxu0 0.0
    %751 = vmatpush1.msra.mxu0 0.0
    %752 = vmatprep.subr.mxu0 0.0
    %753 = vmatpush1.msra.mxu0 0.0
    %754 = vmatprep.subr.mxu0 0.0
    %755 = vmatpush1.msra.mxu0 0.0
    %756 = vmatprep.subr.mxu0 0.0
    %757 = vmatpush1.msra.mxu0 0.0
    %758 = vmatprep.subr.mxu0 0.0
    %759 = vmatpush1.msra.mxu0 0.0
    %760 = vmatprep.subr.mxu0 0.0
    %761 = vmatpush1.msra.mxu0 0.0
    %762 = vmatprep.subr.mxu0 0.0
    %763 = vmatpush1.msra.mxu0 %v76
    %764 = vmatprep.subr.mxu0 0.0
    %765 = vmatpush1.msra.mxu0 %v75
    %766 = vmatprep.subr.mxu0 0.0
    %767 = vmatpush2.msra.mxu0 0.0
    %768 = vmatprep.subr.mxu0 0.0
    %769 = vmatpush2.msra.mxu0 0.0
    %770 = vmatprep.subr.mxu0 0.0
    %771 = vmatpush2.msra.mxu0 0.0
    %772 = vmatprep.subr.mxu0 0.0
    %773 = vmatpush2.msra.mxu0 0.0
    %774 = vmatprep.subr.mxu0 0.0
    %775 = vmatpush2.msra.mxu0 0.0
    %776 = vmatprep.subr.mxu0 0.0
    %777 = vmatpush2.msra.mxu0 0.0
    %778 = vmatprep.subr.mxu0 0.0
    %779 = vmatpush2.msra.mxu0 0.0
    %780 = vmatprep.subr.mxu0 0.0
    %781 = vmatpush2.msra.mxu0 0.0
    %782 = vmatprep.subr.mxu0 0.0
    %783 = vmatpush2.msra.mxu0 0.0
    %784 = vmatprep.subr.mxu0 0.0
    %785 = vmatpush2.msra.mxu0 0.0
    %786 = vmatprep.subr.mxu0 0.0
    %787 = vmatpush2.msra.mxu0 0.0
    %788 = vmatprep.subr.mxu0 0.0
    %789 = vmatpush2.msra.mxu0 0.0
    %790 = vmatprep.subr.mxu0 0.0
    %791 = vmatpush2.msra.mxu0 0.0
    %792 = vmatprep.subr.mxu0 0.0
    %793 = vmatpush2.msra.mxu0 0.0
    %794 = vmatprep.subr.mxu0 0.0
    %795 = vmatpush2.msra.mxu0 0.0
    %796 = vmatprep.subr.mxu0 0.0
    %797 = vmatpush2.msra.mxu0 0.0
    %798 = vmatprep.mubr.f32.mxu0 0.0
    %799 = vmatmul.mubr.f32.gmra.mxu0 %v729
    %v800 = vpop.f32.mrf.mxu0
    %v801 = vadd.f32 0.0, %v800
    %v802 = vpop.f32.mrf.mxu0
    %803 = vmatprep.mubr.f32.mxu0 0.0
    %804 = vmatmul.mubr.f32.gmra.mxu0 %v732
    %v805 = vpop.f32.mrf.mxu0
    %v806 = vadd.f32 0.0, %v805
    %v807 = vpop.f32.mrf.mxu0
    %808 = vdwg.mxu0
    %809 = vmatprep.subr.mxu0 0.0
    %810 = vmatpush1.msra.mxu0 0.0
    %811 = vmatprep.subr.mxu0 0.0
    %812 = vmatpush1.msra.mxu0 0.0
    %813 = vmatprep.subr.mxu0 0.0
    %814 = vmatpush1.msra.mxu0 0.0
    %815 = vmatprep.subr.mxu0 0.0
    %816 = vmatpush1.msra.mxu0 0.0
    %817 = vmatprep.subr.mxu0 0.0
    %818 = vmatpush1.msra.mxu0 0.0
    %819 = vmatprep.subr.mxu0 0.0
    %820 = vmatpush1.msra.mxu0 0.0
    %821 = vmatprep.subr.mxu0 0.0
    %822 = vmatpush1.msra.mxu0 0.0
    %823 = vmatprep.subr.mxu0 0.0
    %824 = vmatpush1.msra.mxu0 0.0
    %825 = vmatprep.subr.mxu0 0.0
    %826 = vmatpush1.msra.mxu0 0.0
    %827 = vmatprep.subr.mxu0 0.0
    %828 = vmatpush1.msra.mxu0 0.0
    %829 = vmatprep.subr.mxu0 0.0
    %830 = vmatpush1.msra.mxu0 0.0
    %831 = vmatprep.subr.mxu0 0.0
    %832 = vmatpush1.msra.mxu0 0.0
    %833 = vmatprep.subr.mxu0 0.0
    %834 = vmatpush1.msra.mxu0 0.0
    %835 = vmatprep.subr.mxu0 0.0
    %836 = vmatpush1.msra.mxu0 0.0
    %837 = vmatprep.subr.mxu0 0.0
    %838 = vmatpush1.msra.mxu0 %v806
    %839 = vmatprep.subr.mxu0 0.0
    %840 = vmatpush1.msra.mxu0 %v801
    %841 = vmatprep.subr.mxu0 0.0
    %842 = vmatpush2.msra.mxu0 0.0
    %843 = vmatprep.subr.mxu0 0.0
    %844 = vmatpush2.msra.mxu0 0.0
    %845 = vmatprep.subr.mxu0 0.0
    %846 = vmatpush2.msra.mxu0 0.0
    %847 = vmatprep.subr.mxu0 0.0
    %848 = vmatpush2.msra.mxu0 0.0
    %849 = vmatprep.subr.mxu0 0.0
    %850 = vmatpush2.msra.mxu0 0.0
    %851 = vmatprep.subr.mxu0 0.0
    %852 = vmatpush2.msra.mxu0 0.0
    %853 = vmatprep.subr.mxu0 0.0
    %854 = vmatpush2.msra.mxu0 0.0
    %855 = vmatprep.subr.mxu0 0.0
    %856 = vmatpush2.msra.mxu0 0.0
    %857 = vmatprep.subr.mxu0 0.0
    %858 = vmatpush2.msra.mxu0 0.0
    %859 = vmatprep.subr.mxu0 0.0
    %860 = vmatpush2.msra.mxu0 0.0
    %861 = vmatprep.subr.mxu0 0.0
    %862 = vmatpush2.msra.mxu0 0.0
    %863 = vmatprep.subr.mxu0 0.0
    %864 = vmatpush2.msra.mxu0 0.0
    %865 = vmatprep.subr.mxu0 0.0
    %866 = vmatpush2.msra.mxu0 0.0
    %867 = vmatprep.subr.mxu0 0.0
    %868 = vmatpush2.msra.mxu0 0.0
    %869 = vmatprep.subr.mxu0 0.0
    %870 = vmatpush2.msra.mxu0 0.0
    %871 = vmatprep.subr.mxu0 0.0
    %872 = vmatpush2.msra.mxu0 0.0
    %873 = vmatprep.mubr.f32.mxu0 0.0
    %874 = vmatmul.mubr.f32.gmra.mxu0 %v164
    %v875 = vpop.f32.mrf.mxu0
    %v876 = vadd.f32 0.0, %v875
    %v877 = vpop.f32.mrf.mxu0
    %878 = vmatprep.mubr.f32.mxu0 0.0
    %879 = vmatmul.mubr.f32.gmra.mxu0 %v167
    %v880 = vpop.f32.mrf.mxu0
    %v881 = vadd.f32 0.0, %v880
    %v882 = vpop.f32.mrf.mxu0
    %883 = vdwg.mxu0
    %v884 = vsub.f32 %v876, %v404
    %v885 = vsub.f32 %v881, %v405
    %v886 = vmul.f32 %v404, 2.0
    %v887 = vmul.f32 %v405, 2.0
    %v888 = vadd.f32 %v886, 0.0001
    %v889 = vadd.f32 %v887, 0.0001
    %v890 = vmul.f32 %v884, 2.0
    %v891 = vmul.f32 %v885, 2.0
    %v892 = vadd.f32 %v890, 0.0009
    %v893 = vadd.f32 %v891, 0.0009
    %v894 = vmul.f32 %v888, %v892
    %v895 = vmul.f32 %v889, %v893
    %v896 = vadd.f32 %v400, %v402
    %v897 = vadd.f32 %v401, %v403
    %v898 = vadd.f32 %v896, 0.0001
    %v899 = vadd.f32 %v897, 0.0001
    %v900 = vadd.f32 %v564, %v724
    %v901 = vadd.f32 %v565, %v725
    %v902 = vadd.f32 %v900, 0.0009
    %v903 = vadd.f32 %v901, 0.0009
    %v904 = vmul.f32 %v898, %v902
    %v905 = vmul.f32 %v899, %v903
    %v906 = vrcp.pop %v904
    %v907 = vmul.f32 %v894, %v906
    %v908 = vrcp.pop %v905
    %v909 = vmul.f32 %v895, %v908
    %v910 = vsel %vm81, %v907, 0.0
    %v911 = vsel %vm81, %v909, 0.0
    %v912 = vadd.f32 %v910, %v911
    %913 = vadd.xlane.f32.xlu0 %v912
    %v914 = vpop.xlane.xlu0 %913
    %v915 = vrot.slane %v914, 4
    %v916 = vadd.f32 %v914, %v915
    %v917 = vrot.slane %v916, 2
    %v918 = vadd.f32 %v916, %v917
    %v919 = vrot.slane %v918, 1
    %v920 = vadd.f32 %v918, %v919
    %s921 = vtos %v920
    %v922 = vstv %s921
    %s923 = scalar_lea.vmem [#allocation2], 16
    %v924 = vld [vmem:[%s923] sm:$0xff]
    %v925 = vld [vmem:[%s923 + $0x8] sm:$0xff]
    %s926 = scalar_lea.vmem [#allocation5], 16
    %v927 = vld [vmem:[%s926] sm:$0xff]
    %v928 = vld [vmem:[%s926 + $0x8] sm:$0xff]
    %v930 = vsel %vm81, %v924, 0
    %v933 = vsel %vm81, %v925, 0
    %935 = vmatprep.subr.mxu0 0.0
    %936 = vmatpush1.msra.mxu0 0.0
    %937 = vmatprep.subr.mxu0 0.0
    %938 = vmatpush1.msra.mxu0 0.0
    %939 = vmatprep.subr.mxu0 0.0
    %940 = vmatpush1.msra.mxu0 0.0
    %941 = vmatprep.subr.mxu0 0.0
    %942 = vmatpush1.msra.mxu0 0.0
    %943 = vmatprep.subr.mxu0 0.0
    %944 = vmatpush1.msra.mxu0 0.0
    %945 = vmatprep.subr.mxu0 0.0
    %946 = vmatpush1.msra.mxu0 0.0
    %947 = vmatprep.subr.mxu0 0.0
    %948 = vmatpush1.msra.mxu0 0.0
    %949 = vmatprep.subr.mxu0 0.0
    %950 = vmatpush1.msra.mxu0 0.0
    %951 = vmatprep.subr.mxu0 0.0
    %952 = vmatpush1.msra.mxu0 0.0
    %953 = vmatprep.subr.mxu0 0.0
    %954 = vmatpush1.msra.mxu0 0.0
    %955 = vmatprep.subr.mxu0 0.0
    %956 = vmatpush1.msra.mxu0 0.0
    %957 = vmatprep.subr.mxu0 0.0
    %958 = vmatpush1.msra.mxu0 0.0
    %959 = vmatprep.subr.mxu0 0.0
    %960 = vmatpush1.msra.mxu0 0.0
    %961 = vmatprep.subr.mxu0 0.0
    %962 = vmatpush1.msra.mxu0 0.0
    %963 = vmatprep.subr.mxu0 0.0
    %964 = vmatpush1.msra.mxu0 %v76
    %965 = vmatprep.subr.mxu0 0.0
    %966 = vmatpush1.msra.mxu0 %v75
    %967 = vmatprep.subr.mxu0 0.0
    %968 = vmatpush2.msra.mxu0 0.0
    %969 = vmatprep.subr.mxu0 0.0
    %970 = vmatpush2.msra.mxu0 0.0
    %971 = vmatprep.subr.mxu0 0.0
    %972 = vmatpush2.msra.mxu0 0.0
    %973 = vmatprep.subr.mxu0 0.0
    %974 = vmatpush2.msra.mxu0 0.0
    %975 = vmatprep.subr.mxu0 0.0
    %976 = vmatpush2.msra.mxu0 0.0
    %977 = vmatprep.subr.mxu0 0.0
    %978 = vmatpush2.msra.mxu0 0.0
    %979 = vmatprep.subr.mxu0 0.0
    %980 = vmatpush2.msra.mxu0 0.0
    %981 = vmatprep.subr.mxu0 0.0
    %982 = vmatpush2.msra.mxu0 0.0
    %983 = vmatprep.subr.mxu0 0.0
    %984 = vmatpush2.msra.mxu0 0.0
    %985 = vmatprep.subr.mxu0 0.0
    %986 = vmatpush2.msra.mxu0 0.0
    %987 = vmatprep.subr.mxu0 0.0
    %988 = vmatpush2.msra.mxu0 0.0
    %989 = vmatprep.subr.mxu0 0.0
    %990 = vmatpush2.msra.mxu0 0.0
    %991 = vmatprep.subr.mxu0 0.0
    %992 = vmatpush2.msra.mxu0 0.0
    %993 = vmatprep.subr.mxu0 0.0
    %994 = vmatpush2.msra.mxu0 0.0
    %995 = vmatprep.subr.mxu0 0.0
    %996 = vmatpush2.msra.mxu0 0.0
    %997 = vmatprep.subr.mxu0 0.0
    %998 = vmatpush2.msra.mxu0 0.0
    %999 = vmatprep.mubr.f32.mxu0 0.0
    %1000 = vmatmul.mubr.f32.gmra.mxu0 %v930
    %v1001 = vpop.f32.mrf.mxu0
    %v1002 = vadd.f32 0.0, %v1001
    %v1003 = vpop.f32.mrf.mxu0
    %1004 = vmatprep.mubr.f32.mxu0 0.0
    %1005 = vmatmul.mubr.f32.gmra.mxu0 %v933
    %v1006 = vpop.f32.mrf.mxu0
    %v1007 = vadd.f32 0.0, %v1006
    %v1008 = vpop.f32.mrf.mxu0
    %1009 = vdwg.mxu0
    %1010 = vmatprep.subr.mxu0 0.0
    %1011 = vmatpush1.msra.mxu0 0.0
    %1012 = vmatprep.subr.mxu0 0.0
    %1013 = vmatpush1.msra.mxu0 0.0
    %1014 = vmatprep.subr.mxu0 0.0
    %1015 = vmatpush1.msra.mxu0 0.0
    %1016 = vmatprep.subr.mxu0 0.0
    %1017 = vmatpush1.msra.mxu0 0.0
    %1018 = vmatprep.subr.mxu0 0.0
    %1019 = vmatpush1.msra.mxu0 0.0
    %1020 = vmatprep.subr.mxu0 0.0
    %1021 = vmatpush1.msra.mxu0 0.0
    %1022 = vmatprep.subr.mxu0 0.0
    %1023 = vmatpush1.msra.mxu0 0.0
    %1024 = vmatprep.subr.mxu0 0.0
    %1025 = vmatpush1.msra.mxu0 0.0
    %1026 = vmatprep.subr.mxu0 0.0
    %1027 = vmatpush1.msra.mxu0 0.0
    %1028 = vmatprep.subr.mxu0 0.0
    %1029 = vmatpush1.msra.mxu0 0.0
    %1030 = vmatprep.subr.mxu0 0.0
    %1031 = vmatpush1.msra.mxu0 0.0
    %1032 = vmatprep.subr.mxu0 0.0
    %1033 = vmatpush1.msra.mxu0 0.0
    %1034 = vmatprep.subr.mxu0 0.0
    %1035 = vmatpush1.msra.mxu0 0.0
    %1036 = vmatprep.subr.mxu0 0.0
    %1037 = vmatpush1.msra.mxu0 0.0
    %1038 = vmatprep.subr.mxu0 0.0
    %1039 = vmatpush1.msra.mxu0 %v1007
    %1040 = vmatprep.subr.mxu0 0.0
    %1041 = vmatpush1.msra.mxu0 %v1002
    %1042 = vmatprep.subr.mxu0 0.0
    %1043 = vmatpush2.msra.mxu0 0.0
    %1044 = vmatprep.subr.mxu0 0.0
    %1045 = vmatpush2.msra.mxu0 0.0
    %1046 = vmatprep.subr.mxu0 0.0
    %1047 = vmatpush2.msra.mxu0 0.0
    %1048 = vmatprep.subr.mxu0 0.0
    %1049 = vmatpush2.msra.mxu0 0.0
    %1050 = vmatprep.subr.mxu0 0.0
    %1051 = vmatpush2.msra.mxu0 0.0
    %1052 = vmatprep.subr.mxu0 0.0
    %1053 = vmatpush2.msra.mxu0 0.0
    %1054 = vmatprep.subr.mxu0 0.0
    %1055 = vmatpush2.msra.mxu0 0.0
    %1056 = vmatprep.subr.mxu0 0.0
    %1057 = vmatpush2.msra.mxu0 0.0
    %1058 = vmatprep.subr.mxu0 0.0
    %1059 = vmatpush2.msra.mxu0 0.0
    %1060 = vmatprep.subr.mxu0 0.0
    %1061 = vmatpush2.msra.mxu0 0.0
    %1062 = vmatprep.subr.mxu0 0.0
    %1063 = vmatpush2.msra.mxu0 0.0
    %1064 = vmatprep.subr.mxu0 0.0
    %1065 = vmatpush2.msra.mxu0 0.0
    %1066 = vmatprep.subr.mxu0 0.0
    %1067 = vmatpush2.msra.mxu0 0.0
    %1068 = vmatprep.subr.mxu0 0.0
    %1069 = vmatpush2.msra.mxu0 0.0
    %1070 = vmatprep.subr.mxu0 0.0
    %1071 = vmatpush2.msra.mxu0 0.0
    %1072 = vmatprep.subr.mxu0 0.0
    %1073 = vmatpush2.msra.mxu0 0.0
    %1074 = vmatprep.mubr.f32.mxu0 0.0
    %1075 = vmatmul.mubr.f32.gmra.mxu0 %v164
    %v1076 = vpop.f32.mrf.mxu0
    %v1077 = vadd.f32 0.0, %v1076
    %v1078 = vpop.f32.mrf.mxu0
    %1079 = vmatprep.mubr.f32.mxu0 0.0
    %1080 = vmatmul.mubr.f32.gmra.mxu0 %v167
    %v1081 = vpop.f32.mrf.mxu0
    %v1082 = vadd.f32 0.0, %v1081
    %v1083 = vpop.f32.mrf.mxu0
    %1084 = vdwg.mxu0
    %v1086 = vsel %vm81, %v927, 0
    %v1089 = vsel %vm81, %v928, 0
    %1091 = vmatprep.subr.mxu0 0.0
    %1092 = vmatpush1.msra.mxu0 0.0
    %1093 = vmatprep.subr.mxu0 0.0
    %1094 = vmatpush1.msra.mxu0 0.0
    %1095 = vmatprep.subr.mxu0 0.0
    %1096 = vmatpush1.msra.mxu0 0.0
    %1097 = vmatprep.subr.mxu0 0.0
    %1098 = vmatpush1.msra.mxu0 0.0
    %1099 = vmatprep.subr.mxu0 0.0
    %1100 = vmatpush1.msra.mxu0 0.0
    %1101 = vmatprep.subr.mxu0 0.0
    %1102 = vmatpush1.msra.mxu0 0.0
    %1103 = vmatprep.subr.mxu0 0.0
    %1104 = vmatpush1.msra.mxu0 0.0
    %1105 = vmatprep.subr.mxu0 0.0
    %1106 = vmatpush1.msra.mxu0 0.0
    %1107 = vmatprep.subr.mxu0 0.0
    %1108 = vmatpush1.msra.mxu0 0.0
    %1109 = vmatprep.subr.mxu0 0.0
    %1110 = vmatpush1.msra.mxu0 0.0
    %1111 = vmatprep.subr.mxu0 0.0
    %1112 = vmatpush1.msra.mxu0 0.0
    %1113 = vmatprep.subr.mxu0 0.0
    %1114 = vmatpush1.msra.mxu0 0.0
    %1115 = vmatprep.subr.mxu0 0.0
    %1116 = vmatpush1.msra.mxu0 0.0
    %1117 = vmatprep.subr.mxu0 0.0
    %1118 = vmatpush1.msra.mxu0 0.0
    %1119 = vmatprep.subr.mxu0 0.0
    %1120 = vmatpush1.msra.mxu0 %v76
    %1121 = vmatprep.subr.mxu0 0.0
    %1122 = vmatpush1.msra.mxu0 %v75
    %1123 = vmatprep.subr.mxu0 0.0
    %1124 = vmatpush2.msra.mxu0 0.0
    %1125 = vmatprep.subr.mxu0 0.0
    %1126 = vmatpush2.msra.mxu0 0.0
    %1127 = vmatprep.subr.mxu0 0.0
    %1128 = vmatpush2.msra.mxu0 0.0
    %1129 = vmatprep.subr.mxu0 0.0
    %1130 = vmatpush2.msra.mxu0 0.0
    %1131 = vmatprep.subr.mxu0 0.0
    %1132 = vmatpush2.msra.mxu0 0.0
    %1133 = vmatprep.subr.mxu0 0.0
    %1134 = vmatpush2.msra.mxu0 0.0
    %1135 = vmatprep.subr.mxu0 0.0
    %1136 = vmatpush2.msra.mxu0 0.0
    %1137 = vmatprep.subr.mxu0 0.0
    %1138 = vmatpush2.msra.mxu0 0.0
    %1139 = vmatprep.subr.mxu0 0.0
    %1140 = vmatpush2.msra.mxu0 0.0
    %1141 = vmatprep.subr.mxu0 0.0
    %1142 = vmatpush2.msra.mxu0 0.0
    %1143 = vmatprep.subr.mxu0 0.0
    %1144 = vmatpush2.msra.mxu0 0.0
    %1145 = vmatprep.subr.mxu0 0.0
    %1146 = vmatpush2.msra.mxu0 0.0
    %1147 = vmatprep.subr.mxu0 0.0
    %1148 = vmatpush2.msra.mxu0 0.0
    %1149 = vmatprep.subr.mxu0 0.0
    %1150 = vmatpush2.msra.mxu0 0.0
    %1151 = vmatprep.subr.mxu0 0.0
    %1152 = vmatpush2.msra.mxu0 0.0
    %1153 = vmatprep.subr.mxu0 0.0
    %1154 = vmatpush2.msra.mxu0 0.0
    %1155 = vmatprep.mubr.f32.mxu0 0.0
    %1156 = vmatmul.mubr.f32.gmra.mxu0 %v1086
    %v1157 = vpop.f32.mrf.mxu0
    %v1158 = vadd.f32 0.0, %v1157
    %v1159 = vpop.f32.mrf.mxu0
    %1160 = vmatprep.mubr.f32.mxu0 0.0
    %1161 = vmatmul.mubr.f32.gmra.mxu0 %v1089
    %v1162 = vpop.f32.mrf.mxu0
    %v1163 = vadd.f32 0.0, %v1162
    %v1164 = vpop.f32.mrf.mxu0
    %1165 = vdwg.mxu0
    %1166 = vmatprep.subr.mxu0 0.0
    %1167 = vmatpush1.msra.mxu0 0.0
    %1168 = vmatprep.subr.mxu0 0.0
    %1169 = vmatpush1.msra.mxu0 0.0
    %1170 = vmatprep.subr.mxu0 0.0
    %1171 = vmatpush1.msra.mxu0 0.0
    %1172 = vmatprep.subr.mxu0 0.0
    %1173 = vmatpush1.msra.mxu0 0.0
    %1174 = vmatprep.subr.mxu0 0.0
    %1175 = vmatpush1.msra.mxu0 0.0
    %1176 = vmatprep.subr.mxu0 0.0
    %1177 = vmatpush1.msra.mxu0 0.0
    %1178 = vmatprep.subr.mxu0 0.0
    %1179 = vmatpush1.msra.mxu0 0.0
    %1180 = vmatprep.subr.mxu0 0.0
    %1181 = vmatpush1.msra.mxu0 0.0
    %1182 = vmatprep.subr.mxu0 0.0
    %1183 = vmatpush1.msra.mxu0 0.0
    %1184 = vmatprep.subr.mxu0 0.0
    %1185 = vmatpush1.msra.mxu0 0.0
    %1186 = vmatprep.subr.mxu0 0.0
    %1187 = vmatpush1.msra.mxu0 0.0
    %1188 = vmatprep.subr.mxu0 0.0
    %1189 = vmatpush1.msra.mxu0 0.0
    %1190 = vmatprep.subr.mxu0 0.0
    %1191 = vmatpush1.msra.mxu0 0.0
    %1192 = vmatprep.subr.mxu0 0.0
    %1193 = vmatpush1.msra.mxu0 0.0
    %1194 = vmatprep.subr.mxu0 0.0
    %1195 = vmatpush1.msra.mxu0 %v1163
    %1196 = vmatprep.subr.mxu0 0.0
    %1197 = vmatpush1.msra.mxu0 %v1158
    %1198 = vmatprep.subr.mxu0 0.0
    %1199 = vmatpush2.msra.mxu0 0.0
    %1200 = vmatprep.subr.mxu0 0.0
    %1201 = vmatpush2.msra.mxu0 0.0
    %1202 = vmatprep.subr.mxu0 0.0
    %1203 = vmatpush2.msra.mxu0 0.0
    %1204 = vmatprep.subr.mxu0 0.0
    %1205 = vmatpush2.msra.mxu0 0.0
    %1206 = vmatprep.subr.mxu0 0.0
    %1207 = vmatpush2.msra.mxu0 0.0
    %1208 = vmatprep.subr.mxu0 0.0
    %1209 = vmatpush2.msra.mxu0 0.0
    %1210 = vmatprep.subr.mxu0 0.0
    %1211 = vmatpush2.msra.mxu0 0.0
    %1212 = vmatprep.subr.mxu0 0.0
    %1213 = vmatpush2.msra.mxu0 0.0
    %1214 = vmatprep.subr.mxu0 0.0
    %1215 = vmatpush2.msra.mxu0 0.0
    %1216 = vmatprep.subr.mxu0 0.0
    %1217 = vmatpush2.msra.mxu0 0.0
    %1218 = vmatprep.subr.mxu0 0.0
    %1219 = vmatpush2.msra.mxu0 0.0
    %1220 = vmatprep.subr.mxu0 0.0
    %1221 = vmatpush2.msra.mxu0 0.0
    %1222 = vmatprep.subr.mxu0 0.0
    %1223 = vmatpush2.msra.mxu0 0.0
    %1224 = vmatprep.subr.mxu0 0.0
    %1225 = vmatpush2.msra.mxu0 0.0
    %1226 = vmatprep.subr.mxu0 0.0
    %1227 = vmatpush2.msra.mxu0 0.0
    %1228 = vmatprep.subr.mxu0 0.0
    %1229 = vmatpush2.msra.mxu0 0.0
    %1230 = vmatprep.mubr.f32.mxu0 0.0
    %1231 = vmatmul.mubr.f32.gmra.mxu0 %v164
    %v1232 = vpop.f32.mrf.mxu0
    %v1233 = vadd.f32 0.0, %v1232
    %v1234 = vpop.f32.mrf.mxu0
    %1235 = vmatprep.mubr.f32.mxu0 0.0
    %1236 = vmatmul.mubr.f32.gmra.mxu0 %v167
    %v1237 = vpop.f32.mrf.mxu0
    %v1238 = vadd.f32 0.0, %v1237
    %v1239 = vpop.f32.mrf.mxu0
    %1240 = vdwg.mxu0
    %v1241 = vmul.f32 %v1077, %v1077
    %v1242 = vmul.f32 %v1082, %v1082
    %v1243 = vmul.f32 %v1233, %v1233
    %v1244 = vmul.f32 %v1238, %v1238
    %v1245 = vmul.f32 %v1077, %v1233
    %v1246 = vmul.f32 %v1082, %v1238
    %v1247 = vmul.f32 %v924, %v924
    %v1248 = vmul.f32 %v925, %v925
    %v1250 = vsel %vm81, %v1247, 0
    %v1253 = vsel %vm81, %v1248, 0
    %1255 = vmatprep.subr.mxu0 0.0
    %1256 = vmatpush1.msra.mxu0 0.0
    %1257 = vmatprep.subr.mxu0 0.0
    %1258 = vmatpush1.msra.mxu0 0.0
    %1259 = vmatprep.subr.mxu0 0.0
    %1260 = vmatpush1.msra.mxu0 0.0
    %1261 = vmatprep.subr.mxu0 0.0
    %1262 = vmatpush1.msra.mxu0 0.0
    %1263 = vmatprep.subr.mxu0 0.0
    %1264 = vmatpush1.msra.mxu0 0.0
    %1265 = vmatprep.subr.mxu0 0.0
    %1266 = vmatpush1.msra.mxu0 0.0
    %1267 = vmatprep.subr.mxu0 0.0
    %1268 = vmatpush1.msra.mxu0 0.0
    %1269 = vmatprep.subr.mxu0 0.0
    %1270 = vmatpush1.msra.mxu0 0.0
    %1271 = vmatprep.subr.mxu0 0.0
    %1272 = vmatpush1.msra.mxu0 0.0
    %1273 = vmatprep.subr.mxu0 0.0
    %1274 = vmatpush1.msra.mxu0 0.0
    %1275 = vmatprep.subr.mxu0 0.0
    %1276 = vmatpush1.msra.mxu0 0.0
    %1277 = vmatprep.subr.mxu0 0.0
    %1278 = vmatpush1.msra.mxu0 0.0
    %1279 = vmatprep.subr.mxu0 0.0
    %1280 = vmatpush1.msra.mxu0 0.0
    %1281 = vmatprep.subr.mxu0 0.0
    %1282 = vmatpush1.msra.mxu0 0.0
    %1283 = vmatprep.subr.mxu0 0.0
    %1284 = vmatpush1.msra.mxu0 %v76
    %1285 = vmatprep.subr.mxu0 0.0
    %1286 = vmatpush1.msra.mxu0 %v75
    %1287 = vmatprep.subr.mxu0 0.0
    %1288 = vmatpush2.msra.mxu0 0.0
    %1289 = vmatprep.subr.mxu0 0.0
    %1290 = vmatpush2.msra.mxu0 0.0
    %1291 = vmatprep.subr.mxu0 0.0
    %1292 = vmatpush2.msra.mxu0 0.0
    %1293 = vmatprep.subr.mxu0 0.0
    %1294 = vmatpush2.msra.mxu0 0.0
    %1295 = vmatprep.subr.mxu0 0.0
    %1296 = vmatpush2.msra.mxu0 0.0
    %1297 = vmatprep.subr.mxu0 0.0
    %1298 = vmatpush2.msra.mxu0 0.0
    %1299 = vmatprep.subr.mxu0 0.0
    %1300 = vmatpush2.msra.mxu0 0.0
    %1301 = vmatprep.subr.mxu0 0.0
    %1302 = vmatpush2.msra.mxu0 0.0
    %1303 = vmatprep.subr.mxu0 0.0
    %1304 = vmatpush2.msra.mxu0 0.0
    %1305 = vmatprep.subr.mxu0 0.0
    %1306 = vmatpush2.msra.mxu0 0.0
    %1307 = vmatprep.subr.mxu0 0.0
    %1308 = vmatpush2.msra.mxu0 0.0
    %1309 = vmatprep.subr.mxu0 0.0
    %1310 = vmatpush2.msra.mxu0 0.0
    %1311 = vmatprep.subr.mxu0 0.0
    %1312 = vmatpush2.msra.mxu0 0.0
    %1313 = vmatprep.subr.mxu0 0.0
    %1314 = vmatpush2.msra.mxu0 0.0
    %1315 = vmatprep.subr.mxu0 0.0
    %1316 = vmatpush2.msra.mxu0 0.0
    %1317 = vmatprep.subr.mxu0 0.0
    %1318 = vmatpush2.msra.mxu0 0.0
    %1319 = vmatprep.mubr.f32.mxu0 0.0
    %1320 = vmatmul.mubr.f32.gmra.mxu0 %v1250
    %v1321 = vpop.f32.mrf.mxu0
    %v1322 = vadd.f32 0.0, %v1321
    %v1323 = vpop.f32.mrf.mxu0
    %1324 = vmatprep.mubr.f32.mxu0 0.0
    %1325 = vmatmul.mubr.f32.gmra.mxu0 %v1253
    %v1326 = vpop.f32.mrf.mxu0
    %v1327 = vadd.f32 0.0, %v1326
    %v1328 = vpop.f32.mrf.mxu0
    %1329 = vdwg.mxu0
    %1330 = vmatprep.subr.mxu0 0.0
    %1331 = vmatpush1.msra.mxu0 0.0
    %1332 = vmatprep.subr.mxu0 0.0
    %1333 = vmatpush1.msra.mxu0 0.0
    %1334 = vmatprep.subr.mxu0 0.0
    %1335 = vmatpush1.msra.mxu0 0.0
    %1336 = vmatprep.subr.mxu0 0.0
    %1337 = vmatpush1.msra.mxu0 0.0
    %1338 = vmatprep.subr.mxu0 0.0
    %1339 = vmatpush1.msra.mxu0 0.0
    %1340 = vmatprep.subr.mxu0 0.0
    %1341 = vmatpush1.msra.mxu0 0.0
    %1342 = vmatprep.subr.mxu0 0.0
    %1343 = vmatpush1.msra.mxu0 0.0
    %1344 = vmatprep.subr.mxu0 0.0
    %1345 = vmatpush1.msra.mxu0 0.0
    %1346 = vmatprep.subr.mxu0 0.0
    %1347 = vmatpush1.msra.mxu0 0.0
    %1348 = vmatprep.subr.mxu0 0.0
    %1349 = vmatpush1.msra.mxu0 0.0
    %1350 = vmatprep.subr.mxu0 0.0
    %1351 = vmatpush1.msra.mxu0 0.0
    %1352 = vmatprep.subr.mxu0 0.0
    %1353 = vmatpush1.msra.mxu0 0.0
    %1354 = vmatprep.subr.mxu0 0.0
    %1355 = vmatpush1.msra.mxu0 0.0
    %1356 = vmatprep.subr.mxu0 0.0
    %1357 = vmatpush1.msra.mxu0 0.0
    %1358 = vmatprep.subr.mxu0 0.0
    %1359 = vmatpush1.msra.mxu0 %v1327
    %1360 = vmatprep.subr.mxu0 0.0
    %1361 = vmatpush1.msra.mxu0 %v1322
    %1362 = vmatprep.subr.mxu0 0.0
    %1363 = vmatpush2.msra.mxu0 0.0
    %1364 = vmatprep.subr.mxu0 0.0
    %1365 = vmatpush2.msra.mxu0 0.0
    %1366 = vmatprep.subr.mxu0 0.0
    %1367 = vmatpush2.msra.mxu0 0.0
    %1368 = vmatprep.subr.mxu0 0.0
    %1369 = vmatpush2.msra.mxu0 0.0
    %1370 = vmatprep.subr.mxu0 0.0
    %1371 = vmatpush2.msra.mxu0 0.0
    %1372 = vmatprep.subr.mxu0 0.0
    %1373 = vmatpush2.msra.mxu0 0.0
    %1374 = vmatprep.subr.mxu0 0.0
    %1375 = vmatpush2.msra.mxu0 0.0
    %1376 = vmatprep.subr.mxu0 0.0
    %1377 = vmatpush2.msra.mxu0 0.0
    %1378 = vmatprep.subr.mxu0 0.0
    %1379 = vmatpush2.msra.mxu0 0.0
    %1380 = vmatprep.subr.mxu0 0.0
    %1381 = vmatpush2.msra.mxu0 0.0
    %1382 = vmatprep.subr.mxu0 0.0
    %1383 = vmatpush2.msra.mxu0 0.0
    %1384 = vmatprep.subr.mxu0 0.0
    %1385 = vmatpush2.msra.mxu0 0.0
    %1386 = vmatprep.subr.mxu0 0.0
    %1387 = vmatpush2.msra.mxu0 0.0
    %1388 = vmatprep.subr.mxu0 0.0
    %1389 = vmatpush2.msra.mxu0 0.0
    %1390 = vmatprep.subr.mxu0 0.0
    %1391 = vmatpush2.msra.mxu0 0.0
    %1392 = vmatprep.subr.mxu0 0.0
    %1393 = vmatpush2.msra.mxu0 0.0
    %1394 = vmatprep.mubr.f32.mxu0 0.0
    %1395 = vmatmul.mubr.f32.gmra.mxu0 %v164
    %v1396 = vpop.f32.mrf.mxu0
    %v1397 = vadd.f32 0.0, %v1396
    %v1398 = vpop.f32.mrf.mxu0
    %1399 = vmatprep.mubr.f32.mxu0 0.0
    %1400 = vmatmul.mubr.f32.gmra.mxu0 %v167
    %v1401 = vpop.f32.mrf.mxu0
    %v1402 = vadd.f32 0.0, %v1401
    %v1403 = vpop.f32.mrf.mxu0
    %1404 = vdwg.mxu0
    %v1405 = vsub.f32 %v1397, %v1241
    %v1406 = vsub.f32 %v1402, %v1242
    %v1407 = vmul.f32 %v927, %v927
    %v1408 = vmul.f32 %v928, %v928
    %v1410 = vsel %vm81, %v1407, 0
    %v1413 = vsel %vm81, %v1408, 0
    %1415 = vmatprep.subr.mxu0 0.0
    %1416 = vmatpush1.msra.mxu0 0.0
    %1417 = vmatprep.subr.mxu0 0.0
    %1418 = vmatpush1.msra.mxu0 0.0
    %1419 = vmatprep.subr.mxu0 0.0
    %1420 = vmatpush1.msra.mxu0 0.0
    %1421 = vmatprep.subr.mxu0 0.0
    %1422 = vmatpush1.msra.mxu0 0.0
    %1423 = vmatprep.subr.mxu0 0.0
    %1424 = vmatpush1.msra.mxu0 0.0
    %1425 = vmatprep.subr.mxu0 0.0
    %1426 = vmatpush1.msra.mxu0 0.0
    %1427 = vmatprep.subr.mxu0 0.0
    %1428 = vmatpush1.msra.mxu0 0.0
    %1429 = vmatprep.subr.mxu0 0.0
    %1430 = vmatpush1.msra.mxu0 0.0
    %1431 = vmatprep.subr.mxu0 0.0
    %1432 = vmatpush1.msra.mxu0 0.0
    %1433 = vmatprep.subr.mxu0 0.0
    %1434 = vmatpush1.msra.mxu0 0.0
    %1435 = vmatprep.subr.mxu0 0.0
    %1436 = vmatpush1.msra.mxu0 0.0
    %1437 = vmatprep.subr.mxu0 0.0
    %1438 = vmatpush1.msra.mxu0 0.0
    %1439 = vmatprep.subr.mxu0 0.0
    %1440 = vmatpush1.msra.mxu0 0.0
    %1441 = vmatprep.subr.mxu0 0.0
    %1442 = vmatpush1.msra.mxu0 0.0
    %1443 = vmatprep.subr.mxu0 0.0
    %1444 = vmatpush1.msra.mxu0 %v76
    %1445 = vmatprep.subr.mxu0 0.0
    %1446 = vmatpush1.msra.mxu0 %v75
    %1447 = vmatprep.subr.mxu0 0.0
    %1448 = vmatpush2.msra.mxu0 0.0
    %1449 = vmatprep.subr.mxu0 0.0
    %1450 = vmatpush2.msra.mxu0 0.0
    %1451 = vmatprep.subr.mxu0 0.0
    %1452 = vmatpush2.msra.mxu0 0.0
    %1453 = vmatprep.subr.mxu0 0.0
    %1454 = vmatpush2.msra.mxu0 0.0
    %1455 = vmatprep.subr.mxu0 0.0
    %1456 = vmatpush2.msra.mxu0 0.0
    %1457 = vmatprep.subr.mxu0 0.0
    %1458 = vmatpush2.msra.mxu0 0.0
    %1459 = vmatprep.subr.mxu0 0.0
    %1460 = vmatpush2.msra.mxu0 0.0
    %1461 = vmatprep.subr.mxu0 0.0
    %1462 = vmatpush2.msra.mxu0 0.0
    %1463 = vmatprep.subr.mxu0 0.0
    %1464 = vmatpush2.msra.mxu0 0.0
    %1465 = vmatprep.subr.mxu0 0.0
    %1466 = vmatpush2.msra.mxu0 0.0
    %1467 = vmatprep.subr.mxu0 0.0
    %1468 = vmatpush2.msra.mxu0 0.0
    %1469 = vmatprep.subr.mxu0 0.0
    %1470 = vmatpush2.msra.mxu0 0.0
    %1471 = vmatprep.subr.mxu0 0.0
    %1472 = vmatpush2.msra.mxu0 0.0
    %1473 = vmatprep.subr.mxu0 0.0
    %1474 = vmatpush2.msra.mxu0 0.0
    %1475 = vmatprep.subr.mxu0 0.0
    %1476 = vmatpush2.msra.mxu0 0.0
    %1477 = vmatprep.subr.mxu0 0.0
    %1478 = vmatpush2.msra.mxu0 0.0
    %1479 = vmatprep.mubr.f32.mxu0 0.0
    %1480 = vmatmul.mubr.f32.gmra.mxu0 %v1410
    %v1481 = vpop.f32.mrf.mxu0
    %v1482 = vadd.f32 0.0, %v1481
    %v1483 = vpop.f32.mrf.mxu0
    %1484 = vmatprep.mubr.f32.mxu0 0.0
    %1485 = vmatmul.mubr.f32.gmra.mxu0 %v1413
    %v1486 = vpop.f32.mrf.mxu0
    %v1487 = vadd.f32 0.0, %v1486
    %v1488 = vpop.f32.mrf.mxu0
    %1489 = vdwg.mxu0
    %1490 = vmatprep.subr.mxu0 0.0
    %1491 = vmatpush1.msra.mxu0 0.0
    %1492 = vmatprep.subr.mxu0 0.0
    %1493 = vmatpush1.msra.mxu0 0.0
    %1494 = vmatprep.subr.mxu0 0.0
    %1495 = vmatpush1.msra.mxu0 0.0
    %1496 = vmatprep.subr.mxu0 0.0
    %1497 = vmatpush1.msra.mxu0 0.0
    %1498 = vmatprep.subr.mxu0 0.0
    %1499 = vmatpush1.msra.mxu0 0.0
    %1500 = vmatprep.subr.mxu0 0.0
    %1501 = vmatpush1.msra.mxu0 0.0
    %1502 = vmatprep.subr.mxu0 0.0
    %1503 = vmatpush1.msra.mxu0 0.0
    %1504 = vmatprep.subr.mxu0 0.0
    %1505 = vmatpush1.msra.mxu0 0.0
    %1506 = vmatprep.subr.mxu0 0.0
    %1507 = vmatpush1.msra.mxu0 0.0
    %1508 = vmatprep.subr.mxu0 0.0
    %1509 = vmatpush1.msra.mxu0 0.0
    %1510 = vmatprep.subr.mxu0 0.0
    %1511 = vmatpush1.msra.mxu0 0.0
    %1512 = vmatprep.subr.mxu0 0.0
    %1513 = vmatpush1.msra.mxu0 0.0
    %1514 = vmatprep.subr.mxu0 0.0
    %1515 = vmatpush1.msra.mxu0 0.0
    %1516 = vmatprep.subr.mxu0 0.0
    %1517 = vmatpush1.msra.mxu0 0.0
    %1518 = vmatprep.subr.mxu0 0.0
    %1519 = vmatpush1.msra.mxu0 %v1487
    %1520 = vmatprep.subr.mxu0 0.0
    %1521 = vmatpush1.msra.mxu0 %v1482
    %1522 = vmatprep.subr.mxu0 0.0
    %1523 = vmatpush2.msra.mxu0 0.0
    %1524 = vmatprep.subr.mxu0 0.0
    %1525 = vmatpush2.msra.mxu0 0.0
    %1526 = vmatprep.subr.mxu0 0.0
    %1527 = vmatpush2.msra.mxu0 0.0
    %1528 = vmatprep.subr.mxu0 0.0
    %1529 = vmatpush2.msra.mxu0 0.0
    %1530 = vmatprep.subr.mxu0 0.0
    %1531 = vmatpush2.msra.mxu0 0.0
    %1532 = vmatprep.subr.mxu0 0.0
    %1533 = vmatpush2.msra.mxu0 0.0
    %1534 = vmatprep.subr.mxu0 0.0
    %1535 = vmatpush2.msra.mxu0 0.0
    %1536 = vmatprep.subr.mxu0 0.0
    %1537 = vmatpush2.msra.mxu0 0.0
    %1538 = vmatprep.subr.mxu0 0.0
    %1539 = vmatpush2.msra.mxu0 0.0
    %1540 = vmatprep.subr.mxu0 0.0
    %1541 = vmatpush2.msra.mxu0 0.0
    %1542 = vmatprep.subr.mxu0 0.0
    %1543 = vmatpush2.msra.mxu0 0.0
    %1544 = vmatprep.subr.mxu0 0.0
    %1545 = vmatpush2.msra.mxu0 0.0
    %1546 = vmatprep.subr.mxu0 0.0
    %1547 = vmatpush2.msra.mxu0 0.0
    %1548 = vmatprep.subr.mxu0 0.0
    %1549 = vmatpush2.msra.mxu0 0.0
    %1550 = vmatprep.subr.mxu0 0.0
    %1551 = vmatpush2.msra.mxu0 0.0
    %1552 = vmatprep.subr.mxu0 0.0
    %1553 = vmatpush2.msra.mxu0 0.0
    %1554 = vmatprep.mubr.f32.mxu0 0.0
    %1555 = vmatmul.mubr.f32.gmra.mxu0 %v164
    %v1556 = vpop.f32.mrf.mxu0
    %v1557 = vadd.f32 0.0, %v1556
    %v1558 = vpop.f32.mrf.mxu0
    %1559 = vmatprep.mubr.f32.mxu0 0.0
    %1560 = vmatmul.mubr.f32.gmra.mxu0 %v167
    %v1561 = vpop.f32.mrf.mxu0
    %v1562 = vadd.f32 0.0, %v1561
    %v1563 = vpop.f32.mrf.mxu0
    %1564 = vdwg.mxu0
    %v1565 = vsub.f32 %v1557, %v1243
    %v1566 = vsub.f32 %v1562, %v1244
    %v1567 = vmul.f32 %v924, %v927
    %v1568 = vmul.f32 %v925, %v928
    %v1570 = vsel %vm81, %v1567, 0
    %v1573 = vsel %vm81, %v1568, 0
    %1575 = vmatprep.subr.mxu0 0.0
    %1576 = vmatpush1.msra.mxu0 0.0
    %1577 = vmatprep.subr.mxu0 0.0
    %1578 = vmatpush1.msra.mxu0 0.0
    %1579 = vmatprep.subr.mxu0 0.0
    %1580 = vmatpush1.msra.mxu0 0.0
    %1581 = vmatprep.subr.mxu0 0.0
    %1582 = vmatpush1.msra.mxu0 0.0
    %1583 = vmatprep.subr.mxu0 0.0
    %1584 = vmatpush1.msra.mxu0 0.0
    %1585 = vmatprep.subr.mxu0 0.0
    %1586 = vmatpush1.msra.mxu0 0.0
    %1587 = vmatprep.subr.mxu0 0.0
    %1588 = vmatpush1.msra.mxu0 0.0
    %1589 = vmatprep.subr.mxu0 0.0
    %1590 = vmatpush1.msra.mxu0 0.0
    %1591 = vmatprep.subr.mxu0 0.0
    %1592 = vmatpush1.msra.mxu0 0.0
    %1593 = vmatprep.subr.mxu0 0.0
    %1594 = vmatpush1.msra.mxu0 0.0
    %1595 = vmatprep.subr.mxu0 0.0
    %1596 = vmatpush1.msra.mxu0 0.0
    %1597 = vmatprep.subr.mxu0 0.0
    %1598 = vmatpush1.msra.mxu0 0.0
    %1599 = vmatprep.subr.mxu0 0.0
    %1600 = vmatpush1.msra.mxu0 0.0
    %1601 = vmatprep.subr.mxu0 0.0
    %1602 = vmatpush1.msra.mxu0 0.0
    %1603 = vmatprep.subr.mxu0 0.0
    %1604 = vmatpush1.msra.mxu0 %v76
    %1605 = vmatprep.subr.mxu0 0.0
    %1606 = vmatpush1.msra.mxu0 %v75
    %1607 = vmatprep.subr.mxu0 0.0
    %1608 = vmatpush2.msra.mxu0 0.0
    %1609 = vmatprep.subr.mxu0 0.0
    %1610 = vmatpush2.msra.mxu0 0.0
    %1611 = vmatprep.subr.mxu0 0.0
    %1612 = vmatpush2.msra.mxu0 0.0
    %1613 = vmatprep.subr.mxu0 0.0
    %1614 = vmatpush2.msra.mxu0 0.0
    %1615 = vmatprep.subr.mxu0 0.0
    %1616 = vmatpush2.msra.mxu0 0.0
    %1617 = vmatprep.subr.mxu0 0.0
    %1618 = vmatpush2.msra.mxu0 0.0
    %1619 = vmatprep.subr.mxu0 0.0
    %1620 = vmatpush2.msra.mxu0 0.0
    %1621 = vmatprep.subr.mxu0 0.0
    %1622 = vmatpush2.msra.mxu0 0.0
    %1623 = vmatprep.subr.mxu0 0.0
    %1624 = vmatpush2.msra.mxu0 0.0
    %1625 = vmatprep.subr.mxu0 0.0
    %1626 = vmatpush2.msra.mxu0 0.0
    %1627 = vmatprep.subr.mxu0 0.0
    %1628 = vmatpush2.msra.mxu0 0.0
    %1629 = vmatprep.subr.mxu0 0.0
    %1630 = vmatpush2.msra.mxu0 0.0
    %1631 = vmatprep.subr.mxu0 0.0
    %1632 = vmatpush2.msra.mxu0 0.0
    %1633 = vmatprep.subr.mxu0 0.0
    %1634 = vmatpush2.msra.mxu0 0.0
    %1635 = vmatprep.subr.mxu0 0.0
    %1636 = vmatpush2.msra.mxu0 0.0
    %1637 = vmatprep.subr.mxu0 0.0
    %1638 = vmatpush2.msra.mxu0 0.0
    %1639 = vmatprep.mubr.f32.mxu0 0.0
    %1640 = vmatmul.mubr.f32.gmra.mxu0 %v1570
    %v1641 = vpop.f32.mrf.mxu0
    %v1642 = vadd.f32 0.0, %v1641
    %v1643 = vpop.f32.mrf.mxu0
    %1644 = vmatprep.mubr.f32.mxu0 0.0
    %1645 = vmatmul.mubr.f32.gmra.mxu0 %v1573
    %v1646 = vpop.f32.mrf.mxu0
    %v1647 = vadd.f32 0.0, %v1646
    %v1648 = vpop.f32.mrf.mxu0
    %1649 = vdwg.mxu0
    %1650 = vmatprep.subr.mxu0 0.0
    %1651 = vmatpush1.msra.mxu0 0.0
    %1652 = vmatprep.subr.mxu0 0.0
    %1653 = vmatpush1.msra.mxu0 0.0
    %1654 = vmatprep.subr.mxu0 0.0
    %1655 = vmatpush1.msra.mxu0 0.0
    %1656 = vmatprep.subr.mxu0 0.0
    %1657 = vmatpush1.msra.mxu0 0.0
    %1658 = vmatprep.subr.mxu0 0.0
    %1659 = vmatpush1.msra.mxu0 0.0
    %1660 = vmatprep.subr.mxu0 0.0
    %1661 = vmatpush1.msra.mxu0 0.0
    %1662 = vmatprep.subr.mxu0 0.0
    %1663 = vmatpush1.msra.mxu0 0.0
    %1664 = vmatprep.subr.mxu0 0.0
    %1665 = vmatpush1.msra.mxu0 0.0
    %1666 = vmatprep.subr.mxu0 0.0
    %1667 = vmatpush1.msra.mxu0 0.0
    %1668 = vmatprep.subr.mxu0 0.0
    %1669 = vmatpush1.msra.mxu0 0.0
    %1670 = vmatprep.subr.mxu0 0.0
    %1671 = vmatpush1.msra.mxu0 0.0
    %1672 = vmatprep.subr.mxu0 0.0
    %1673 = vmatpush1.msra.mxu0 0.0
    %1674 = vmatprep.subr.mxu0 0.0
    %1675 = vmatpush1.msra.mxu0 0.0
    %1676 = vmatprep.subr.mxu0 0.0
    %1677 = vmatpush1.msra.mxu0 0.0
    %1678 = vmatprep.subr.mxu0 0.0
    %1679 = vmatpush1.msra.mxu0 %v1647
    %1680 = vmatprep.subr.mxu0 0.0
    %1681 = vmatpush1.msra.mxu0 %v1642
    %1682 = vmatprep.subr.mxu0 0.0
    %1683 = vmatpush2.msra.mxu0 0.0
    %1684 = vmatprep.subr.mxu0 0.0
    %1685 = vmatpush2.msra.mxu0 0.0
    %1686 = vmatprep.subr.mxu0 0.0
    %1687 = vmatpush2.msra.mxu0 0.0
    %1688 = vmatprep.subr.mxu0 0.0
    %1689 = vmatpush2.msra.mxu0 0.0
    %1690 = vmatprep.subr.mxu0 0.0
    %1691 = vmatpush2.msra.mxu0 0.0
    %1692 = vmatprep.subr.mxu0 0.0
    %1693 = vmatpush2.msra.mxu0 0.0
    %1694 = vmatprep.subr.mxu0 0.0
    %1695 = vmatpush2.msra.mxu0 0.0
    %1696 = vmatprep.subr.mxu0 0.0
    %1697 = vmatpush2.msra.mxu0 0.0
    %1698 = vmatprep.subr.mxu0 0.0
    %1699 = vmatpush2.msra.mxu0 0.0
    %1700 = vmatprep.subr.mxu0 0.0
    %1701 = vmatpush2.msra.mxu0 0.0
    %1702 = vmatprep.subr.mxu0 0.0
    %1703 = vmatpush2.msra.mxu0 0.0
    %1704 = vmatprep.subr.mxu0 0.0
    %1705 = vmatpush2.msra.mxu0 0.0
    %1706 = vmatprep.subr.mxu0 0.0
    %1707 = vmatpush2.msra.mxu0 0.0
    %1708 = vmatprep.subr.mxu0 0.0
    %1709 = vmatpush2.msra.mxu0 0.0
    %1710 = vmatprep.subr.mxu0 0.0
    %1711 = vmatpush2.msra.mxu0 0.0
    %1712 = vmatprep.subr.mxu0 0.0
    %1713 = vmatpush2.msra.mxu0 0.0
    %1714 = vmatprep.mubr.f32.mxu0 0.0
    %1715 = vmatmul.mubr.f32.gmra.mxu0 %v164
    %v1716 = vpop.f32.mrf.mxu0
    %v1717 = vadd.f32 0.0, %v1716
    %v1718 = vpop.f32.mrf.mxu0
    %1719 = vmatprep.mubr.f32.mxu0 0.0
    %1720 = vmatmul.mubr.f32.gmra.mxu0 %v167
    %v1721 = vpop.f32.mrf.mxu0
    %v1722 = vadd.f32 0.0, %v1721
    %v1723 = vpop.f32.mrf.mxu0
    %1724 = vdwg.mxu0
    %v1725 = vsub.f32 %v1717, %v1245
    %v1726 = vsub.f32 %v1722, %v1246
    %v1727 = vmul.f32 %v1245, 2.0
    %v1728 = vmul.f32 %v1246, 2.0
    %v1729 = vadd.f32 %v1727, 0.0001
    %v1730 = vadd.f32 %v1728, 0.0001
    %v1731 = vmul.f32 %v1725, 2.0
    %v1732 = vmul.f32 %v1726, 2.0
    %v1733 = vadd.f32 %v1731, 0.0009
    %v1734 = vadd.f32 %v1732, 0.0009
    %v1735 = vmul.f32 %v1729, %v1733
    %v1736 = vmul.f32 %v1730, %v1734
    %v1737 = vadd.f32 %v1241, %v1243
    %v1738 = vadd.f32 %v1242, %v1244
    %v1739 = vadd.f32 %v1737, 0.0001
    %v1740 = vadd.f32 %v1738, 0.0001
    %v1741 = vadd.f32 %v1405, %v1565
    %v1742 = vadd.f32 %v1406, %v1566
    %v1743 = vadd.f32 %v1741, 0.0009
    %v1744 = vadd.f32 %v1742, 0.0009
    %v1745 = vmul.f32 %v1739, %v1743
    %v1746 = vmul.f32 %v1740, %v1744
    %v1747 = vrcp.pop %v1745
    %v1748 = vmul.f32 %v1735, %v1747
    %v1749 = vrcp.pop %v1746
    %v1750 = vmul.f32 %v1736, %v1749
    %v1751 = vsel %vm81, %v1748, 0.0
    %v1752 = vsel %vm81, %v1750, 0.0
    %v1753 = vadd.f32 %v1751, %v1752
    %1754 = vadd.xlane.f32.xlu0 %v1753
    %v1755 = vpop.xlane.xlu0 %1754
    %v1756 = vrot.slane %v1755, 4
    %v1757 = vadd.f32 %v1755, %v1756
    %v1758 = vrot.slane %v1757, 2
    %v1759 = vadd.f32 %v1757, %v1758
    %v1760 = vrot.slane %v1759, 1
    %v1761 = vadd.f32 %v1759, %v1760
    %s1762 = vtos %v1761
    %v1763 = vstv %s1762
    %s1764 = scalar_lea.vmem [#allocation2], 32
    %v1765 = vld [vmem:[%s1764] sm:$0xff]
    %v1766 = vld [vmem:[%s1764 + $0x8] sm:$0xff]
    %s1767 = scalar_lea.vmem [#allocation5], 32
    %v1768 = vld [vmem:[%s1767] sm:$0xff]
    %v1769 = vld [vmem:[%s1767 + $0x8] sm:$0xff]
    %v1771 = vsel %vm81, %v1765, 0
    %v1774 = vsel %vm81, %v1766, 0
    %1776 = vmatprep.subr.mxu0 0.0
    %1777 = vmatpush1.msra.mxu0 0.0
    %1778 = vmatprep.subr.mxu0 0.0
    %1779 = vmatpush1.msra.mxu0 0.0
    %1780 = vmatprep.subr.mxu0 0.0
    %1781 = vmatpush1.msra.mxu0 0.0
    %1782 = vmatprep.subr.mxu0 0.0
    %1783 = vmatpush1.msra.mxu0 0.0
    %1784 = vmatprep.subr.mxu0 0.0
    %1785 = vmatpush1.msra.mxu0 0.0
    %1786 = vmatprep.subr.mxu0 0.0
    %1787 = vmatpush1.msra.mxu0 0.0
    %1788 = vmatprep.subr.mxu0 0.0
    %1789 = vmatpush1.msra.mxu0 0.0
    %1790 = vmatprep.subr.mxu0 0.0
    %1791 = vmatpush1.msra.mxu0 0.0
    %1792 = vmatprep.subr.mxu0 0.0
    %1793 = vmatpush1.msra.mxu0 0.0
    %1794 = vmatprep.subr.mxu0 0.0
    %1795 = vmatpush1.msra.mxu0 0.0
    %1796 = vmatprep.subr.mxu0 0.0
    %1797 = vmatpush1.msra.mxu0 0.0
    %1798 = vmatprep.subr.mxu0 0.0
    %1799 = vmatpush1.msra.mxu0 0.0
    %1800 = vmatprep.subr.mxu0 0.0
    %1801 = vmatpush1.msra.mxu0 0.0
    %1802 = vmatprep.subr.mxu0 0.0
    %1803 = vmatpush1.msra.mxu0 0.0
    %1804 = vmatprep.subr.mxu0 0.0
    %1805 = vmatpush1.msra.mxu0 %v76
    %1806 = vmatprep.subr.mxu0 0.0
    %1807 = vmatpush1.msra.mxu0 %v75
    %1808 = vmatprep.subr.mxu0 0.0
    %1809 = vmatpush2.msra.mxu0 0.0
    %1810 = vmatprep.subr.mxu0 0.0
    %1811 = vmatpush2.msra.mxu0 0.0
    %1812 = vmatprep.subr.mxu0 0.0
    %1813 = vmatpush2.msra.mxu0 0.0
    %1814 = vmatprep.subr.mxu0 0.0
    %1815 = vmatpush2.msra.mxu0 0.0
    %1816 = vmatprep.subr.mxu0 0.0
    %1817 = vmatpush2.msra.mxu0 0.0
    %1818 = vmatprep.subr.mxu0 0.0
    %1819 = vmatpush2.msra.mxu0 0.0
    %1820 = vmatprep.subr.mxu0 0.0
    %1821 = vmatpush2.msra.mxu0 0.0
    %1822 = vmatprep.subr.mxu0 0.0
    %1823 = vmatpush2.msra.mxu0 0.0
    %1824 = vmatprep.subr.mxu0 0.0
    %1825 = vmatpush2.msra.mxu0 0.0
    %1826 = vmatprep.subr.mxu0 0.0
    %1827 = vmatpush2.msra.mxu0 0.0
    %1828 = vmatprep.subr.mxu0 0.0
    %1829 = vmatpush2.msra.mxu0 0.0
    %1830 = vmatprep.subr.mxu0 0.0
    %1831 = vmatpush2.msra.mxu0 0.0
    %1832 = vmatprep.subr.mxu0 0.0
    %1833 = vmatpush2.msra.mxu0 0.0
    %1834 = vmatprep.subr.mxu0 0.0
    %1835 = vmatpush2.msra.mxu0 0.0
    %1836 = vmatprep.subr.mxu0 0.0
    %1837 = vmatpush2.msra.mxu0 0.0
    %1838 = vmatprep.subr.mxu0 0.0
    %1839 = vmatpush2.msra.mxu0 0.0
    %1840 = vmatprep.mubr.f32.mxu0 0.0
    %1841 = vmatmul.mubr.f32.gmra.mxu0 %v1771
    %v1842 = vpop.f32.mrf.mxu0
    %v1843 = vadd.f32 0.0, %v1842
    %v1844 = vpop.f32.mrf.mxu0
    %1845 = vmatprep.mubr.f32.mxu0 0.0
    %1846 = vmatmul.mubr.f32.gmra.mxu0 %v1774
    %v1847 = vpop.f32.mrf.mxu0
    %v1848 = vadd.f32 0.0, %v1847
    %v1849 = vpop.f32.mrf.mxu0
    %1850 = vdwg.mxu0
    %1851 = vmatprep.subr.mxu0 0.0
    %1852 = vmatpush1.msra.mxu0 0.0
    %1853 = vmatprep.subr.mxu0 0.0
    %1854 = vmatpush1.msra.mxu0 0.0
    %1855 = vmatprep.subr.mxu0 0.0
    %1856 = vmatpush1.msra.mxu0 0.0
    %1857 = vmatprep.subr.mxu0 0.0
    %1858 = vmatpush1.msra.mxu0 0.0
    %1859 = vmatprep.subr.mxu0 0.0
    %1860 = vmatpush1.msra.mxu0 0.0
    %1861 = vmatprep.subr.mxu0 0.0
    %1862 = vmatpush1.msra.mxu0 0.0
    %1863 = vmatprep.subr.mxu0 0.0
    %1864 = vmatpush1.msra.mxu0 0.0
    %1865 = vmatprep.subr.mxu0 0.0
    %1866 = vmatpush1.msra.mxu0 0.0
    %1867 = vmatprep.subr.mxu0 0.0
    %1868 = vmatpush1.msra.mxu0 0.0
    %1869 = vmatprep.subr.mxu0 0.0
    %1870 = vmatpush1.msra.mxu0 0.0
    %1871 = vmatprep.subr.mxu0 0.0
    %1872 = vmatpush1.msra.mxu0 0.0
    %1873 = vmatprep.subr.mxu0 0.0
    %1874 = vmatpush1.msra.mxu0 0.0
    %1875 = vmatprep.subr.mxu0 0.0
    %1876 = vmatpush1.msra.mxu0 0.0
    %1877 = vmatprep.subr.mxu0 0.0
    %1878 = vmatpush1.msra.mxu0 0.0
    %1879 = vmatprep.subr.mxu0 0.0
    %1880 = vmatpush1.msra.mxu0 %v1848
    %1881 = vmatprep.subr.mxu0 0.0
    %1882 = vmatpush1.msra.mxu0 %v1843
    %1883 = vmatprep.subr.mxu0 0.0
    %1884 = vmatpush2.msra.mxu0 0.0
    %1885 = vmatprep.subr.mxu0 0.0
    %1886 = vmatpush2.msra.mxu0 0.0
    %1887 = vmatprep.subr.mxu0 0.0
    %1888 = vmatpush2.msra.mxu0 0.0
    %1889 = vmatprep.subr.mxu0 0.0
    %1890 = vmatpush2.msra.mxu0 0.0
    %1891 = vmatprep.subr.mxu0 0.0
    %1892 = vmatpush2.msra.mxu0 0.0
    %1893 = vmatprep.subr.mxu0 0.0
    %1894 = vmatpush2.msra.mxu0 0.0
    %1895 = vmatprep.subr.mxu0 0.0
    %1896 = vmatpush2.msra.mxu0 0.0
    %1897 = vmatprep.subr.mxu0 0.0
    %1898 = vmatpush2.msra.mxu0 0.0
    %1899 = vmatprep.subr.mxu0 0.0
    %1900 = vmatpush2.msra.mxu0 0.0
    %1901 = vmatprep.subr.mxu0 0.0
    %1902 = vmatpush2.msra.mxu0 0.0
    %1903 = vmatprep.subr.mxu0 0.0
    %1904 = vmatpush2.msra.mxu0 0.0
    %1905 = vmatprep.subr.mxu0 0.0
    %1906 = vmatpush2.msra.mxu0 0.0
    %1907 = vmatprep.subr.mxu0 0.0
    %1908 = vmatpush2.msra.mxu0 0.0
    %1909 = vmatprep.subr.mxu0 0.0
    %1910 = vmatpush2.msra.mxu0 0.0
    %1911 = vmatprep.subr.mxu0 0.0
    %1912 = vmatpush2.msra.mxu0 0.0
    %1913 = vmatprep.subr.mxu0 0.0
    %1914 = vmatpush2.msra.mxu0 0.0
    %1915 = vmatprep.mubr.f32.mxu0 0.0
    %1916 = vmatmul.mubr.f32.gmra.mxu0 %v164
    %v1917 = vpop.f32.mrf.mxu0
    %v1918 = vadd.f32 0.0, %v1917
    %v1919 = vpop.f32.mrf.mxu0
    %1920 = vmatprep.mubr.f32.mxu0 0.0
    %1921 = vmatmul.mubr.f32.gmra.mxu0 %v167
    %v1922 = vpop.f32.mrf.mxu0
    %v1923 = vadd.f32 0.0, %v1922
    %v1924 = vpop.f32.mrf.mxu0
    %1925 = vdwg.mxu0
    %v1927 = vsel %vm81, %v1768, 0
    %v1930 = vsel %vm81, %v1769, 0
    %1932 = vmatprep.subr.mxu0 0.0
    %1933 = vmatpush1.msra.mxu0 0.0
    %1934 = vmatprep.subr.mxu0 0.0
    %1935 = vmatpush1.msra.mxu0 0.0
    %1936 = vmatprep.subr.mxu0 0.0
    %1937 = vmatpush1.msra.mxu0 0.0
    %1938 = vmatprep.subr.mxu0 0.0
    %1939 = vmatpush1.msra.mxu0 0.0
    %1940 = vmatprep.subr.mxu0 0.0
    %1941 = vmatpush1.msra.mxu0 0.0
    %1942 = vmatprep.subr.mxu0 0.0
    %1943 = vmatpush1.msra.mxu0 0.0
    %1944 = vmatprep.subr.mxu0 0.0
    %1945 = vmatpush1.msra.mxu0 0.0
    %1946 = vmatprep.subr.mxu0 0.0
    %1947 = vmatpush1.msra.mxu0 0.0
    %1948 = vmatprep.subr.mxu0 0.0
    %1949 = vmatpush1.msra.mxu0 0.0
    %1950 = vmatprep.subr.mxu0 0.0
    %1951 = vmatpush1.msra.mxu0 0.0
    %1952 = vmatprep.subr.mxu0 0.0
    %1953 = vmatpush1.msra.mxu0 0.0
    %1954 = vmatprep.subr.mxu0 0.0
    %1955 = vmatpush1.msra.mxu0 0.0
    %1956 = vmatprep.subr.mxu0 0.0
    %1957 = vmatpush1.msra.mxu0 0.0
    %1958 = vmatprep.subr.mxu0 0.0
    %1959 = vmatpush1.msra.mxu0 0.0
    %1960 = vmatprep.subr.mxu0 0.0
    %1961 = vmatpush1.msra.mxu0 %v76
    %1962 = vmatprep.subr.mxu0 0.0
    %1963 = vmatpush1.msra.mxu0 %v75
    %1964 = vmatprep.subr.mxu0 0.0
    %1965 = vmatpush2.msra.mxu0 0.0
    %1966 = vmatprep.subr.mxu0 0.0
    %1967 = vmatpush2.msra.mxu0 0.0
    %1968 = vmatprep.subr.mxu0 0.0
    %1969 = vmatpush2.msra.mxu0 0.0
    %1970 = vmatprep.subr.mxu0 0.0
    %1971 = vmatpush2.msra.mxu0 0.0
    %1972 = vmatprep.subr.mxu0 0.0
    %1973 = vmatpush2.msra.mxu0 0.0
    %1974 = vmatprep.subr.mxu0 0.0
    %1975 = vmatpush2.msra.mxu0 0.0
    %1976 = vmatprep.subr.mxu0 0.0
    %1977 = vmatpush2.msra.mxu0 0.0
    %1978 = vmatprep.subr.mxu0 0.0
    %1979 = vmatpush2.msra.mxu0 0.0
    %1980 = vmatprep.subr.mxu0 0.0
    %1981 = vmatpush2.msra.mxu0 0.0
    %1982 = vmatprep.subr.mxu0 0.0
    %1983 = vmatpush2.msra.mxu0 0.0
    %1984 = vmatprep.subr.mxu0 0.0
    %1985 = vmatpush2.msra.mxu0 0.0
    %1986 = vmatprep.subr.mxu0 0.0
    %1987 = vmatpush2.msra.mxu0 0.0
    %1988 = vmatprep.subr.mxu0 0.0
    %1989 = vmatpush2.msra.mxu0 0.0
    %1990 = vmatprep.subr.mxu0 0.0
    %1991 = vmatpush2.msra.mxu0 0.0
    %1992 = vmatprep.subr.mxu0 0.0
    %1993 = vmatpush2.msra.mxu0 0.0
    %1994 = vmatprep.subr.mxu0 0.0
    %1995 = vmatpush2.msra.mxu0 0.0
    %1996 = vmatprep.mubr.f32.mxu0 0.0
    %1997 = vmatmul.mubr.f32.gmra.mxu0 %v1927
    %v1998 = vpop.f32.mrf.mxu0
    %v1999 = vadd.f32 0.0, %v1998
    %v2000 = vpop.f32.mrf.mxu0
    %2001 = vmatprep.mubr.f32.mxu0 0.0
    %2002 = vmatmul.mubr.f32.gmra.mxu0 %v1930
    %v2003 = vpop.f32.mrf.mxu0
    %v2004 = vadd.f32 0.0, %v2003
    %v2005 = vpop.f32.mrf.mxu0
    %2006 = vdwg.mxu0
    %2007 = vmatprep.subr.mxu0 0.0
    %2008 = vmatpush1.msra.mxu0 0.0
    %2009 = vmatprep.subr.mxu0 0.0
    %2010 = vmatpush1.msra.mxu0 0.0
    %2011 = vmatprep.subr.mxu0 0.0
    %2012 = vmatpush1.msra.mxu0 0.0
    %2013 = vmatprep.subr.mxu0 0.0
    %2014 = vmatpush1.msra.mxu0 0.0
    %2015 = vmatprep.subr.mxu0 0.0
    %2016 = vmatpush1.msra.mxu0 0.0
    %2017 = vmatprep.subr.mxu0 0.0
    %2018 = vmatpush1.msra.mxu0 0.0
    %2019 = vmatprep.subr.mxu0 0.0
    %2020 = vmatpush1.msra.mxu0 0.0
    %2021 = vmatprep.subr.mxu0 0.0
    %2022 = vmatpush1.msra.mxu0 0.0
    %2023 = vmatprep.subr.mxu0 0.0
    %2024 = vmatpush1.msra.mxu0 0.0
    %2025 = vmatprep.subr.mxu0 0.0
    %2026 = vmatpush1.msra.mxu0 0.0
    %2027 = vmatprep.subr.mxu0 0.0
    %2028 = vmatpush1.msra.mxu0 0.0
    %2029 = vmatprep.subr.mxu0 0.0
    %2030 = vmatpush1.msra.mxu0 0.0
    %2031 = vmatprep.subr.mxu0 0.0
    %2032 = vmatpush1.msra.mxu0 0.0
    %2033 = vmatprep.subr.mxu0 0.0
    %2034 = vmatpush1.msra.mxu0 0.0
    %2035 = vmatprep.subr.mxu0 0.0
    %2036 = vmatpush1.msra.mxu0 %v2004
    %2037 = vmatprep.subr.mxu0 0.0
    %2038 = vmatpush1.msra.mxu0 %v1999
    %2039 = vmatprep.subr.mxu0 0.0
    %2040 = vmatpush2.msra.mxu0 0.0
    %2041 = vmatprep.subr.mxu0 0.0
    %2042 = vmatpush2.msra.mxu0 0.0
    %2043 = vmatprep.subr.mxu0 0.0
    %2044 = vmatpush2.msra.mxu0 0.0
    %2045 = vmatprep.subr.mxu0 0.0
    %2046 = vmatpush2.msra.mxu0 0.0
    %2047 = vmatprep.subr.mxu0 0.0
    %2048 = vmatpush2.msra.mxu0 0.0
    %2049 = vmatprep.subr.mxu0 0.0
    %2050 = vmatpush2.msra.mxu0 0.0
    %2051 = vmatprep.subr.mxu0 0.0
    %2052 = vmatpush2.msra.mxu0 0.0
    %2053 = vmatprep.subr.mxu0 0.0
    %2054 = vmatpush2.msra.mxu0 0.0
    %2055 = vmatprep.subr.mxu0 0.0
    %2056 = vmatpush2.msra.mxu0 0.0
    %2057 = vmatprep.subr.mxu0 0.0
    %2058 = vmatpush2.msra.mxu0 0.0
    %2059 = vmatprep.subr.mxu0 0.0
    %2060 = vmatpush2.msra.mxu0 0.0
    %2061 = vmatprep.subr.mxu0 0.0
    %2062 = vmatpush2.msra.mxu0 0.0
    %2063 = vmatprep.subr.mxu0 0.0
    %2064 = vmatpush2.msra.mxu0 0.0
    %2065 = vmatprep.subr.mxu0 0.0
    %2066 = vmatpush2.msra.mxu0 0.0
    %2067 = vmatprep.subr.mxu0 0.0
    %2068 = vmatpush2.msra.mxu0 0.0
    %2069 = vmatprep.subr.mxu0 0.0
    %2070 = vmatpush2.msra.mxu0 0.0
    %2071 = vmatprep.mubr.f32.mxu0 0.0
    %2072 = vmatmul.mubr.f32.gmra.mxu0 %v164
    %v2073 = vpop.f32.mrf.mxu0
    %v2074 = vadd.f32 0.0, %v2073
    %v2075 = vpop.f32.mrf.mxu0
    %2076 = vmatprep.mubr.f32.mxu0 0.0
    %2077 = vmatmul.mubr.f32.gmra.mxu0 %v167
    %v2078 = vpop.f32.mrf.mxu0
    %v2079 = vadd.f32 0.0, %v2078
    %v2080 = vpop.f32.mrf.mxu0
    %2081 = vdwg.mxu0
    %v2082 = vmul.f32 %v1918, %v1918
    %v2083 = vmul.f32 %v1923, %v1923
    %v2084 = vmul.f32 %v2074, %v2074
    %v2085 = vmul.f32 %v2079, %v2079
    %v2086 = vmul.f32 %v1918, %v2074
    %v2087 = vmul.f32 %v1923, %v2079
    %v2088 = vmul.f32 %v1765, %v1765
    %v2089 = vmul.f32 %v1766, %v1766
    %v2091 = vsel %vm81, %v2088, 0
    %v2094 = vsel %vm81, %v2089, 0
    %2096 = vmatprep.subr.mxu0 0.0
    %2097 = vmatpush1.msra.mxu0 0.0
    %2098 = vmatprep.subr.mxu0 0.0
    %2099 = vmatpush1.msra.mxu0 0.0
    %2100 = vmatprep.subr.mxu0 0.0
    %2101 = vmatpush1.msra.mxu0 0.0
    %2102 = vmatprep.subr.mxu0 0.0
    %2103 = vmatpush1.msra.mxu0 0.0
    %2104 = vmatprep.subr.mxu0 0.0
    %2105 = vmatpush1.msra.mxu0 0.0
    %2106 = vmatprep.subr.mxu0 0.0
    %2107 = vmatpush1.msra.mxu0 0.0
    %2108 = vmatprep.subr.mxu0 0.0
    %2109 = vmatpush1.msra.mxu0 0.0
    %2110 = vmatprep.subr.mxu0 0.0
    %2111 = vmatpush1.msra.mxu0 0.0
    %2112 = vmatprep.subr.mxu0 0.0
    %2113 = vmatpush1.msra.mxu0 0.0
    %2114 = vmatprep.subr.mxu0 0.0
    %2115 = vmatpush1.msra.mxu0 0.0
    %2116 = vmatprep.subr.mxu0 0.0
    %2117 = vmatpush1.msra.mxu0 0.0
    %2118 = vmatprep.subr.mxu0 0.0
    %2119 = vmatpush1.msra.mxu0 0.0
    %2120 = vmatprep.subr.mxu0 0.0
    %2121 = vmatpush1.msra.mxu0 0.0
    %2122 = vmatprep.subr.mxu0 0.0
    %2123 = vmatpush1.msra.mxu0 0.0
    %2124 = vmatprep.subr.mxu0 0.0
    %2125 = vmatpush1.msra.mxu0 %v76
    %2126 = vmatprep.subr.mxu0 0.0
    %2127 = vmatpush1.msra.mxu0 %v75
    %2128 = vmatprep.subr.mxu0 0.0
    %2129 = vmatpush2.msra.mxu0 0.0
    %2130 = vmatprep.subr.mxu0 0.0
    %2131 = vmatpush2.msra.mxu0 0.0
    %2132 = vmatprep.subr.mxu0 0.0
    %2133 = vmatpush2.msra.mxu0 0.0
    %2134 = vmatprep.subr.mxu0 0.0
    %2135 = vmatpush2.msra.mxu0 0.0
    %2136 = vmatprep.subr.mxu0 0.0
    %2137 = vmatpush2.msra.mxu0 0.0
    %2138 = vmatprep.subr.mxu0 0.0
    %2139 = vmatpush2.msra.mxu0 0.0
    %2140 = vmatprep.subr.mxu0 0.0
    %2141 = vmatpush2.msra.mxu0 0.0
    %2142 = vmatprep.subr.mxu0 0.0
    %2143 = vmatpush2.msra.mxu0 0.0
    %2144 = vmatprep.subr.mxu0 0.0
    %2145 = vmatpush2.msra.mxu0 0.0
    %2146 = vmatprep.subr.mxu0 0.0
    %2147 = vmatpush2.msra.mxu0 0.0
    %2148 = vmatprep.subr.mxu0 0.0
    %2149 = vmatpush2.msra.mxu0 0.0
    %2150 = vmatprep.subr.mxu0 0.0
    %2151 = vmatpush2.msra.mxu0 0.0
    %2152 = vmatprep.subr.mxu0 0.0
    %2153 = vmatpush2.msra.mxu0 0.0
    %2154 = vmatprep.subr.mxu0 0.0
    %2155 = vmatpush2.msra.mxu0 0.0
    %2156 = vmatprep.subr.mxu0 0.0
    %2157 = vmatpush2.msra.mxu0 0.0
    %2158 = vmatprep.subr.mxu0 0.0
    %2159 = vmatpush2.msra.mxu0 0.0
    %2160 = vmatprep.mubr.f32.mxu0 0.0
    %2161 = vmatmul.mubr.f32.gmra.mxu0 %v2091
    %v2162 = vpop.f32.mrf.mxu0
    %v2163 = vadd.f32 0.0, %v2162
    %v2164 = vpop.f32.mrf.mxu0
    %2165 = vmatprep.mubr.f32.mxu0 0.0
    %2166 = vmatmul.mubr.f32.gmra.mxu0 %v2094
    %v2167 = vpop.f32.mrf.mxu0
    %v2168 = vadd.f32 0.0, %v2167
    %v2169 = vpop.f32.mrf.mxu0
    %2170 = vdwg.mxu0
    %2171 = vmatprep.subr.mxu0 0.0
    %2172 = vmatpush1.msra.mxu0 0.0
    %2173 = vmatprep.subr.mxu0 0.0
    %2174 = vmatpush1.msra.mxu0 0.0
    %2175 = vmatprep.subr.mxu0 0.0
    %2176 = vmatpush1.msra.mxu0 0.0
    %2177 = vmatprep.subr.mxu0 0.0
    %2178 = vmatpush1.msra.mxu0 0.0
    %2179 = vmatprep.subr.mxu0 0.0
    %2180 = vmatpush1.msra.mxu0 0.0
    %2181 = vmatprep.subr.mxu0 0.0
    %2182 = vmatpush1.msra.mxu0 0.0
    %2183 = vmatprep.subr.mxu0 0.0
    %2184 = vmatpush1.msra.mxu0 0.0
    %2185 = vmatprep.subr.mxu0 0.0
    %2186 = vmatpush1.msra.mxu0 0.0
    %2187 = vmatprep.subr.mxu0 0.0
    %2188 = vmatpush1.msra.mxu0 0.0
    %2189 = vmatprep.subr.mxu0 0.0
    %2190 = vmatpush1.msra.mxu0 0.0
    %2191 = vmatprep.subr.mxu0 0.0
    %2192 = vmatpush1.msra.mxu0 0.0
    %2193 = vmatprep.subr.mxu0 0.0
    %2194 = vmatpush1.msra.mxu0 0.0
    %2195 = vmatprep.subr.mxu0 0.0
    %2196 = vmatpush1.msra.mxu0 0.0
    %2197 = vmatprep.subr.mxu0 0.0
    %2198 = vmatpush1.msra.mxu0 0.0
    %2199 = vmatprep.subr.mxu0 0.0
    %2200 = vmatpush1.msra.mxu0 %v2168
    %2201 = vmatprep.subr.mxu0 0.0
    %2202 = vmatpush1.msra.mxu0 %v2163
    %2203 = vmatprep.subr.mxu0 0.0
    %2204 = vmatpush2.msra.mxu0 0.0
    %2205 = vmatprep.subr.mxu0 0.0
    %2206 = vmatpush2.msra.mxu0 0.0
    %2207 = vmatprep.subr.mxu0 0.0
    %2208 = vmatpush2.msra.mxu0 0.0
    %2209 = vmatprep.subr.mxu0 0.0
    %2210 = vmatpush2.msra.mxu0 0.0
    %2211 = vmatprep.subr.mxu0 0.0
    %2212 = vmatpush2.msra.mxu0 0.0
    %2213 = vmatprep.subr.mxu0 0.0
    %2214 = vmatpush2.msra.mxu0 0.0
    %2215 = vmatprep.subr.mxu0 0.0
    %2216 = vmatpush2.msra.mxu0 0.0
    %2217 = vmatprep.subr.mxu0 0.0
    %2218 = vmatpush2.msra.mxu0 0.0
    %2219 = vmatprep.subr.mxu0 0.0
    %2220 = vmatpush2.msra.mxu0 0.0
    %2221 = vmatprep.subr.mxu0 0.0
    %2222 = vmatpush2.msra.mxu0 0.0
    %2223 = vmatprep.subr.mxu0 0.0
    %2224 = vmatpush2.msra.mxu0 0.0
    %2225 = vmatprep.subr.mxu0 0.0
    %2226 = vmatpush2.msra.mxu0 0.0
    %2227 = vmatprep.subr.mxu0 0.0
    %2228 = vmatpush2.msra.mxu0 0.0
    %2229 = vmatprep.subr.mxu0 0.0
    %2230 = vmatpush2.msra.mxu0 0.0
    %2231 = vmatprep.subr.mxu0 0.0
    %2232 = vmatpush2.msra.mxu0 0.0
    %2233 = vmatprep.subr.mxu0 0.0
    %2234 = vmatpush2.msra.mxu0 0.0
    %2235 = vmatprep.mubr.f32.mxu0 0.0
    %2236 = vmatmul.mubr.f32.gmra.mxu0 %v164
    %v2237 = vpop.f32.mrf.mxu0
    %v2238 = vadd.f32 0.0, %v2237
    %v2239 = vpop.f32.mrf.mxu0
    %2240 = vmatprep.mubr.f32.mxu0 0.0
    %2241 = vmatmul.mubr.f32.gmra.mxu0 %v167
    %v2242 = vpop.f32.mrf.mxu0
    %v2243 = vadd.f32 0.0, %v2242
    %v2244 = vpop.f32.mrf.mxu0
    %2245 = vdwg.mxu0
    %v2246 = vsub.f32 %v2238, %v2082
    %v2247 = vsub.f32 %v2243, %v2083
    %v2248 = vmul.f32 %v1768, %v1768
    %v2249 = vmul.f32 %v1769, %v1769
    %v2251 = vsel %vm81, %v2248, 0
    %v2254 = vsel %vm81, %v2249, 0
    %2256 = vmatprep.subr.mxu0 0.0
    %2257 = vmatpush1.msra.mxu0 0.0
    %2258 = vmatprep.subr.mxu0 0.0
    %2259 = vmatpush1.msra.mxu0 0.0
    %2260 = vmatprep.subr.mxu0 0.0
    %2261 = vmatpush1.msra.mxu0 0.0
    %2262 = vmatprep.subr.mxu0 0.0
    %2263 = vmatpush1.msra.mxu0 0.0
    %2264 = vmatprep.subr.mxu0 0.0
    %2265 = vmatpush1.msra.mxu0 0.0
    %2266 = vmatprep.subr.mxu0 0.0
    %2267 = vmatpush1.msra.mxu0 0.0
    %2268 = vmatprep.subr.mxu0 0.0
    %2269 = vmatpush1.msra.mxu0 0.0
    %2270 = vmatprep.subr.mxu0 0.0
    %2271 = vmatpush1.msra.mxu0 0.0
    %2272 = vmatprep.subr.mxu0 0.0
    %2273 = vmatpush1.msra.mxu0 0.0
    %2274 = vmatprep.subr.mxu0 0.0
    %2275 = vmatpush1.msra.mxu0 0.0
    %2276 = vmatprep.subr.mxu0 0.0
    %2277 = vmatpush1.msra.mxu0 0.0
    %2278 = vmatprep.subr.mxu0 0.0
    %2279 = vmatpush1.msra.mxu0 0.0
    %2280 = vmatprep.subr.mxu0 0.0
    %2281 = vmatpush1.msra.mxu0 0.0
    %2282 = vmatprep.subr.mxu0 0.0
    %2283 = vmatpush1.msra.mxu0 0.0
    %2284 = vmatprep.subr.mxu0 0.0
    %2285 = vmatpush1.msra.mxu0 %v76
    %2286 = vmatprep.subr.mxu0 0.0
    %2287 = vmatpush1.msra.mxu0 %v75
    %2288 = vmatprep.subr.mxu0 0.0
    %2289 = vmatpush2.msra.mxu0 0.0
    %2290 = vmatprep.subr.mxu0 0.0
    %2291 = vmatpush2.msra.mxu0 0.0
    %2292 = vmatprep.subr.mxu0 0.0
    %2293 = vmatpush2.msra.mxu0 0.0
    %2294 = vmatprep.subr.mxu0 0.0
    %2295 = vmatpush2.msra.mxu0 0.0
    %2296 = vmatprep.subr.mxu0 0.0
    %2297 = vmatpush2.msra.mxu0 0.0
    %2298 = vmatprep.subr.mxu0 0.0
    %2299 = vmatpush2.msra.mxu0 0.0
    %2300 = vmatprep.subr.mxu0 0.0
    %2301 = vmatpush2.msra.mxu0 0.0
    %2302 = vmatprep.subr.mxu0 0.0
    %2303 = vmatpush2.msra.mxu0 0.0
    %2304 = vmatprep.subr.mxu0 0.0
    %2305 = vmatpush2.msra.mxu0 0.0
    %2306 = vmatprep.subr.mxu0 0.0
    %2307 = vmatpush2.msra.mxu0 0.0
    %2308 = vmatprep.subr.mxu0 0.0
    %2309 = vmatpush2.msra.mxu0 0.0
    %2310 = vmatprep.subr.mxu0 0.0
    %2311 = vmatpush2.msra.mxu0 0.0
    %2312 = vmatprep.subr.mxu0 0.0
    %2313 = vmatpush2.msra.mxu0 0.0
    %2314 = vmatprep.subr.mxu0 0.0
    %2315 = vmatpush2.msra.mxu0 0.0
    %2316 = vmatprep.subr.mxu0 0.0
    %2317 = vmatpush2.msra.mxu0 0.0
    %2318 = vmatprep.subr.mxu0 0.0
    %2319 = vmatpush2.msra.mxu0 0.0
    %2320 = vmatprep.mubr.f32.mxu0 0.0
    %2321 = vmatmul.mubr.f32.gmra.mxu0 %v2251
    %v2322 = vpop.f32.mrf.mxu0
    %v2323 = vadd.f32 0.0, %v2322
    %v2324 = vpop.f32.mrf.mxu0
    %2325 = vmatprep.mubr.f32.mxu0 0.0
    %2326 = vmatmul.mubr.f32.gmra.mxu0 %v2254
    %v2327 = vpop.f32.mrf.mxu0
    %v2328 = vadd.f32 0.0, %v2327
    %v2329 = vpop.f32.mrf.mxu0
    %2330 = vdwg.mxu0
    %2331 = vmatprep.subr.mxu0 0.0
    %2332 = vmatpush1.msra.mxu0 0.0
    %2333 = vmatprep.subr.mxu0 0.0
    %2334 = vmatpush1.msra.mxu0 0.0
    %2335 = vmatprep.subr.mxu0 0.0
    %2336 = vmatpush1.msra.mxu0 0.0
    %2337 = vmatprep.subr.mxu0 0.0
    %2338 = vmatpush1.msra.mxu0 0.0
    %2339 = vmatprep.subr.mxu0 0.0
    %2340 = vmatpush1.msra.mxu0 0.0
    %2341 = vmatprep.subr.mxu0 0.0
    %2342 = vmatpush1.msra.mxu0 0.0
    %2343 = vmatprep.subr.mxu0 0.0
    %2344 = vmatpush1.msra.mxu0 0.0
    %2345 = vmatprep.subr.mxu0 0.0
    %2346 = vmatpush1.msra.mxu0 0.0
    %2347 = vmatprep.subr.mxu0 0.0
    %2348 = vmatpush1.msra.mxu0 0.0
    %2349 = vmatprep.subr.mxu0 0.0
    %2350 = vmatpush1.msra.mxu0 0.0
    %2351 = vmatprep.subr.mxu0 0.0
    %2352 = vmatpush1.msra.mxu0 0.0
    %2353 = vmatprep.subr.mxu0 0.0
    %2354 = vmatpush1.msra.mxu0 0.0
    %2355 = vmatprep.subr.mxu0 0.0
    %2356 = vmatpush1.msra.mxu0 0.0
    %2357 = vmatprep.subr.mxu0 0.0
    %2358 = vmatpush1.msra.mxu0 0.0
    %2359 = vmatprep.subr.mxu0 0.0
    %2360 = vmatpush1.msra.mxu0 %v2328
    %2361 = vmatprep.subr.mxu0 0.0
    %2362 = vmatpush1.msra.mxu0 %v2323
    %2363 = vmatprep.subr.mxu0 0.0
    %2364 = vmatpush2.msra.mxu0 0.0
    %2365 = vmatprep.subr.mxu0 0.0
    %2366 = vmatpush2.msra.mxu0 0.0
    %2367 = vmatprep.subr.mxu0 0.0
    %2368 = vmatpush2.msra.mxu0 0.0
    %2369 = vmatprep.subr.mxu0 0.0
    %2370 = vmatpush2.msra.mxu0 0.0
    %2371 = vmatprep.subr.mxu0 0.0
    %2372 = vmatpush2.msra.mxu0 0.0
    %2373 = vmatprep.subr.mxu0 0.0
    %2374 = vmatpush2.msra.mxu0 0.0
    %2375 = vmatprep.subr.mxu0 0.0
    %2376 = vmatpush2.msra.mxu0 0.0
    %2377 = vmatprep.subr.mxu0 0.0
    %2378 = vmatpush2.msra.mxu0 0.0
    %2379 = vmatprep.subr.mxu0 0.0
    %2380 = vmatpush2.msra.mxu0 0.0
    %2381 = vmatprep.subr.mxu0 0.0
    %2382 = vmatpush2.msra.mxu0 0.0
    %2383 = vmatprep.subr.mxu0 0.0
    %2384 = vmatpush2.msra.mxu0 0.0
    %2385 = vmatprep.subr.mxu0 0.0
    %2386 = vmatpush2.msra.mxu0 0.0
    %2387 = vmatprep.subr.mxu0 0.0
    %2388 = vmatpush2.msra.mxu0 0.0
    %2389 = vmatprep.subr.mxu0 0.0
    %2390 = vmatpush2.msra.mxu0 0.0
    %2391 = vmatprep.subr.mxu0 0.0
    %2392 = vmatpush2.msra.mxu0 0.0
    %2393 = vmatprep.subr.mxu0 0.0
    %2394 = vmatpush2.msra.mxu0 0.0
    %2395 = vmatprep.mubr.f32.mxu0 0.0
    %2396 = vmatmul.mubr.f32.gmra.mxu0 %v164
    %v2397 = vpop.f32.mrf.mxu0
    %v2398 = vadd.f32 0.0, %v2397
    %v2399 = vpop.f32.mrf.mxu0
    %2400 = vmatprep.mubr.f32.mxu0 0.0
    %2401 = vmatmul.mubr.f32.gmra.mxu0 %v167
    %v2402 = vpop.f32.mrf.mxu0
    %v2403 = vadd.f32 0.0, %v2402
    %v2404 = vpop.f32.mrf.mxu0
    %2405 = vdwg.mxu0
    %v2406 = vsub.f32 %v2398, %v2084
    %v2407 = vsub.f32 %v2403, %v2085
    %v2408 = vmul.f32 %v1765, %v1768
    %v2409 = vmul.f32 %v1766, %v1769
    %v2411 = vsel %vm81, %v2408, 0
    %v2414 = vsel %vm81, %v2409, 0
    %2416 = vmatprep.subr.mxu0 0.0
    %2417 = vmatpush1.msra.mxu0 0.0
    %2418 = vmatprep.subr.mxu0 0.0
    %2419 = vmatpush1.msra.mxu0 0.0
    %2420 = vmatprep.subr.mxu0 0.0
    %2421 = vmatpush1.msra.mxu0 0.0
    %2422 = vmatprep.subr.mxu0 0.0
    %2423 = vmatpush1.msra.mxu0 0.0
    %2424 = vmatprep.subr.mxu0 0.0
    %2425 = vmatpush1.msra.mxu0 0.0
    %2426 = vmatprep.subr.mxu0 0.0
    %2427 = vmatpush1.msra.mxu0 0.0
    %2428 = vmatprep.subr.mxu0 0.0
    %2429 = vmatpush1.msra.mxu0 0.0
    %2430 = vmatprep.subr.mxu0 0.0
    %2431 = vmatpush1.msra.mxu0 0.0
    %2432 = vmatprep.subr.mxu0 0.0
    %2433 = vmatpush1.msra.mxu0 0.0
    %2434 = vmatprep.subr.mxu0 0.0
    %2435 = vmatpush1.msra.mxu0 0.0
    %2436 = vmatprep.subr.mxu0 0.0
    %2437 = vmatpush1.msra.mxu0 0.0
    %2438 = vmatprep.subr.mxu0 0.0
    %2439 = vmatpush1.msra.mxu0 0.0
    %2440 = vmatprep.subr.mxu0 0.0
    %2441 = vmatpush1.msra.mxu0 0.0
    %2442 = vmatprep.subr.mxu0 0.0
    %2443 = vmatpush1.msra.mxu0 0.0
    %2444 = vmatprep.subr.mxu0 0.0
    %2445 = vmatpush1.msra.mxu0 %v76
    %2446 = vmatprep.subr.mxu0 0.0
    %2447 = vmatpush1.msra.mxu0 %v75
    %2448 = vmatprep.subr.mxu0 0.0
    %2449 = vmatpush2.msra.mxu0 0.0
    %2450 = vmatprep.subr.mxu0 0.0
    %2451 = vmatpush2.msra.mxu0 0.0
    %2452 = vmatprep.subr.mxu0 0.0
    %2453 = vmatpush2.msra.mxu0 0.0
    %2454 = vmatprep.subr.mxu0 0.0
    %2455 = vmatpush2.msra.mxu0 0.0
    %2456 = vmatprep.subr.mxu0 0.0
    %2457 = vmatpush2.msra.mxu0 0.0
    %2458 = vmatprep.subr.mxu0 0.0
    %2459 = vmatpush2.msra.mxu0 0.0
    %2460 = vmatprep.subr.mxu0 0.0
    %2461 = vmatpush2.msra.mxu0 0.0
    %2462 = vmatprep.subr.mxu0 0.0
    %2463 = vmatpush2.msra.mxu0 0.0
    %2464 = vmatprep.subr.mxu0 0.0
    %2465 = vmatpush2.msra.mxu0 0.0
    %2466 = vmatprep.subr.mxu0 0.0
    %2467 = vmatpush2.msra.mxu0 0.0
    %2468 = vmatprep.subr.mxu0 0.0
    %2469 = vmatpush2.msra.mxu0 0.0
    %2470 = vmatprep.subr.mxu0 0.0
    %2471 = vmatpush2.msra.mxu0 0.0
    %2472 = vmatprep.subr.mxu0 0.0
    %2473 = vmatpush2.msra.mxu0 0.0
    %2474 = vmatprep.subr.mxu0 0.0
    %2475 = vmatpush2.msra.mxu0 0.0
    %2476 = vmatprep.subr.mxu0 0.0
    %2477 = vmatpush2.msra.mxu0 0.0
    %2478 = vmatprep.subr.mxu0 0.0
    %2479 = vmatpush2.msra.mxu0 0.0
    %2480 = vmatprep.mubr.f32.mxu0 0.0
    %2481 = vmatmul.mubr.f32.gmra.mxu0 %v2411
    %v2482 = vpop.f32.mrf.mxu0
    %v2483 = vadd.f32 0.0, %v2482
    %v2484 = vpop.f32.mrf.mxu0
    %2485 = vmatprep.mubr.f32.mxu0 0.0
    %2486 = vmatmul.mubr.f32.gmra.mxu0 %v2414
    %v2487 = vpop.f32.mrf.mxu0
    %v2488 = vadd.f32 0.0, %v2487
    %v2489 = vpop.f32.mrf.mxu0
    %2490 = vdwg.mxu0
    %2491 = vmatprep.subr.mxu0 0.0
    %2492 = vmatpush1.msra.mxu0 0.0
    %2493 = vmatprep.subr.mxu0 0.0
    %2494 = vmatpush1.msra.mxu0 0.0
    %2495 = vmatprep.subr.mxu0 0.0
    %2496 = vmatpush1.msra.mxu0 0.0
    %2497 = vmatprep.subr.mxu0 0.0
    %2498 = vmatpush1.msra.mxu0 0.0
    %2499 = vmatprep.subr.mxu0 0.0
    %2500 = vmatpush1.msra.mxu0 0.0
    %2501 = vmatprep.subr.mxu0 0.0
    %2502 = vmatpush1.msra.mxu0 0.0
    %2503 = vmatprep.subr.mxu0 0.0
    %2504 = vmatpush1.msra.mxu0 0.0
    %2505 = vmatprep.subr.mxu0 0.0
    %2506 = vmatpush1.msra.mxu0 0.0
    %2507 = vmatprep.subr.mxu0 0.0
    %2508 = vmatpush1.msra.mxu0 0.0
    %2509 = vmatprep.subr.mxu0 0.0
    %2510 = vmatpush1.msra.mxu0 0.0
    %2511 = vmatprep.subr.mxu0 0.0
    %2512 = vmatpush1.msra.mxu0 0.0
    %2513 = vmatprep.subr.mxu0 0.0
    %2514 = vmatpush1.msra.mxu0 0.0
    %2515 = vmatprep.subr.mxu0 0.0
    %2516 = vmatpush1.msra.mxu0 0.0
    %2517 = vmatprep.subr.mxu0 0.0
    %2518 = vmatpush1.msra.mxu0 0.0
    %2519 = vmatprep.subr.mxu0 0.0
    %2520 = vmatpush1.msra.mxu0 %v2488
    %2521 = vmatprep.subr.mxu0 0.0
    %2522 = vmatpush1.msra.mxu0 %v2483
    %2523 = vmatprep.subr.mxu0 0.0
    %2524 = vmatpush2.msra.mxu0 0.0
    %2525 = vmatprep.subr.mxu0 0.0
    %2526 = vmatpush2.msra.mxu0 0.0
    %2527 = vmatprep.subr.mxu0 0.0
    %2528 = vmatpush2.msra.mxu0 0.0
    %2529 = vmatprep.subr.mxu0 0.0
    %2530 = vmatpush2.msra.mxu0 0.0
    %2531 = vmatprep.subr.mxu0 0.0
    %2532 = vmatpush2.msra.mxu0 0.0
    %2533 = vmatprep.subr.mxu0 0.0
    %2534 = vmatpush2.msra.mxu0 0.0
    %2535 = vmatprep.subr.mxu0 0.0
    %2536 = vmatpush2.msra.mxu0 0.0
    %2537 = vmatprep.subr.mxu0 0.0
    %2538 = vmatpush2.msra.mxu0 0.0
    %2539 = vmatprep.subr.mxu0 0.0
    %2540 = vmatpush2.msra.mxu0 0.0
    %2541 = vmatprep.subr.mxu0 0.0
    %2542 = vmatpush2.msra.mxu0 0.0
    %2543 = vmatprep.subr.mxu0 0.0
    %2544 = vmatpush2.msra.mxu0 0.0
    %2545 = vmatprep.subr.mxu0 0.0
    %2546 = vmatpush2.msra.mxu0 0.0
    %2547 = vmatprep.subr.mxu0 0.0
    %2548 = vmatpush2.msra.mxu0 0.0
    %2549 = vmatprep.subr.mxu0 0.0
    %2550 = vmatpush2.msra.mxu0 0.0
    %2551 = vmatprep.subr.mxu0 0.0
    %2552 = vmatpush2.msra.mxu0 0.0
    %2553 = vmatprep.subr.mxu0 0.0
    %2554 = vmatpush2.msra.mxu0 0.0
    %2555 = vmatprep.mubr.f32.mxu0 0.0
    %2556 = vmatmul.mubr.f32.gmra.mxu0 %v164
    %v2557 = vpop.f32.mrf.mxu0
    %v2558 = vadd.f32 0.0, %v2557
    %v2559 = vpop.f32.mrf.mxu0
    %2560 = vmatprep.mubr.f32.mxu0 0.0
    %2561 = vmatmul.mubr.f32.gmra.mxu0 %v167
    %v2562 = vpop.f32.mrf.mxu0
    %v2563 = vadd.f32 0.0, %v2562
    %v2564 = vpop.f32.mrf.mxu0
    %2565 = vdwg.mxu0
    %v2566 = vsub.f32 %v2558, %v2086
    %v2567 = vsub.f32 %v2563, %v2087
    %v2568 = vmul.f32 %v2086, 2.0
    %v2569 = vmul.f32 %v2087, 2.0
    %v2570 = vadd.f32 %v2568, 0.0001
    %v2571 = vadd.f32 %v2569, 0.0001
    %v2572 = vmul.f32 %v2566, 2.0
    %v2573 = vmul.f32 %v2567, 2.0
    %v2574 = vadd.f32 %v2572, 0.0009
    %v2575 = vadd.f32 %v2573, 0.0009
    %v2576 = vmul.f32 %v2570, %v2574
    %v2577 = vmul.f32 %v2571, %v2575
    %v2578 = vadd.f32 %v2082, %v2084
    %v2579 = vadd.f32 %v2083, %v2085
    %v2580 = vadd.f32 %v2578, 0.0001
    %v2581 = vadd.f32 %v2579, 0.0001
    %v2582 = vadd.f32 %v2246, %v2406
    %v2583 = vadd.f32 %v2247, %v2407
    %v2584 = vadd.f32 %v2582, 0.0009
    %v2585 = vadd.f32 %v2583, 0.0009
    %v2586 = vmul.f32 %v2580, %v2584
    %v2587 = vmul.f32 %v2581, %v2585
    %v2588 = vrcp.pop %v2586
    %v2589 = vmul.f32 %v2576, %v2588
    %v2590 = vrcp.pop %v2587
    %v2591 = vmul.f32 %v2577, %v2590
    %v2592 = vsel %vm81, %v2589, 0.0
    %v2593 = vsel %vm81, %v2591, 0.0
    %v2594 = vadd.f32 %v2592, %v2593
    %2595 = vadd.xlane.f32.xlu0 %v2594
    %v2596 = vpop.xlane.xlu0 %2595
    %v2597 = vrot.slane %v2596, 4
    %v2598 = vadd.f32 %v2596, %v2597
    %v2599 = vrot.slane %v2598, 2
    %v2600 = vadd.f32 %v2598, %v2599
    %v2601 = vrot.slane %v2600, 1
    %v2602 = vadd.f32 %v2600, %v2601
    %s2603 = vtos %v2602
    %v2604 = vstv %s2603
    %s2605 = scalar_lea.vmem [#allocation2], 48
    %v2606 = vld [vmem:[%s2605] sm:$0xff]
    %v2607 = vld [vmem:[%s2605 + $0x8] sm:$0xff]
    %s2608 = scalar_lea.vmem [#allocation5], 48
    %v2609 = vld [vmem:[%s2608] sm:$0xff]
    %v2610 = vld [vmem:[%s2608 + $0x8] sm:$0xff]
    %v2612 = vsel %vm81, %v2606, 0
    %v2615 = vsel %vm81, %v2607, 0
    %2617 = vmatprep.subr.mxu0 0.0
    %2618 = vmatpush1.msra.mxu0 0.0
    %2619 = vmatprep.subr.mxu0 0.0
    %2620 = vmatpush1.msra.mxu0 0.0
    %2621 = vmatprep.subr.mxu0 0.0
    %2622 = vmatpush1.msra.mxu0 0.0
    %2623 = vmatprep.subr.mxu0 0.0
    %2624 = vmatpush1.msra.mxu0 0.0
    %2625 = vmatprep.subr.mxu0 0.0
    %2626 = vmatpush1.msra.mxu0 0.0
    %2627 = vmatprep.subr.mxu0 0.0
    %2628 = vmatpush1.msra.mxu0 0.0
    %2629 = vmatprep.subr.mxu0 0.0
    %2630 = vmatpush1.msra.mxu0 0.0
    %2631 = vmatprep.subr.mxu0 0.0
    %2632 = vmatpush1.msra.mxu0 0.0
    %2633 = vmatprep.subr.mxu0 0.0
    %2634 = vmatpush1.msra.mxu0 0.0
    %2635 = vmatprep.subr.mxu0 0.0
    %2636 = vmatpush1.msra.mxu0 0.0
    %2637 = vmatprep.subr.mxu0 0.0
    %2638 = vmatpush1.msra.mxu0 0.0
    %2639 = vmatprep.subr.mxu0 0.0
    %2640 = vmatpush1.msra.mxu0 0.0
    %2641 = vmatprep.subr.mxu0 0.0
    %2642 = vmatpush1.msra.mxu0 0.0
    %2643 = vmatprep.subr.mxu0 0.0
    %2644 = vmatpush1.msra.mxu0 0.0
    %2645 = vmatprep.subr.mxu0 0.0
    %2646 = vmatpush1.msra.mxu0 %v76
    %2647 = vmatprep.subr.mxu0 0.0
    %2648 = vmatpush1.msra.mxu0 %v75
    %2649 = vmatprep.subr.mxu0 0.0
    %2650 = vmatpush2.msra.mxu0 0.0
    %2651 = vmatprep.subr.mxu0 0.0
    %2652 = vmatpush2.msra.mxu0 0.0
    %2653 = vmatprep.subr.mxu0 0.0
    %2654 = vmatpush2.msra.mxu0 0.0
    %2655 = vmatprep.subr.mxu0 0.0
    %2656 = vmatpush2.msra.mxu0 0.0
    %2657 = vmatprep.subr.mxu0 0.0
    %2658 = vmatpush2.msra.mxu0 0.0
    %2659 = vmatprep.subr.mxu0 0.0
    %2660 = vmatpush2.msra.mxu0 0.0
    %2661 = vmatprep.subr.mxu0 0.0
    %2662 = vmatpush2.msra.mxu0 0.0
    %2663 = vmatprep.subr.mxu0 0.0
    %2664 = vmatpush2.msra.mxu0 0.0
    %2665 = vmatprep.subr.mxu0 0.0
    %2666 = vmatpush2.msra.mxu0 0.0
    %2667 = vmatprep.subr.mxu0 0.0
    %2668 = vmatpush2.msra.mxu0 0.0
    %2669 = vmatprep.subr.mxu0 0.0
    %2670 = vmatpush2.msra.mxu0 0.0
    %2671 = vmatprep.subr.mxu0 0.0
    %2672 = vmatpush2.msra.mxu0 0.0
    %2673 = vmatprep.subr.mxu0 0.0
    %2674 = vmatpush2.msra.mxu0 0.0
    %2675 = vmatprep.subr.mxu0 0.0
    %2676 = vmatpush2.msra.mxu0 0.0
    %2677 = vmatprep.subr.mxu0 0.0
    %2678 = vmatpush2.msra.mxu0 0.0
    %2679 = vmatprep.subr.mxu0 0.0
    %2680 = vmatpush2.msra.mxu0 0.0
    %2681 = vmatprep.mubr.f32.mxu0 0.0
    %2682 = vmatmul.mubr.f32.gmra.mxu0 %v2612
    %v2683 = vpop.f32.mrf.mxu0
    %v2684 = vadd.f32 0.0, %v2683
    %v2685 = vpop.f32.mrf.mxu0
    %2686 = vmatprep.mubr.f32.mxu0 0.0
    %2687 = vmatmul.mubr.f32.gmra.mxu0 %v2615
    %v2688 = vpop.f32.mrf.mxu0
    %v2689 = vadd.f32 0.0, %v2688
    %v2690 = vpop.f32.mrf.mxu0
    %2691 = vdwg.mxu0
    %2692 = vmatprep.subr.mxu0 0.0
    %2693 = vmatpush1.msra.mxu0 0.0
    %2694 = vmatprep.subr.mxu0 0.0
    %2695 = vmatpush1.msra.mxu0 0.0
    %2696 = vmatprep.subr.mxu0 0.0
    %2697 = vmatpush1.msra.mxu0 0.0
    %2698 = vmatprep.subr.mxu0 0.0
    %2699 = vmatpush1.msra.mxu0 0.0
    %2700 = vmatprep.subr.mxu0 0.0
    %2701 = vmatpush1.msra.mxu0 0.0
    %2702 = vmatprep.subr.mxu0 0.0
    %2703 = vmatpush1.msra.mxu0 0.0
    %2704 = vmatprep.subr.mxu0 0.0
    %2705 = vmatpush1.msra.mxu0 0.0
    %2706 = vmatprep.subr.mxu0 0.0
    %2707 = vmatpush1.msra.mxu0 0.0
    %2708 = vmatprep.subr.mxu0 0.0
    %2709 = vmatpush1.msra.mxu0 0.0
    %2710 = vmatprep.subr.mxu0 0.0
    %2711 = vmatpush1.msra.mxu0 0.0
    %2712 = vmatprep.subr.mxu0 0.0
    %2713 = vmatpush1.msra.mxu0 0.0
    %2714 = vmatprep.subr.mxu0 0.0
    %2715 = vmatpush1.msra.mxu0 0.0
    %2716 = vmatprep.subr.mxu0 0.0
    %2717 = vmatpush1.msra.mxu0 0.0
    %2718 = vmatprep.subr.mxu0 0.0
    %2719 = vmatpush1.msra.mxu0 0.0
    %2720 = vmatprep.subr.mxu0 0.0
    %2721 = vmatpush1.msra.mxu0 %v2689
    %2722 = vmatprep.subr.mxu0 0.0
    %2723 = vmatpush1.msra.mxu0 %v2684
    %2724 = vmatprep.subr.mxu0 0.0
    %2725 = vmatpush2.msra.mxu0 0.0
    %2726 = vmatprep.subr.mxu0 0.0
    %2727 = vmatpush2.msra.mxu0 0.0
    %2728 = vmatprep.subr.mxu0 0.0
    %2729 = vmatpush2.msra.mxu0 0.0
    %2730 = vmatprep.subr.mxu0 0.0
    %2731 = vmatpush2.msra.mxu0 0.0
    %2732 = vmatprep.subr.mxu0 0.0
    %2733 = vmatpush2.msra.mxu0 0.0
    %2734 = vmatprep.subr.mxu0 0.0
    %2735 = vmatpush2.msra.mxu0 0.0
    %2736 = vmatprep.subr.mxu0 0.0
    %2737 = vmatpush2.msra.mxu0 0.0
    %2738 = vmatprep.subr.mxu0 0.0
    %2739 = vmatpush2.msra.mxu0 0.0
    %2740 = vmatprep.subr.mxu0 0.0
    %2741 = vmatpush2.msra.mxu0 0.0
    %2742 = vmatprep.subr.mxu0 0.0
    %2743 = vmatpush2.msra.mxu0 0.0
    %2744 = vmatprep.subr.mxu0 0.0
    %2745 = vmatpush2.msra.mxu0 0.0
    %2746 = vmatprep.subr.mxu0 0.0
    %2747 = vmatpush2.msra.mxu0 0.0
    %2748 = vmatprep.subr.mxu0 0.0
    %2749 = vmatpush2.msra.mxu0 0.0
    %2750 = vmatprep.subr.mxu0 0.0
    %2751 = vmatpush2.msra.mxu0 0.0
    %2752 = vmatprep.subr.mxu0 0.0
    %2753 = vmatpush2.msra.mxu0 0.0
    %2754 = vmatprep.subr.mxu0 0.0
    %2755 = vmatpush2.msra.mxu0 0.0
    %2756 = vmatprep.mubr.f32.mxu0 0.0
    %2757 = vmatmul.mubr.f32.gmra.mxu0 %v164
    %v2758 = vpop.f32.mrf.mxu0
    %v2759 = vadd.f32 0.0, %v2758
    %v2760 = vpop.f32.mrf.mxu0
    %2761 = vmatprep.mubr.f32.mxu0 0.0
    %2762 = vmatmul.mubr.f32.gmra.mxu0 %v167
    %v2763 = vpop.f32.mrf.mxu0
    %v2764 = vadd.f32 0.0, %v2763
    %v2765 = vpop.f32.mrf.mxu0
    %2766 = vdwg.mxu0
    %v2768 = vsel %vm81, %v2609, 0
    %v2771 = vsel %vm81, %v2610, 0
    %2773 = vmatprep.subr.mxu0 0.0
    %2774 = vmatpush1.msra.mxu0 0.0
    %2775 = vmatprep.subr.mxu0 0.0
    %2776 = vmatpush1.msra.mxu0 0.0
    %2777 = vmatprep.subr.mxu0 0.0
    %2778 = vmatpush1.msra.mxu0 0.0
    %2779 = vmatprep.subr.mxu0 0.0
    %2780 = vmatpush1.msra.mxu0 0.0
    %2781 = vmatprep.subr.mxu0 0.0
    %2782 = vmatpush1.msra.mxu0 0.0
    %2783 = vmatprep.subr.mxu0 0.0
    %2784 = vmatpush1.msra.mxu0 0.0
    %2785 = vmatprep.subr.mxu0 0.0
    %2786 = vmatpush1.msra.mxu0 0.0
    %2787 = vmatprep.subr.mxu0 0.0
    %2788 = vmatpush1.msra.mxu0 0.0
    %2789 = vmatprep.subr.mxu0 0.0
    %2790 = vmatpush1.msra.mxu0 0.0
    %2791 = vmatprep.subr.mxu0 0.0
    %2792 = vmatpush1.msra.mxu0 0.0
    %2793 = vmatprep.subr.mxu0 0.0
    %2794 = vmatpush1.msra.mxu0 0.0
    %2795 = vmatprep.subr.mxu0 0.0
    %2796 = vmatpush1.msra.mxu0 0.0
    %2797 = vmatprep.subr.mxu0 0.0
    %2798 = vmatpush1.msra.mxu0 0.0
    %2799 = vmatprep.subr.mxu0 0.0
    %2800 = vmatpush1.msra.mxu0 0.0
    %2801 = vmatprep.subr.mxu0 0.0
    %2802 = vmatpush1.msra.mxu0 %v76
    %2803 = vmatprep.subr.mxu0 0.0
    %2804 = vmatpush1.msra.mxu0 %v75
    %2805 = vmatprep.subr.mxu0 0.0
    %2806 = vmatpush2.msra.mxu0 0.0
    %2807 = vmatprep.subr.mxu0 0.0
    %2808 = vmatpush2.msra.mxu0 0.0
    %2809 = vmatprep.subr.mxu0 0.0
    %2810 = vmatpush2.msra.mxu0 0.0
    %2811 = vmatprep.subr.mxu0 0.0
    %2812 = vmatpush2.msra.mxu0 0.0
    %2813 = vmatprep.subr.mxu0 0.0
    %2814 = vmatpush2.msra.mxu0 0.0
    %2815 = vmatprep.subr.mxu0 0.0
    %2816 = vmatpush2.msra.mxu0 0.0
    %2817 = vmatprep.subr.mxu0 0.0
    %2818 = vmatpush2.msra.mxu0 0.0
    %2819 = vmatprep.subr.mxu0 0.0
    %2820 = vmatpush2.msra.mxu0 0.0
    %2821 = vmatprep.subr.mxu0 0.0
    %2822 = vmatpush2.msra.mxu0 0.0
    %2823 = vmatprep.subr.mxu0 0.0
    %2824 = vmatpush2.msra.mxu0 0.0
    %2825 = vmatprep.subr.mxu0 0.0
    %2826 = vmatpush2.msra.mxu0 0.0
    %2827 = vmatprep.subr.mxu0 0.0
    %2828 = vmatpush2.msra.mxu0 0.0
    %2829 = vmatprep.subr.mxu0 0.0
    %2830 = vmatpush2.msra.mxu0 0.0
    %2831 = vmatprep.subr.mxu0 0.0
    %2832 = vmatpush2.msra.mxu0 0.0
    %2833 = vmatprep.subr.mxu0 0.0
    %2834 = vmatpush2.msra.mxu0 0.0
    %2835 = vmatprep.subr.mxu0 0.0
    %2836 = vmatpush2.msra.mxu0 0.0
    %2837 = vmatprep.mubr.f32.mxu0 0.0
    %2838 = vmatmul.mubr.f32.gmra.mxu0 %v2768
    %v2839 = vpop.f32.mrf.mxu0
    %v2840 = vadd.f32 0.0, %v2839
    %v2841 = vpop.f32.mrf.mxu0
    %2842 = vmatprep.mubr.f32.mxu0 0.0
    %2843 = vmatmul.mubr.f32.gmra.mxu0 %v2771
    %v2844 = vpop.f32.mrf.mxu0
    %v2845 = vadd.f32 0.0, %v2844
    %v2846 = vpop.f32.mrf.mxu0
    %2847 = vdwg.mxu0
    %2848 = vmatprep.subr.mxu0 0.0
    %2849 = vmatpush1.msra.mxu0 0.0
    %2850 = vmatprep.subr.mxu0 0.0
    %2851 = vmatpush1.msra.mxu0 0.0
    %2852 = vmatprep.subr.mxu0 0.0
    %2853 = vmatpush1.msra.mxu0 0.0
    %2854 = vmatprep.subr.mxu0 0.0
    %2855 = vmatpush1.msra.mxu0 0.0
    %2856 = vmatprep.subr.mxu0 0.0
    %2857 = vmatpush1.msra.mxu0 0.0
    %2858 = vmatprep.subr.mxu0 0.0
    %2859 = vmatpush1.msra.mxu0 0.0
    %2860 = vmatprep.subr.mxu0 0.0
    %2861 = vmatpush1.msra.mxu0 0.0
    %2862 = vmatprep.subr.mxu0 0.0
    %2863 = vmatpush1.msra.mxu0 0.0
    %2864 = vmatprep.subr.mxu0 0.0
    %2865 = vmatpush1.msra.mxu0 0.0
    %2866 = vmatprep.subr.mxu0 0.0
    %2867 = vmatpush1.msra.mxu0 0.0
    %2868 = vmatprep.subr.mxu0 0.0
    %2869 = vmatpush1.msra.mxu0 0.0
    %2870 = vmatprep.subr.mxu0 0.0
    %2871 = vmatpush1.msra.mxu0 0.0
    %2872 = vmatprep.subr.mxu0 0.0
    %2873 = vmatpush1.msra.mxu0 0.0
    %2874 = vmatprep.subr.mxu0 0.0
    %2875 = vmatpush1.msra.mxu0 0.0
    %2876 = vmatprep.subr.mxu0 0.0
    %2877 = vmatpush1.msra.mxu0 %v2845
    %2878 = vmatprep.subr.mxu0 0.0
    %2879 = vmatpush1.msra.mxu0 %v2840
    %2880 = vmatprep.subr.mxu0 0.0
    %2881 = vmatpush2.msra.mxu0 0.0
    %2882 = vmatprep.subr.mxu0 0.0
    %2883 = vmatpush2.msra.mxu0 0.0
    %2884 = vmatprep.subr.mxu0 0.0
    %2885 = vmatpush2.msra.mxu0 0.0
    %2886 = vmatprep.subr.mxu0 0.0
    %2887 = vmatpush2.msra.mxu0 0.0
    %2888 = vmatprep.subr.mxu0 0.0
    %2889 = vmatpush2.msra.mxu0 0.0
    %2890 = vmatprep.subr.mxu0 0.0
    %2891 = vmatpush2.msra.mxu0 0.0
    %2892 = vmatprep.subr.mxu0 0.0
    %2893 = vmatpush2.msra.mxu0 0.0
    %2894 = vmatprep.subr.mxu0 0.0
    %2895 = vmatpush2.msra.mxu0 0.0
    %2896 = vmatprep.subr.mxu0 0.0
    %2897 = vmatpush2.msra.mxu0 0.0
    %2898 = vmatprep.subr.mxu0 0.0
    %2899 = vmatpush2.msra.mxu0 0.0
    %2900 = vmatprep.subr.mxu0 0.0
    %2901 = vmatpush2.msra.mxu0 0.0
    %2902 = vmatprep.subr.mxu0 0.0
    %2903 = vmatpush2.msra.mxu0 0.0
    %2904 = vmatprep.subr.mxu0 0.0
    %2905 = vmatpush2.msra.mxu0 0.0
    %2906 = vmatprep.subr.mxu0 0.0
    %2907 = vmatpush2.msra.mxu0 0.0
    %2908 = vmatprep.subr.mxu0 0.0
    %2909 = vmatpush2.msra.mxu0 0.0
    %2910 = vmatprep.subr.mxu0 0.0
    %2911 = vmatpush2.msra.mxu0 0.0
    %2912 = vmatprep.mubr.f32.mxu0 0.0
    %2913 = vmatmul.mubr.f32.gmra.mxu0 %v164
    %v2914 = vpop.f32.mrf.mxu0
    %v2915 = vadd.f32 0.0, %v2914
    %v2916 = vpop.f32.mrf.mxu0
    %2917 = vmatprep.mubr.f32.mxu0 0.0
    %2918 = vmatmul.mubr.f32.gmra.mxu0 %v167
    %v2919 = vpop.f32.mrf.mxu0
    %v2920 = vadd.f32 0.0, %v2919
    %v2921 = vpop.f32.mrf.mxu0
    %2922 = vdwg.mxu0
    %v2923 = vmul.f32 %v2759, %v2759
    %v2924 = vmul.f32 %v2764, %v2764
    %v2925 = vmul.f32 %v2915, %v2915
    %v2926 = vmul.f32 %v2920, %v2920
    %v2927 = vmul.f32 %v2759, %v2915
    %v2928 = vmul.f32 %v2764, %v2920
    %v2929 = vmul.f32 %v2606, %v2606
    %v2930 = vmul.f32 %v2607, %v2607
    %v2932 = vsel %vm81, %v2929, 0
    %v2935 = vsel %vm81, %v2930, 0
    %2937 = vmatprep.subr.mxu0 0.0
    %2938 = vmatpush1.msra.mxu0 0.0
    %2939 = vmatprep.subr.mxu0 0.0
    %2940 = vmatpush1.msra.mxu0 0.0
    %2941 = vmatprep.subr.mxu0 0.0
    %2942 = vmatpush1.msra.mxu0 0.0
    %2943 = vmatprep.subr.mxu0 0.0
    %2944 = vmatpush1.msra.mxu0 0.0
    %2945 = vmatprep.subr.mxu0 0.0
    %2946 = vmatpush1.msra.mxu0 0.0
    %2947 = vmatprep.subr.mxu0 0.0
    %2948 = vmatpush1.msra.mxu0 0.0
    %2949 = vmatprep.subr.mxu0 0.0
    %2950 = vmatpush1.msra.mxu0 0.0
    %2951 = vmatprep.subr.mxu0 0.0
    %2952 = vmatpush1.msra.mxu0 0.0
    %2953 = vmatprep.subr.mxu0 0.0
    %2954 = vmatpush1.msra.mxu0 0.0
    %2955 = vmatprep.subr.mxu0 0.0
    %2956 = vmatpush1.msra.mxu0 0.0
    %2957 = vmatprep.subr.mxu0 0.0
    %2958 = vmatpush1.msra.mxu0 0.0
    %2959 = vmatprep.subr.mxu0 0.0
    %2960 = vmatpush1.msra.mxu0 0.0
    %2961 = vmatprep.subr.mxu0 0.0
    %2962 = vmatpush1.msra.mxu0 0.0
    %2963 = vmatprep.subr.mxu0 0.0
    %2964 = vmatpush1.msra.mxu0 0.0
    %2965 = vmatprep.subr.mxu0 0.0
    %2966 = vmatpush1.msra.mxu0 %v76
    %2967 = vmatprep.subr.mxu0 0.0
    %2968 = vmatpush1.msra.mxu0 %v75
    %2969 = vmatprep.subr.mxu0 0.0
    %2970 = vmatpush2.msra.mxu0 0.0
    %2971 = vmatprep.subr.mxu0 0.0
    %2972 = vmatpush2.msra.mxu0 0.0
    %2973 = vmatprep.subr.mxu0 0.0
    %2974 = vmatpush2.msra.mxu0 0.0
    %2975 = vmatprep.subr.mxu0 0.0
    %2976 = vmatpush2.msra.mxu0 0.0
    %2977 = vmatprep.subr.mxu0 0.0
    %2978 = vmatpush2.msra.mxu0 0.0
    %2979 = vmatprep.subr.mxu0 0.0
    %2980 = vmatpush2.msra.mxu0 0.0
    %2981 = vmatprep.subr.mxu0 0.0
    %2982 = vmatpush2.msra.mxu0 0.0
    %2983 = vmatprep.subr.mxu0 0.0
    %2984 = vmatpush2.msra.mxu0 0.0
    %2985 = vmatprep.subr.mxu0 0.0
    %2986 = vmatpush2.msra.mxu0 0.0
    %2987 = vmatprep.subr.mxu0 0.0
    %2988 = vmatpush2.msra.mxu0 0.0
    %2989 = vmatprep.subr.mxu0 0.0
    %2990 = vmatpush2.msra.mxu0 0.0
    %2991 = vmatprep.subr.mxu0 0.0
    %2992 = vmatpush2.msra.mxu0 0.0
    %2993 = vmatprep.subr.mxu0 0.0
    %2994 = vmatpush2.msra.mxu0 0.0
    %2995 = vmatprep.subr.mxu0 0.0
    %2996 = vmatpush2.msra.mxu0 0.0
    %2997 = vmatprep.subr.mxu0 0.0
    %2998 = vmatpush2.msra.mxu0 0.0
    %2999 = vmatprep.subr.mxu0 0.0
    %3000 = vmatpush2.msra.mxu0 0.0
    %3001 = vmatprep.mubr.f32.mxu0 0.0
    %3002 = vmatmul.mubr.f32.gmra.mxu0 %v2932
    %v3003 = vpop.f32.mrf.mxu0
    %v3004 = vadd.f32 0.0, %v3003
    %v3005 = vpop.f32.mrf.mxu0
    %3006 = vmatprep.mubr.f32.mxu0 0.0
    %3007 = vmatmul.mubr.f32.gmra.mxu0 %v2935
    %v3008 = vpop.f32.mrf.mxu0
    %v3009 = vadd.f32 0.0, %v3008
    %v3010 = vpop.f32.mrf.mxu0
    %3011 = vdwg.mxu0
    %3012 = vmatprep.subr.mxu0 0.0
    %3013 = vmatpush1.msra.mxu0 0.0
    %3014 = vmatprep.subr.mxu0 0.0
    %3015 = vmatpush1.msra.mxu0 0.0
    %3016 = vmatprep.subr.mxu0 0.0
    %3017 = vmatpush1.msra.mxu0 0.0
    %3018 = vmatprep.subr.mxu0 0.0
    %3019 = vmatpush1.msra.mxu0 0.0
    %3020 = vmatprep.subr.mxu0 0.0
    %3021 = vmatpush1.msra.mxu0 0.0
    %3022 = vmatprep.subr.mxu0 0.0
    %3023 = vmatpush1.msra.mxu0 0.0
    %3024 = vmatprep.subr.mxu0 0.0
    %3025 = vmatpush1.msra.mxu0 0.0
    %3026 = vmatprep.subr.mxu0 0.0
    %3027 = vmatpush1.msra.mxu0 0.0
    %3028 = vmatprep.subr.mxu0 0.0
    %3029 = vmatpush1.msra.mxu0 0.0
    %3030 = vmatprep.subr.mxu0 0.0
    %3031 = vmatpush1.msra.mxu0 0.0
    %3032 = vmatprep.subr.mxu0 0.0
    %3033 = vmatpush1.msra.mxu0 0.0
    %3034 = vmatprep.subr.mxu0 0.0
    %3035 = vmatpush1.msra.mxu0 0.0
    %3036 = vmatprep.subr.mxu0 0.0
    %3037 = vmatpush1.msra.mxu0 0.0
    %3038 = vmatprep.subr.mxu0 0.0
    %3039 = vmatpush1.msra.mxu0 0.0
    %3040 = vmatprep.subr.mxu0 0.0
    %3041 = vmatpush1.msra.mxu0 %v3009
    %3042 = vmatprep.subr.mxu0 0.0
    %3043 = vmatpush1.msra.mxu0 %v3004
    %3044 = vmatprep.subr.mxu0 0.0
    %3045 = vmatpush2.msra.mxu0 0.0
    %3046 = vmatprep.subr.mxu0 0.0
    %3047 = vmatpush2.msra.mxu0 0.0
    %3048 = vmatprep.subr.mxu0 0.0
    %3049 = vmatpush2.msra.mxu0 0.0
    %3050 = vmatprep.subr.mxu0 0.0
    %3051 = vmatpush2.msra.mxu0 0.0
    %3052 = vmatprep.subr.mxu0 0.0
    %3053 = vmatpush2.msra.mxu0 0.0
    %3054 = vmatprep.subr.mxu0 0.0
    %3055 = vmatpush2.msra.mxu0 0.0
    %3056 = vmatprep.subr.mxu0 0.0
    %3057 = vmatpush2.msra.mxu0 0.0
    %3058 = vmatprep.subr.mxu0 0.0
    %3059 = vmatpush2.msra.mxu0 0.0
    %3060 = vmatprep.subr.mxu0 0.0
    %3061 = vmatpush2.msra.mxu0 0.0
    %3062 = vmatprep.subr.mxu0 0.0
    %3063 = vmatpush2.msra.mxu0 0.0
    %3064 = vmatprep.subr.mxu0 0.0
    %3065 = vmatpush2.msra.mxu0 0.0
    %3066 = vmatprep.subr.mxu0 0.0
    %3067 = vmatpush2.msra.mxu0 0.0
    %3068 = vmatprep.subr.mxu0 0.0
    %3069 = vmatpush2.msra.mxu0 0.0
    %3070 = vmatprep.subr.mxu0 0.0
    %3071 = vmatpush2.msra.mxu0 0.0
    %3072 = vmatprep.subr.mxu0 0.0
    %3073 = vmatpush2.msra.mxu0 0.0
    %3074 = vmatprep.subr.mxu0 0.0
    %3075 = vmatpush2.msra.mxu0 0.0
    %3076 = vmatprep.mubr.f32.mxu0 0.0
    %3077 = vmatmul.mubr.f32.gmra.mxu0 %v164
    %v3078 = vpop.f32.mrf.mxu0
    %v3079 = vadd.f32 0.0, %v3078
    %v3080 = vpop.f32.mrf.mxu0
    %3081 = vmatprep.mubr.f32.mxu0 0.0
    %3082 = vmatmul.mubr.f32.gmra.mxu0 %v167
    %v3083 = vpop.f32.mrf.mxu0
    %v3084 = vadd.f32 0.0, %v3083
    %v3085 = vpop.f32.mrf.mxu0
    %3086 = vdwg.mxu0
    %v3087 = vsub.f32 %v3079, %v2923
    %v3088 = vsub.f32 %v3084, %v2924
    %v3089 = vmul.f32 %v2609, %v2609
    %v3090 = vmul.f32 %v2610, %v2610
    %v3092 = vsel %vm81, %v3089, 0
    %v3095 = vsel %vm81, %v3090, 0
    %3097 = vmatprep.subr.mxu0 0.0
    %3098 = vmatpush1.msra.mxu0 0.0
    %3099 = vmatprep.subr.mxu0 0.0
    %3100 = vmatpush1.msra.mxu0 0.0
    %3101 = vmatprep.subr.mxu0 0.0
    %3102 = vmatpush1.msra.mxu0 0.0
    %3103 = vmatprep.subr.mxu0 0.0
    %3104 = vmatpush1.msra.mxu0 0.0
    %3105 = vmatprep.subr.mxu0 0.0
    %3106 = vmatpush1.msra.mxu0 0.0
    %3107 = vmatprep.subr.mxu0 0.0
    %3108 = vmatpush1.msra.mxu0 0.0
    %3109 = vmatprep.subr.mxu0 0.0
    %3110 = vmatpush1.msra.mxu0 0.0
    %3111 = vmatprep.subr.mxu0 0.0
    %3112 = vmatpush1.msra.mxu0 0.0
    %3113 = vmatprep.subr.mxu0 0.0
    %3114 = vmatpush1.msra.mxu0 0.0
    %3115 = vmatprep.subr.mxu0 0.0
    %3116 = vmatpush1.msra.mxu0 0.0
    %3117 = vmatprep.subr.mxu0 0.0
    %3118 = vmatpush1.msra.mxu0 0.0
    %3119 = vmatprep.subr.mxu0 0.0
    %3120 = vmatpush1.msra.mxu0 0.0
    %3121 = vmatprep.subr.mxu0 0.0
    %3122 = vmatpush1.msra.mxu0 0.0
    %3123 = vmatprep.subr.mxu0 0.0
    %3124 = vmatpush1.msra.mxu0 0.0
    %3125 = vmatprep.subr.mxu0 0.0
    %3126 = vmatpush1.msra.mxu0 %v76
    %3127 = vmatprep.subr.mxu0 0.0
    %3128 = vmatpush1.msra.mxu0 %v75
    %3129 = vmatprep.subr.mxu0 0.0
    %3130 = vmatpush2.msra.mxu0 0.0
    %3131 = vmatprep.subr.mxu0 0.0
    %3132 = vmatpush2.msra.mxu0 0.0
    %3133 = vmatprep.subr.mxu0 0.0
    %3134 = vmatpush2.msra.mxu0 0.0
    %3135 = vmatprep.subr.mxu0 0.0
    %3136 = vmatpush2.msra.mxu0 0.0
    %3137 = vmatprep.subr.mxu0 0.0
    %3138 = vmatpush2.msra.mxu0 0.0
    %3139 = vmatprep.subr.mxu0 0.0
    %3140 = vmatpush2.msra.mxu0 0.0
    %3141 = vmatprep.subr.mxu0 0.0
    %3142 = vmatpush2.msra.mxu0 0.0
    %3143 = vmatprep.subr.mxu0 0.0
    %3144 = vmatpush2.msra.mxu0 0.0
    %3145 = vmatprep.subr.mxu0 0.0
    %3146 = vmatpush2.msra.mxu0 0.0
    %3147 = vmatprep.subr.mxu0 0.0
    %3148 = vmatpush2.msra.mxu0 0.0
    %3149 = vmatprep.subr.mxu0 0.0
    %3150 = vmatpush2.msra.mxu0 0.0
    %3151 = vmatprep.subr.mxu0 0.0
    %3152 = vmatpush2.msra.mxu0 0.0
    %3153 = vmatprep.subr.mxu0 0.0
    %3154 = vmatpush2.msra.mxu0 0.0
    %3155 = vmatprep.subr.mxu0 0.0
    %3156 = vmatpush2.msra.mxu0 0.0
    %3157 = vmatprep.subr.mxu0 0.0
    %3158 = vmatpush2.msra.mxu0 0.0
    %3159 = vmatprep.subr.mxu0 0.0
    %3160 = vmatpush2.msra.mxu0 0.0
    %3161 = vmatprep.mubr.f32.mxu0 0.0
    %3162 = vmatmul.mubr.f32.gmra.mxu0 %v3092
    %v3163 = vpop.f32.mrf.mxu0
    %v3164 = vadd.f32 0.0, %v3163
    %v3165 = vpop.f32.mrf.mxu0
    %3166 = vmatprep.mubr.f32.mxu0 0.0
    %3167 = vmatmul.mubr.f32.gmra.mxu0 %v3095
    %v3168 = vpop.f32.mrf.mxu0
    %v3169 = vadd.f32 0.0, %v3168
    %v3170 = vpop.f32.mrf.mxu0
    %3171 = vdwg.mxu0
    %3172 = vmatprep.subr.mxu0 0.0
    %3173 = vmatpush1.msra.mxu0 0.0
    %3174 = vmatprep.subr.mxu0 0.0
    %3175 = vmatpush1.msra.mxu0 0.0
    %3176 = vmatprep.subr.mxu0 0.0
    %3177 = vmatpush1.msra.mxu0 0.0
    %3178 = vmatprep.subr.mxu0 0.0
    %3179 = vmatpush1.msra.mxu0 0.0
    %3180 = vmatprep.subr.mxu0 0.0
    %3181 = vmatpush1.msra.mxu0 0.0
    %3182 = vmatprep.subr.mxu0 0.0
    %3183 = vmatpush1.msra.mxu0 0.0
    %3184 = vmatprep.subr.mxu0 0.0
    %3185 = vmatpush1.msra.mxu0 0.0
    %3186 = vmatprep.subr.mxu0 0.0
    %3187 = vmatpush1.msra.mxu0 0.0
    %3188 = vmatprep.subr.mxu0 0.0
    %3189 = vmatpush1.msra.mxu0 0.0
    %3190 = vmatprep.subr.mxu0 0.0
    %3191 = vmatpush1.msra.mxu0 0.0
    %3192 = vmatprep.subr.mxu0 0.0
    %3193 = vmatpush1.msra.mxu0 0.0
    %3194 = vmatprep.subr.mxu0 0.0
    %3195 = vmatpush1.msra.mxu0 0.0
    %3196 = vmatprep.subr.mxu0 0.0
    %3197 = vmatpush1.msra.mxu0 0.0
    %3198 = vmatprep.subr.mxu0 0.0
    %3199 = vmatpush1.msra.mxu0 0.0
    %3200 = vmatprep.subr.mxu0 0.0
    %3201 = vmatpush1.msra.mxu0 %v3169
    %3202 = vmatprep.subr.mxu0 0.0
    %3203 = vmatpush1.msra.mxu0 %v3164
    %3204 = vmatprep.subr.mxu0 0.0
    %3205 = vmatpush2.msra.mxu0 0.0
    %3206 = vmatprep.subr.mxu0 0.0
    %3207 = vmatpush2.msra.mxu0 0.0
    %3208 = vmatprep.subr.mxu0 0.0
    %3209 = vmatpush2.msra.mxu0 0.0
    %3210 = vmatprep.subr.mxu0 0.0
    %3211 = vmatpush2.msra.mxu0 0.0
    %3212 = vmatprep.subr.mxu0 0.0
    %3213 = vmatpush2.msra.mxu0 0.0
    %3214 = vmatprep.subr.mxu0 0.0
    %3215 = vmatpush2.msra.mxu0 0.0
    %3216 = vmatprep.subr.mxu0 0.0
    %3217 = vmatpush2.msra.mxu0 0.0
    %3218 = vmatprep.subr.mxu0 0.0
    %3219 = vmatpush2.msra.mxu0 0.0
    %3220 = vmatprep.subr.mxu0 0.0
    %3221 = vmatpush2.msra.mxu0 0.0
    %3222 = vmatprep.subr.mxu0 0.0
    %3223 = vmatpush2.msra.mxu0 0.0
    %3224 = vmatprep.subr.mxu0 0.0
    %3225 = vmatpush2.msra.mxu0 0.0
    %3226 = vmatprep.subr.mxu0 0.0
    %3227 = vmatpush2.msra.mxu0 0.0
    %3228 = vmatprep.subr.mxu0 0.0
    %3229 = vmatpush2.msra.mxu0 0.0
    %3230 = vmatprep.subr.mxu0 0.0
    %3231 = vmatpush2.msra.mxu0 0.0
    %3232 = vmatprep.subr.mxu0 0.0
    %3233 = vmatpush2.msra.mxu0 0.0
    %3234 = vmatprep.subr.mxu0 0.0
    %3235 = vmatpush2.msra.mxu0 0.0
    %3236 = vmatprep.mubr.f32.mxu0 0.0
    %3237 = vmatmul.mubr.f32.gmra.mxu0 %v164
    %v3238 = vpop.f32.mrf.mxu0
    %v3239 = vadd.f32 0.0, %v3238
    %v3240 = vpop.f32.mrf.mxu0
    %3241 = vmatprep.mubr.f32.mxu0 0.0
    %3242 = vmatmul.mubr.f32.gmra.mxu0 %v167
    %v3243 = vpop.f32.mrf.mxu0
    %v3244 = vadd.f32 0.0, %v3243
    %v3245 = vpop.f32.mrf.mxu0
    %3246 = vdwg.mxu0
    %v3247 = vsub.f32 %v3239, %v2925
    %v3248 = vsub.f32 %v3244, %v2926
    %v3249 = vmul.f32 %v2606, %v2609
    %v3250 = vmul.f32 %v2607, %v2610
    %v3252 = vsel %vm81, %v3249, 0
    %v3255 = vsel %vm81, %v3250, 0
    %3257 = vmatprep.subr.mxu0 0.0
    %3258 = vmatpush1.msra.mxu0 0.0
    %3259 = vmatprep.subr.mxu0 0.0
    %3260 = vmatpush1.msra.mxu0 0.0
    %3261 = vmatprep.subr.mxu0 0.0
    %3262 = vmatpush1.msra.mxu0 0.0
    %3263 = vmatprep.subr.mxu0 0.0
    %3264 = vmatpush1.msra.mxu0 0.0
    %3265 = vmatprep.subr.mxu0 0.0
    %3266 = vmatpush1.msra.mxu0 0.0
    %3267 = vmatprep.subr.mxu0 0.0
    %3268 = vmatpush1.msra.mxu0 0.0
    %3269 = vmatprep.subr.mxu0 0.0
    %3270 = vmatpush1.msra.mxu0 0.0
    %3271 = vmatprep.subr.mxu0 0.0
    %3272 = vmatpush1.msra.mxu0 0.0
    %3273 = vmatprep.subr.mxu0 0.0
    %3274 = vmatpush1.msra.mxu0 0.0
    %3275 = vmatprep.subr.mxu0 0.0
    %3276 = vmatpush1.msra.mxu0 0.0
    %3277 = vmatprep.subr.mxu0 0.0
    %3278 = vmatpush1.msra.mxu0 0.0
    %3279 = vmatprep.subr.mxu0 0.0
    %3280 = vmatpush1.msra.mxu0 0.0
    %3281 = vmatprep.subr.mxu0 0.0
    %3282 = vmatpush1.msra.mxu0 0.0
    %3283 = vmatprep.subr.mxu0 0.0
    %3284 = vmatpush1.msra.mxu0 0.0
    %3285 = vmatprep.subr.mxu0 0.0
    %3286 = vmatpush1.msra.mxu0 %v76
    %3287 = vmatprep.subr.mxu0 0.0
    %3288 = vmatpush1.msra.mxu0 %v75
    %3289 = vmatprep.subr.mxu0 0.0
    %3290 = vmatpush2.msra.mxu0 0.0
    %3291 = vmatprep.subr.mxu0 0.0
    %3292 = vmatpush2.msra.mxu0 0.0
    %3293 = vmatprep.subr.mxu0 0.0
    %3294 = vmatpush2.msra.mxu0 0.0
    %3295 = vmatprep.subr.mxu0 0.0
    %3296 = vmatpush2.msra.mxu0 0.0
    %3297 = vmatprep.subr.mxu0 0.0
    %3298 = vmatpush2.msra.mxu0 0.0
    %3299 = vmatprep.subr.mxu0 0.0
    %3300 = vmatpush2.msra.mxu0 0.0
    %3301 = vmatprep.subr.mxu0 0.0
    %3302 = vmatpush2.msra.mxu0 0.0
    %3303 = vmatprep.subr.mxu0 0.0
    %3304 = vmatpush2.msra.mxu0 0.0
    %3305 = vmatprep.subr.mxu0 0.0
    %3306 = vmatpush2.msra.mxu0 0.0
    %3307 = vmatprep.subr.mxu0 0.0
    %3308 = vmatpush2.msra.mxu0 0.0
    %3309 = vmatprep.subr.mxu0 0.0
    %3310 = vmatpush2.msra.mxu0 0.0
    %3311 = vmatprep.subr.mxu0 0.0
    %3312 = vmatpush2.msra.mxu0 0.0
    %3313 = vmatprep.subr.mxu0 0.0
    %3314 = vmatpush2.msra.mxu0 0.0
    %3315 = vmatprep.subr.mxu0 0.0
    %3316 = vmatpush2.msra.mxu0 0.0
    %3317 = vmatprep.subr.mxu0 0.0
    %3318 = vmatpush2.msra.mxu0 0.0
    %3319 = vmatprep.subr.mxu0 0.0
    %3320 = vmatpush2.msra.mxu0 0.0
    %3321 = vmatprep.mubr.f32.mxu0 0.0
    %3322 = vmatmul.mubr.f32.gmra.mxu0 %v3252
    %v3323 = vpop.f32.mrf.mxu0
    %v3324 = vadd.f32 0.0, %v3323
    %v3325 = vpop.f32.mrf.mxu0
    %3326 = vmatprep.mubr.f32.mxu0 0.0
    %3327 = vmatmul.mubr.f32.gmra.mxu0 %v3255
    %v3328 = vpop.f32.mrf.mxu0
    %v3329 = vadd.f32 0.0, %v3328
    %v3330 = vpop.f32.mrf.mxu0
    %3331 = vdwg.mxu0
    %3332 = vmatprep.subr.mxu0 0.0
    %3333 = vmatpush1.msra.mxu0 0.0
    %3334 = vmatprep.subr.mxu0 0.0
    %3335 = vmatpush1.msra.mxu0 0.0
    %3336 = vmatprep.subr.mxu0 0.0
    %3337 = vmatpush1.msra.mxu0 0.0
    %3338 = vmatprep.subr.mxu0 0.0
    %3339 = vmatpush1.msra.mxu0 0.0
    %3340 = vmatprep.subr.mxu0 0.0
    %3341 = vmatpush1.msra.mxu0 0.0
    %3342 = vmatprep.subr.mxu0 0.0
    %3343 = vmatpush1.msra.mxu0 0.0
    %3344 = vmatprep.subr.mxu0 0.0
    %3345 = vmatpush1.msra.mxu0 0.0
    %3346 = vmatprep.subr.mxu0 0.0
    %3347 = vmatpush1.msra.mxu0 0.0
    %3348 = vmatprep.subr.mxu0 0.0
    %3349 = vmatpush1.msra.mxu0 0.0
    %3350 = vmatprep.subr.mxu0 0.0
    %3351 = vmatpush1.msra.mxu0 0.0
    %3352 = vmatprep.subr.mxu0 0.0
    %3353 = vmatpush1.msra.mxu0 0.0
    %3354 = vmatprep.subr.mxu0 0.0
    %3355 = vmatpush1.msra.mxu0 0.0
    %3356 = vmatprep.subr.mxu0 0.0
    %3357 = vmatpush1.msra.mxu0 0.0
    %3358 = vmatprep.subr.mxu0 0.0
    %3359 = vmatpush1.msra.mxu0 0.0
    %3360 = vmatprep.subr.mxu0 0.0
    %3361 = vmatpush1.msra.mxu0 %v3329
    %3362 = vmatprep.subr.mxu0 0.0
    %3363 = vmatpush1.msra.mxu0 %v3324
    %3364 = vmatprep.subr.mxu0 0.0
    %3365 = vmatpush2.msra.mxu0 0.0
    %3366 = vmatprep.subr.mxu0 0.0
    %3367 = vmatpush2.msra.mxu0 0.0
    %3368 = vmatprep.subr.mxu0 0.0
    %3369 = vmatpush2.msra.mxu0 0.0
    %3370 = vmatprep.subr.mxu0 0.0
    %3371 = vmatpush2.msra.mxu0 0.0
    %3372 = vmatprep.subr.mxu0 0.0
    %3373 = vmatpush2.msra.mxu0 0.0
    %3374 = vmatprep.subr.mxu0 0.0
    %3375 = vmatpush2.msra.mxu0 0.0
    %3376 = vmatprep.subr.mxu0 0.0
    %3377 = vmatpush2.msra.mxu0 0.0
    %3378 = vmatprep.subr.mxu0 0.0
    %3379 = vmatpush2.msra.mxu0 0.0
    %3380 = vmatprep.subr.mxu0 0.0
    %3381 = vmatpush2.msra.mxu0 0.0
    %3382 = vmatprep.subr.mxu0 0.0
    %3383 = vmatpush2.msra.mxu0 0.0
    %3384 = vmatprep.subr.mxu0 0.0
    %3385 = vmatpush2.msra.mxu0 0.0
    %3386 = vmatprep.subr.mxu0 0.0
    %3387 = vmatpush2.msra.mxu0 0.0
    %3388 = vmatprep.subr.mxu0 0.0
    %3389 = vmatpush2.msra.mxu0 0.0
    %3390 = vmatprep.subr.mxu0 0.0
    %3391 = vmatpush2.msra.mxu0 0.0
    %3392 = vmatprep.subr.mxu0 0.0
    %3393 = vmatpush2.msra.mxu0 0.0
    %3394 = vmatprep.subr.mxu0 0.0
    %3395 = vmatpush2.msra.mxu0 0.0
    %3396 = vmatprep.mubr.f32.mxu0 0.0
    %3397 = vmatmul.mubr.f32.gmra.mxu0 %v164
    %v3398 = vpop.f32.mrf.mxu0
    %v3399 = vadd.f32 0.0, %v3398
    %v3400 = vpop.f32.mrf.mxu0
    %3401 = vmatprep.mubr.f32.mxu0 0.0
    %3402 = vmatmul.mubr.f32.gmra.mxu0 %v167
    %v3403 = vpop.f32.mrf.mxu0
    %v3404 = vadd.f32 0.0, %v3403
    %v3405 = vpop.f32.mrf.mxu0
    %3406 = vdwg.mxu0
    %v3407 = vsub.f32 %v3399, %v2927
    %v3408 = vsub.f32 %v3404, %v2928
    %v3409 = vmul.f32 %v2927, 2.0
    %v3410 = vmul.f32 %v2928, 2.0
    %v3411 = vadd.f32 %v3409, 0.0001
    %v3412 = vadd.f32 %v3410, 0.0001
    %v3413 = vmul.f32 %v3407, 2.0
    %v3414 = vmul.f32 %v3408, 2.0
    %v3415 = vadd.f32 %v3413, 0.0009
    %v3416 = vadd.f32 %v3414, 0.0009
    %v3417 = vmul.f32 %v3411, %v3415
    %v3418 = vmul.f32 %v3412, %v3416
    %v3419 = vadd.f32 %v2923, %v2925
    %v3420 = vadd.f32 %v2924, %v2926
    %v3421 = vadd.f32 %v3419, 0.0001
    %v3422 = vadd.f32 %v3420, 0.0001
    %v3423 = vadd.f32 %v3087, %v3247
    %v3424 = vadd.f32 %v3088, %v3248
    %v3425 = vadd.f32 %v3423, 0.0009
    %v3426 = vadd.f32 %v3424, 0.0009
    %v3427 = vmul.f32 %v3421, %v3425
    %v3428 = vmul.f32 %v3422, %v3426
    %v3429 = vrcp.pop %v3427
    %v3430 = vmul.f32 %v3417, %v3429
    %v3431 = vrcp.pop %v3428
    %v3432 = vmul.f32 %v3418, %v3431
    %v3433 = vsel %vm81, %v3430, 0.0
    %v3434 = vsel %vm81, %v3432, 0.0
    %v3435 = vadd.f32 %v3433, %v3434
    %3436 = vadd.xlane.f32.xlu0 %v3435
    %v3437 = vpop.xlane.xlu0 %3436
    %v3438 = vrot.slane %v3437, 4
    %v3439 = vadd.f32 %v3437, %v3438
    %v3440 = vrot.slane %v3439, 2
    %v3441 = vadd.f32 %v3439, %v3440
    %v3442 = vrot.slane %v3441, 1
    %v3443 = vadd.f32 %v3441, %v3442
    %s3444 = vtos %v3443
    %v3445 = vstv %s3444
    %s3446 = scalar_lea.vmem [#allocation2], 64
    %v3447 = vld [vmem:[%s3446] sm:$0xff]
    %v3448 = vld [vmem:[%s3446 + $0x8] sm:$0xff]
    %s3449 = scalar_lea.vmem [#allocation5], 64
    %v3450 = vld [vmem:[%s3449] sm:$0xff]
    %v3451 = vld [vmem:[%s3449 + $0x8] sm:$0xff]
    %v3453 = vsel %vm81, %v3447, 0
    %v3456 = vsel %vm81, %v3448, 0
    %3458 = vmatprep.subr.mxu0 0.0
    %3459 = vmatpush1.msra.mxu0 0.0
    %3460 = vmatprep.subr.mxu0 0.0
    %3461 = vmatpush1.msra.mxu0 0.0
    %3462 = vmatprep.subr.mxu0 0.0
    %3463 = vmatpush1.msra.mxu0 0.0
    %3464 = vmatprep.subr.mxu0 0.0
    %3465 = vmatpush1.msra.mxu0 0.0
    %3466 = vmatprep.subr.mxu0 0.0
    %3467 = vmatpush1.msra.mxu0 0.0
    %3468 = vmatprep.subr.mxu0 0.0
    %3469 = vmatpush1.msra.mxu0 0.0
    %3470 = vmatprep.subr.mxu0 0.0
    %3471 = vmatpush1.msra.mxu0 0.0
    %3472 = vmatprep.subr.mxu0 0.0
    %3473 = vmatpush1.msra.mxu0 0.0
    %3474 = vmatprep.subr.mxu0 0.0
    %3475 = vmatpush1.msra.mxu0 0.0
    %3476 = vmatprep.subr.mxu0 0.0
    %3477 = vmatpush1.msra.mxu0 0.0
    %3478 = vmatprep.subr.mxu0 0.0
    %3479 = vmatpush1.msra.mxu0 0.0
    %3480 = vmatprep.subr.mxu0 0.0
    %3481 = vmatpush1.msra.mxu0 0.0
    %3482 = vmatprep.subr.mxu0 0.0
    %3483 = vmatpush1.msra.mxu0 0.0
    %3484 = vmatprep.subr.mxu0 0.0
    %3485 = vmatpush1.msra.mxu0 0.0
    %3486 = vmatprep.subr.mxu0 0.0
    %3487 = vmatpush1.msra.mxu0 %v76
    %3488 = vmatprep.subr.mxu0 0.0
    %3489 = vmatpush1.msra.mxu0 %v75
    %3490 = vmatprep.subr.mxu0 0.0
    %3491 = vmatpush2.msra.mxu0 0.0
    %3492 = vmatprep.subr.mxu0 0.0
    %3493 = vmatpush2.msra.mxu0 0.0
    %3494 = vmatprep.subr.mxu0 0.0
    %3495 = vmatpush2.msra.mxu0 0.0
    %3496 = vmatprep.subr.mxu0 0.0
    %3497 = vmatpush2.msra.mxu0 0.0
    %3498 = vmatprep.subr.mxu0 0.0
    %3499 = vmatpush2.msra.mxu0 0.0
    %3500 = vmatprep.subr.mxu0 0.0
    %3501 = vmatpush2.msra.mxu0 0.0
    %3502 = vmatprep.subr.mxu0 0.0
    %3503 = vmatpush2.msra.mxu0 0.0
    %3504 = vmatprep.subr.mxu0 0.0
    %3505 = vmatpush2.msra.mxu0 0.0
    %3506 = vmatprep.subr.mxu0 0.0
    %3507 = vmatpush2.msra.mxu0 0.0
    %3508 = vmatprep.subr.mxu0 0.0
    %3509 = vmatpush2.msra.mxu0 0.0
    %3510 = vmatprep.subr.mxu0 0.0
    %3511 = vmatpush2.msra.mxu0 0.0
    %3512 = vmatprep.subr.mxu0 0.0
    %3513 = vmatpush2.msra.mxu0 0.0
    %3514 = vmatprep.subr.mxu0 0.0
    %3515 = vmatpush2.msra.mxu0 0.0
    %3516 = vmatprep.subr.mxu0 0.0
    %3517 = vmatpush2.msra.mxu0 0.0
    %3518 = vmatprep.subr.mxu0 0.0
    %3519 = vmatpush2.msra.mxu0 0.0
    %3520 = vmatprep.subr.mxu0 0.0
    %3521 = vmatpush2.msra.mxu0 0.0
    %3522 = vmatprep.mubr.f32.mxu0 0.0
    %3523 = vmatmul.mubr.f32.gmra.mxu0 %v3453
    %v3524 = vpop.f32.mrf.mxu0
    %v3525 = vadd.f32 0.0, %v3524
    %v3526 = vpop.f32.mrf.mxu0
    %3527 = vmatprep.mubr.f32.mxu0 0.0
    %3528 = vmatmul.mubr.f32.gmra.mxu0 %v3456
    %v3529 = vpop.f32.mrf.mxu0
    %v3530 = vadd.f32 0.0, %v3529
    %v3531 = vpop.f32.mrf.mxu0
    %3532 = vdwg.mxu0
    %3533 = vmatprep.subr.mxu0 0.0
    %3534 = vmatpush1.msra.mxu0 0.0
    %3535 = vmatprep.subr.mxu0 0.0
    %3536 = vmatpush1.msra.mxu0 0.0
    %3537 = vmatprep.subr.mxu0 0.0
    %3538 = vmatpush1.msra.mxu0 0.0
    %3539 = vmatprep.subr.mxu0 0.0
    %3540 = vmatpush1.msra.mxu0 0.0
    %3541 = vmatprep.subr.mxu0 0.0
    %3542 = vmatpush1.msra.mxu0 0.0
    %3543 = vmatprep.subr.mxu0 0.0
    %3544 = vmatpush1.msra.mxu0 0.0
    %3545 = vmatprep.subr.mxu0 0.0
    %3546 = vmatpush1.msra.mxu0 0.0
    %3547 = vmatprep.subr.mxu0 0.0
    %3548 = vmatpush1.msra.mxu0 0.0
    %3549 = vmatprep.subr.mxu0 0.0
    %3550 = vmatpush1.msra.mxu0 0.0
    %3551 = vmatprep.subr.mxu0 0.0
    %3552 = vmatpush1.msra.mxu0 0.0
    %3553 = vmatprep.subr.mxu0 0.0
    %3554 = vmatpush1.msra.mxu0 0.0
    %3555 = vmatprep.subr.mxu0 0.0
    %3556 = vmatpush1.msra.mxu0 0.0
    %3557 = vmatprep.subr.mxu0 0.0
    %3558 = vmatpush1.msra.mxu0 0.0
    %3559 = vmatprep.subr.mxu0 0.0
    %3560 = vmatpush1.msra.mxu0 0.0
    %3561 = vmatprep.subr.mxu0 0.0
    %3562 = vmatpush1.msra.mxu0 %v3530
    %3563 = vmatprep.subr.mxu0 0.0
    %3564 = vmatpush1.msra.mxu0 %v3525
    %3565 = vmatprep.subr.mxu0 0.0
    %3566 = vmatpush2.msra.mxu0 0.0
    %3567 = vmatprep.subr.mxu0 0.0
    %3568 = vmatpush2.msra.mxu0 0.0
    %3569 = vmatprep.subr.mxu0 0.0
    %3570 = vmatpush2.msra.mxu0 0.0
    %3571 = vmatprep.subr.mxu0 0.0
    %3572 = vmatpush2.msra.mxu0 0.0
    %3573 = vmatprep.subr.mxu0 0.0
    %3574 = vmatpush2.msra.mxu0 0.0
    %3575 = vmatprep.subr.mxu0 0.0
    %3576 = vmatpush2.msra.mxu0 0.0
    %3577 = vmatprep.subr.mxu0 0.0
    %3578 = vmatpush2.msra.mxu0 0.0
    %3579 = vmatprep.subr.mxu0 0.0
    %3580 = vmatpush2.msra.mxu0 0.0
    %3581 = vmatprep.subr.mxu0 0.0
    %3582 = vmatpush2.msra.mxu0 0.0
    %3583 = vmatprep.subr.mxu0 0.0
    %3584 = vmatpush2.msra.mxu0 0.0
    %3585 = vmatprep.subr.mxu0 0.0
    %3586 = vmatpush2.msra.mxu0 0.0
    %3587 = vmatprep.subr.mxu0 0.0
    %3588 = vmatpush2.msra.mxu0 0.0
    %3589 = vmatprep.subr.mxu0 0.0
    %3590 = vmatpush2.msra.mxu0 0.0
    %3591 = vmatprep.subr.mxu0 0.0
    %3592 = vmatpush2.msra.mxu0 0.0
    %3593 = vmatprep.subr.mxu0 0.0
    %3594 = vmatpush2.msra.mxu0 0.0
    %3595 = vmatprep.subr.mxu0 0.0
    %3596 = vmatpush2.msra.mxu0 0.0
    %3597 = vmatprep.mubr.f32.mxu0 0.0
    %3598 = vmatmul.mubr.f32.gmra.mxu0 %v164
    %v3599 = vpop.f32.mrf.mxu0
    %v3600 = vadd.f32 0.0, %v3599
    %v3601 = vpop.f32.mrf.mxu0
    %3602 = vmatprep.mubr.f32.mxu0 0.0
    %3603 = vmatmul.mubr.f32.gmra.mxu0 %v167
    %v3604 = vpop.f32.mrf.mxu0
    %v3605 = vadd.f32 0.0, %v3604
    %v3606 = vpop.f32.mrf.mxu0
    %3607 = vdwg.mxu0
    %v3609 = vsel %vm81, %v3450, 0
    %v3612 = vsel %vm81, %v3451, 0
    %3614 = vmatprep.subr.mxu0 0.0
    %3615 = vmatpush1.msra.mxu0 0.0
    %3616 = vmatprep.subr.mxu0 0.0
    %3617 = vmatpush1.msra.mxu0 0.0
    %3618 = vmatprep.subr.mxu0 0.0
    %3619 = vmatpush1.msra.mxu0 0.0
    %3620 = vmatprep.subr.mxu0 0.0
    %3621 = vmatpush1.msra.mxu0 0.0
    %3622 = vmatprep.subr.mxu0 0.0
    %3623 = vmatpush1.msra.mxu0 0.0
    %3624 = vmatprep.subr.mxu0 0.0
    %3625 = vmatpush1.msra.mxu0 0.0
    %3626 = vmatprep.subr.mxu0 0.0
    %3627 = vmatpush1.msra.mxu0 0.0
    %3628 = vmatprep.subr.mxu0 0.0
    %3629 = vmatpush1.msra.mxu0 0.0
    %3630 = vmatprep.subr.mxu0 0.0
    %3631 = vmatpush1.msra.mxu0 0.0
    %3632 = vmatprep.subr.mxu0 0.0
    %3633 = vmatpush1.msra.mxu0 0.0
    %3634 = vmatprep.subr.mxu0 0.0
    %3635 = vmatpush1.msra.mxu0 0.0
    %3636 = vmatprep.subr.mxu0 0.0
    %3637 = vmatpush1.msra.mxu0 0.0
    %3638 = vmatprep.subr.mxu0 0.0
    %3639 = vmatpush1.msra.mxu0 0.0
    %3640 = vmatprep.subr.mxu0 0.0
    %3641 = vmatpush1.msra.mxu0 0.0
    %3642 = vmatprep.subr.mxu0 0.0
    %3643 = vmatpush1.msra.mxu0 %v76
    %3644 = vmatprep.subr.mxu0 0.0
    %3645 = vmatpush1.msra.mxu0 %v75
    %3646 = vmatprep.subr.mxu0 0.0
    %3647 = vmatpush2.msra.mxu0 0.0
    %3648 = vmatprep.subr.mxu0 0.0
    %3649 = vmatpush2.msra.mxu0 0.0
    %3650 = vmatprep.subr.mxu0 0.0
    %3651 = vmatpush2.msra.mxu0 0.0
    %3652 = vmatprep.subr.mxu0 0.0
    %3653 = vmatpush2.msra.mxu0 0.0
    %3654 = vmatprep.subr.mxu0 0.0
    %3655 = vmatpush2.msra.mxu0 0.0
    %3656 = vmatprep.subr.mxu0 0.0
    %3657 = vmatpush2.msra.mxu0 0.0
    %3658 = vmatprep.subr.mxu0 0.0
    %3659 = vmatpush2.msra.mxu0 0.0
    %3660 = vmatprep.subr.mxu0 0.0
    %3661 = vmatpush2.msra.mxu0 0.0
    %3662 = vmatprep.subr.mxu0 0.0
    %3663 = vmatpush2.msra.mxu0 0.0
    %3664 = vmatprep.subr.mxu0 0.0
    %3665 = vmatpush2.msra.mxu0 0.0
    %3666 = vmatprep.subr.mxu0 0.0
    %3667 = vmatpush2.msra.mxu0 0.0
    %3668 = vmatprep.subr.mxu0 0.0
    %3669 = vmatpush2.msra.mxu0 0.0
    %3670 = vmatprep.subr.mxu0 0.0
    %3671 = vmatpush2.msra.mxu0 0.0
    %3672 = vmatprep.subr.mxu0 0.0
    %3673 = vmatpush2.msra.mxu0 0.0
    %3674 = vmatprep.subr.mxu0 0.0
    %3675 = vmatpush2.msra.mxu0 0.0
    %3676 = vmatprep.subr.mxu0 0.0
    %3677 = vmatpush2.msra.mxu0 0.0
    %3678 = vmatprep.mubr.f32.mxu0 0.0
    %3679 = vmatmul.mubr.f32.gmra.mxu0 %v3609
    %v3680 = vpop.f32.mrf.mxu0
    %v3681 = vadd.f32 0.0, %v3680
    %v3682 = vpop.f32.mrf.mxu0
    %3683 = vmatprep.mubr.f32.mxu0 0.0
    %3684 = vmatmul.mubr.f32.gmra.mxu0 %v3612
    %v3685 = vpop.f32.mrf.mxu0
    %v3686 = vadd.f32 0.0, %v3685
    %v3687 = vpop.f32.mrf.mxu0
    %3688 = vdwg.mxu0
    %3689 = vmatprep.subr.mxu0 0.0
    %3690 = vmatpush1.msra.mxu0 0.0
    %3691 = vmatprep.subr.mxu0 0.0
    %3692 = vmatpush1.msra.mxu0 0.0
    %3693 = vmatprep.subr.mxu0 0.0
    %3694 = vmatpush1.msra.mxu0 0.0
    %3695 = vmatprep.subr.mxu0 0.0
    %3696 = vmatpush1.msra.mxu0 0.0
    %3697 = vmatprep.subr.mxu0 0.0
    %3698 = vmatpush1.msra.mxu0 0.0
    %3699 = vmatprep.subr.mxu0 0.0
    %3700 = vmatpush1.msra.mxu0 0.0
    %3701 = vmatprep.subr.mxu0 0.0
    %3702 = vmatpush1.msra.mxu0 0.0
    %3703 = vmatprep.subr.mxu0 0.0
    %3704 = vmatpush1.msra.mxu0 0.0
    %3705 = vmatprep.subr.mxu0 0.0
    %3706 = vmatpush1.msra.mxu0 0.0
    %3707 = vmatprep.subr.mxu0 0.0
    %3708 = vmatpush1.msra.mxu0 0.0
    %3709 = vmatprep.subr.mxu0 0.0
    %3710 = vmatpush1.msra.mxu0 0.0
    %3711 = vmatprep.subr.mxu0 0.0
    %3712 = vmatpush1.msra.mxu0 0.0
    %3713 = vmatprep.subr.mxu0 0.0
    %3714 = vmatpush1.msra.mxu0 0.0
    %3715 = vmatprep.subr.mxu0 0.0
    %3716 = vmatpush1.msra.mxu0 0.0
    %3717 = vmatprep.subr.mxu0 0.0
    %3718 = vmatpush1.msra.mxu0 %v3686
    %3719 = vmatprep.subr.mxu0 0.0
    %3720 = vmatpush1.msra.mxu0 %v3681
    %3721 = vmatprep.subr.mxu0 0.0
    %3722 = vmatpush2.msra.mxu0 0.0
    %3723 = vmatprep.subr.mxu0 0.0
    %3724 = vmatpush2.msra.mxu0 0.0
    %3725 = vmatprep.subr.mxu0 0.0
    %3726 = vmatpush2.msra.mxu0 0.0
    %3727 = vmatprep.subr.mxu0 0.0
    %3728 = vmatpush2.msra.mxu0 0.0
    %3729 = vmatprep.subr.mxu0 0.0
    %3730 = vmatpush2.msra.mxu0 0.0
    %3731 = vmatprep.subr.mxu0 0.0
    %3732 = vmatpush2.msra.mxu0 0.0
    %3733 = vmatprep.subr.mxu0 0.0
    %3734 = vmatpush2.msra.mxu0 0.0
    %3735 = vmatprep.subr.mxu0 0.0
    %3736 = vmatpush2.msra.mxu0 0.0
    %3737 = vmatprep.subr.mxu0 0.0
    %3738 = vmatpush2.msra.mxu0 0.0
    %3739 = vmatprep.subr.mxu0 0.0
    %3740 = vmatpush2.msra.mxu0 0.0
    %3741 = vmatprep.subr.mxu0 0.0
    %3742 = vmatpush2.msra.mxu0 0.0
    %3743 = vmatprep.subr.mxu0 0.0
    %3744 = vmatpush2.msra.mxu0 0.0
    %3745 = vmatprep.subr.mxu0 0.0
    %3746 = vmatpush2.msra.mxu0 0.0
    %3747 = vmatprep.subr.mxu0 0.0
    %3748 = vmatpush2.msra.mxu0 0.0
    %3749 = vmatprep.subr.mxu0 0.0
    %3750 = vmatpush2.msra.mxu0 0.0
    %3751 = vmatprep.subr.mxu0 0.0
    %3752 = vmatpush2.msra.mxu0 0.0
    %3753 = vmatprep.mubr.f32.mxu0 0.0
    %3754 = vmatmul.mubr.f32.gmra.mxu0 %v164
    %v3755 = vpop.f32.mrf.mxu0
    %v3756 = vadd.f32 0.0, %v3755
    %v3757 = vpop.f32.mrf.mxu0
    %3758 = vmatprep.mubr.f32.mxu0 0.0
    %3759 = vmatmul.mubr.f32.gmra.mxu0 %v167
    %v3760 = vpop.f32.mrf.mxu0
    %v3761 = vadd.f32 0.0, %v3760
    %v3762 = vpop.f32.mrf.mxu0
    %3763 = vdwg.mxu0
    %v3764 = vmul.f32 %v3600, %v3600
    %v3765 = vmul.f32 %v3605, %v3605
    %v3766 = vmul.f32 %v3756, %v3756
    %v3767 = vmul.f32 %v3761, %v3761
    %v3768 = vmul.f32 %v3600, %v3756
    %v3769 = vmul.f32 %v3605, %v3761
    %v3770 = vmul.f32 %v3447, %v3447
    %v3771 = vmul.f32 %v3448, %v3448
    %v3773 = vsel %vm81, %v3770, 0
    %v3776 = vsel %vm81, %v3771, 0
    %3778 = vmatprep.subr.mxu0 0.0
    %3779 = vmatpush1.msra.mxu0 0.0
    %3780 = vmatprep.subr.mxu0 0.0
    %3781 = vmatpush1.msra.mxu0 0.0
    %3782 = vmatprep.subr.mxu0 0.0
    %3783 = vmatpush1.msra.mxu0 0.0
    %3784 = vmatprep.subr.mxu0 0.0
    %3785 = vmatpush1.msra.mxu0 0.0
    %3786 = vmatprep.subr.mxu0 0.0
    %3787 = vmatpush1.msra.mxu0 0.0
    %3788 = vmatprep.subr.mxu0 0.0
    %3789 = vmatpush1.msra.mxu0 0.0
    %3790 = vmatprep.subr.mxu0 0.0
    %3791 = vmatpush1.msra.mxu0 0.0
    %3792 = vmatprep.subr.mxu0 0.0
    %3793 = vmatpush1.msra.mxu0 0.0
    %3794 = vmatprep.subr.mxu0 0.0
    %3795 = vmatpush1.msra.mxu0 0.0
    %3796 = vmatprep.subr.mxu0 0.0
    %3797 = vmatpush1.msra.mxu0 0.0
    %3798 = vmatprep.subr.mxu0 0.0
    %3799 = vmatpush1.msra.mxu0 0.0
    %3800 = vmatprep.subr.mxu0 0.0
    %3801 = vmatpush1.msra.mxu0 0.0
    %3802 = vmatprep.subr.mxu0 0.0
    %3803 = vmatpush1.msra.mxu0 0.0
    %3804 = vmatprep.subr.mxu0 0.0
    %3805 = vmatpush1.msra.mxu0 0.0
    %3806 = vmatprep.subr.mxu0 0.0
    %3807 = vmatpush1.msra.mxu0 %v76
    %3808 = vmatprep.subr.mxu0 0.0
    %3809 = vmatpush1.msra.mxu0 %v75
    %3810 = vmatprep.subr.mxu0 0.0
    %3811 = vmatpush2.msra.mxu0 0.0
    %3812 = vmatprep.subr.mxu0 0.0
    %3813 = vmatpush2.msra.mxu0 0.0
    %3814 = vmatprep.subr.mxu0 0.0
    %3815 = vmatpush2.msra.mxu0 0.0
    %3816 = vmatprep.subr.mxu0 0.0
    %3817 = vmatpush2.msra.mxu0 0.0
    %3818 = vmatprep.subr.mxu0 0.0
    %3819 = vmatpush2.msra.mxu0 0.0
    %3820 = vmatprep.subr.mxu0 0.0
    %3821 = vmatpush2.msra.mxu0 0.0
    %3822 = vmatprep.subr.mxu0 0.0
    %3823 = vmatpush2.msra.mxu0 0.0
    %3824 = vmatprep.subr.mxu0 0.0
    %3825 = vmatpush2.msra.mxu0 0.0
    %3826 = vmatprep.subr.mxu0 0.0
    %3827 = vmatpush2.msra.mxu0 0.0
    %3828 = vmatprep.subr.mxu0 0.0
    %3829 = vmatpush2.msra.mxu0 0.0
    %3830 = vmatprep.subr.mxu0 0.0
    %3831 = vmatpush2.msra.mxu0 0.0
    %3832 = vmatprep.subr.mxu0 0.0
    %3833 = vmatpush2.msra.mxu0 0.0
    %3834 = vmatprep.subr.mxu0 0.0
    %3835 = vmatpush2.msra.mxu0 0.0
    %3836 = vmatprep.subr.mxu0 0.0
    %3837 = vmatpush2.msra.mxu0 0.0
    %3838 = vmatprep.subr.mxu0 0.0
    %3839 = vmatpush2.msra.mxu0 0.0
    %3840 = vmatprep.subr.mxu0 0.0
    %3841 = vmatpush2.msra.mxu0 0.0
    %3842 = vmatprep.mubr.f32.mxu0 0.0
    %3843 = vmatmul.mubr.f32.gmra.mxu0 %v3773
    %v3844 = vpop.f32.mrf.mxu0
    %v3845 = vadd.f32 0.0, %v3844
    %v3846 = vpop.f32.mrf.mxu0
    %3847 = vmatprep.mubr.f32.mxu0 0.0
    %3848 = vmatmul.mubr.f32.gmra.mxu0 %v3776
    %v3849 = vpop.f32.mrf.mxu0
    %v3850 = vadd.f32 0.0, %v3849
    %v3851 = vpop.f32.mrf.mxu0
    %3852 = vdwg.mxu0
    %3853 = vmatprep.subr.mxu0 0.0
    %3854 = vmatpush1.msra.mxu0 0.0
    %3855 = vmatprep.subr.mxu0 0.0
    %3856 = vmatpush1.msra.mxu0 0.0
    %3857 = vmatprep.subr.mxu0 0.0
    %3858 = vmatpush1.msra.mxu0 0.0
    %3859 = vmatprep.subr.mxu0 0.0
    %3860 = vmatpush1.msra.mxu0 0.0
    %3861 = vmatprep.subr.mxu0 0.0
    %3862 = vmatpush1.msra.mxu0 0.0
    %3863 = vmatprep.subr.mxu0 0.0
    %3864 = vmatpush1.msra.mxu0 0.0
    %3865 = vmatprep.subr.mxu0 0.0
    %3866 = vmatpush1.msra.mxu0 0.0
    %3867 = vmatprep.subr.mxu0 0.0
    %3868 = vmatpush1.msra.mxu0 0.0
    %3869 = vmatprep.subr.mxu0 0.0
    %3870 = vmatpush1.msra.mxu0 0.0
    %3871 = vmatprep.subr.mxu0 0.0
    %3872 = vmatpush1.msra.mxu0 0.0
    %3873 = vmatprep.subr.mxu0 0.0
    %3874 = vmatpush1.msra.mxu0 0.0
    %3875 = vmatprep.subr.mxu0 0.0
    %3876 = vmatpush1.msra.mxu0 0.0
    %3877 = vmatprep.subr.mxu0 0.0
    %3878 = vmatpush1.msra.mxu0 0.0
    %3879 = vmatprep.subr.mxu0 0.0
    %3880 = vmatpush1.msra.mxu0 0.0
    %3881 = vmatprep.subr.mxu0 0.0
    %3882 = vmatpush1.msra.mxu0 %v3850
    %3883 = vmatprep.subr.mxu0 0.0
    %3884 = vmatpush1.msra.mxu0 %v3845
    %3885 = vmatprep.subr.mxu0 0.0
    %3886 = vmatpush2.msra.mxu0 0.0
    %3887 = vmatprep.subr.mxu0 0.0
    %3888 = vmatpush2.msra.mxu0 0.0
    %3889 = vmatprep.subr.mxu0 0.0
    %3890 = vmatpush2.msra.mxu0 0.0
    %3891 = vmatprep.subr.mxu0 0.0
    %3892 = vmatpush2.msra.mxu0 0.0
    %3893 = vmatprep.subr.mxu0 0.0
    %3894 = vmatpush2.msra.mxu0 0.0
    %3895 = vmatprep.subr.mxu0 0.0
    %3896 = vmatpush2.msra.mxu0 0.0
    %3897 = vmatprep.subr.mxu0 0.0
    %3898 = vmatpush2.msra.mxu0 0.0
    %3899 = vmatprep.subr.mxu0 0.0
    %3900 = vmatpush2.msra.mxu0 0.0
    %3901 = vmatprep.subr.mxu0 0.0
    %3902 = vmatpush2.msra.mxu0 0.0
    %3903 = vmatprep.subr.mxu0 0.0
    %3904 = vmatpush2.msra.mxu0 0.0
    %3905 = vmatprep.subr.mxu0 0.0
    %3906 = vmatpush2.msra.mxu0 0.0
    %3907 = vmatprep.subr.mxu0 0.0
    %3908 = vmatpush2.msra.mxu0 0.0
    %3909 = vmatprep.subr.mxu0 0.0
    %3910 = vmatpush2.msra.mxu0 0.0
    %3911 = vmatprep.subr.mxu0 0.0
    %3912 = vmatpush2.msra.mxu0 0.0
    %3913 = vmatprep.subr.mxu0 0.0
    %3914 = vmatpush2.msra.mxu0 0.0
    %3915 = vmatprep.subr.mxu0 0.0
    %3916 = vmatpush2.msra.mxu0 0.0
    %3917 = vmatprep.mubr.f32.mxu0 0.0
    %3918 = vmatmul.mubr.f32.gmra.mxu0 %v164
    %v3919 = vpop.f32.mrf.mxu0
    %v3920 = vadd.f32 0.0, %v3919
    %v3921 = vpop.f32.mrf.mxu0
    %3922 = vmatprep.mubr.f32.mxu0 0.0
    %3923 = vmatmul.mubr.f32.gmra.mxu0 %v167
    %v3924 = vpop.f32.mrf.mxu0
    %v3925 = vadd.f32 0.0, %v3924
    %v3926 = vpop.f32.mrf.mxu0
    %3927 = vdwg.mxu0
    %v3928 = vsub.f32 %v3920, %v3764
    %v3929 = vsub.f32 %v3925, %v3765
    %v3930 = vmul.f32 %v3450, %v3450
    %v3931 = vmul.f32 %v3451, %v3451
    %v3933 = vsel %vm81, %v3930, 0
    %v3936 = vsel %vm81, %v3931, 0
    %3938 = vmatprep.subr.mxu0 0.0
    %3939 = vmatpush1.msra.mxu0 0.0
    %3940 = vmatprep.subr.mxu0 0.0
    %3941 = vmatpush1.msra.mxu0 0.0
    %3942 = vmatprep.subr.mxu0 0.0
    %3943 = vmatpush1.msra.mxu0 0.0
    %3944 = vmatprep.subr.mxu0 0.0
    %3945 = vmatpush1.msra.mxu0 0.0
    %3946 = vmatprep.subr.mxu0 0.0
    %3947 = vmatpush1.msra.mxu0 0.0
    %3948 = vmatprep.subr.mxu0 0.0
    %3949 = vmatpush1.msra.mxu0 0.0
    %3950 = vmatprep.subr.mxu0 0.0
    %3951 = vmatpush1.msra.mxu0 0.0
    %3952 = vmatprep.subr.mxu0 0.0
    %3953 = vmatpush1.msra.mxu0 0.0
    %3954 = vmatprep.subr.mxu0 0.0
    %3955 = vmatpush1.msra.mxu0 0.0
    %3956 = vmatprep.subr.mxu0 0.0
    %3957 = vmatpush1.msra.mxu0 0.0
    %3958 = vmatprep.subr.mxu0 0.0
    %3959 = vmatpush1.msra.mxu0 0.0
    %3960 = vmatprep.subr.mxu0 0.0
    %3961 = vmatpush1.msra.mxu0 0.0
    %3962 = vmatprep.subr.mxu0 0.0
    %3963 = vmatpush1.msra.mxu0 0.0
    %3964 = vmatprep.subr.mxu0 0.0
    %3965 = vmatpush1.msra.mxu0 0.0
    %3966 = vmatprep.subr.mxu0 0.0
    %3967 = vmatpush1.msra.mxu0 %v76
    %3968 = vmatprep.subr.mxu0 0.0
    %3969 = vmatpush1.msra.mxu0 %v75
    %3970 = vmatprep.subr.mxu0 0.0
    %3971 = vmatpush2.msra.mxu0 0.0
    %3972 = vmatprep.subr.mxu0 0.0
    %3973 = vmatpush2.msra.mxu0 0.0
    %3974 = vmatprep.subr.mxu0 0.0
    %3975 = vmatpush2.msra.mxu0 0.0
    %3976 = vmatprep.subr.mxu0 0.0
    %3977 = vmatpush2.msra.mxu0 0.0
    %3978 = vmatprep.subr.mxu0 0.0
    %3979 = vmatpush2.msra.mxu0 0.0
    %3980 = vmatprep.subr.mxu0 0.0
    %3981 = vmatpush2.msra.mxu0 0.0
    %3982 = vmatprep.subr.mxu0 0.0
    %3983 = vmatpush2.msra.mxu0 0.0
    %3984 = vmatprep.subr.mxu0 0.0
    %3985 = vmatpush2.msra.mxu0 0.0
    %3986 = vmatprep.subr.mxu0 0.0
    %3987 = vmatpush2.msra.mxu0 0.0
    %3988 = vmatprep.subr.mxu0 0.0
    %3989 = vmatpush2.msra.mxu0 0.0
    %3990 = vmatprep.subr.mxu0 0.0
    %3991 = vmatpush2.msra.mxu0 0.0
    %3992 = vmatprep.subr.mxu0 0.0
    %3993 = vmatpush2.msra.mxu0 0.0
    %3994 = vmatprep.subr.mxu0 0.0
    %3995 = vmatpush2.msra.mxu0 0.0
    %3996 = vmatprep.subr.mxu0 0.0
    %3997 = vmatpush2.msra.mxu0 0.0
    %3998 = vmatprep.subr.mxu0 0.0
    %3999 = vmatpush2.msra.mxu0 0.0
    %4000 = vmatprep.subr.mxu0 0.0
    %4001 = vmatpush2.msra.mxu0 0.0
    %4002 = vmatprep.mubr.f32.mxu0 0.0
    %4003 = vmatmul.mubr.f32.gmra.mxu0 %v3933
    %v4004 = vpop.f32.mrf.mxu0
    %v4005 = vadd.f32 0.0, %v4004
    %v4006 = vpop.f32.mrf.mxu0
    %4007 = vmatprep.mubr.f32.mxu0 0.0
    %4008 = vmatmul.mubr.f32.gmra.mxu0 %v3936
    %v4009 = vpop.f32.mrf.mxu0
    %v4010 = vadd.f32 0.0, %v4009
    %v4011 = vpop.f32.mrf.mxu0
    %4012 = vdwg.mxu0
    %4013 = vmatprep.subr.mxu0 0.0
    %4014 = vmatpush1.msra.mxu0 0.0
    %4015 = vmatprep.subr.mxu0 0.0
    %4016 = vmatpush1.msra.mxu0 0.0
    %4017 = vmatprep.subr.mxu0 0.0
    %4018 = vmatpush1.msra.mxu0 0.0
    %4019 = vmatprep.subr.mxu0 0.0
    %4020 = vmatpush1.msra.mxu0 0.0
    %4021 = vmatprep.subr.mxu0 0.0
    %4022 = vmatpush1.msra.mxu0 0.0
    %4023 = vmatprep.subr.mxu0 0.0
    %4024 = vmatpush1.msra.mxu0 0.0
    %4025 = vmatprep.subr.mxu0 0.0
    %4026 = vmatpush1.msra.mxu0 0.0
    %4027 = vmatprep.subr.mxu0 0.0
    %4028 = vmatpush1.msra.mxu0 0.0
    %4029 = vmatprep.subr.mxu0 0.0
    %4030 = vmatpush1.msra.mxu0 0.0
    %4031 = vmatprep.subr.mxu0 0.0
    %4032 = vmatpush1.msra.mxu0 0.0
    %4033 = vmatprep.subr.mxu0 0.0
    %4034 = vmatpush1.msra.mxu0 0.0
    %4035 = vmatprep.subr.mxu0 0.0
    %4036 = vmatpush1.msra.mxu0 0.0
    %4037 = vmatprep.subr.mxu0 0.0
    %4038 = vmatpush1.msra.mxu0 0.0
    %4039 = vmatprep.subr.mxu0 0.0
    %4040 = vmatpush1.msra.mxu0 0.0
    %4041 = vmatprep.subr.mxu0 0.0
    %4042 = vmatpush1.msra.mxu0 %v4010
    %4043 = vmatprep.subr.mxu0 0.0
    %4044 = vmatpush1.msra.mxu0 %v4005
    %4045 = vmatprep.subr.mxu0 0.0
    %4046 = vmatpush2.msra.mxu0 0.0
    %4047 = vmatprep.subr.mxu0 0.0
    %4048 = vmatpush2.msra.mxu0 0.0
    %4049 = vmatprep.subr.mxu0 0.0
    %4050 = vmatpush2.msra.mxu0 0.0
    %4051 = vmatprep.subr.mxu0 0.0
    %4052 = vmatpush2.msra.mxu0 0.0
    %4053 = vmatprep.subr.mxu0 0.0
    %4054 = vmatpush2.msra.mxu0 0.0
    %4055 = vmatprep.subr.mxu0 0.0
    %4056 = vmatpush2.msra.mxu0 0.0
    %4057 = vmatprep.subr.mxu0 0.0
    %4058 = vmatpush2.msra.mxu0 0.0
    %4059 = vmatprep.subr.mxu0 0.0
    %4060 = vmatpush2.msra.mxu0 0.0
    %4061 = vmatprep.subr.mxu0 0.0
    %4062 = vmatpush2.msra.mxu0 0.0
    %4063 = vmatprep.subr.mxu0 0.0
    %4064 = vmatpush2.msra.mxu0 0.0
    %4065 = vmatprep.subr.mxu0 0.0
    %4066 = vmatpush2.msra.mxu0 0.0
    %4067 = vmatprep.subr.mxu0 0.0
    %4068 = vmatpush2.msra.mxu0 0.0
    %4069 = vmatprep.subr.mxu0 0.0
    %4070 = vmatpush2.msra.mxu0 0.0
    %4071 = vmatprep.subr.mxu0 0.0
    %4072 = vmatpush2.msra.mxu0 0.0
    %4073 = vmatprep.subr.mxu0 0.0
    %4074 = vmatpush2.msra.mxu0 0.0
    %4075 = vmatprep.subr.mxu0 0.0
    %4076 = vmatpush2.msra.mxu0 0.0
    %4077 = vmatprep.mubr.f32.mxu0 0.0
    %4078 = vmatmul.mubr.f32.gmra.mxu0 %v164
    %v4079 = vpop.f32.mrf.mxu0
    %v4080 = vadd.f32 0.0, %v4079
    %v4081 = vpop.f32.mrf.mxu0
    %4082 = vmatprep.mubr.f32.mxu0 0.0
    %4083 = vmatmul.mubr.f32.gmra.mxu0 %v167
    %v4084 = vpop.f32.mrf.mxu0
    %v4085 = vadd.f32 0.0, %v4084
    %v4086 = vpop.f32.mrf.mxu0
    %4087 = vdwg.mxu0
    %v4088 = vsub.f32 %v4080, %v3766
    %v4089 = vsub.f32 %v4085, %v3767
    %v4090 = vmul.f32 %v3447, %v3450
    %v4091 = vmul.f32 %v3448, %v3451
    %v4093 = vsel %vm81, %v4090, 0
    %v4096 = vsel %vm81, %v4091, 0
    %4098 = vmatprep.subr.mxu0 0.0
    %4099 = vmatpush1.msra.mxu0 0.0
    %4100 = vmatprep.subr.mxu0 0.0
    %4101 = vmatpush1.msra.mxu0 0.0
    %4102 = vmatprep.subr.mxu0 0.0
    %4103 = vmatpush1.msra.mxu0 0.0
    %4104 = vmatprep.subr.mxu0 0.0
    %4105 = vmatpush1.msra.mxu0 0.0
    %4106 = vmatprep.subr.mxu0 0.0
    %4107 = vmatpush1.msra.mxu0 0.0
    %4108 = vmatprep.subr.mxu0 0.0
    %4109 = vmatpush1.msra.mxu0 0.0
    %4110 = vmatprep.subr.mxu0 0.0
    %4111 = vmatpush1.msra.mxu0 0.0
    %4112 = vmatprep.subr.mxu0 0.0
    %4113 = vmatpush1.msra.mxu0 0.0
    %4114 = vmatprep.subr.mxu0 0.0
    %4115 = vmatpush1.msra.mxu0 0.0
    %4116 = vmatprep.subr.mxu0 0.0
    %4117 = vmatpush1.msra.mxu0 0.0
    %4118 = vmatprep.subr.mxu0 0.0
    %4119 = vmatpush1.msra.mxu0 0.0
    %4120 = vmatprep.subr.mxu0 0.0
    %4121 = vmatpush1.msra.mxu0 0.0
    %4122 = vmatprep.subr.mxu0 0.0
    %4123 = vmatpush1.msra.mxu0 0.0
    %4124 = vmatprep.subr.mxu0 0.0
    %4125 = vmatpush1.msra.mxu0 0.0
    %4126 = vmatprep.subr.mxu0 0.0
    %4127 = vmatpush1.msra.mxu0 %v76
    %4128 = vmatprep.subr.mxu0 0.0
    %4129 = vmatpush1.msra.mxu0 %v75
    %4130 = vmatprep.subr.mxu0 0.0
    %4131 = vmatpush2.msra.mxu0 0.0
    %4132 = vmatprep.subr.mxu0 0.0
    %4133 = vmatpush2.msra.mxu0 0.0
    %4134 = vmatprep.subr.mxu0 0.0
    %4135 = vmatpush2.msra.mxu0 0.0
    %4136 = vmatprep.subr.mxu0 0.0
    %4137 = vmatpush2.msra.mxu0 0.0
    %4138 = vmatprep.subr.mxu0 0.0
    %4139 = vmatpush2.msra.mxu0 0.0
    %4140 = vmatprep.subr.mxu0 0.0
    %4141 = vmatpush2.msra.mxu0 0.0
    %4142 = vmatprep.subr.mxu0 0.0
    %4143 = vmatpush2.msra.mxu0 0.0
    %4144 = vmatprep.subr.mxu0 0.0
    %4145 = vmatpush2.msra.mxu0 0.0
    %4146 = vmatprep.subr.mxu0 0.0
    %4147 = vmatpush2.msra.mxu0 0.0
    %4148 = vmatprep.subr.mxu0 0.0
    %4149 = vmatpush2.msra.mxu0 0.0
    %4150 = vmatprep.subr.mxu0 0.0
    %4151 = vmatpush2.msra.mxu0 0.0
    %4152 = vmatprep.subr.mxu0 0.0
    %4153 = vmatpush2.msra.mxu0 0.0
    %4154 = vmatprep.subr.mxu0 0.0
    %4155 = vmatpush2.msra.mxu0 0.0
    %4156 = vmatprep.subr.mxu0 0.0
    %4157 = vmatpush2.msra.mxu0 0.0
    %4158 = vmatprep.subr.mxu0 0.0
    %4159 = vmatpush2.msra.mxu0 0.0
    %4160 = vmatprep.subr.mxu0 0.0
    %4161 = vmatpush2.msra.mxu0 0.0
    %4162 = vmatprep.mubr.f32.mxu0 0.0
    %4163 = vmatmul.mubr.f32.gmra.mxu0 %v4093
    %v4164 = vpop.f32.mrf.mxu0
    %v4165 = vadd.f32 0.0, %v4164
    %v4166 = vpop.f32.mrf.mxu0
    %4167 = vmatprep.mubr.f32.mxu0 0.0
    %4168 = vmatmul.mubr.f32.gmra.mxu0 %v4096
    %v4169 = vpop.f32.mrf.mxu0
    %v4170 = vadd.f32 0.0, %v4169
    %v4171 = vpop.f32.mrf.mxu0
    %4172 = vdwg.mxu0
    %4173 = vmatprep.subr.mxu0 0.0
    %4174 = vmatpush1.msra.mxu0 0.0
    %4175 = vmatprep.subr.mxu0 0.0
    %4176 = vmatpush1.msra.mxu0 0.0
    %4177 = vmatprep.subr.mxu0 0.0
    %4178 = vmatpush1.msra.mxu0 0.0
    %4179 = vmatprep.subr.mxu0 0.0
    %4180 = vmatpush1.msra.mxu0 0.0
    %4181 = vmatprep.subr.mxu0 0.0
    %4182 = vmatpush1.msra.mxu0 0.0
    %4183 = vmatprep.subr.mxu0 0.0
    %4184 = vmatpush1.msra.mxu0 0.0
    %4185 = vmatprep.subr.mxu0 0.0
    %4186 = vmatpush1.msra.mxu0 0.0
    %4187 = vmatprep.subr.mxu0 0.0
    %4188 = vmatpush1.msra.mxu0 0.0
    %4189 = vmatprep.subr.mxu0 0.0
    %4190 = vmatpush1.msra.mxu0 0.0
    %4191 = vmatprep.subr.mxu0 0.0
    %4192 = vmatpush1.msra.mxu0 0.0
    %4193 = vmatprep.subr.mxu0 0.0
    %4194 = vmatpush1.msra.mxu0 0.0
    %4195 = vmatprep.subr.mxu0 0.0
    %4196 = vmatpush1.msra.mxu0 0.0
    %4197 = vmatprep.subr.mxu0 0.0
    %4198 = vmatpush1.msra.mxu0 0.0
    %4199 = vmatprep.subr.mxu0 0.0
    %4200 = vmatpush1.msra.mxu0 0.0
    %4201 = vmatprep.subr.mxu0 0.0
    %4202 = vmatpush1.msra.mxu0 %v4170
    %4203 = vmatprep.subr.mxu0 0.0
    %4204 = vmatpush1.msra.mxu0 %v4165
    %4205 = vmatprep.subr.mxu0 0.0
    %4206 = vmatpush2.msra.mxu0 0.0
    %4207 = vmatprep.subr.mxu0 0.0
    %4208 = vmatpush2.msra.mxu0 0.0
    %4209 = vmatprep.subr.mxu0 0.0
    %4210 = vmatpush2.msra.mxu0 0.0
    %4211 = vmatprep.subr.mxu0 0.0
    %4212 = vmatpush2.msra.mxu0 0.0
    %4213 = vmatprep.subr.mxu0 0.0
    %4214 = vmatpush2.msra.mxu0 0.0
    %4215 = vmatprep.subr.mxu0 0.0
    %4216 = vmatpush2.msra.mxu0 0.0
    %4217 = vmatprep.subr.mxu0 0.0
    %4218 = vmatpush2.msra.mxu0 0.0
    %4219 = vmatprep.subr.mxu0 0.0
    %4220 = vmatpush2.msra.mxu0 0.0
    %4221 = vmatprep.subr.mxu0 0.0
    %4222 = vmatpush2.msra.mxu0 0.0
    %4223 = vmatprep.subr.mxu0 0.0
    %4224 = vmatpush2.msra.mxu0 0.0
    %4225 = vmatprep.subr.mxu0 0.0
    %4226 = vmatpush2.msra.mxu0 0.0
    %4227 = vmatprep.subr.mxu0 0.0
    %4228 = vmatpush2.msra.mxu0 0.0
    %4229 = vmatprep.subr.mxu0 0.0
    %4230 = vmatpush2.msra.mxu0 0.0
    %4231 = vmatprep.subr.mxu0 0.0
    %4232 = vmatpush2.msra.mxu0 0.0
    %4233 = vmatprep.subr.mxu0 0.0
    %4234 = vmatpush2.msra.mxu0 0.0
    %4235 = vmatprep.subr.mxu0 0.0
    %4236 = vmatpush2.msra.mxu0 0.0
    %4237 = vmatprep.mubr.f32.mxu0 0.0
    %4238 = vmatmul.mubr.f32.gmra.mxu0 %v164
    %v4239 = vpop.f32.mrf.mxu0
    %v4240 = vadd.f32 0.0, %v4239
    %v4241 = vpop.f32.mrf.mxu0
    %4242 = vmatprep.mubr.f32.mxu0 0.0
    %4243 = vmatmul.mubr.f32.gmra.mxu0 %v167
    %v4244 = vpop.f32.mrf.mxu0
    %v4245 = vadd.f32 0.0, %v4244
    %v4246 = vpop.f32.mrf.mxu0
    %4247 = vdwg.mxu0
    %v4248 = vsub.f32 %v4240, %v3768
    %v4249 = vsub.f32 %v4245, %v3769
    %v4250 = vmul.f32 %v3768, 2.0
    %v4251 = vmul.f32 %v3769, 2.0
    %v4252 = vadd.f32 %v4250, 0.0001
    %v4253 = vadd.f32 %v4251, 0.0001
    %v4254 = vmul.f32 %v4248, 2.0
    %v4255 = vmul.f32 %v4249, 2.0
    %v4256 = vadd.f32 %v4254, 0.0009
    %v4257 = vadd.f32 %v4255, 0.0009
    %v4258 = vmul.f32 %v4252, %v4256
    %v4259 = vmul.f32 %v4253, %v4257
    %v4260 = vadd.f32 %v3764, %v3766
    %v4261 = vadd.f32 %v3765, %v3767
    %v4262 = vadd.f32 %v4260, 0.0001
    %v4263 = vadd.f32 %v4261, 0.0001
    %v4264 = vadd.f32 %v3928, %v4088
    %v4265 = vadd.f32 %v3929, %v4089
    %v4266 = vadd.f32 %v4264, 0.0009
    %v4267 = vadd.f32 %v4265, 0.0009
    %v4268 = vmul.f32 %v4262, %v4266
    %v4269 = vmul.f32 %v4263, %v4267
    %v4270 = vrcp.pop %v4268
    %v4271 = vmul.f32 %v4258, %v4270
    %v4272 = vrcp.pop %v4269
    %v4273 = vmul.f32 %v4259, %v4272
    %v4274 = vsel %vm81, %v4271, 0.0
    %v4275 = vsel %vm81, %v4273, 0.0
    %v4276 = vadd.f32 %v4274, %v4275
    %4277 = vadd.xlane.f32.xlu0 %v4276
    %v4278 = vpop.xlane.xlu0 %4277
    %v4279 = vrot.slane %v4278, 4
    %v4280 = vadd.f32 %v4278, %v4279
    %v4281 = vrot.slane %v4280, 2
    %v4282 = vadd.f32 %v4280, %v4281
    %v4283 = vrot.slane %v4282, 1
    %v4284 = vadd.f32 %v4282, %v4283
    %s4285 = vtos %v4284
    %v4286 = vstv %s4285
    %s4287 = scalar_lea.vmem [#allocation2], 80
    %v4288 = vld [vmem:[%s4287] sm:$0xff]
    %v4289 = vld [vmem:[%s4287 + $0x8] sm:$0xff]
    %s4290 = scalar_lea.vmem [#allocation5], 80
    %v4291 = vld [vmem:[%s4290] sm:$0xff]
    %v4292 = vld [vmem:[%s4290 + $0x8] sm:$0xff]
    %v4294 = vsel %vm81, %v4288, 0
    %v4297 = vsel %vm81, %v4289, 0
    %4299 = vmatprep.subr.mxu0 0.0
    %4300 = vmatpush1.msra.mxu0 0.0
    %4301 = vmatprep.subr.mxu0 0.0
    %4302 = vmatpush1.msra.mxu0 0.0
    %4303 = vmatprep.subr.mxu0 0.0
    %4304 = vmatpush1.msra.mxu0 0.0
    %4305 = vmatprep.subr.mxu0 0.0
    %4306 = vmatpush1.msra.mxu0 0.0
    %4307 = vmatprep.subr.mxu0 0.0
    %4308 = vmatpush1.msra.mxu0 0.0
    %4309 = vmatprep.subr.mxu0 0.0
    %4310 = vmatpush1.msra.mxu0 0.0
    %4311 = vmatprep.subr.mxu0 0.0
    %4312 = vmatpush1.msra.mxu0 0.0
    %4313 = vmatprep.subr.mxu0 0.0
    %4314 = vmatpush1.msra.mxu0 0.0
    %4315 = vmatprep.subr.mxu0 0.0
    %4316 = vmatpush1.msra.mxu0 0.0
    %4317 = vmatprep.subr.mxu0 0.0
    %4318 = vmatpush1.msra.mxu0 0.0
    %4319 = vmatprep.subr.mxu0 0.0
    %4320 = vmatpush1.msra.mxu0 0.0
    %4321 = vmatprep.subr.mxu0 0.0
    %4322 = vmatpush1.msra.mxu0 0.0
    %4323 = vmatprep.subr.mxu0 0.0
    %4324 = vmatpush1.msra.mxu0 0.0
    %4325 = vmatprep.subr.mxu0 0.0
    %4326 = vmatpush1.msra.mxu0 0.0
    %4327 = vmatprep.subr.mxu0 0.0
    %4328 = vmatpush1.msra.mxu0 %v76
    %4329 = vmatprep.subr.mxu0 0.0
    %4330 = vmatpush1.msra.mxu0 %v75
    %4331 = vmatprep.subr.mxu0 0.0
    %4332 = vmatpush2.msra.mxu0 0.0
    %4333 = vmatprep.subr.mxu0 0.0
    %4334 = vmatpush2.msra.mxu0 0.0
    %4335 = vmatprep.subr.mxu0 0.0
    %4336 = vmatpush2.msra.mxu0 0.0
    %4337 = vmatprep.subr.mxu0 0.0
    %4338 = vmatpush2.msra.mxu0 0.0
    %4339 = vmatprep.subr.mxu0 0.0
    %4340 = vmatpush2.msra.mxu0 0.0
    %4341 = vmatprep.subr.mxu0 0.0
    %4342 = vmatpush2.msra.mxu0 0.0
    %4343 = vmatprep.subr.mxu0 0.0
    %4344 = vmatpush2.msra.mxu0 0.0
    %4345 = vmatprep.subr.mxu0 0.0
    %4346 = vmatpush2.msra.mxu0 0.0
    %4347 = vmatprep.subr.mxu0 0.0
    %4348 = vmatpush2.msra.mxu0 0.0
    %4349 = vmatprep.subr.mxu0 0.0
    %4350 = vmatpush2.msra.mxu0 0.0
    %4351 = vmatprep.subr.mxu0 0.0
    %4352 = vmatpush2.msra.mxu0 0.0
    %4353 = vmatprep.subr.mxu0 0.0
    %4354 = vmatpush2.msra.mxu0 0.0
    %4355 = vmatprep.subr.mxu0 0.0
    %4356 = vmatpush2.msra.mxu0 0.0
    %4357 = vmatprep.subr.mxu0 0.0
    %4358 = vmatpush2.msra.mxu0 0.0
    %4359 = vmatprep.subr.mxu0 0.0
    %4360 = vmatpush2.msra.mxu0 0.0
    %4361 = vmatprep.subr.mxu0 0.0
    %4362 = vmatpush2.msra.mxu0 0.0
    %4363 = vmatprep.mubr.f32.mxu0 0.0
    %4364 = vmatmul.mubr.f32.gmra.mxu0 %v4294
    %v4365 = vpop.f32.mrf.mxu0
    %v4366 = vadd.f32 0.0, %v4365
    %v4367 = vpop.f32.mrf.mxu0
    %4368 = vmatprep.mubr.f32.mxu0 0.0
    %4369 = vmatmul.mubr.f32.gmra.mxu0 %v4297
    %v4370 = vpop.f32.mrf.mxu0
    %v4371 = vadd.f32 0.0, %v4370
    %v4372 = vpop.f32.mrf.mxu0
    %4373 = vdwg.mxu0
    %4374 = vmatprep.subr.mxu0 0.0
    %4375 = vmatpush1.msra.mxu0 0.0
    %4376 = vmatprep.subr.mxu0 0.0
    %4377 = vmatpush1.msra.mxu0 0.0
    %4378 = vmatprep.subr.mxu0 0.0
    %4379 = vmatpush1.msra.mxu0 0.0
    %4380 = vmatprep.subr.mxu0 0.0
    %4381 = vmatpush1.msra.mxu0 0.0
    %4382 = vmatprep.subr.mxu0 0.0
    %4383 = vmatpush1.msra.mxu0 0.0
    %4384 = vmatprep.subr.mxu0 0.0
    %4385 = vmatpush1.msra.mxu0 0.0
    %4386 = vmatprep.subr.mxu0 0.0
    %4387 = vmatpush1.msra.mxu0 0.0
    %4388 = vmatprep.subr.mxu0 0.0
    %4389 = vmatpush1.msra.mxu0 0.0
    %4390 = vmatprep.subr.mxu0 0.0
    %4391 = vmatpush1.msra.mxu0 0.0
    %4392 = vmatprep.subr.mxu0 0.0
    %4393 = vmatpush1.msra.mxu0 0.0
    %4394 = vmatprep.subr.mxu0 0.0
    %4395 = vmatpush1.msra.mxu0 0.0
    %4396 = vmatprep.subr.mxu0 0.0
    %4397 = vmatpush1.msra.mxu0 0.0
    %4398 = vmatprep.subr.mxu0 0.0
    %4399 = vmatpush1.msra.mxu0 0.0
    %4400 = vmatprep.subr.mxu0 0.0
    %4401 = vmatpush1.msra.mxu0 0.0
    %4402 = vmatprep.subr.mxu0 0.0
    %4403 = vmatpush1.msra.mxu0 %v4371
    %4404 = vmatprep.subr.mxu0 0.0
    %4405 = vmatpush1.msra.mxu0 %v4366
    %4406 = vmatprep.subr.mxu0 0.0
    %4407 = vmatpush2.msra.mxu0 0.0
    %4408 = vmatprep.subr.mxu0 0.0
    %4409 = vmatpush2.msra.mxu0 0.0
    %4410 = vmatprep.subr.mxu0 0.0
    %4411 = vmatpush2.msra.mxu0 0.0
    %4412 = vmatprep.subr.mxu0 0.0
    %4413 = vmatpush2.msra.mxu0 0.0
    %4414 = vmatprep.subr.mxu0 0.0
    %4415 = vmatpush2.msra.mxu0 0.0
    %4416 = vmatprep.subr.mxu0 0.0
    %4417 = vmatpush2.msra.mxu0 0.0
    %4418 = vmatprep.subr.mxu0 0.0
    %4419 = vmatpush2.msra.mxu0 0.0
    %4420 = vmatprep.subr.mxu0 0.0
    %4421 = vmatpush2.msra.mxu0 0.0
    %4422 = vmatprep.subr.mxu0 0.0
    %4423 = vmatpush2.msra.mxu0 0.0
    %4424 = vmatprep.subr.mxu0 0.0
    %4425 = vmatpush2.msra.mxu0 0.0
    %4426 = vmatprep.subr.mxu0 0.0
    %4427 = vmatpush2.msra.mxu0 0.0
    %4428 = vmatprep.subr.mxu0 0.0
    %4429 = vmatpush2.msra.mxu0 0.0
    %4430 = vmatprep.subr.mxu0 0.0
    %4431 = vmatpush2.msra.mxu0 0.0
    %4432 = vmatprep.subr.mxu0 0.0
    %4433 = vmatpush2.msra.mxu0 0.0
    %4434 = vmatprep.subr.mxu0 0.0
    %4435 = vmatpush2.msra.mxu0 0.0
    %4436 = vmatprep.subr.mxu0 0.0
    %4437 = vmatpush2.msra.mxu0 0.0
    %4438 = vmatprep.mubr.f32.mxu0 0.0
    %4439 = vmatmul.mubr.f32.gmra.mxu0 %v164
    %v4440 = vpop.f32.mrf.mxu0
    %v4441 = vadd.f32 0.0, %v4440
    %v4442 = vpop.f32.mrf.mxu0
    %4443 = vmatprep.mubr.f32.mxu0 0.0
    %4444 = vmatmul.mubr.f32.gmra.mxu0 %v167
    %v4445 = vpop.f32.mrf.mxu0
    %v4446 = vadd.f32 0.0, %v4445
    %v4447 = vpop.f32.mrf.mxu0
    %4448 = vdwg.mxu0
    %v4450 = vsel %vm81, %v4291, 0
    %v4453 = vsel %vm81, %v4292, 0
    %4455 = vmatprep.subr.mxu0 0.0
    %4456 = vmatpush1.msra.mxu0 0.0
    %4457 = vmatprep.subr.mxu0 0.0
    %4458 = vmatpush1.msra.mxu0 0.0
    %4459 = vmatprep.subr.mxu0 0.0
    %4460 = vmatpush1.msra.mxu0 0.0
    %4461 = vmatprep.subr.mxu0 0.0
    %4462 = vmatpush1.msra.mxu0 0.0
    %4463 = vmatprep.subr.mxu0 0.0
    %4464 = vmatpush1.msra.mxu0 0.0
    %4465 = vmatprep.subr.mxu0 0.0
    %4466 = vmatpush1.msra.mxu0 0.0
    %4467 = vmatprep.subr.mxu0 0.0
    %4468 = vmatpush1.msra.mxu0 0.0
    %4469 = vmatprep.subr.mxu0 0.0
    %4470 = vmatpush1.msra.mxu0 0.0
    %4471 = vmatprep.subr.mxu0 0.0
    %4472 = vmatpush1.msra.mxu0 0.0
    %4473 = vmatprep.subr.mxu0 0.0
    %4474 = vmatpush1.msra.mxu0 0.0
    %4475 = vmatprep.subr.mxu0 0.0
    %4476 = vmatpush1.msra.mxu0 0.0
    %4477 = vmatprep.subr.mxu0 0.0
    %4478 = vmatpush1.msra.mxu0 0.0
    %4479 = vmatprep.subr.mxu0 0.0
    %4480 = vmatpush1.msra.mxu0 0.0
    %4481 = vmatprep.subr.mxu0 0.0
    %4482 = vmatpush1.msra.mxu0 0.0
    %4483 = vmatprep.subr.mxu0 0.0
    %4484 = vmatpush1.msra.mxu0 %v76
    %4485 = vmatprep.subr.mxu0 0.0
    %4486 = vmatpush1.msra.mxu0 %v75
    %4487 = vmatprep.subr.mxu0 0.0
    %4488 = vmatpush2.msra.mxu0 0.0
    %4489 = vmatprep.subr.mxu0 0.0
    %4490 = vmatpush2.msra.mxu0 0.0
    %4491 = vmatprep.subr.mxu0 0.0
    %4492 = vmatpush2.msra.mxu0 0.0
    %4493 = vmatprep.subr.mxu0 0.0
    %4494 = vmatpush2.msra.mxu0 0.0
    %4495 = vmatprep.subr.mxu0 0.0
    %4496 = vmatpush2.msra.mxu0 0.0
    %4497 = vmatprep.subr.mxu0 0.0
    %4498 = vmatpush2.msra.mxu0 0.0
    %4499 = vmatprep.subr.mxu0 0.0
    %4500 = vmatpush2.msra.mxu0 0.0
    %4501 = vmatprep.subr.mxu0 0.0
    %4502 = vmatpush2.msra.mxu0 0.0
    %4503 = vmatprep.subr.mxu0 0.0
    %4504 = vmatpush2.msra.mxu0 0.0
    %4505 = vmatprep.subr.mxu0 0.0
    %4506 = vmatpush2.msra.mxu0 0.0
    %4507 = vmatprep.subr.mxu0 0.0
    %4508 = vmatpush2.msra.mxu0 0.0
    %4509 = vmatprep.subr.mxu0 0.0
    %4510 = vmatpush2.msra.mxu0 0.0
    %4511 = vmatprep.subr.mxu0 0.0
    %4512 = vmatpush2.msra.mxu0 0.0
    %4513 = vmatprep.subr.mxu0 0.0
    %4514 = vmatpush2.msra.mxu0 0.0
    %4515 = vmatprep.subr.mxu0 0.0
    %4516 = vmatpush2.msra.mxu0 0.0
    %4517 = vmatprep.subr.mxu0 0.0
    %4518 = vmatpush2.msra.mxu0 0.0
    %4519 = vmatprep.mubr.f32.mxu0 0.0
    %4520 = vmatmul.mubr.f32.gmra.mxu0 %v4450
    %v4521 = vpop.f32.mrf.mxu0
    %v4522 = vadd.f32 0.0, %v4521
    %v4523 = vpop.f32.mrf.mxu0
    %4524 = vmatprep.mubr.f32.mxu0 0.0
    %4525 = vmatmul.mubr.f32.gmra.mxu0 %v4453
    %v4526 = vpop.f32.mrf.mxu0
    %v4527 = vadd.f32 0.0, %v4526
    %v4528 = vpop.f32.mrf.mxu0
    %4529 = vdwg.mxu0
    %4530 = vmatprep.subr.mxu0 0.0
    %4531 = vmatpush1.msra.mxu0 0.0
    %4532 = vmatprep.subr.mxu0 0.0
    %4533 = vmatpush1.msra.mxu0 0.0
    %4534 = vmatprep.subr.mxu0 0.0
    %4535 = vmatpush1.msra.mxu0 0.0
    %4536 = vmatprep.subr.mxu0 0.0
    %4537 = vmatpush1.msra.mxu0 0.0
    %4538 = vmatprep.subr.mxu0 0.0
    %4539 = vmatpush1.msra.mxu0 0.0
    %4540 = vmatprep.subr.mxu0 0.0
    %4541 = vmatpush1.msra.mxu0 0.0
    %4542 = vmatprep.subr.mxu0 0.0
    %4543 = vmatpush1.msra.mxu0 0.0
    %4544 = vmatprep.subr.mxu0 0.0
    %4545 = vmatpush1.msra.mxu0 0.0
    %4546 = vmatprep.subr.mxu0 0.0
    %4547 = vmatpush1.msra.mxu0 0.0
    %4548 = vmatprep.subr.mxu0 0.0
    %4549 = vmatpush1.msra.mxu0 0.0
    %4550 = vmatprep.subr.mxu0 0.0
    %4551 = vmatpush1.msra.mxu0 0.0
    %4552 = vmatprep.subr.mxu0 0.0
    %4553 = vmatpush1.msra.mxu0 0.0
    %4554 = vmatprep.subr.mxu0 0.0
    %4555 = vmatpush1.msra.mxu0 0.0
    %4556 = vmatprep.subr.mxu0 0.0
    %4557 = vmatpush1.msra.mxu0 0.0
    %4558 = vmatprep.subr.mxu0 0.0
    %4559 = vmatpush1.msra.mxu0 %v4527
    %4560 = vmatprep.subr.mxu0 0.0
    %4561 = vmatpush1.msra.mxu0 %v4522
    %4562 = vmatprep.subr.mxu0 0.0
    %4563 = vmatpush2.msra.mxu0 0.0
    %4564 = vmatprep.subr.mxu0 0.0
    %4565 = vmatpush2.msra.mxu0 0.0
    %4566 = vmatprep.subr.mxu0 0.0
    %4567 = vmatpush2.msra.mxu0 0.0
    %4568 = vmatprep.subr.mxu0 0.0
    %4569 = vmatpush2.msra.mxu0 0.0
    %4570 = vmatprep.subr.mxu0 0.0
    %4571 = vmatpush2.msra.mxu0 0.0
    %4572 = vmatprep.subr.mxu0 0.0
    %4573 = vmatpush2.msra.mxu0 0.0
    %4574 = vmatprep.subr.mxu0 0.0
    %4575 = vmatpush2.msra.mxu0 0.0
    %4576 = vmatprep.subr.mxu0 0.0
    %4577 = vmatpush2.msra.mxu0 0.0
    %4578 = vmatprep.subr.mxu0 0.0
    %4579 = vmatpush2.msra.mxu0 0.0
    %4580 = vmatprep.subr.mxu0 0.0
    %4581 = vmatpush2.msra.mxu0 0.0
    %4582 = vmatprep.subr.mxu0 0.0
    %4583 = vmatpush2.msra.mxu0 0.0
    %4584 = vmatprep.subr.mxu0 0.0
    %4585 = vmatpush2.msra.mxu0 0.0
    %4586 = vmatprep.subr.mxu0 0.0
    %4587 = vmatpush2.msra.mxu0 0.0
    %4588 = vmatprep.subr.mxu0 0.0
    %4589 = vmatpush2.msra.mxu0 0.0
    %4590 = vmatprep.subr.mxu0 0.0
    %4591 = vmatpush2.msra.mxu0 0.0
    %4592 = vmatprep.subr.mxu0 0.0
    %4593 = vmatpush2.msra.mxu0 0.0
    %4594 = vmatprep.mubr.f32.mxu0 0.0
    %4595 = vmatmul.mubr.f32.gmra.mxu0 %v164
    %v4596 = vpop.f32.mrf.mxu0
    %v4597 = vadd.f32 0.0, %v4596
    %v4598 = vpop.f32.mrf.mxu0
    %4599 = vmatprep.mubr.f32.mxu0 0.0
    %4600 = vmatmul.mubr.f32.gmra.mxu0 %v167
    %v4601 = vpop.f32.mrf.mxu0
    %v4602 = vadd.f32 0.0, %v4601
    %v4603 = vpop.f32.mrf.mxu0
    %4604 = vdwg.mxu0
    %v4605 = vmul.f32 %v4441, %v4441
    %v4606 = vmul.f32 %v4446, %v4446
    %v4607 = vmul.f32 %v4597, %v4597
    %v4608 = vmul.f32 %v4602, %v4602
    %v4609 = vmul.f32 %v4441, %v4597
    %v4610 = vmul.f32 %v4446, %v4602
    %v4611 = vmul.f32 %v4288, %v4288
    %v4612 = vmul.f32 %v4289, %v4289
    %v4614 = vsel %vm81, %v4611, 0
    %v4617 = vsel %vm81, %v4612, 0
    %4619 = vmatprep.subr.mxu0 0.0
    %4620 = vmatpush1.msra.mxu0 0.0
    %4621 = vmatprep.subr.mxu0 0.0
    %4622 = vmatpush1.msra.mxu0 0.0
    %4623 = vmatprep.subr.mxu0 0.0
    %4624 = vmatpush1.msra.mxu0 0.0
    %4625 = vmatprep.subr.mxu0 0.0
    %4626 = vmatpush1.msra.mxu0 0.0
    %4627 = vmatprep.subr.mxu0 0.0
    %4628 = vmatpush1.msra.mxu0 0.0
    %4629 = vmatprep.subr.mxu0 0.0
    %4630 = vmatpush1.msra.mxu0 0.0
    %4631 = vmatprep.subr.mxu0 0.0
    %4632 = vmatpush1.msra.mxu0 0.0
    %4633 = vmatprep.subr.mxu0 0.0
    %4634 = vmatpush1.msra.mxu0 0.0
    %4635 = vmatprep.subr.mxu0 0.0
    %4636 = vmatpush1.msra.mxu0 0.0
    %4637 = vmatprep.subr.mxu0 0.0
    %4638 = vmatpush1.msra.mxu0 0.0
    %4639 = vmatprep.subr.mxu0 0.0
    %4640 = vmatpush1.msra.mxu0 0.0
    %4641 = vmatprep.subr.mxu0 0.0
    %4642 = vmatpush1.msra.mxu0 0.0
    %4643 = vmatprep.subr.mxu0 0.0
    %4644 = vmatpush1.msra.mxu0 0.0
    %4645 = vmatprep.subr.mxu0 0.0
    %4646 = vmatpush1.msra.mxu0 0.0
    %4647 = vmatprep.subr.mxu0 0.0
    %4648 = vmatpush1.msra.mxu0 %v76
    %4649 = vmatprep.subr.mxu0 0.0
    %4650 = vmatpush1.msra.mxu0 %v75
    %4651 = vmatprep.subr.mxu0 0.0
    %4652 = vmatpush2.msra.mxu0 0.0
    %4653 = vmatprep.subr.mxu0 0.0
    %4654 = vmatpush2.msra.mxu0 0.0
    %4655 = vmatprep.subr.mxu0 0.0
    %4656 = vmatpush2.msra.mxu0 0.0
    %4657 = vmatprep.subr.mxu0 0.0
    %4658 = vmatpush2.msra.mxu0 0.0
    %4659 = vmatprep.subr.mxu0 0.0
    %4660 = vmatpush2.msra.mxu0 0.0
    %4661 = vmatprep.subr.mxu0 0.0
    %4662 = vmatpush2.msra.mxu0 0.0
    %4663 = vmatprep.subr.mxu0 0.0
    %4664 = vmatpush2.msra.mxu0 0.0
    %4665 = vmatprep.subr.mxu0 0.0
    %4666 = vmatpush2.msra.mxu0 0.0
    %4667 = vmatprep.subr.mxu0 0.0
    %4668 = vmatpush2.msra.mxu0 0.0
    %4669 = vmatprep.subr.mxu0 0.0
    %4670 = vmatpush2.msra.mxu0 0.0
    %4671 = vmatprep.subr.mxu0 0.0
    %4672 = vmatpush2.msra.mxu0 0.0
    %4673 = vmatprep.subr.mxu0 0.0
    %4674 = vmatpush2.msra.mxu0 0.0
    %4675 = vmatprep.subr.mxu0 0.0
    %4676 = vmatpush2.msra.mxu0 0.0
    %4677 = vmatprep.subr.mxu0 0.0
    %4678 = vmatpush2.msra.mxu0 0.0
    %4679 = vmatprep.subr.mxu0 0.0
    %4680 = vmatpush2.msra.mxu0 0.0
    %4681 = vmatprep.subr.mxu0 0.0
    %4682 = vmatpush2.msra.mxu0 0.0
    %4683 = vmatprep.mubr.f32.mxu0 0.0
    %4684 = vmatmul.mubr.f32.gmra.mxu0 %v4614
    %v4685 = vpop.f32.mrf.mxu0
    %v4686 = vadd.f32 0.0, %v4685
    %v4687 = vpop.f32.mrf.mxu0
    %4688 = vmatprep.mubr.f32.mxu0 0.0
    %4689 = vmatmul.mubr.f32.gmra.mxu0 %v4617
    %v4690 = vpop.f32.mrf.mxu0
    %v4691 = vadd.f32 0.0, %v4690
    %v4692 = vpop.f32.mrf.mxu0
    %4693 = vdwg.mxu0
    %4694 = vmatprep.subr.mxu0 0.0
    %4695 = vmatpush1.msra.mxu0 0.0
    %4696 = vmatprep.subr.mxu0 0.0
    %4697 = vmatpush1.msra.mxu0 0.0
    %4698 = vmatprep.subr.mxu0 0.0
    %4699 = vmatpush1.msra.mxu0 0.0
    %4700 = vmatprep.subr.mxu0 0.0
    %4701 = vmatpush1.msra.mxu0 0.0
    %4702 = vmatprep.subr.mxu0 0.0
    %4703 = vmatpush1.msra.mxu0 0.0
    %4704 = vmatprep.subr.mxu0 0.0
    %4705 = vmatpush1.msra.mxu0 0.0
    %4706 = vmatprep.subr.mxu0 0.0
    %4707 = vmatpush1.msra.mxu0 0.0
    %4708 = vmatprep.subr.mxu0 0.0
    %4709 = vmatpush1.msra.mxu0 0.0
    %4710 = vmatprep.subr.mxu0 0.0
    %4711 = vmatpush1.msra.mxu0 0.0
    %4712 = vmatprep.subr.mxu0 0.0
    %4713 = vmatpush1.msra.mxu0 0.0
    %4714 = vmatprep.subr.mxu0 0.0
    %4715 = vmatpush1.msra.mxu0 0.0
    %4716 = vmatprep.subr.mxu0 0.0
    %4717 = vmatpush1.msra.mxu0 0.0
    %4718 = vmatprep.subr.mxu0 0.0
    %4719 = vmatpush1.msra.mxu0 0.0
    %4720 = vmatprep.subr.mxu0 0.0
    %4721 = vmatpush1.msra.mxu0 0.0
    %4722 = vmatprep.subr.mxu0 0.0
    %4723 = vmatpush1.msra.mxu0 %v4691
    %4724 = vmatprep.subr.mxu0 0.0
    %4725 = vmatpush1.msra.mxu0 %v4686
    %4726 = vmatprep.subr.mxu0 0.0
    %4727 = vmatpush2.msra.mxu0 0.0
    %4728 = vmatprep.subr.mxu0 0.0
    %4729 = vmatpush2.msra.mxu0 0.0
    %4730 = vmatprep.subr.mxu0 0.0
    %4731 = vmatpush2.msra.mxu0 0.0
    %4732 = vmatprep.subr.mxu0 0.0
    %4733 = vmatpush2.msra.mxu0 0.0
    %4734 = vmatprep.subr.mxu0 0.0
    %4735 = vmatpush2.msra.mxu0 0.0
    %4736 = vmatprep.subr.mxu0 0.0
    %4737 = vmatpush2.msra.mxu0 0.0
    %4738 = vmatprep.subr.mxu0 0.0
    %4739 = vmatpush2.msra.mxu0 0.0
    %4740 = vmatprep.subr.mxu0 0.0
    %4741 = vmatpush2.msra.mxu0 0.0
    %4742 = vmatprep.subr.mxu0 0.0
    %4743 = vmatpush2.msra.mxu0 0.0
    %4744 = vmatprep.subr.mxu0 0.0
    %4745 = vmatpush2.msra.mxu0 0.0
    %4746 = vmatprep.subr.mxu0 0.0
    %4747 = vmatpush2.msra.mxu0 0.0
    %4748 = vmatprep.subr.mxu0 0.0
    %4749 = vmatpush2.msra.mxu0 0.0
    %4750 = vmatprep.subr.mxu0 0.0
    %4751 = vmatpush2.msra.mxu0 0.0
    %4752 = vmatprep.subr.mxu0 0.0
    %4753 = vmatpush2.msra.mxu0 0.0
    %4754 = vmatprep.subr.mxu0 0.0
    %4755 = vmatpush2.msra.mxu0 0.0
    %4756 = vmatprep.subr.mxu0 0.0
    %4757 = vmatpush2.msra.mxu0 0.0
    %4758 = vmatprep.mubr.f32.mxu0 0.0
    %4759 = vmatmul.mubr.f32.gmra.mxu0 %v164
    %v4760 = vpop.f32.mrf.mxu0
    %v4761 = vadd.f32 0.0, %v4760
    %v4762 = vpop.f32.mrf.mxu0
    %4763 = vmatprep.mubr.f32.mxu0 0.0
    %4764 = vmatmul.mubr.f32.gmra.mxu0 %v167
    %v4765 = vpop.f32.mrf.mxu0
    %v4766 = vadd.f32 0.0, %v4765
    %v4767 = vpop.f32.mrf.mxu0
    %4768 = vdwg.mxu0
    %v4769 = vsub.f32 %v4761, %v4605
    %v4770 = vsub.f32 %v4766, %v4606
    %v4771 = vmul.f32 %v4291, %v4291
    %v4772 = vmul.f32 %v4292, %v4292
    %v4774 = vsel %vm81, %v4771, 0
    %v4777 = vsel %vm81, %v4772, 0
    %4779 = vmatprep.subr.mxu0 0.0
    %4780 = vmatpush1.msra.mxu0 0.0
    %4781 = vmatprep.subr.mxu0 0.0
    %4782 = vmatpush1.msra.mxu0 0.0
    %4783 = vmatprep.subr.mxu0 0.0
    %4784 = vmatpush1.msra.mxu0 0.0
    %4785 = vmatprep.subr.mxu0 0.0
    %4786 = vmatpush1.msra.mxu0 0.0
    %4787 = vmatprep.subr.mxu0 0.0
    %4788 = vmatpush1.msra.mxu0 0.0
    %4789 = vmatprep.subr.mxu0 0.0
    %4790 = vmatpush1.msra.mxu0 0.0
    %4791 = vmatprep.subr.mxu0 0.0
    %4792 = vmatpush1.msra.mxu0 0.0
    %4793 = vmatprep.subr.mxu0 0.0
    %4794 = vmatpush1.msra.mxu0 0.0
    %4795 = vmatprep.subr.mxu0 0.0
    %4796 = vmatpush1.msra.mxu0 0.0
    %4797 = vmatprep.subr.mxu0 0.0
    %4798 = vmatpush1.msra.mxu0 0.0
    %4799 = vmatprep.subr.mxu0 0.0
    %4800 = vmatpush1.msra.mxu0 0.0
    %4801 = vmatprep.subr.mxu0 0.0
    %4802 = vmatpush1.msra.mxu0 0.0
    %4803 = vmatprep.subr.mxu0 0.0
    %4804 = vmatpush1.msra.mxu0 0.0
    %4805 = vmatprep.subr.mxu0 0.0
    %4806 = vmatpush1.msra.mxu0 0.0
    %4807 = vmatprep.subr.mxu0 0.0
    %4808 = vmatpush1.msra.mxu0 %v76
    %4809 = vmatprep.subr.mxu0 0.0
    %4810 = vmatpush1.msra.mxu0 %v75
    %4811 = vmatprep.subr.mxu0 0.0
    %4812 = vmatpush2.msra.mxu0 0.0
    %4813 = vmatprep.subr.mxu0 0.0
    %4814 = vmatpush2.msra.mxu0 0.0
    %4815 = vmatprep.subr.mxu0 0.0
    %4816 = vmatpush2.msra.mxu0 0.0
    %4817 = vmatprep.subr.mxu0 0.0
    %4818 = vmatpush2.msra.mxu0 0.0
    %4819 = vmatprep.subr.mxu0 0.0
    %4820 = vmatpush2.msra.mxu0 0.0
    %4821 = vmatprep.subr.mxu0 0.0
    %4822 = vmatpush2.msra.mxu0 0.0
    %4823 = vmatprep.subr.mxu0 0.0
    %4824 = vmatpush2.msra.mxu0 0.0
    %4825 = vmatprep.subr.mxu0 0.0
    %4826 = vmatpush2.msra.mxu0 0.0
    %4827 = vmatprep.subr.mxu0 0.0
    %4828 = vmatpush2.msra.mxu0 0.0
    %4829 = vmatprep.subr.mxu0 0.0
    %4830 = vmatpush2.msra.mxu0 0.0
    %4831 = vmatprep.subr.mxu0 0.0
    %4832 = vmatpush2.msra.mxu0 0.0
    %4833 = vmatprep.subr.mxu0 0.0
    %4834 = vmatpush2.msra.mxu0 0.0
    %4835 = vmatprep.subr.mxu0 0.0
    %4836 = vmatpush2.msra.mxu0 0.0
    %4837 = vmatprep.subr.mxu0 0.0
    %4838 = vmatpush2.msra.mxu0 0.0
    %4839 = vmatprep.subr.mxu0 0.0
    %4840 = vmatpush2.msra.mxu0 0.0
    %4841 = vmatprep.subr.mxu0 0.0
    %4842 = vmatpush2.msra.mxu0 0.0
    %4843 = vmatprep.mubr.f32.mxu0 0.0
    %4844 = vmatmul.mubr.f32.gmra.mxu0 %v4774
    %v4845 = vpop.f32.mrf.mxu0
    %v4846 = vadd.f32 0.0, %v4845
    %v4847 = vpop.f32.mrf.mxu0
    %4848 = vmatprep.mubr.f32.mxu0 0.0
    %4849 = vmatmul.mubr.f32.gmra.mxu0 %v4777
    %v4850 = vpop.f32.mrf.mxu0
    %v4851 = vadd.f32 0.0, %v4850
    %v4852 = vpop.f32.mrf.mxu0
    %4853 = vdwg.mxu0
    %4854 = vmatprep.subr.mxu0 0.0
    %4855 = vmatpush1.msra.mxu0 0.0
    %4856 = vmatprep.subr.mxu0 0.0
    %4857 = vmatpush1.msra.mxu0 0.0
    %4858 = vmatprep.subr.mxu0 0.0
    %4859 = vmatpush1.msra.mxu0 0.0
    %4860 = vmatprep.subr.mxu0 0.0
    %4861 = vmatpush1.msra.mxu0 0.0
    %4862 = vmatprep.subr.mxu0 0.0
    %4863 = vmatpush1.msra.mxu0 0.0
    %4864 = vmatprep.subr.mxu0 0.0
    %4865 = vmatpush1.msra.mxu0 0.0
    %4866 = vmatprep.subr.mxu0 0.0
    %4867 = vmatpush1.msra.mxu0 0.0
    %4868 = vmatprep.subr.mxu0 0.0
    %4869 = vmatpush1.msra.mxu0 0.0
    %4870 = vmatprep.subr.mxu0 0.0
    %4871 = vmatpush1.msra.mxu0 0.0
    %4872 = vmatprep.subr.mxu0 0.0
    %4873 = vmatpush1.msra.mxu0 0.0
    %4874 = vmatprep.subr.mxu0 0.0
    %4875 = vmatpush1.msra.mxu0 0.0
    %4876 = vmatprep.subr.mxu0 0.0
    %4877 = vmatpush1.msra.mxu0 0.0
    %4878 = vmatprep.subr.mxu0 0.0
    %4879 = vmatpush1.msra.mxu0 0.0
    %4880 = vmatprep.subr.mxu0 0.0
    %4881 = vmatpush1.msra.mxu0 0.0
    %4882 = vmatprep.subr.mxu0 0.0
    %4883 = vmatpush1.msra.mxu0 %v4851
    %4884 = vmatprep.subr.mxu0 0.0
    %4885 = vmatpush1.msra.mxu0 %v4846
    %4886 = vmatprep.subr.mxu0 0.0
    %4887 = vmatpush2.msra.mxu0 0.0
    %4888 = vmatprep.subr.mxu0 0.0
    %4889 = vmatpush2.msra.mxu0 0.0
    %4890 = vmatprep.subr.mxu0 0.0
    %4891 = vmatpush2.msra.mxu0 0.0
    %4892 = vmatprep.subr.mxu0 0.0
    %4893 = vmatpush2.msra.mxu0 0.0
    %4894 = vmatprep.subr.mxu0 0.0
    %4895 = vmatpush2.msra.mxu0 0.0
    %4896 = vmatprep.subr.mxu0 0.0
    %4897 = vmatpush2.msra.mxu0 0.0
    %4898 = vmatprep.subr.mxu0 0.0
    %4899 = vmatpush2.msra.mxu0 0.0
    %4900 = vmatprep.subr.mxu0 0.0
    %4901 = vmatpush2.msra.mxu0 0.0
    %4902 = vmatprep.subr.mxu0 0.0
    %4903 = vmatpush2.msra.mxu0 0.0
    %4904 = vmatprep.subr.mxu0 0.0
    %4905 = vmatpush2.msra.mxu0 0.0
    %4906 = vmatprep.subr.mxu0 0.0
    %4907 = vmatpush2.msra.mxu0 0.0
    %4908 = vmatprep.subr.mxu0 0.0
    %4909 = vmatpush2.msra.mxu0 0.0
    %4910 = vmatprep.subr.mxu0 0.0
    %4911 = vmatpush2.msra.mxu0 0.0
    %4912 = vmatprep.subr.mxu0 0.0
    %4913 = vmatpush2.msra.mxu0 0.0
    %4914 = vmatprep.subr.mxu0 0.0
    %4915 = vmatpush2.msra.mxu0 0.0
    %4916 = vmatprep.subr.mxu0 0.0
    %4917 = vmatpush2.msra.mxu0 0.0
    %4918 = vmatprep.mubr.f32.mxu0 0.0
    %4919 = vmatmul.mubr.f32.gmra.mxu0 %v164
    %v4920 = vpop.f32.mrf.mxu0
    %v4921 = vadd.f32 0.0, %v4920
    %v4922 = vpop.f32.mrf.mxu0
    %4923 = vmatprep.mubr.f32.mxu0 0.0
    %4924 = vmatmul.mubr.f32.gmra.mxu0 %v167
    %v4925 = vpop.f32.mrf.mxu0
    %v4926 = vadd.f32 0.0, %v4925
    %v4927 = vpop.f32.mrf.mxu0
    %4928 = vdwg.mxu0
    %v4929 = vsub.f32 %v4921, %v4607
    %v4930 = vsub.f32 %v4926, %v4608
    %v4931 = vmul.f32 %v4288, %v4291
    %v4932 = vmul.f32 %v4289, %v4292
    %v4934 = vsel %vm81, %v4931, 0
    %v4937 = vsel %vm81, %v4932, 0
    %4939 = vmatprep.subr.mxu0 0.0
    %4940 = vmatpush1.msra.mxu0 0.0
    %4941 = vmatprep.subr.mxu0 0.0
    %4942 = vmatpush1.msra.mxu0 0.0
    %4943 = vmatprep.subr.mxu0 0.0
    %4944 = vmatpush1.msra.mxu0 0.0
    %4945 = vmatprep.subr.mxu0 0.0
    %4946 = vmatpush1.msra.mxu0 0.0
    %4947 = vmatprep.subr.mxu0 0.0
    %4948 = vmatpush1.msra.mxu0 0.0
    %4949 = vmatprep.subr.mxu0 0.0
    %4950 = vmatpush1.msra.mxu0 0.0
    %4951 = vmatprep.subr.mxu0 0.0
    %4952 = vmatpush1.msra.mxu0 0.0
    %4953 = vmatprep.subr.mxu0 0.0
    %4954 = vmatpush1.msra.mxu0 0.0
    %4955 = vmatprep.subr.mxu0 0.0
    %4956 = vmatpush1.msra.mxu0 0.0
    %4957 = vmatprep.subr.mxu0 0.0
    %4958 = vmatpush1.msra.mxu0 0.0
    %4959 = vmatprep.subr.mxu0 0.0
    %4960 = vmatpush1.msra.mxu0 0.0
    %4961 = vmatprep.subr.mxu0 0.0
    %4962 = vmatpush1.msra.mxu0 0.0
    %4963 = vmatprep.subr.mxu0 0.0
    %4964 = vmatpush1.msra.mxu0 0.0
    %4965 = vmatprep.subr.mxu0 0.0
    %4966 = vmatpush1.msra.mxu0 0.0
    %4967 = vmatprep.subr.mxu0 0.0
    %4968 = vmatpush1.msra.mxu0 %v76
    %4969 = vmatprep.subr.mxu0 0.0
    %4970 = vmatpush1.msra.mxu0 %v75
    %4971 = vmatprep.subr.mxu0 0.0
    %4972 = vmatpush2.msra.mxu0 0.0
    %4973 = vmatprep.subr.mxu0 0.0
    %4974 = vmatpush2.msra.mxu0 0.0
    %4975 = vmatprep.subr.mxu0 0.0
    %4976 = vmatpush2.msra.mxu0 0.0
    %4977 = vmatprep.subr.mxu0 0.0
    %4978 = vmatpush2.msra.mxu0 0.0
    %4979 = vmatprep.subr.mxu0 0.0
    %4980 = vmatpush2.msra.mxu0 0.0
    %4981 = vmatprep.subr.mxu0 0.0
    %4982 = vmatpush2.msra.mxu0 0.0
    %4983 = vmatprep.subr.mxu0 0.0
    %4984 = vmatpush2.msra.mxu0 0.0
    %4985 = vmatprep.subr.mxu0 0.0
    %4986 = vmatpush2.msra.mxu0 0.0
    %4987 = vmatprep.subr.mxu0 0.0
    %4988 = vmatpush2.msra.mxu0 0.0
    %4989 = vmatprep.subr.mxu0 0.0
    %4990 = vmatpush2.msra.mxu0 0.0
    %4991 = vmatprep.subr.mxu0 0.0
    %4992 = vmatpush2.msra.mxu0 0.0
    %4993 = vmatprep.subr.mxu0 0.0
    %4994 = vmatpush2.msra.mxu0 0.0
    %4995 = vmatprep.subr.mxu0 0.0
    %4996 = vmatpush2.msra.mxu0 0.0
    %4997 = vmatprep.subr.mxu0 0.0
    %4998 = vmatpush2.msra.mxu0 0.0
    %4999 = vmatprep.subr.mxu0 0.0
    %5000 = vmatpush2.msra.mxu0 0.0
    %5001 = vmatprep.subr.mxu0 0.0
    %5002 = vmatpush2.msra.mxu0 0.0
    %5003 = vmatprep.mubr.f32.mxu0 0.0
    %5004 = vmatmul.mubr.f32.gmra.mxu0 %v4934
    %v5005 = vpop.f32.mrf.mxu0
    %v5006 = vadd.f32 0.0, %v5005
    %v5007 = vpop.f32.mrf.mxu0
    %5008 = vmatprep.mubr.f32.mxu0 0.0
    %5009 = vmatmul.mubr.f32.gmra.mxu0 %v4937
    %v5010 = vpop.f32.mrf.mxu0
    %v5011 = vadd.f32 0.0, %v5010
    %v5012 = vpop.f32.mrf.mxu0
    %5013 = vdwg.mxu0
    %5014 = vmatprep.subr.mxu0 0.0
    %5015 = vmatpush1.msra.mxu0 0.0
    %5016 = vmatprep.subr.mxu0 0.0
    %5017 = vmatpush1.msra.mxu0 0.0
    %5018 = vmatprep.subr.mxu0 0.0
    %5019 = vmatpush1.msra.mxu0 0.0
    %5020 = vmatprep.subr.mxu0 0.0
    %5021 = vmatpush1.msra.mxu0 0.0
    %5022 = vmatprep.subr.mxu0 0.0
    %5023 = vmatpush1.msra.mxu0 0.0
    %5024 = vmatprep.subr.mxu0 0.0
    %5025 = vmatpush1.msra.mxu0 0.0
    %5026 = vmatprep.subr.mxu0 0.0
    %5027 = vmatpush1.msra.mxu0 0.0
    %5028 = vmatprep.subr.mxu0 0.0
    %5029 = vmatpush1.msra.mxu0 0.0
    %5030 = vmatprep.subr.mxu0 0.0
    %5031 = vmatpush1.msra.mxu0 0.0
    %5032 = vmatprep.subr.mxu0 0.0
    %5033 = vmatpush1.msra.mxu0 0.0
    %5034 = vmatprep.subr.mxu0 0.0
    %5035 = vmatpush1.msra.mxu0 0.0
    %5036 = vmatprep.subr.mxu0 0.0
    %5037 = vmatpush1.msra.mxu0 0.0
    %5038 = vmatprep.subr.mxu0 0.0
    %5039 = vmatpush1.msra.mxu0 0.0
    %5040 = vmatprep.subr.mxu0 0.0
    %5041 = vmatpush1.msra.mxu0 0.0
    %5042 = vmatprep.subr.mxu0 0.0
    %5043 = vmatpush1.msra.mxu0 %v5011
    %5044 = vmatprep.subr.mxu0 0.0
    %5045 = vmatpush1.msra.mxu0 %v5006
    %5046 = vmatprep.subr.mxu0 0.0
    %5047 = vmatpush2.msra.mxu0 0.0
    %5048 = vmatprep.subr.mxu0 0.0
    %5049 = vmatpush2.msra.mxu0 0.0
    %5050 = vmatprep.subr.mxu0 0.0
    %5051 = vmatpush2.msra.mxu0 0.0
    %5052 = vmatprep.subr.mxu0 0.0
    %5053 = vmatpush2.msra.mxu0 0.0
    %5054 = vmatprep.subr.mxu0 0.0
    %5055 = vmatpush2.msra.mxu0 0.0
    %5056 = vmatprep.subr.mxu0 0.0
    %5057 = vmatpush2.msra.mxu0 0.0
    %5058 = vmatprep.subr.mxu0 0.0
    %5059 = vmatpush2.msra.mxu0 0.0
    %5060 = vmatprep.subr.mxu0 0.0
    %5061 = vmatpush2.msra.mxu0 0.0
    %5062 = vmatprep.subr.mxu0 0.0
    %5063 = vmatpush2.msra.mxu0 0.0
    %5064 = vmatprep.subr.mxu0 0.0
    %5065 = vmatpush2.msra.mxu0 0.0
    %5066 = vmatprep.subr.mxu0 0.0
    %5067 = vmatpush2.msra.mxu0 0.0
    %5068 = vmatprep.subr.mxu0 0.0
    %5069 = vmatpush2.msra.mxu0 0.0
    %5070 = vmatprep.subr.mxu0 0.0
    %5071 = vmatpush2.msra.mxu0 0.0
    %5072 = vmatprep.subr.mxu0 0.0
    %5073 = vmatpush2.msra.mxu0 0.0
    %5074 = vmatprep.subr.mxu0 0.0
    %5075 = vmatpush2.msra.mxu0 0.0
    %5076 = vmatprep.subr.mxu0 0.0
    %5077 = vmatpush2.msra.mxu0 0.0
    %5078 = vmatprep.mubr.f32.mxu0 0.0
    %5079 = vmatmul.mubr.f32.gmra.mxu0 %v164
    %v5080 = vpop.f32.mrf.mxu0
    %v5081 = vadd.f32 0.0, %v5080
    %v5082 = vpop.f32.mrf.mxu0
    %5083 = vmatprep.mubr.f32.mxu0 0.0
    %5084 = vmatmul.mubr.f32.gmra.mxu0 %v167
    %v5085 = vpop.f32.mrf.mxu0
    %v5086 = vadd.f32 0.0, %v5085
    %v5087 = vpop.f32.mrf.mxu0
    %5088 = vdwg.mxu0
    %v5089 = vsub.f32 %v5081, %v4609
    %v5090 = vsub.f32 %v5086, %v4610
    %v5091 = vmul.f32 %v4609, 2.0
    %v5092 = vmul.f32 %v4610, 2.0
    %v5093 = vadd.f32 %v5091, 0.0001
    %v5094 = vadd.f32 %v5092, 0.0001
    %v5095 = vmul.f32 %v5089, 2.0
    %v5096 = vmul.f32 %v5090, 2.0
    %v5097 = vadd.f32 %v5095, 0.0009
    %v5098 = vadd.f32 %v5096, 0.0009
    %v5099 = vmul.f32 %v5093, %v5097
    %v5100 = vmul.f32 %v5094, %v5098
    %v5101 = vadd.f32 %v4605, %v4607
    %v5102 = vadd.f32 %v4606, %v4608
    %v5103 = vadd.f32 %v5101, 0.0001
    %v5104 = vadd.f32 %v5102, 0.0001
    %v5105 = vadd.f32 %v4769, %v4929
    %v5106 = vadd.f32 %v4770, %v4930
    %v5107 = vadd.f32 %v5105, 0.0009
    %v5108 = vadd.f32 %v5106, 0.0009
    %v5109 = vmul.f32 %v5103, %v5107
    %v5110 = vmul.f32 %v5104, %v5108
    %v5111 = vrcp.pop %v5109
    %v5112 = vmul.f32 %v5099, %v5111
    %v5113 = vrcp.pop %v5110
    %v5114 = vmul.f32 %v5100, %v5113
    %v5115 = vsel %vm81, %v5112, 0.0
    %v5116 = vsel %vm81, %v5114, 0.0
    %v5117 = vadd.f32 %v5115, %v5116
    %5118 = vadd.xlane.f32.xlu0 %v5117
    %v5119 = vpop.xlane.xlu0 %5118
    %v5120 = vrot.slane %v5119, 4
    %v5121 = vadd.f32 %v5119, %v5120
    %v5122 = vrot.slane %v5121, 2
    %v5123 = vadd.f32 %v5121, %v5122
    %v5124 = vrot.slane %v5123, 1
    %v5125 = vadd.f32 %v5123, %v5124
    %s5126 = vtos %v5125
    %v5127 = vstv %s5126
    %s5128 = scalar_lea.vmem [#allocation2], 96
    %v5129 = vld [vmem:[%s5128] sm:$0xff]
    %v5130 = vld [vmem:[%s5128 + $0x8] sm:$0xff]
    %s5131 = scalar_lea.vmem [#allocation5], 96
    %v5132 = vld [vmem:[%s5131] sm:$0xff]
    %v5133 = vld [vmem:[%s5131 + $0x8] sm:$0xff]
    %v5135 = vsel %vm81, %v5129, 0
    %v5138 = vsel %vm81, %v5130, 0
    %5140 = vmatprep.subr.mxu0 0.0
    %5141 = vmatpush1.msra.mxu0 0.0
    %5142 = vmatprep.subr.mxu0 0.0
    %5143 = vmatpush1.msra.mxu0 0.0
    %5144 = vmatprep.subr.mxu0 0.0
    %5145 = vmatpush1.msra.mxu0 0.0
    %5146 = vmatprep.subr.mxu0 0.0
    %5147 = vmatpush1.msra.mxu0 0.0
    %5148 = vmatprep.subr.mxu0 0.0
    %5149 = vmatpush1.msra.mxu0 0.0
    %5150 = vmatprep.subr.mxu0 0.0
    %5151 = vmatpush1.msra.mxu0 0.0
    %5152 = vmatprep.subr.mxu0 0.0
    %5153 = vmatpush1.msra.mxu0 0.0
    %5154 = vmatprep.subr.mxu0 0.0
    %5155 = vmatpush1.msra.mxu0 0.0
    %5156 = vmatprep.subr.mxu0 0.0
    %5157 = vmatpush1.msra.mxu0 0.0
    %5158 = vmatprep.subr.mxu0 0.0
    %5159 = vmatpush1.msra.mxu0 0.0
    %5160 = vmatprep.subr.mxu0 0.0
    %5161 = vmatpush1.msra.mxu0 0.0
    %5162 = vmatprep.subr.mxu0 0.0
    %5163 = vmatpush1.msra.mxu0 0.0
    %5164 = vmatprep.subr.mxu0 0.0
    %5165 = vmatpush1.msra.mxu0 0.0
    %5166 = vmatprep.subr.mxu0 0.0
    %5167 = vmatpush1.msra.mxu0 0.0
    %5168 = vmatprep.subr.mxu0 0.0
    %5169 = vmatpush1.msra.mxu0 %v76
    %5170 = vmatprep.subr.mxu0 0.0
    %5171 = vmatpush1.msra.mxu0 %v75
    %5172 = vmatprep.subr.mxu0 0.0
    %5173 = vmatpush2.msra.mxu0 0.0
    %5174 = vmatprep.subr.mxu0 0.0
    %5175 = vmatpush2.msra.mxu0 0.0
    %5176 = vmatprep.subr.mxu0 0.0
    %5177 = vmatpush2.msra.mxu0 0.0
    %5178 = vmatprep.subr.mxu0 0.0
    %5179 = vmatpush2.msra.mxu0 0.0
    %5180 = vmatprep.subr.mxu0 0.0
    %5181 = vmatpush2.msra.mxu0 0.0
    %5182 = vmatprep.subr.mxu0 0.0
    %5183 = vmatpush2.msra.mxu0 0.0
    %5184 = vmatprep.subr.mxu0 0.0
    %5185 = vmatpush2.msra.mxu0 0.0
    %5186 = vmatprep.subr.mxu0 0.0
    %5187 = vmatpush2.msra.mxu0 0.0
    %5188 = vmatprep.subr.mxu0 0.0
    %5189 = vmatpush2.msra.mxu0 0.0
    %5190 = vmatprep.subr.mxu0 0.0
    %5191 = vmatpush2.msra.mxu0 0.0
    %5192 = vmatprep.subr.mxu0 0.0
    %5193 = vmatpush2.msra.mxu0 0.0
    %5194 = vmatprep.subr.mxu0 0.0
    %5195 = vmatpush2.msra.mxu0 0.0
    %5196 = vmatprep.subr.mxu0 0.0
    %5197 = vmatpush2.msra.mxu0 0.0
    %5198 = vmatprep.subr.mxu0 0.0
    %5199 = vmatpush2.msra.mxu0 0.0
    %5200 = vmatprep.subr.mxu0 0.0
    %5201 = vmatpush2.msra.mxu0 0.0
    %5202 = vmatprep.subr.mxu0 0.0
    %5203 = vmatpush2.msra.mxu0 0.0
    %5204 = vmatprep.mubr.f32.mxu0 0.0
    %5205 = vmatmul.mubr.f32.gmra.mxu0 %v5135
    %v5206 = vpop.f32.mrf.mxu0
    %v5207 = vadd.f32 0.0, %v5206
    %v5208 = vpop.f32.mrf.mxu0
    %5209 = vmatprep.mubr.f32.mxu0 0.0
    %5210 = vmatmul.mubr.f32.gmra.mxu0 %v5138
    %v5211 = vpop.f32.mrf.mxu0
    %v5212 = vadd.f32 0.0, %v5211
    %v5213 = vpop.f32.mrf.mxu0
    %5214 = vdwg.mxu0
    %5215 = vmatprep.subr.mxu0 0.0
    %5216 = vmatpush1.msra.mxu0 0.0
    %5217 = vmatprep.subr.mxu0 0.0
    %5218 = vmatpush1.msra.mxu0 0.0
    %5219 = vmatprep.subr.mxu0 0.0
    %5220 = vmatpush1.msra.mxu0 0.0
    %5221 = vmatprep.subr.mxu0 0.0
    %5222 = vmatpush1.msra.mxu0 0.0
    %5223 = vmatprep.subr.mxu0 0.0
    %5224 = vmatpush1.msra.mxu0 0.0
    %5225 = vmatprep.subr.mxu0 0.0
    %5226 = vmatpush1.msra.mxu0 0.0
    %5227 = vmatprep.subr.mxu0 0.0
    %5228 = vmatpush1.msra.mxu0 0.0
    %5229 = vmatprep.subr.mxu0 0.0
    %5230 = vmatpush1.msra.mxu0 0.0
    %5231 = vmatprep.subr.mxu0 0.0
    %5232 = vmatpush1.msra.mxu0 0.0
    %5233 = vmatprep.subr.mxu0 0.0
    %5234 = vmatpush1.msra.mxu0 0.0
    %5235 = vmatprep.subr.mxu0 0.0
    %5236 = vmatpush1.msra.mxu0 0.0
    %5237 = vmatprep.subr.mxu0 0.0
    %5238 = vmatpush1.msra.mxu0 0.0
    %5239 = vmatprep.subr.mxu0 0.0
    %5240 = vmatpush1.msra.mxu0 0.0
    %5241 = vmatprep.subr.mxu0 0.0
    %5242 = vmatpush1.msra.mxu0 0.0
    %5243 = vmatprep.subr.mxu0 0.0
    %5244 = vmatpush1.msra.mxu0 %v5212
    %5245 = vmatprep.subr.mxu0 0.0
    %5246 = vmatpush1.msra.mxu0 %v5207
    %5247 = vmatprep.subr.mxu0 0.0
    %5248 = vmatpush2.msra.mxu0 0.0
    %5249 = vmatprep.subr.mxu0 0.0
    %5250 = vmatpush2.msra.mxu0 0.0
    %5251 = vmatprep.subr.mxu0 0.0
    %5252 = vmatpush2.msra.mxu0 0.0
    %5253 = vmatprep.subr.mxu0 0.0
    %5254 = vmatpush2.msra.mxu0 0.0
    %5255 = vmatprep.subr.mxu0 0.0
    %5256 = vmatpush2.msra.mxu0 0.0
    %5257 = vmatprep.subr.mxu0 0.0
    %5258 = vmatpush2.msra.mxu0 0.0
    %5259 = vmatprep.subr.mxu0 0.0
    %5260 = vmatpush2.msra.mxu0 0.0
    %5261 = vmatprep.subr.mxu0 0.0
    %5262 = vmatpush2.msra.mxu0 0.0
    %5263 = vmatprep.subr.mxu0 0.0
    %5264 = vmatpush2.msra.mxu0 0.0
    %5265 = vmatprep.subr.mxu0 0.0
    %5266 = vmatpush2.msra.mxu0 0.0
    %5267 = vmatprep.subr.mxu0 0.0
    %5268 = vmatpush2.msra.mxu0 0.0
    %5269 = vmatprep.subr.mxu0 0.0
    %5270 = vmatpush2.msra.mxu0 0.0
    %5271 = vmatprep.subr.mxu0 0.0
    %5272 = vmatpush2.msra.mxu0 0.0
    %5273 = vmatprep.subr.mxu0 0.0
    %5274 = vmatpush2.msra.mxu0 0.0
    %5275 = vmatprep.subr.mxu0 0.0
    %5276 = vmatpush2.msra.mxu0 0.0
    %5277 = vmatprep.subr.mxu0 0.0
    %5278 = vmatpush2.msra.mxu0 0.0
    %5279 = vmatprep.mubr.f32.mxu0 0.0
    %5280 = vmatmul.mubr.f32.gmra.mxu0 %v164
    %v5281 = vpop.f32.mrf.mxu0
    %v5282 = vadd.f32 0.0, %v5281
    %v5283 = vpop.f32.mrf.mxu0
    %5284 = vmatprep.mubr.f32.mxu0 0.0
    %5285 = vmatmul.mubr.f32.gmra.mxu0 %v167
    %v5286 = vpop.f32.mrf.mxu0
    %v5287 = vadd.f32 0.0, %v5286
    %v5288 = vpop.f32.mrf.mxu0
    %5289 = vdwg.mxu0
    %v5291 = vsel %vm81, %v5132, 0
    %v5294 = vsel %vm81, %v5133, 0
    %5296 = vmatprep.subr.mxu0 0.0
    %5297 = vmatpush1.msra.mxu0 0.0
    %5298 = vmatprep.subr.mxu0 0.0
    %5299 = vmatpush1.msra.mxu0 0.0
    %5300 = vmatprep.subr.mxu0 0.0
    %5301 = vmatpush1.msra.mxu0 0.0
    %5302 = vmatprep.subr.mxu0 0.0
    %5303 = vmatpush1.msra.mxu0 0.0
    %5304 = vmatprep.subr.mxu0 0.0
    %5305 = vmatpush1.msra.mxu0 0.0
    %5306 = vmatprep.subr.mxu0 0.0
    %5307 = vmatpush1.msra.mxu0 0.0
    %5308 = vmatprep.subr.mxu0 0.0
    %5309 = vmatpush1.msra.mxu0 0.0
    %5310 = vmatprep.subr.mxu0 0.0
    %5311 = vmatpush1.msra.mxu0 0.0
    %5312 = vmatprep.subr.mxu0 0.0
    %5313 = vmatpush1.msra.mxu0 0.0
    %5314 = vmatprep.subr.mxu0 0.0
    %5315 = vmatpush1.msra.mxu0 0.0
    %5316 = vmatprep.subr.mxu0 0.0
    %5317 = vmatpush1.msra.mxu0 0.0
    %5318 = vmatprep.subr.mxu0 0.0
    %5319 = vmatpush1.msra.mxu0 0.0
    %5320 = vmatprep.subr.mxu0 0.0
    %5321 = vmatpush1.msra.mxu0 0.0
    %5322 = vmatprep.subr.mxu0 0.0
    %5323 = vmatpush1.msra.mxu0 0.0
    %5324 = vmatprep.subr.mxu0 0.0
    %5325 = vmatpush1.msra.mxu0 %v76
    %5326 = vmatprep.subr.mxu0 0.0
    %5327 = vmatpush1.msra.mxu0 %v75
    %5328 = vmatprep.subr.mxu0 0.0
    %5329 = vmatpush2.msra.mxu0 0.0
    %5330 = vmatprep.subr.mxu0 0.0
    %5331 = vmatpush2.msra.mxu0 0.0
    %5332 = vmatprep.subr.mxu0 0.0
    %5333 = vmatpush2.msra.mxu0 0.0
    %5334 = vmatprep.subr.mxu0 0.0
    %5335 = vmatpush2.msra.mxu0 0.0
    %5336 = vmatprep.subr.mxu0 0.0
    %5337 = vmatpush2.msra.mxu0 0.0
    %5338 = vmatprep.subr.mxu0 0.0
    %5339 = vmatpush2.msra.mxu0 0.0
    %5340 = vmatprep.subr.mxu0 0.0
    %5341 = vmatpush2.msra.mxu0 0.0
    %5342 = vmatprep.subr.mxu0 0.0
    %5343 = vmatpush2.msra.mxu0 0.0
    %5344 = vmatprep.subr.mxu0 0.0
    %5345 = vmatpush2.msra.mxu0 0.0
    %5346 = vmatprep.subr.mxu0 0.0
    %5347 = vmatpush2.msra.mxu0 0.0
    %5348 = vmatprep.subr.mxu0 0.0
    %5349 = vmatpush2.msra.mxu0 0.0
    %5350 = vmatprep.subr.mxu0 0.0
    %5351 = vmatpush2.msra.mxu0 0.0
    %5352 = vmatprep.subr.mxu0 0.0
    %5353 = vmatpush2.msra.mxu0 0.0
    %5354 = vmatprep.subr.mxu0 0.0
    %5355 = vmatpush2.msra.mxu0 0.0
    %5356 = vmatprep.subr.mxu0 0.0
    %5357 = vmatpush2.msra.mxu0 0.0
    %5358 = vmatprep.subr.mxu0 0.0
    %5359 = vmatpush2.msra.mxu0 0.0
    %5360 = vmatprep.mubr.f32.mxu0 0.0
    %5361 = vmatmul.mubr.f32.gmra.mxu0 %v5291
    %v5362 = vpop.f32.mrf.mxu0
    %v5363 = vadd.f32 0.0, %v5362
    %v5364 = vpop.f32.mrf.mxu0
    %5365 = vmatprep.mubr.f32.mxu0 0.0
    %5366 = vmatmul.mubr.f32.gmra.mxu0 %v5294
    %v5367 = vpop.f32.mrf.mxu0
    %v5368 = vadd.f32 0.0, %v5367
    %v5369 = vpop.f32.mrf.mxu0
    %5370 = vdwg.mxu0
    %5371 = vmatprep.subr.mxu0 0.0
    %5372 = vmatpush1.msra.mxu0 0.0
    %5373 = vmatprep.subr.mxu0 0.0
    %5374 = vmatpush1.msra.mxu0 0.0
    %5375 = vmatprep.subr.mxu0 0.0
    %5376 = vmatpush1.msra.mxu0 0.0
    %5377 = vmatprep.subr.mxu0 0.0
    %5378 = vmatpush1.msra.mxu0 0.0
    %5379 = vmatprep.subr.mxu0 0.0
    %5380 = vmatpush1.msra.mxu0 0.0
    %5381 = vmatprep.subr.mxu0 0.0
    %5382 = vmatpush1.msra.mxu0 0.0
    %5383 = vmatprep.subr.mxu0 0.0
    %5384 = vmatpush1.msra.mxu0 0.0
    %5385 = vmatprep.subr.mxu0 0.0
    %5386 = vmatpush1.msra.mxu0 0.0
    %5387 = vmatprep.subr.mxu0 0.0
    %5388 = vmatpush1.msra.mxu0 0.0
    %5389 = vmatprep.subr.mxu0 0.0
    %5390 = vmatpush1.msra.mxu0 0.0
    %5391 = vmatprep.subr.mxu0 0.0
    %5392 = vmatpush1.msra.mxu0 0.0
    %5393 = vmatprep.subr.mxu0 0.0
    %5394 = vmatpush1.msra.mxu0 0.0
    %5395 = vmatprep.subr.mxu0 0.0
    %5396 = vmatpush1.msra.mxu0 0.0
    %5397 = vmatprep.subr.mxu0 0.0
    %5398 = vmatpush1.msra.mxu0 0.0
    %5399 = vmatprep.subr.mxu0 0.0
    %5400 = vmatpush1.msra.mxu0 %v5368
    %5401 = vmatprep.subr.mxu0 0.0
    %5402 = vmatpush1.msra.mxu0 %v5363
    %5403 = vmatprep.subr.mxu0 0.0
    %5404 = vmatpush2.msra.mxu0 0.0
    %5405 = vmatprep.subr.mxu0 0.0
    %5406 = vmatpush2.msra.mxu0 0.0
    %5407 = vmatprep.subr.mxu0 0.0
    %5408 = vmatpush2.msra.mxu0 0.0
    %5409 = vmatprep.subr.mxu0 0.0
    %5410 = vmatpush2.msra.mxu0 0.0
    %5411 = vmatprep.subr.mxu0 0.0
    %5412 = vmatpush2.msra.mxu0 0.0
    %5413 = vmatprep.subr.mxu0 0.0
    %5414 = vmatpush2.msra.mxu0 0.0
    %5415 = vmatprep.subr.mxu0 0.0
    %5416 = vmatpush2.msra.mxu0 0.0
    %5417 = vmatprep.subr.mxu0 0.0
    %5418 = vmatpush2.msra.mxu0 0.0
    %5419 = vmatprep.subr.mxu0 0.0
    %5420 = vmatpush2.msra.mxu0 0.0
    %5421 = vmatprep.subr.mxu0 0.0
    %5422 = vmatpush2.msra.mxu0 0.0
    %5423 = vmatprep.subr.mxu0 0.0
    %5424 = vmatpush2.msra.mxu0 0.0
    %5425 = vmatprep.subr.mxu0 0.0
    %5426 = vmatpush2.msra.mxu0 0.0
    %5427 = vmatprep.subr.mxu0 0.0
    %5428 = vmatpush2.msra.mxu0 0.0
    %5429 = vmatprep.subr.mxu0 0.0
    %5430 = vmatpush2.msra.mxu0 0.0
    %5431 = vmatprep.subr.mxu0 0.0
    %5432 = vmatpush2.msra.mxu0 0.0
    %5433 = vmatprep.subr.mxu0 0.0
    %5434 = vmatpush2.msra.mxu0 0.0
    %5435 = vmatprep.mubr.f32.mxu0 0.0
    %5436 = vmatmul.mubr.f32.gmra.mxu0 %v164
    %v5437 = vpop.f32.mrf.mxu0
    %v5438 = vadd.f32 0.0, %v5437
    %v5439 = vpop.f32.mrf.mxu0
    %5440 = vmatprep.mubr.f32.mxu0 0.0
    %5441 = vmatmul.mubr.f32.gmra.mxu0 %v167
    %v5442 = vpop.f32.mrf.mxu0
    %v5443 = vadd.f32 0.0, %v5442
    %v5444 = vpop.f32.mrf.mxu0
    %5445 = vdwg.mxu0
    %v5446 = vmul.f32 %v5282, %v5282
    %v5447 = vmul.f32 %v5287, %v5287
    %v5448 = vmul.f32 %v5438, %v5438
    %v5449 = vmul.f32 %v5443, %v5443
    %v5450 = vmul.f32 %v5282, %v5438
    %v5451 = vmul.f32 %v5287, %v5443
    %v5452 = vmul.f32 %v5129, %v5129
    %v5453 = vmul.f32 %v5130, %v5130
    %v5455 = vsel %vm81, %v5452, 0
    %v5458 = vsel %vm81, %v5453, 0
    %5460 = vmatprep.subr.mxu0 0.0
    %5461 = vmatpush1.msra.mxu0 0.0
    %5462 = vmatprep.subr.mxu0 0.0
    %5463 = vmatpush1.msra.mxu0 0.0
    %5464 = vmatprep.subr.mxu0 0.0
    %5465 = vmatpush1.msra.mxu0 0.0
    %5466 = vmatprep.subr.mxu0 0.0
    %5467 = vmatpush1.msra.mxu0 0.0
    %5468 = vmatprep.subr.mxu0 0.0
    %5469 = vmatpush1.msra.mxu0 0.0
    %5470 = vmatprep.subr.mxu0 0.0
    %5471 = vmatpush1.msra.mxu0 0.0
    %5472 = vmatprep.subr.mxu0 0.0
    %5473 = vmatpush1.msra.mxu0 0.0
    %5474 = vmatprep.subr.mxu0 0.0
    %5475 = vmatpush1.msra.mxu0 0.0
    %5476 = vmatprep.subr.mxu0 0.0
    %5477 = vmatpush1.msra.mxu0 0.0
    %5478 = vmatprep.subr.mxu0 0.0
    %5479 = vmatpush1.msra.mxu0 0.0
    %5480 = vmatprep.subr.mxu0 0.0
    %5481 = vmatpush1.msra.mxu0 0.0
    %5482 = vmatprep.subr.mxu0 0.0
    %5483 = vmatpush1.msra.mxu0 0.0
    %5484 = vmatprep.subr.mxu0 0.0
    %5485 = vmatpush1.msra.mxu0 0.0
    %5486 = vmatprep.subr.mxu0 0.0
    %5487 = vmatpush1.msra.mxu0 0.0
    %5488 = vmatprep.subr.mxu0 0.0
    %5489 = vmatpush1.msra.mxu0 %v76
    %5490 = vmatprep.subr.mxu0 0.0
    %5491 = vmatpush1.msra.mxu0 %v75
    %5492 = vmatprep.subr.mxu0 0.0
    %5493 = vmatpush2.msra.mxu0 0.0
    %5494 = vmatprep.subr.mxu0 0.0
    %5495 = vmatpush2.msra.mxu0 0.0
    %5496 = vmatprep.subr.mxu0 0.0
    %5497 = vmatpush2.msra.mxu0 0.0
    %5498 = vmatprep.subr.mxu0 0.0
    %5499 = vmatpush2.msra.mxu0 0.0
    %5500 = vmatprep.subr.mxu0 0.0
    %5501 = vmatpush2.msra.mxu0 0.0
    %5502 = vmatprep.subr.mxu0 0.0
    %5503 = vmatpush2.msra.mxu0 0.0
    %5504 = vmatprep.subr.mxu0 0.0
    %5505 = vmatpush2.msra.mxu0 0.0
    %5506 = vmatprep.subr.mxu0 0.0
    %5507 = vmatpush2.msra.mxu0 0.0
    %5508 = vmatprep.subr.mxu0 0.0
    %5509 = vmatpush2.msra.mxu0 0.0
    %5510 = vmatprep.subr.mxu0 0.0
    %5511 = vmatpush2.msra.mxu0 0.0
    %5512 = vmatprep.subr.mxu0 0.0
    %5513 = vmatpush2.msra.mxu0 0.0
    %5514 = vmatprep.subr.mxu0 0.0
    %5515 = vmatpush2.msra.mxu0 0.0
    %5516 = vmatprep.subr.mxu0 0.0
    %5517 = vmatpush2.msra.mxu0 0.0
    %5518 = vmatprep.subr.mxu0 0.0
    %5519 = vmatpush2.msra.mxu0 0.0
    %5520 = vmatprep.subr.mxu0 0.0
    %5521 = vmatpush2.msra.mxu0 0.0
    %5522 = vmatprep.subr.mxu0 0.0
    %5523 = vmatpush2.msra.mxu0 0.0
    %5524 = vmatprep.mubr.f32.mxu0 0.0
    %5525 = vmatmul.mubr.f32.gmra.mxu0 %v5455
    %v5526 = vpop.f32.mrf.mxu0
    %v5527 = vadd.f32 0.0, %v5526
    %v5528 = vpop.f32.mrf.mxu0
    %5529 = vmatprep.mubr.f32.mxu0 0.0
    %5530 = vmatmul.mubr.f32.gmra.mxu0 %v5458
    %v5531 = vpop.f32.mrf.mxu0
    %v5532 = vadd.f32 0.0, %v5531
    %v5533 = vpop.f32.mrf.mxu0
    %5534 = vdwg.mxu0
    %5535 = vmatprep.subr.mxu0 0.0
    %5536 = vmatpush1.msra.mxu0 0.0
    %5537 = vmatprep.subr.mxu0 0.0
    %5538 = vmatpush1.msra.mxu0 0.0
    %5539 = vmatprep.subr.mxu0 0.0
    %5540 = vmatpush1.msra.mxu0 0.0
    %5541 = vmatprep.subr.mxu0 0.0
    %5542 = vmatpush1.msra.mxu0 0.0
    %5543 = vmatprep.subr.mxu0 0.0
    %5544 = vmatpush1.msra.mxu0 0.0
    %5545 = vmatprep.subr.mxu0 0.0
    %5546 = vmatpush1.msra.mxu0 0.0
    %5547 = vmatprep.subr.mxu0 0.0
    %5548 = vmatpush1.msra.mxu0 0.0
    %5549 = vmatprep.subr.mxu0 0.0
    %5550 = vmatpush1.msra.mxu0 0.0
    %5551 = vmatprep.subr.mxu0 0.0
    %5552 = vmatpush1.msra.mxu0 0.0
    %5553 = vmatprep.subr.mxu0 0.0
    %5554 = vmatpush1.msra.mxu0 0.0
    %5555 = vmatprep.subr.mxu0 0.0
    %5556 = vmatpush1.msra.mxu0 0.0
    %5557 = vmatprep.subr.mxu0 0.0
    %5558 = vmatpush1.msra.mxu0 0.0
    %5559 = vmatprep.subr.mxu0 0.0
    %5560 = vmatpush1.msra.mxu0 0.0
    %5561 = vmatprep.subr.mxu0 0.0
    %5562 = vmatpush1.msra.mxu0 0.0
    %5563 = vmatprep.subr.mxu0 0.0
    %5564 = vmatpush1.msra.mxu0 %v5532
    %5565 = vmatprep.subr.mxu0 0.0
    %5566 = vmatpush1.msra.mxu0 %v5527
    %5567 = vmatprep.subr.mxu0 0.0
    %5568 = vmatpush2.msra.mxu0 0.0
    %5569 = vmatprep.subr.mxu0 0.0
    %5570 = vmatpush2.msra.mxu0 0.0
    %5571 = vmatprep.subr.mxu0 0.0
    %5572 = vmatpush2.msra.mxu0 0.0
    %5573 = vmatprep.subr.mxu0 0.0
    %5574 = vmatpush2.msra.mxu0 0.0
    %5575 = vmatprep.subr.mxu0 0.0
    %5576 = vmatpush2.msra.mxu0 0.0
    %5577 = vmatprep.subr.mxu0 0.0
    %5578 = vmatpush2.msra.mxu0 0.0
    %5579 = vmatprep.subr.mxu0 0.0
    %5580 = vmatpush2.msra.mxu0 0.0
    %5581 = vmatprep.subr.mxu0 0.0
    %5582 = vmatpush2.msra.mxu0 0.0
    %5583 = vmatprep.subr.mxu0 0.0
    %5584 = vmatpush2.msra.mxu0 0.0
    %5585 = vmatprep.subr.mxu0 0.0
    %5586 = vmatpush2.msra.mxu0 0.0
    %5587 = vmatprep.subr.mxu0 0.0
    %5588 = vmatpush2.msra.mxu0 0.0
    %5589 = vmatprep.subr.mxu0 0.0
    %5590 = vmatpush2.msra.mxu0 0.0
    %5591 = vmatprep.subr.mxu0 0.0
    %5592 = vmatpush2.msra.mxu0 0.0
    %5593 = vmatprep.subr.mxu0 0.0
    %5594 = vmatpush2.msra.mxu0 0.0
    %5595 = vmatprep.subr.mxu0 0.0
    %5596 = vmatpush2.msra.mxu0 0.0
    %5597 = vmatprep.subr.mxu0 0.0
    %5598 = vmatpush2.msra.mxu0 0.0
    %5599 = vmatprep.mubr.f32.mxu0 0.0
    %5600 = vmatmul.mubr.f32.gmra.mxu0 %v164
    %v5601 = vpop.f32.mrf.mxu0
    %v5602 = vadd.f32 0.0, %v5601
    %v5603 = vpop.f32.mrf.mxu0
    %5604 = vmatprep.mubr.f32.mxu0 0.0
    %5605 = vmatmul.mubr.f32.gmra.mxu0 %v167
    %v5606 = vpop.f32.mrf.mxu0
    %v5607 = vadd.f32 0.0, %v5606
    %v5608 = vpop.f32.mrf.mxu0
    %5609 = vdwg.mxu0
    %v5610 = vsub.f32 %v5602, %v5446
    %v5611 = vsub.f32 %v5607, %v5447
    %v5612 = vmul.f32 %v5132, %v5132
    %v5613 = vmul.f32 %v5133, %v5133
    %v5615 = vsel %vm81, %v5612, 0
    %v5618 = vsel %vm81, %v5613, 0
    %5620 = vmatprep.subr.mxu0 0.0
    %5621 = vmatpush1.msra.mxu0 0.0
    %5622 = vmatprep.subr.mxu0 0.0
    %5623 = vmatpush1.msra.mxu0 0.0
    %5624 = vmatprep.subr.mxu0 0.0
    %5625 = vmatpush1.msra.mxu0 0.0
    %5626 = vmatprep.subr.mxu0 0.0
    %5627 = vmatpush1.msra.mxu0 0.0
    %5628 = vmatprep.subr.mxu0 0.0
    %5629 = vmatpush1.msra.mxu0 0.0
    %5630 = vmatprep.subr.mxu0 0.0
    %5631 = vmatpush1.msra.mxu0 0.0
    %5632 = vmatprep.subr.mxu0 0.0
    %5633 = vmatpush1.msra.mxu0 0.0
    %5634 = vmatprep.subr.mxu0 0.0
    %5635 = vmatpush1.msra.mxu0 0.0
    %5636 = vmatprep.subr.mxu0 0.0
    %5637 = vmatpush1.msra.mxu0 0.0
    %5638 = vmatprep.subr.mxu0 0.0
    %5639 = vmatpush1.msra.mxu0 0.0
    %5640 = vmatprep.subr.mxu0 0.0
    %5641 = vmatpush1.msra.mxu0 0.0
    %5642 = vmatprep.subr.mxu0 0.0
    %5643 = vmatpush1.msra.mxu0 0.0
    %5644 = vmatprep.subr.mxu0 0.0
    %5645 = vmatpush1.msra.mxu0 0.0
    %5646 = vmatprep.subr.mxu0 0.0
    %5647 = vmatpush1.msra.mxu0 0.0
    %5648 = vmatprep.subr.mxu0 0.0
    %5649 = vmatpush1.msra.mxu0 %v76
    %5650 = vmatprep.subr.mxu0 0.0
    %5651 = vmatpush1.msra.mxu0 %v75
    %5652 = vmatprep.subr.mxu0 0.0
    %5653 = vmatpush2.msra.mxu0 0.0
    %5654 = vmatprep.subr.mxu0 0.0
    %5655 = vmatpush2.msra.mxu0 0.0
    %5656 = vmatprep.subr.mxu0 0.0
    %5657 = vmatpush2.msra.mxu0 0.0
    %5658 = vmatprep.subr.mxu0 0.0
    %5659 = vmatpush2.msra.mxu0 0.0
    %5660 = vmatprep.subr.mxu0 0.0
    %5661 = vmatpush2.msra.mxu0 0.0
    %5662 = vmatprep.subr.mxu0 0.0
    %5663 = vmatpush2.msra.mxu0 0.0
    %5664 = vmatprep.subr.mxu0 0.0
    %5665 = vmatpush2.msra.mxu0 0.0
    %5666 = vmatprep.subr.mxu0 0.0
    %5667 = vmatpush2.msra.mxu0 0.0
    %5668 = vmatprep.subr.mxu0 0.0
    %5669 = vmatpush2.msra.mxu0 0.0
    %5670 = vmatprep.subr.mxu0 0.0
    %5671 = vmatpush2.msra.mxu0 0.0
    %5672 = vmatprep.subr.mxu0 0.0
    %5673 = vmatpush2.msra.mxu0 0.0
    %5674 = vmatprep.subr.mxu0 0.0
    %5675 = vmatpush2.msra.mxu0 0.0
    %5676 = vmatprep.subr.mxu0 0.0
    %5677 = vmatpush2.msra.mxu0 0.0
    %5678 = vmatprep.subr.mxu0 0.0
    %5679 = vmatpush2.msra.mxu0 0.0
    %5680 = vmatprep.subr.mxu0 0.0
    %5681 = vmatpush2.msra.mxu0 0.0
    %5682 = vmatprep.subr.mxu0 0.0
    %5683 = vmatpush2.msra.mxu0 0.0
    %5684 = vmatprep.mubr.f32.mxu0 0.0
    %5685 = vmatmul.mubr.f32.gmra.mxu0 %v5615
    %v5686 = vpop.f32.mrf.mxu0
    %v5687 = vadd.f32 0.0, %v5686
    %v5688 = vpop.f32.mrf.mxu0
    %5689 = vmatprep.mubr.f32.mxu0 0.0
    %5690 = vmatmul.mubr.f32.gmra.mxu0 %v5618
    %v5691 = vpop.f32.mrf.mxu0
    %v5692 = vadd.f32 0.0, %v5691
    %v5693 = vpop.f32.mrf.mxu0
    %5694 = vdwg.mxu0
    %5695 = vmatprep.subr.mxu0 0.0
    %5696 = vmatpush1.msra.mxu0 0.0
    %5697 = vmatprep.subr.mxu0 0.0
    %5698 = vmatpush1.msra.mxu0 0.0
    %5699 = vmatprep.subr.mxu0 0.0
    %5700 = vmatpush1.msra.mxu0 0.0
    %5701 = vmatprep.subr.mxu0 0.0
    %5702 = vmatpush1.msra.mxu0 0.0
    %5703 = vmatprep.subr.mxu0 0.0
    %5704 = vmatpush1.msra.mxu0 0.0
    %5705 = vmatprep.subr.mxu0 0.0
    %5706 = vmatpush1.msra.mxu0 0.0
    %5707 = vmatprep.subr.mxu0 0.0
    %5708 = vmatpush1.msra.mxu0 0.0
    %5709 = vmatprep.subr.mxu0 0.0
    %5710 = vmatpush1.msra.mxu0 0.0
    %5711 = vmatprep.subr.mxu0 0.0
    %5712 = vmatpush1.msra.mxu0 0.0
    %5713 = vmatprep.subr.mxu0 0.0
    %5714 = vmatpush1.msra.mxu0 0.0
    %5715 = vmatprep.subr.mxu0 0.0
    %5716 = vmatpush1.msra.mxu0 0.0
    %5717 = vmatprep.subr.mxu0 0.0
    %5718 = vmatpush1.msra.mxu0 0.0
    %5719 = vmatprep.subr.mxu0 0.0
    %5720 = vmatpush1.msra.mxu0 0.0
    %5721 = vmatprep.subr.mxu0 0.0
    %5722 = vmatpush1.msra.mxu0 0.0
    %5723 = vmatprep.subr.mxu0 0.0
    %5724 = vmatpush1.msra.mxu0 %v5692
    %5725 = vmatprep.subr.mxu0 0.0
    %5726 = vmatpush1.msra.mxu0 %v5687
    %5727 = vmatprep.subr.mxu0 0.0
    %5728 = vmatpush2.msra.mxu0 0.0
    %5729 = vmatprep.subr.mxu0 0.0
    %5730 = vmatpush2.msra.mxu0 0.0
    %5731 = vmatprep.subr.mxu0 0.0
    %5732 = vmatpush2.msra.mxu0 0.0
    %5733 = vmatprep.subr.mxu0 0.0
    %5734 = vmatpush2.msra.mxu0 0.0
    %5735 = vmatprep.subr.mxu0 0.0
    %5736 = vmatpush2.msra.mxu0 0.0
    %5737 = vmatprep.subr.mxu0 0.0
    %5738 = vmatpush2.msra.mxu0 0.0
    %5739 = vmatprep.subr.mxu0 0.0
    %5740 = vmatpush2.msra.mxu0 0.0
    %5741 = vmatprep.subr.mxu0 0.0
    %5742 = vmatpush2.msra.mxu0 0.0
    %5743 = vmatprep.subr.mxu0 0.0
    %5744 = vmatpush2.msra.mxu0 0.0
    %5745 = vmatprep.subr.mxu0 0.0
    %5746 = vmatpush2.msra.mxu0 0.0
    %5747 = vmatprep.subr.mxu0 0.0
    %5748 = vmatpush2.msra.mxu0 0.0
    %5749 = vmatprep.subr.mxu0 0.0
    %5750 = vmatpush2.msra.mxu0 0.0
    %5751 = vmatprep.subr.mxu0 0.0
    %5752 = vmatpush2.msra.mxu0 0.0
    %5753 = vmatprep.subr.mxu0 0.0
    %5754 = vmatpush2.msra.mxu0 0.0
    %5755 = vmatprep.subr.mxu0 0.0
    %5756 = vmatpush2.msra.mxu0 0.0
    %5757 = vmatprep.subr.mxu0 0.0
    %5758 = vmatpush2.msra.mxu0 0.0
    %5759 = vmatprep.mubr.f32.mxu0 0.0
    %5760 = vmatmul.mubr.f32.gmra.mxu0 %v164
    %v5761 = vpop.f32.mrf.mxu0
    %v5762 = vadd.f32 0.0, %v5761
    %v5763 = vpop.f32.mrf.mxu0
    %5764 = vmatprep.mubr.f32.mxu0 0.0
    %5765 = vmatmul.mubr.f32.gmra.mxu0 %v167
    %v5766 = vpop.f32.mrf.mxu0
    %v5767 = vadd.f32 0.0, %v5766
    %v5768 = vpop.f32.mrf.mxu0
    %5769 = vdwg.mxu0
    %v5770 = vsub.f32 %v5762, %v5448
    %v5771 = vsub.f32 %v5767, %v5449
    %v5772 = vmul.f32 %v5129, %v5132
    %v5773 = vmul.f32 %v5130, %v5133
    %v5775 = vsel %vm81, %v5772, 0
    %v5778 = vsel %vm81, %v5773, 0
    %5780 = vmatprep.subr.mxu0 0.0
    %5781 = vmatpush1.msra.mxu0 0.0
    %5782 = vmatprep.subr.mxu0 0.0
    %5783 = vmatpush1.msra.mxu0 0.0
    %5784 = vmatprep.subr.mxu0 0.0
    %5785 = vmatpush1.msra.mxu0 0.0
    %5786 = vmatprep.subr.mxu0 0.0
    %5787 = vmatpush1.msra.mxu0 0.0
    %5788 = vmatprep.subr.mxu0 0.0
    %5789 = vmatpush1.msra.mxu0 0.0
    %5790 = vmatprep.subr.mxu0 0.0
    %5791 = vmatpush1.msra.mxu0 0.0
    %5792 = vmatprep.subr.mxu0 0.0
    %5793 = vmatpush1.msra.mxu0 0.0
    %5794 = vmatprep.subr.mxu0 0.0
    %5795 = vmatpush1.msra.mxu0 0.0
    %5796 = vmatprep.subr.mxu0 0.0
    %5797 = vmatpush1.msra.mxu0 0.0
    %5798 = vmatprep.subr.mxu0 0.0
    %5799 = vmatpush1.msra.mxu0 0.0
    %5800 = vmatprep.subr.mxu0 0.0
    %5801 = vmatpush1.msra.mxu0 0.0
    %5802 = vmatprep.subr.mxu0 0.0
    %5803 = vmatpush1.msra.mxu0 0.0
    %5804 = vmatprep.subr.mxu0 0.0
    %5805 = vmatpush1.msra.mxu0 0.0
    %5806 = vmatprep.subr.mxu0 0.0
    %5807 = vmatpush1.msra.mxu0 0.0
    %5808 = vmatprep.subr.mxu0 0.0
    %5809 = vmatpush1.msra.mxu0 %v76
    %5810 = vmatprep.subr.mxu0 0.0
    %5811 = vmatpush1.msra.mxu0 %v75
    %5812 = vmatprep.subr.mxu0 0.0
    %5813 = vmatpush2.msra.mxu0 0.0
    %5814 = vmatprep.subr.mxu0 0.0
    %5815 = vmatpush2.msra.mxu0 0.0
    %5816 = vmatprep.subr.mxu0 0.0
    %5817 = vmatpush2.msra.mxu0 0.0
    %5818 = vmatprep.subr.mxu0 0.0
    %5819 = vmatpush2.msra.mxu0 0.0
    %5820 = vmatprep.subr.mxu0 0.0
    %5821 = vmatpush2.msra.mxu0 0.0
    %5822 = vmatprep.subr.mxu0 0.0
    %5823 = vmatpush2.msra.mxu0 0.0
    %5824 = vmatprep.subr.mxu0 0.0
    %5825 = vmatpush2.msra.mxu0 0.0
    %5826 = vmatprep.subr.mxu0 0.0
    %5827 = vmatpush2.msra.mxu0 0.0
    %5828 = vmatprep.subr.mxu0 0.0
    %5829 = vmatpush2.msra.mxu0 0.0
    %5830 = vmatprep.subr.mxu0 0.0
    %5831 = vmatpush2.msra.mxu0 0.0
    %5832 = vmatprep.subr.mxu0 0.0
    %5833 = vmatpush2.msra.mxu0 0.0
    %5834 = vmatprep.subr.mxu0 0.0
    %5835 = vmatpush2.msra.mxu0 0.0
    %5836 = vmatprep.subr.mxu0 0.0
    %5837 = vmatpush2.msra.mxu0 0.0
    %5838 = vmatprep.subr.mxu0 0.0
    %5839 = vmatpush2.msra.mxu0 0.0
    %5840 = vmatprep.subr.mxu0 0.0
    %5841 = vmatpush2.msra.mxu0 0.0
    %5842 = vmatprep.subr.mxu0 0.0
    %5843 = vmatpush2.msra.mxu0 0.0
    %5844 = vmatprep.mubr.f32.mxu0 0.0
    %5845 = vmatmul.mubr.f32.gmra.mxu0 %v5775
    %v5846 = vpop.f32.mrf.mxu0
    %v5847 = vadd.f32 0.0, %v5846
    %v5848 = vpop.f32.mrf.mxu0
    %5849 = vmatprep.mubr.f32.mxu0 0.0
    %5850 = vmatmul.mubr.f32.gmra.mxu0 %v5778
    %v5851 = vpop.f32.mrf.mxu0
    %v5852 = vadd.f32 0.0, %v5851
    %v5853 = vpop.f32.mrf.mxu0
    %5854 = vdwg.mxu0
    %5855 = vmatprep.subr.mxu0 0.0
    %5856 = vmatpush1.msra.mxu0 0.0
    %5857 = vmatprep.subr.mxu0 0.0
    %5858 = vmatpush1.msra.mxu0 0.0
    %5859 = vmatprep.subr.mxu0 0.0
    %5860 = vmatpush1.msra.mxu0 0.0
    %5861 = vmatprep.subr.mxu0 0.0
    %5862 = vmatpush1.msra.mxu0 0.0
    %5863 = vmatprep.subr.mxu0 0.0
    %5864 = vmatpush1.msra.mxu0 0.0
    %5865 = vmatprep.subr.mxu0 0.0
    %5866 = vmatpush1.msra.mxu0 0.0
    %5867 = vmatprep.subr.mxu0 0.0
    %5868 = vmatpush1.msra.mxu0 0.0
    %5869 = vmatprep.subr.mxu0 0.0
    %5870 = vmatpush1.msra.mxu0 0.0
    %5871 = vmatprep.subr.mxu0 0.0
    %5872 = vmatpush1.msra.mxu0 0.0
    %5873 = vmatprep.subr.mxu0 0.0
    %5874 = vmatpush1.msra.mxu0 0.0
    %5875 = vmatprep.subr.mxu0 0.0
    %5876 = vmatpush1.msra.mxu0 0.0
    %5877 = vmatprep.subr.mxu0 0.0
    %5878 = vmatpush1.msra.mxu0 0.0
    %5879 = vmatprep.subr.mxu0 0.0
    %5880 = vmatpush1.msra.mxu0 0.0
    %5881 = vmatprep.subr.mxu0 0.0
    %5882 = vmatpush1.msra.mxu0 0.0
    %5883 = vmatprep.subr.mxu0 0.0
    %5884 = vmatpush1.msra.mxu0 %v5852
    %5885 = vmatprep.subr.mxu0 0.0
    %5886 = vmatpush1.msra.mxu0 %v5847
    %5887 = vmatprep.subr.mxu0 0.0
    %5888 = vmatpush2.msra.mxu0 0.0
    %5889 = vmatprep.subr.mxu0 0.0
    %5890 = vmatpush2.msra.mxu0 0.0
    %5891 = vmatprep.subr.mxu0 0.0
    %5892 = vmatpush2.msra.mxu0 0.0
    %5893 = vmatprep.subr.mxu0 0.0
    %5894 = vmatpush2.msra.mxu0 0.0
    %5895 = vmatprep.subr.mxu0 0.0
    %5896 = vmatpush2.msra.mxu0 0.0
    %5897 = vmatprep.subr.mxu0 0.0
    %5898 = vmatpush2.msra.mxu0 0.0
    %5899 = vmatprep.subr.mxu0 0.0
    %5900 = vmatpush2.msra.mxu0 0.0
    %5901 = vmatprep.subr.mxu0 0.0
    %5902 = vmatpush2.msra.mxu0 0.0
    %5903 = vmatprep.subr.mxu0 0.0
    %5904 = vmatpush2.msra.mxu0 0.0
    %5905 = vmatprep.subr.mxu0 0.0
    %5906 = vmatpush2.msra.mxu0 0.0
    %5907 = vmatprep.subr.mxu0 0.0
    %5908 = vmatpush2.msra.mxu0 0.0
    %5909 = vmatprep.subr.mxu0 0.0
    %5910 = vmatpush2.msra.mxu0 0.0
    %5911 = vmatprep.subr.mxu0 0.0
    %5912 = vmatpush2.msra.mxu0 0.0
    %5913 = vmatprep.subr.mxu0 0.0
    %5914 = vmatpush2.msra.mxu0 0.0
    %5915 = vmatprep.subr.mxu0 0.0
    %5916 = vmatpush2.msra.mxu0 0.0
    %5917 = vmatprep.subr.mxu0 0.0
    %5918 = vmatpush2.msra.mxu0 0.0
    %5919 = vmatprep.mubr.f32.mxu0 0.0
    %5920 = vmatmul.mubr.f32.gmra.mxu0 %v164
    %v5921 = vpop.f32.mrf.mxu0
    %v5922 = vadd.f32 0.0, %v5921
    %v5923 = vpop.f32.mrf.mxu0
    %5924 = vmatprep.mubr.f32.mxu0 0.0
    %5925 = vmatmul.mubr.f32.gmra.mxu0 %v167
    %v5926 = vpop.f32.mrf.mxu0
    %v5927 = vadd.f32 0.0, %v5926
    %v5928 = vpop.f32.mrf.mxu0
    %5929 = vdwg.mxu0
    %v5930 = vsub.f32 %v5922, %v5450
    %v5931 = vsub.f32 %v5927, %v5451
    %v5932 = vmul.f32 %v5450, 2.0
    %v5933 = vmul.f32 %v5451, 2.0
    %v5934 = vadd.f32 %v5932, 0.0001
    %v5935 = vadd.f32 %v5933, 0.0001
    %v5936 = vmul.f32 %v5930, 2.0
    %v5937 = vmul.f32 %v5931, 2.0
    %v5938 = vadd.f32 %v5936, 0.0009
    %v5939 = vadd.f32 %v5937, 0.0009
    %v5940 = vmul.f32 %v5934, %v5938
    %v5941 = vmul.f32 %v5935, %v5939
    %v5942 = vadd.f32 %v5446, %v5448
    %v5943 = vadd.f32 %v5447, %v5449
    %v5944 = vadd.f32 %v5942, 0.0001
    %v5945 = vadd.f32 %v5943, 0.0001
    %v5946 = vadd.f32 %v5610, %v5770
    %v5947 = vadd.f32 %v5611, %v5771
    %v5948 = vadd.f32 %v5946, 0.0009
    %v5949 = vadd.f32 %v5947, 0.0009
    %v5950 = vmul.f32 %v5944, %v5948
    %v5951 = vmul.f32 %v5945, %v5949
    %v5952 = vrcp.pop %v5950
    %v5953 = vmul.f32 %v5940, %v5952
    %v5954 = vrcp.pop %v5951
    %v5955 = vmul.f32 %v5941, %v5954
    %v5956 = vsel %vm81, %v5953, 0.0
    %v5957 = vsel %vm81, %v5955, 0.0
    %v5958 = vadd.f32 %v5956, %v5957
    %5959 = vadd.xlane.f32.xlu0 %v5958
    %v5960 = vpop.xlane.xlu0 %5959
    %v5961 = vrot.slane %v5960, 4
    %v5962 = vadd.f32 %v5960, %v5961
    %v5963 = vrot.slane %v5962, 2
    %v5964 = vadd.f32 %v5962, %v5963
    %v5965 = vrot.slane %v5964, 1
    %v5966 = vadd.f32 %v5964, %v5965
    %s5967 = vtos %v5966
    %v5968 = vstv %s5967
    %s5969 = scalar_lea.vmem [#allocation2], 112
    %v5970 = vld [vmem:[%s5969] sm:$0xff]
    %v5971 = vld [vmem:[%s5969 + $0x8] sm:$0xff]
    %s5972 = scalar_lea.vmem [#allocation5], 112
    %v5973 = vld [vmem:[%s5972] sm:$0xff]
    %v5974 = vld [vmem:[%s5972 + $0x8] sm:$0xff]
    %v5976 = vsel %vm81, %v5970, 0
    %v5979 = vsel %vm81, %v5971, 0
    %5981 = vmatprep.subr.mxu0 0.0
    %5982 = vmatpush1.msra.mxu0 0.0
    %5983 = vmatprep.subr.mxu0 0.0
    %5984 = vmatpush1.msra.mxu0 0.0
    %5985 = vmatprep.subr.mxu0 0.0
    %5986 = vmatpush1.msra.mxu0 0.0
    %5987 = vmatprep.subr.mxu0 0.0
    %5988 = vmatpush1.msra.mxu0 0.0
    %5989 = vmatprep.subr.mxu0 0.0
    %5990 = vmatpush1.msra.mxu0 0.0
    %5991 = vmatprep.subr.mxu0 0.0
    %5992 = vmatpush1.msra.mxu0 0.0
    %5993 = vmatprep.subr.mxu0 0.0
    %5994 = vmatpush1.msra.mxu0 0.0
    %5995 = vmatprep.subr.mxu0 0.0
    %5996 = vmatpush1.msra.mxu0 0.0
    %5997 = vmatprep.subr.mxu0 0.0
    %5998 = vmatpush1.msra.mxu0 0.0
    %5999 = vmatprep.subr.mxu0 0.0
    %6000 = vmatpush1.msra.mxu0 0.0
    %6001 = vmatprep.subr.mxu0 0.0
    %6002 = vmatpush1.msra.mxu0 0.0
    %6003 = vmatprep.subr.mxu0 0.0
    %6004 = vmatpush1.msra.mxu0 0.0
    %6005 = vmatprep.subr.mxu0 0.0
    %6006 = vmatpush1.msra.mxu0 0.0
    %6007 = vmatprep.subr.mxu0 0.0
    %6008 = vmatpush1.msra.mxu0 0.0
    %6009 = vmatprep.subr.mxu0 0.0
    %6010 = vmatpush1.msra.mxu0 %v76
    %6011 = vmatprep.subr.mxu0 0.0
    %6012 = vmatpush1.msra.mxu0 %v75
    %6013 = vmatprep.subr.mxu0 0.0
    %6014 = vmatpush2.msra.mxu0 0.0
    %6015 = vmatprep.subr.mxu0 0.0
    %6016 = vmatpush2.msra.mxu0 0.0
    %6017 = vmatprep.subr.mxu0 0.0
    %6018 = vmatpush2.msra.mxu0 0.0
    %6019 = vmatprep.subr.mxu0 0.0
    %6020 = vmatpush2.msra.mxu0 0.0
    %6021 = vmatprep.subr.mxu0 0.0
    %6022 = vmatpush2.msra.mxu0 0.0
    %6023 = vmatprep.subr.mxu0 0.0
    %6024 = vmatpush2.msra.mxu0 0.0
    %6025 = vmatprep.subr.mxu0 0.0
    %6026 = vmatpush2.msra.mxu0 0.0
    %6027 = vmatprep.subr.mxu0 0.0
    %6028 = vmatpush2.msra.mxu0 0.0
    %6029 = vmatprep.subr.mxu0 0.0
    %6030 = vmatpush2.msra.mxu0 0.0
    %6031 = vmatprep.subr.mxu0 0.0
    %6032 = vmatpush2.msra.mxu0 0.0
    %6033 = vmatprep.subr.mxu0 0.0
    %6034 = vmatpush2.msra.mxu0 0.0
    %6035 = vmatprep.subr.mxu0 0.0
    %6036 = vmatpush2.msra.mxu0 0.0
    %6037 = vmatprep.subr.mxu0 0.0
    %6038 = vmatpush2.msra.mxu0 0.0
    %6039 = vmatprep.subr.mxu0 0.0
    %6040 = vmatpush2.msra.mxu0 0.0
    %6041 = vmatprep.subr.mxu0 0.0
    %6042 = vmatpush2.msra.mxu0 0.0
    %6043 = vmatprep.subr.mxu0 0.0
    %6044 = vmatpush2.msra.mxu0 0.0
    %6045 = vmatprep.mubr.f32.mxu0 0.0
    %6046 = vmatmul.mubr.f32.gmra.mxu0 %v5976
    %v6047 = vpop.f32.mrf.mxu0
    %v6048 = vadd.f32 0.0, %v6047
    %v6049 = vpop.f32.mrf.mxu0
    %6050 = vmatprep.mubr.f32.mxu0 0.0
    %6051 = vmatmul.mubr.f32.gmra.mxu0 %v5979
    %v6052 = vpop.f32.mrf.mxu0
    %v6053 = vadd.f32 0.0, %v6052
    %v6054 = vpop.f32.mrf.mxu0
    %6055 = vdwg.mxu0
    %6056 = vmatprep.subr.mxu0 0.0
    %6057 = vmatpush1.msra.mxu0 0.0
    %6058 = vmatprep.subr.mxu0 0.0
    %6059 = vmatpush1.msra.mxu0 0.0
    %6060 = vmatprep.subr.mxu0 0.0
    %6061 = vmatpush1.msra.mxu0 0.0
    %6062 = vmatprep.subr.mxu0 0.0
    %6063 = vmatpush1.msra.mxu0 0.0
    %6064 = vmatprep.subr.mxu0 0.0
    %6065 = vmatpush1.msra.mxu0 0.0
    %6066 = vmatprep.subr.mxu0 0.0
    %6067 = vmatpush1.msra.mxu0 0.0
    %6068 = vmatprep.subr.mxu0 0.0
    %6069 = vmatpush1.msra.mxu0 0.0
    %6070 = vmatprep.subr.mxu0 0.0
    %6071 = vmatpush1.msra.mxu0 0.0
    %6072 = vmatprep.subr.mxu0 0.0
    %6073 = vmatpush1.msra.mxu0 0.0
    %6074 = vmatprep.subr.mxu0 0.0
    %6075 = vmatpush1.msra.mxu0 0.0
    %6076 = vmatprep.subr.mxu0 0.0
    %6077 = vmatpush1.msra.mxu0 0.0
    %6078 = vmatprep.subr.mxu0 0.0
    %6079 = vmatpush1.msra.mxu0 0.0
    %6080 = vmatprep.subr.mxu0 0.0
    %6081 = vmatpush1.msra.mxu0 0.0
    %6082 = vmatprep.subr.mxu0 0.0
    %6083 = vmatpush1.msra.mxu0 0.0
    %6084 = vmatprep.subr.mxu0 0.0
    %6085 = vmatpush1.msra.mxu0 %v6053
    %6086 = vmatprep.subr.mxu0 0.0
    %6087 = vmatpush1.msra.mxu0 %v6048
    %6088 = vmatprep.subr.mxu0 0.0
    %6089 = vmatpush2.msra.mxu0 0.0
    %6090 = vmatprep.subr.mxu0 0.0
    %6091 = vmatpush2.msra.mxu0 0.0
    %6092 = vmatprep.subr.mxu0 0.0
    %6093 = vmatpush2.msra.mxu0 0.0
    %6094 = vmatprep.subr.mxu0 0.0
    %6095 = vmatpush2.msra.mxu0 0.0
    %6096 = vmatprep.subr.mxu0 0.0
    %6097 = vmatpush2.msra.mxu0 0.0
    %6098 = vmatprep.subr.mxu0 0.0
    %6099 = vmatpush2.msra.mxu0 0.0
    %6100 = vmatprep.subr.mxu0 0.0
    %6101 = vmatpush2.msra.mxu0 0.0
    %6102 = vmatprep.subr.mxu0 0.0
    %6103 = vmatpush2.msra.mxu0 0.0
    %6104 = vmatprep.subr.mxu0 0.0
    %6105 = vmatpush2.msra.mxu0 0.0
    %6106 = vmatprep.subr.mxu0 0.0
    %6107 = vmatpush2.msra.mxu0 0.0
    %6108 = vmatprep.subr.mxu0 0.0
    %6109 = vmatpush2.msra.mxu0 0.0
    %6110 = vmatprep.subr.mxu0 0.0
    %6111 = vmatpush2.msra.mxu0 0.0
    %6112 = vmatprep.subr.mxu0 0.0
    %6113 = vmatpush2.msra.mxu0 0.0
    %6114 = vmatprep.subr.mxu0 0.0
    %6115 = vmatpush2.msra.mxu0 0.0
    %6116 = vmatprep.subr.mxu0 0.0
    %6117 = vmatpush2.msra.mxu0 0.0
    %6118 = vmatprep.subr.mxu0 0.0
    %6119 = vmatpush2.msra.mxu0 0.0
    %6120 = vmatprep.mubr.f32.mxu0 0.0
    %6121 = vmatmul.mubr.f32.gmra.mxu0 %v164
    %v6122 = vpop.f32.mrf.mxu0
    %v6123 = vadd.f32 0.0, %v6122
    %v6124 = vpop.f32.mrf.mxu0
    %6125 = vmatprep.mubr.f32.mxu0 0.0
    %6126 = vmatmul.mubr.f32.gmra.mxu0 %v167
    %v6127 = vpop.f32.mrf.mxu0
    %v6128 = vadd.f32 0.0, %v6127
    %v6129 = vpop.f32.mrf.mxu0
    %6130 = vdwg.mxu0
    %v6132 = vsel %vm81, %v5973, 0
    %v6135 = vsel %vm81, %v5974, 0
    %6137 = vmatprep.subr.mxu0 0.0
    %6138 = vmatpush1.msra.mxu0 0.0
    %6139 = vmatprep.subr.mxu0 0.0
    %6140 = vmatpush1.msra.mxu0 0.0
    %6141 = vmatprep.subr.mxu0 0.0
    %6142 = vmatpush1.msra.mxu0 0.0
    %6143 = vmatprep.subr.mxu0 0.0
    %6144 = vmatpush1.msra.mxu0 0.0
    %6145 = vmatprep.subr.mxu0 0.0
    %6146 = vmatpush1.msra.mxu0 0.0
    %6147 = vmatprep.subr.mxu0 0.0
    %6148 = vmatpush1.msra.mxu0 0.0
    %6149 = vmatprep.subr.mxu0 0.0
    %6150 = vmatpush1.msra.mxu0 0.0
    %6151 = vmatprep.subr.mxu0 0.0
    %6152 = vmatpush1.msra.mxu0 0.0
    %6153 = vmatprep.subr.mxu0 0.0
    %6154 = vmatpush1.msra.mxu0 0.0
    %6155 = vmatprep.subr.mxu0 0.0
    %6156 = vmatpush1.msra.mxu0 0.0
    %6157 = vmatprep.subr.mxu0 0.0
    %6158 = vmatpush1.msra.mxu0 0.0
    %6159 = vmatprep.subr.mxu0 0.0
    %6160 = vmatpush1.msra.mxu0 0.0
    %6161 = vmatprep.subr.mxu0 0.0
    %6162 = vmatpush1.msra.mxu0 0.0
    %6163 = vmatprep.subr.mxu0 0.0
    %6164 = vmatpush1.msra.mxu0 0.0
    %6165 = vmatprep.subr.mxu0 0.0
    %6166 = vmatpush1.msra.mxu0 %v76
    %6167 = vmatprep.subr.mxu0 0.0
    %6168 = vmatpush1.msra.mxu0 %v75
    %6169 = vmatprep.subr.mxu0 0.0
    %6170 = vmatpush2.msra.mxu0 0.0
    %6171 = vmatprep.subr.mxu0 0.0
    %6172 = vmatpush2.msra.mxu0 0.0
    %6173 = vmatprep.subr.mxu0 0.0
    %6174 = vmatpush2.msra.mxu0 0.0
    %6175 = vmatprep.subr.mxu0 0.0
    %6176 = vmatpush2.msra.mxu0 0.0
    %6177 = vmatprep.subr.mxu0 0.0
    %6178 = vmatpush2.msra.mxu0 0.0
    %6179 = vmatprep.subr.mxu0 0.0
    %6180 = vmatpush2.msra.mxu0 0.0
    %6181 = vmatprep.subr.mxu0 0.0
    %6182 = vmatpush2.msra.mxu0 0.0
    %6183 = vmatprep.subr.mxu0 0.0
    %6184 = vmatpush2.msra.mxu0 0.0
    %6185 = vmatprep.subr.mxu0 0.0
    %6186 = vmatpush2.msra.mxu0 0.0
    %6187 = vmatprep.subr.mxu0 0.0
    %6188 = vmatpush2.msra.mxu0 0.0
    %6189 = vmatprep.subr.mxu0 0.0
    %6190 = vmatpush2.msra.mxu0 0.0
    %6191 = vmatprep.subr.mxu0 0.0
    %6192 = vmatpush2.msra.mxu0 0.0
    %6193 = vmatprep.subr.mxu0 0.0
    %6194 = vmatpush2.msra.mxu0 0.0
    %6195 = vmatprep.subr.mxu0 0.0
    %6196 = vmatpush2.msra.mxu0 0.0
    %6197 = vmatprep.subr.mxu0 0.0
    %6198 = vmatpush2.msra.mxu0 0.0
    %6199 = vmatprep.subr.mxu0 0.0
    %6200 = vmatpush2.msra.mxu0 0.0
    %6201 = vmatprep.mubr.f32.mxu0 0.0
    %6202 = vmatmul.mubr.f32.gmra.mxu0 %v6132
    %v6203 = vpop.f32.mrf.mxu0
    %v6204 = vadd.f32 0.0, %v6203
    %v6205 = vpop.f32.mrf.mxu0
    %6206 = vmatprep.mubr.f32.mxu0 0.0
    %6207 = vmatmul.mubr.f32.gmra.mxu0 %v6135
    %v6208 = vpop.f32.mrf.mxu0
    %v6209 = vadd.f32 0.0, %v6208
    %v6210 = vpop.f32.mrf.mxu0
    %6211 = vdwg.mxu0
    %6212 = vmatprep.subr.mxu0 0.0
    %6213 = vmatpush1.msra.mxu0 0.0
    %6214 = vmatprep.subr.mxu0 0.0
    %6215 = vmatpush1.msra.mxu0 0.0
    %6216 = vmatprep.subr.mxu0 0.0
    %6217 = vmatpush1.msra.mxu0 0.0
    %6218 = vmatprep.subr.mxu0 0.0
    %6219 = vmatpush1.msra.mxu0 0.0
    %6220 = vmatprep.subr.mxu0 0.0
    %6221 = vmatpush1.msra.mxu0 0.0
    %6222 = vmatprep.subr.mxu0 0.0
    %6223 = vmatpush1.msra.mxu0 0.0
    %6224 = vmatprep.subr.mxu0 0.0
    %6225 = vmatpush1.msra.mxu0 0.0
    %6226 = vmatprep.subr.mxu0 0.0
    %6227 = vmatpush1.msra.mxu0 0.0
    %6228 = vmatprep.subr.mxu0 0.0
    %6229 = vmatpush1.msra.mxu0 0.0
    %6230 = vmatprep.subr.mxu0 0.0
    %6231 = vmatpush1.msra.mxu0 0.0
    %6232 = vmatprep.subr.mxu0 0.0
    %6233 = vmatpush1.msra.mxu0 0.0
    %6234 = vmatprep.subr.mxu0 0.0
    %6235 = vmatpush1.msra.mxu0 0.0
    %6236 = vmatprep.subr.mxu0 0.0
    %6237 = vmatpush1.msra.mxu0 0.0
    %6238 = vmatprep.subr.mxu0 0.0
    %6239 = vmatpush1.msra.mxu0 0.0
    %6240 = vmatprep.subr.mxu0 0.0
    %6241 = vmatpush1.msra.mxu0 %v6209
    %6242 = vmatprep.subr.mxu0 0.0
    %6243 = vmatpush1.msra.mxu0 %v6204
    %6244 = vmatprep.subr.mxu0 0.0
    %6245 = vmatpush2.msra.mxu0 0.0
    %6246 = vmatprep.subr.mxu0 0.0
    %6247 = vmatpush2.msra.mxu0 0.0
    %6248 = vmatprep.subr.mxu0 0.0
    %6249 = vmatpush2.msra.mxu0 0.0
    %6250 = vmatprep.subr.mxu0 0.0
    %6251 = vmatpush2.msra.mxu0 0.0
    %6252 = vmatprep.subr.mxu0 0.0
    %6253 = vmatpush2.msra.mxu0 0.0
    %6254 = vmatprep.subr.mxu0 0.0
    %6255 = vmatpush2.msra.mxu0 0.0
    %6256 = vmatprep.subr.mxu0 0.0
    %6257 = vmatpush2.msra.mxu0 0.0
    %6258 = vmatprep.subr.mxu0 0.0
    %6259 = vmatpush2.msra.mxu0 0.0
    %6260 = vmatprep.subr.mxu0 0.0
    %6261 = vmatpush2.msra.mxu0 0.0
    %6262 = vmatprep.subr.mxu0 0.0
    %6263 = vmatpush2.msra.mxu0 0.0
    %6264 = vmatprep.subr.mxu0 0.0
    %6265 = vmatpush2.msra.mxu0 0.0
    %6266 = vmatprep.subr.mxu0 0.0
    %6267 = vmatpush2.msra.mxu0 0.0
    %6268 = vmatprep.subr.mxu0 0.0
    %6269 = vmatpush2.msra.mxu0 0.0
    %6270 = vmatprep.subr.mxu0 0.0
    %6271 = vmatpush2.msra.mxu0 0.0
    %6272 = vmatprep.subr.mxu0 0.0
    %6273 = vmatpush2.msra.mxu0 0.0
    %6274 = vmatprep.subr.mxu0 0.0
    %6275 = vmatpush2.msra.mxu0 0.0
    %6276 = vmatprep.mubr.f32.mxu0 0.0
    %6277 = vmatmul.mubr.f32.gmra.mxu0 %v164
    %v6278 = vpop.f32.mrf.mxu0
    %v6279 = vadd.f32 0.0, %v6278
    %v6280 = vpop.f32.mrf.mxu0
    %6281 = vmatprep.mubr.f32.mxu0 0.0
    %6282 = vmatmul.mubr.f32.gmra.mxu0 %v167
    %v6283 = vpop.f32.mrf.mxu0
    %v6284 = vadd.f32 0.0, %v6283
    %v6285 = vpop.f32.mrf.mxu0
    %6286 = vdwg.mxu0
    %v6287 = vmul.f32 %v6123, %v6123
    %v6288 = vmul.f32 %v6128, %v6128
    %v6289 = vmul.f32 %v6279, %v6279
    %v6290 = vmul.f32 %v6284, %v6284
    %v6291 = vmul.f32 %v6123, %v6279
    %v6292 = vmul.f32 %v6128, %v6284
    %v6293 = vmul.f32 %v5970, %v5970
    %v6294 = vmul.f32 %v5971, %v5971
    %v6296 = vsel %vm81, %v6293, 0
    %v6299 = vsel %vm81, %v6294, 0
    %6301 = vmatprep.subr.mxu0 0.0
    %6302 = vmatpush1.msra.mxu0 0.0
    %6303 = vmatprep.subr.mxu0 0.0
    %6304 = vmatpush1.msra.mxu0 0.0
    %6305 = vmatprep.subr.mxu0 0.0
    %6306 = vmatpush1.msra.mxu0 0.0
    %6307 = vmatprep.subr.mxu0 0.0
    %6308 = vmatpush1.msra.mxu0 0.0
    %6309 = vmatprep.subr.mxu0 0.0
    %6310 = vmatpush1.msra.mxu0 0.0
    %6311 = vmatprep.subr.mxu0 0.0
    %6312 = vmatpush1.msra.mxu0 0.0
    %6313 = vmatprep.subr.mxu0 0.0
    %6314 = vmatpush1.msra.mxu0 0.0
    %6315 = vmatprep.subr.mxu0 0.0
    %6316 = vmatpush1.msra.mxu0 0.0
    %6317 = vmatprep.subr.mxu0 0.0
    %6318 = vmatpush1.msra.mxu0 0.0
    %6319 = vmatprep.subr.mxu0 0.0
    %6320 = vmatpush1.msra.mxu0 0.0
    %6321 = vmatprep.subr.mxu0 0.0
    %6322 = vmatpush1.msra.mxu0 0.0
    %6323 = vmatprep.subr.mxu0 0.0
    %6324 = vmatpush1.msra.mxu0 0.0
    %6325 = vmatprep.subr.mxu0 0.0
    %6326 = vmatpush1.msra.mxu0 0.0
    %6327 = vmatprep.subr.mxu0 0.0
    %6328 = vmatpush1.msra.mxu0 0.0
    %6329 = vmatprep.subr.mxu0 0.0
    %6330 = vmatpush1.msra.mxu0 %v76
    %6331 = vmatprep.subr.mxu0 0.0
    %6332 = vmatpush1.msra.mxu0 %v75
    %6333 = vmatprep.subr.mxu0 0.0
    %6334 = vmatpush2.msra.mxu0 0.0
    %6335 = vmatprep.subr.mxu0 0.0
    %6336 = vmatpush2.msra.mxu0 0.0
    %6337 = vmatprep.subr.mxu0 0.0
    %6338 = vmatpush2.msra.mxu0 0.0
    %6339 = vmatprep.subr.mxu0 0.0
    %6340 = vmatpush2.msra.mxu0 0.0
    %6341 = vmatprep.subr.mxu0 0.0
    %6342 = vmatpush2.msra.mxu0 0.0
    %6343 = vmatprep.subr.mxu0 0.0
    %6344 = vmatpush2.msra.mxu0 0.0
    %6345 = vmatprep.subr.mxu0 0.0
    %6346 = vmatpush2.msra.mxu0 0.0
    %6347 = vmatprep.subr.mxu0 0.0
    %6348 = vmatpush2.msra.mxu0 0.0
    %6349 = vmatprep.subr.mxu0 0.0
    %6350 = vmatpush2.msra.mxu0 0.0
    %6351 = vmatprep.subr.mxu0 0.0
    %6352 = vmatpush2.msra.mxu0 0.0
    %6353 = vmatprep.subr.mxu0 0.0
    %6354 = vmatpush2.msra.mxu0 0.0
    %6355 = vmatprep.subr.mxu0 0.0
    %6356 = vmatpush2.msra.mxu0 0.0
    %6357 = vmatprep.subr.mxu0 0.0
    %6358 = vmatpush2.msra.mxu0 0.0
    %6359 = vmatprep.subr.mxu0 0.0
    %6360 = vmatpush2.msra.mxu0 0.0
    %6361 = vmatprep.subr.mxu0 0.0
    %6362 = vmatpush2.msra.mxu0 0.0
    %6363 = vmatprep.subr.mxu0 0.0
    %6364 = vmatpush2.msra.mxu0 0.0
    %6365 = vmatprep.mubr.f32.mxu0 0.0
    %6366 = vmatmul.mubr.f32.gmra.mxu0 %v6296
    %v6367 = vpop.f32.mrf.mxu0
    %v6368 = vadd.f32 0.0, %v6367
    %v6369 = vpop.f32.mrf.mxu0
    %6370 = vmatprep.mubr.f32.mxu0 0.0
    %6371 = vmatmul.mubr.f32.gmra.mxu0 %v6299
    %v6372 = vpop.f32.mrf.mxu0
    %v6373 = vadd.f32 0.0, %v6372
    %v6374 = vpop.f32.mrf.mxu0
    %6375 = vdwg.mxu0
    %6376 = vmatprep.subr.mxu0 0.0
    %6377 = vmatpush1.msra.mxu0 0.0
    %6378 = vmatprep.subr.mxu0 0.0
    %6379 = vmatpush1.msra.mxu0 0.0
    %6380 = vmatprep.subr.mxu0 0.0
    %6381 = vmatpush1.msra.mxu0 0.0
    %6382 = vmatprep.subr.mxu0 0.0
    %6383 = vmatpush1.msra.mxu0 0.0
    %6384 = vmatprep.subr.mxu0 0.0
    %6385 = vmatpush1.msra.mxu0 0.0
    %6386 = vmatprep.subr.mxu0 0.0
    %6387 = vmatpush1.msra.mxu0 0.0
    %6388 = vmatprep.subr.mxu0 0.0
    %6389 = vmatpush1.msra.mxu0 0.0
    %6390 = vmatprep.subr.mxu0 0.0
    %6391 = vmatpush1.msra.mxu0 0.0
    %6392 = vmatprep.subr.mxu0 0.0
    %6393 = vmatpush1.msra.mxu0 0.0
    %6394 = vmatprep.subr.mxu0 0.0
    %6395 = vmatpush1.msra.mxu0 0.0
    %6396 = vmatprep.subr.mxu0 0.0
    %6397 = vmatpush1.msra.mxu0 0.0
    %6398 = vmatprep.subr.mxu0 0.0
    %6399 = vmatpush1.msra.mxu0 0.0
    %6400 = vmatprep.subr.mxu0 0.0
    %6401 = vmatpush1.msra.mxu0 0.0
    %6402 = vmatprep.subr.mxu0 0.0
    %6403 = vmatpush1.msra.mxu0 0.0
    %6404 = vmatprep.subr.mxu0 0.0
    %6405 = vmatpush1.msra.mxu0 %v6373
    %6406 = vmatprep.subr.mxu0 0.0
    %6407 = vmatpush1.msra.mxu0 %v6368
    %6408 = vmatprep.subr.mxu0 0.0
    %6409 = vmatpush2.msra.mxu0 0.0
    %6410 = vmatprep.subr.mxu0 0.0
    %6411 = vmatpush2.msra.mxu0 0.0
    %6412 = vmatprep.subr.mxu0 0.0
    %6413 = vmatpush2.msra.mxu0 0.0
    %6414 = vmatprep.subr.mxu0 0.0
    %6415 = vmatpush2.msra.mxu0 0.0
    %6416 = vmatprep.subr.mxu0 0.0
    %6417 = vmatpush2.msra.mxu0 0.0
    %6418 = vmatprep.subr.mxu0 0.0
    %6419 = vmatpush2.msra.mxu0 0.0
    %6420 = vmatprep.subr.mxu0 0.0
    %6421 = vmatpush2.msra.mxu0 0.0
    %6422 = vmatprep.subr.mxu0 0.0
    %6423 = vmatpush2.msra.mxu0 0.0
    %6424 = vmatprep.subr.mxu0 0.0
    %6425 = vmatpush2.msra.mxu0 0.0
    %6426 = vmatprep.subr.mxu0 0.0
    %6427 = vmatpush2.msra.mxu0 0.0
    %6428 = vmatprep.subr.mxu0 0.0
    %6429 = vmatpush2.msra.mxu0 0.0
    %6430 = vmatprep.subr.mxu0 0.0
    %6431 = vmatpush2.msra.mxu0 0.0
    %6432 = vmatprep.subr.mxu0 0.0
    %6433 = vmatpush2.msra.mxu0 0.0
    %6434 = vmatprep.subr.mxu0 0.0
    %6435 = vmatpush2.msra.mxu0 0.0
    %6436 = vmatprep.subr.mxu0 0.0
    %6437 = vmatpush2.msra.mxu0 0.0
    %6438 = vmatprep.subr.mxu0 0.0
    %6439 = vmatpush2.msra.mxu0 0.0
    %6440 = vmatprep.mubr.f32.mxu0 0.0
    %6441 = vmatmul.mubr.f32.gmra.mxu0 %v164
    %v6442 = vpop.f32.mrf.mxu0
    %v6443 = vadd.f32 0.0, %v6442
    %v6444 = vpop.f32.mrf.mxu0
    %6445 = vmatprep.mubr.f32.mxu0 0.0
    %6446 = vmatmul.mubr.f32.gmra.mxu0 %v167
    %v6447 = vpop.f32.mrf.mxu0
    %v6448 = vadd.f32 0.0, %v6447
    %v6449 = vpop.f32.mrf.mxu0
    %6450 = vdwg.mxu0
    %v6451 = vsub.f32 %v6443, %v6287
    %v6452 = vsub.f32 %v6448, %v6288
    %v6453 = vmul.f32 %v5973, %v5973
    %v6454 = vmul.f32 %v5974, %v5974
    %v6456 = vsel %vm81, %v6453, 0
    %v6459 = vsel %vm81, %v6454, 0
    %6461 = vmatprep.subr.mxu0 0.0
    %6462 = vmatpush1.msra.mxu0 0.0
    %6463 = vmatprep.subr.mxu0 0.0
    %6464 = vmatpush1.msra.mxu0 0.0
    %6465 = vmatprep.subr.mxu0 0.0
    %6466 = vmatpush1.msra.mxu0 0.0
    %6467 = vmatprep.subr.mxu0 0.0
    %6468 = vmatpush1.msra.mxu0 0.0
    %6469 = vmatprep.subr.mxu0 0.0
    %6470 = vmatpush1.msra.mxu0 0.0
    %6471 = vmatprep.subr.mxu0 0.0
    %6472 = vmatpush1.msra.mxu0 0.0
    %6473 = vmatprep.subr.mxu0 0.0
    %6474 = vmatpush1.msra.mxu0 0.0
    %6475 = vmatprep.subr.mxu0 0.0
    %6476 = vmatpush1.msra.mxu0 0.0
    %6477 = vmatprep.subr.mxu0 0.0
    %6478 = vmatpush1.msra.mxu0 0.0
    %6479 = vmatprep.subr.mxu0 0.0
    %6480 = vmatpush1.msra.mxu0 0.0
    %6481 = vmatprep.subr.mxu0 0.0
    %6482 = vmatpush1.msra.mxu0 0.0
    %6483 = vmatprep.subr.mxu0 0.0
    %6484 = vmatpush1.msra.mxu0 0.0
    %6485 = vmatprep.subr.mxu0 0.0
    %6486 = vmatpush1.msra.mxu0 0.0
    %6487 = vmatprep.subr.mxu0 0.0
    %6488 = vmatpush1.msra.mxu0 0.0
    %6489 = vmatprep.subr.mxu0 0.0
    %6490 = vmatpush1.msra.mxu0 %v76
    %6491 = vmatprep.subr.mxu0 0.0
    %6492 = vmatpush1.msra.mxu0 %v75
    %6493 = vmatprep.subr.mxu0 0.0
    %6494 = vmatpush2.msra.mxu0 0.0
    %6495 = vmatprep.subr.mxu0 0.0
    %6496 = vmatpush2.msra.mxu0 0.0
    %6497 = vmatprep.subr.mxu0 0.0
    %6498 = vmatpush2.msra.mxu0 0.0
    %6499 = vmatprep.subr.mxu0 0.0
    %6500 = vmatpush2.msra.mxu0 0.0
    %6501 = vmatprep.subr.mxu0 0.0
    %6502 = vmatpush2.msra.mxu0 0.0
    %6503 = vmatprep.subr.mxu0 0.0
    %6504 = vmatpush2.msra.mxu0 0.0
    %6505 = vmatprep.subr.mxu0 0.0
    %6506 = vmatpush2.msra.mxu0 0.0
    %6507 = vmatprep.subr.mxu0 0.0
    %6508 = vmatpush2.msra.mxu0 0.0
    %6509 = vmatprep.subr.mxu0 0.0
    %6510 = vmatpush2.msra.mxu0 0.0
    %6511 = vmatprep.subr.mxu0 0.0
    %6512 = vmatpush2.msra.mxu0 0.0
    %6513 = vmatprep.subr.mxu0 0.0
    %6514 = vmatpush2.msra.mxu0 0.0
    %6515 = vmatprep.subr.mxu0 0.0
    %6516 = vmatpush2.msra.mxu0 0.0
    %6517 = vmatprep.subr.mxu0 0.0
    %6518 = vmatpush2.msra.mxu0 0.0
    %6519 = vmatprep.subr.mxu0 0.0
    %6520 = vmatpush2.msra.mxu0 0.0
    %6521 = vmatprep.subr.mxu0 0.0
    %6522 = vmatpush2.msra.mxu0 0.0
    %6523 = vmatprep.subr.mxu0 0.0
    %6524 = vmatpush2.msra.mxu0 0.0
    %6525 = vmatprep.mubr.f32.mxu0 0.0
    %6526 = vmatmul.mubr.f32.gmra.mxu0 %v6456
    %v6527 = vpop.f32.mrf.mxu0
    %v6528 = vadd.f32 0.0, %v6527
    %v6529 = vpop.f32.mrf.mxu0
    %6530 = vmatprep.mubr.f32.mxu0 0.0
    %6531 = vmatmul.mubr.f32.gmra.mxu0 %v6459
    %v6532 = vpop.f32.mrf.mxu0
    %v6533 = vadd.f32 0.0, %v6532
    %v6534 = vpop.f32.mrf.mxu0
    %6535 = vdwg.mxu0
    %6536 = vmatprep.subr.mxu0 0.0
    %6537 = vmatpush1.msra.mxu0 0.0
    %6538 = vmatprep.subr.mxu0 0.0
    %6539 = vmatpush1.msra.mxu0 0.0
    %6540 = vmatprep.subr.mxu0 0.0
    %6541 = vmatpush1.msra.mxu0 0.0
    %6542 = vmatprep.subr.mxu0 0.0
    %6543 = vmatpush1.msra.mxu0 0.0
    %6544 = vmatprep.subr.mxu0 0.0
    %6545 = vmatpush1.msra.mxu0 0.0
    %6546 = vmatprep.subr.mxu0 0.0
    %6547 = vmatpush1.msra.mxu0 0.0
    %6548 = vmatprep.subr.mxu0 0.0
    %6549 = vmatpush1.msra.mxu0 0.0
    %6550 = vmatprep.subr.mxu0 0.0
    %6551 = vmatpush1.msra.mxu0 0.0
    %6552 = vmatprep.subr.mxu0 0.0
    %6553 = vmatpush1.msra.mxu0 0.0
    %6554 = vmatprep.subr.mxu0 0.0
    %6555 = vmatpush1.msra.mxu0 0.0
    %6556 = vmatprep.subr.mxu0 0.0
    %6557 = vmatpush1.msra.mxu0 0.0
    %6558 = vmatprep.subr.mxu0 0.0
    %6559 = vmatpush1.msra.mxu0 0.0
    %6560 = vmatprep.subr.mxu0 0.0
    %6561 = vmatpush1.msra.mxu0 0.0
    %6562 = vmatprep.subr.mxu0 0.0
    %6563 = vmatpush1.msra.mxu0 0.0
    %6564 = vmatprep.subr.mxu0 0.0
    %6565 = vmatpush1.msra.mxu0 %v6533
    %6566 = vmatprep.subr.mxu0 0.0
    %6567 = vmatpush1.msra.mxu0 %v6528
    %6568 = vmatprep.subr.mxu0 0.0
    %6569 = vmatpush2.msra.mxu0 0.0
    %6570 = vmatprep.subr.mxu0 0.0
    %6571 = vmatpush2.msra.mxu0 0.0
    %6572 = vmatprep.subr.mxu0 0.0
    %6573 = vmatpush2.msra.mxu0 0.0
    %6574 = vmatprep.subr.mxu0 0.0
    %6575 = vmatpush2.msra.mxu0 0.0
    %6576 = vmatprep.subr.mxu0 0.0
    %6577 = vmatpush2.msra.mxu0 0.0
    %6578 = vmatprep.subr.mxu0 0.0
    %6579 = vmatpush2.msra.mxu0 0.0
    %6580 = vmatprep.subr.mxu0 0.0
    %6581 = vmatpush2.msra.mxu0 0.0
    %6582 = vmatprep.subr.mxu0 0.0
    %6583 = vmatpush2.msra.mxu0 0.0
    %6584 = vmatprep.subr.mxu0 0.0
    %6585 = vmatpush2.msra.mxu0 0.0
    %6586 = vmatprep.subr.mxu0 0.0
    %6587 = vmatpush2.msra.mxu0 0.0
    %6588 = vmatprep.subr.mxu0 0.0
    %6589 = vmatpush2.msra.mxu0 0.0
    %6590 = vmatprep.subr.mxu0 0.0
    %6591 = vmatpush2.msra.mxu0 0.0
    %6592 = vmatprep.subr.mxu0 0.0
    %6593 = vmatpush2.msra.mxu0 0.0
    %6594 = vmatprep.subr.mxu0 0.0
    %6595 = vmatpush2.msra.mxu0 0.0
    %6596 = vmatprep.subr.mxu0 0.0
    %6597 = vmatpush2.msra.mxu0 0.0
    %6598 = vmatprep.subr.mxu0 0.0
    %6599 = vmatpush2.msra.mxu0 0.0
    %6600 = vmatprep.mubr.f32.mxu0 0.0
    %6601 = vmatmul.mubr.f32.gmra.mxu0 %v164
    %v6602 = vpop.f32.mrf.mxu0
    %v6603 = vadd.f32 0.0, %v6602
    %v6604 = vpop.f32.mrf.mxu0
    %6605 = vmatprep.mubr.f32.mxu0 0.0
    %6606 = vmatmul.mubr.f32.gmra.mxu0 %v167
    %v6607 = vpop.f32.mrf.mxu0
    %v6608 = vadd.f32 0.0, %v6607
    %v6609 = vpop.f32.mrf.mxu0
    %6610 = vdwg.mxu0
    %v6611 = vsub.f32 %v6603, %v6289
    %v6612 = vsub.f32 %v6608, %v6290
    %v6613 = vmul.f32 %v5970, %v5973
    %v6614 = vmul.f32 %v5971, %v5974
    %v6616 = vsel %vm81, %v6613, 0
    %v6619 = vsel %vm81, %v6614, 0
    %6621 = vmatprep.subr.mxu0 0.0
    %6622 = vmatpush1.msra.mxu0 0.0
    %6623 = vmatprep.subr.mxu0 0.0
    %6624 = vmatpush1.msra.mxu0 0.0
    %6625 = vmatprep.subr.mxu0 0.0
    %6626 = vmatpush1.msra.mxu0 0.0
    %6627 = vmatprep.subr.mxu0 0.0
    %6628 = vmatpush1.msra.mxu0 0.0
    %6629 = vmatprep.subr.mxu0 0.0
    %6630 = vmatpush1.msra.mxu0 0.0
    %6631 = vmatprep.subr.mxu0 0.0
    %6632 = vmatpush1.msra.mxu0 0.0
    %6633 = vmatprep.subr.mxu0 0.0
    %6634 = vmatpush1.msra.mxu0 0.0
    %6635 = vmatprep.subr.mxu0 0.0
    %6636 = vmatpush1.msra.mxu0 0.0
    %6637 = vmatprep.subr.mxu0 0.0
    %6638 = vmatpush1.msra.mxu0 0.0
    %6639 = vmatprep.subr.mxu0 0.0
    %6640 = vmatpush1.msra.mxu0 0.0
    %6641 = vmatprep.subr.mxu0 0.0
    %6642 = vmatpush1.msra.mxu0 0.0
    %6643 = vmatprep.subr.mxu0 0.0
    %6644 = vmatpush1.msra.mxu0 0.0
    %6645 = vmatprep.subr.mxu0 0.0
    %6646 = vmatpush1.msra.mxu0 0.0
    %6647 = vmatprep.subr.mxu0 0.0
    %6648 = vmatpush1.msra.mxu0 0.0
    %6649 = vmatprep.subr.mxu0 0.0
    %6650 = vmatpush1.msra.mxu0 %v76
    %6651 = vmatprep.subr.mxu0 0.0
    %6652 = vmatpush1.msra.mxu0 %v75
    %6653 = vmatprep.subr.mxu0 0.0
    %6654 = vmatpush2.msra.mxu0 0.0
    %6655 = vmatprep.subr.mxu0 0.0
    %6656 = vmatpush2.msra.mxu0 0.0
    %6657 = vmatprep.subr.mxu0 0.0
    %6658 = vmatpush2.msra.mxu0 0.0
    %6659 = vmatprep.subr.mxu0 0.0
    %6660 = vmatpush2.msra.mxu0 0.0
    %6661 = vmatprep.subr.mxu0 0.0
    %6662 = vmatpush2.msra.mxu0 0.0
    %6663 = vmatprep.subr.mxu0 0.0
    %6664 = vmatpush2.msra.mxu0 0.0
    %6665 = vmatprep.subr.mxu0 0.0
    %6666 = vmatpush2.msra.mxu0 0.0
    %6667 = vmatprep.subr.mxu0 0.0
    %6668 = vmatpush2.msra.mxu0 0.0
    %6669 = vmatprep.subr.mxu0 0.0
    %6670 = vmatpush2.msra.mxu0 0.0
    %6671 = vmatprep.subr.mxu0 0.0
    %6672 = vmatpush2.msra.mxu0 0.0
    %6673 = vmatprep.subr.mxu0 0.0
    %6674 = vmatpush2.msra.mxu0 0.0
    %6675 = vmatprep.subr.mxu0 0.0
    %6676 = vmatpush2.msra.mxu0 0.0
    %6677 = vmatprep.subr.mxu0 0.0
    %6678 = vmatpush2.msra.mxu0 0.0
    %6679 = vmatprep.subr.mxu0 0.0
    %6680 = vmatpush2.msra.mxu0 0.0
    %6681 = vmatprep.subr.mxu0 0.0
    %6682 = vmatpush2.msra.mxu0 0.0
    %6683 = vmatprep.subr.mxu0 0.0
    %6684 = vmatpush2.msra.mxu0 0.0
    %6685 = vmatprep.mubr.f32.mxu0 0.0
    %6686 = vmatmul.mubr.f32.gmra.mxu0 %v6616
    %v6687 = vpop.f32.mrf.mxu0
    %v6688 = vadd.f32 0.0, %v6687
    %v6689 = vpop.f32.mrf.mxu0
    %6690 = vmatprep.mubr.f32.mxu0 0.0
    %6691 = vmatmul.mubr.f32.gmra.mxu0 %v6619
    %v6692 = vpop.f32.mrf.mxu0
    %v6693 = vadd.f32 0.0, %v6692
    %v6694 = vpop.f32.mrf.mxu0
    %6695 = vdwg.mxu0
    %6696 = vmatprep.subr.mxu0 0.0
    %6697 = vmatpush1.msra.mxu0 0.0
    %6698 = vmatprep.subr.mxu0 0.0
    %6699 = vmatpush1.msra.mxu0 0.0
    %6700 = vmatprep.subr.mxu0 0.0
    %6701 = vmatpush1.msra.mxu0 0.0
    %6702 = vmatprep.subr.mxu0 0.0
    %6703 = vmatpush1.msra.mxu0 0.0
    %6704 = vmatprep.subr.mxu0 0.0
    %6705 = vmatpush1.msra.mxu0 0.0
    %6706 = vmatprep.subr.mxu0 0.0
    %6707 = vmatpush1.msra.mxu0 0.0
    %6708 = vmatprep.subr.mxu0 0.0
    %6709 = vmatpush1.msra.mxu0 0.0
    %6710 = vmatprep.subr.mxu0 0.0
    %6711 = vmatpush1.msra.mxu0 0.0
    %6712 = vmatprep.subr.mxu0 0.0
    %6713 = vmatpush1.msra.mxu0 0.0
    %6714 = vmatprep.subr.mxu0 0.0
    %6715 = vmatpush1.msra.mxu0 0.0
    %6716 = vmatprep.subr.mxu0 0.0
    %6717 = vmatpush1.msra.mxu0 0.0
    %6718 = vmatprep.subr.mxu0 0.0
    %6719 = vmatpush1.msra.mxu0 0.0
    %6720 = vmatprep.subr.mxu0 0.0
    %6721 = vmatpush1.msra.mxu0 0.0
    %6722 = vmatprep.subr.mxu0 0.0
    %6723 = vmatpush1.msra.mxu0 0.0
    %6724 = vmatprep.subr.mxu0 0.0
    %6725 = vmatpush1.msra.mxu0 %v6693
    %6726 = vmatprep.subr.mxu0 0.0
    %6727 = vmatpush1.msra.mxu0 %v6688
    %6728 = vmatprep.subr.mxu0 0.0
    %6729 = vmatpush2.msra.mxu0 0.0
    %6730 = vmatprep.subr.mxu0 0.0
    %6731 = vmatpush2.msra.mxu0 0.0
    %6732 = vmatprep.subr.mxu0 0.0
    %6733 = vmatpush2.msra.mxu0 0.0
    %6734 = vmatprep.subr.mxu0 0.0
    %6735 = vmatpush2.msra.mxu0 0.0
    %6736 = vmatprep.subr.mxu0 0.0
    %6737 = vmatpush2.msra.mxu0 0.0
    %6738 = vmatprep.subr.mxu0 0.0
    %6739 = vmatpush2.msra.mxu0 0.0
    %6740 = vmatprep.subr.mxu0 0.0
    %6741 = vmatpush2.msra.mxu0 0.0
    %6742 = vmatprep.subr.mxu0 0.0
    %6743 = vmatpush2.msra.mxu0 0.0
    %6744 = vmatprep.subr.mxu0 0.0
    %6745 = vmatpush2.msra.mxu0 0.0
    %6746 = vmatprep.subr.mxu0 0.0
    %6747 = vmatpush2.msra.mxu0 0.0
    %6748 = vmatprep.subr.mxu0 0.0
    %6749 = vmatpush2.msra.mxu0 0.0
    %6750 = vmatprep.subr.mxu0 0.0
    %6751 = vmatpush2.msra.mxu0 0.0
    %6752 = vmatprep.subr.mxu0 0.0
    %6753 = vmatpush2.msra.mxu0 0.0
    %6754 = vmatprep.subr.mxu0 0.0
    %6755 = vmatpush2.msra.mxu0 0.0
    %6756 = vmatprep.subr.mxu0 0.0
    %6757 = vmatpush2.msra.mxu0 0.0
    %6758 = vmatprep.subr.mxu0 0.0
    %6759 = vmatpush2.msra.mxu0 0.0
    %6760 = vmatprep.mubr.f32.mxu0 0.0
    %6761 = vmatmul.mubr.f32.gmra.mxu0 %v164
    %v6762 = vpop.f32.mrf.mxu0
    %v6763 = vadd.f32 0.0, %v6762
    %v6764 = vpop.f32.mrf.mxu0
    %6765 = vmatprep.mubr.f32.mxu0 0.0
    %6766 = vmatmul.mubr.f32.gmra.mxu0 %v167
    %v6767 = vpop.f32.mrf.mxu0
    %v6768 = vadd.f32 0.0, %v6767
    %v6769 = vpop.f32.mrf.mxu0
    %6770 = vdwg.mxu0
    %v6771 = vsub.f32 %v6763, %v6291
    %v6772 = vsub.f32 %v6768, %v6292
    %v6773 = vmul.f32 %v6291, 2.0
    %v6774 = vmul.f32 %v6292, 2.0
    %v6775 = vadd.f32 %v6773, 0.0001
    %v6776 = vadd.f32 %v6774, 0.0001
    %v6777 = vmul.f32 %v6771, 2.0
    %v6778 = vmul.f32 %v6772, 2.0
    %v6779 = vadd.f32 %v6777, 0.0009
    %v6780 = vadd.f32 %v6778, 0.0009
    %v6781 = vmul.f32 %v6775, %v6779
    %v6782 = vmul.f32 %v6776, %v6780
    %v6783 = vadd.f32 %v6287, %v6289
    %v6784 = vadd.f32 %v6288, %v6290
    %v6785 = vadd.f32 %v6783, 0.0001
    %v6786 = vadd.f32 %v6784, 0.0001
    %v6787 = vadd.f32 %v6451, %v6611
    %v6788 = vadd.f32 %v6452, %v6612
    %v6789 = vadd.f32 %v6787, 0.0009
    %v6790 = vadd.f32 %v6788, 0.0009
    %v6791 = vmul.f32 %v6785, %v6789
    %v6792 = vmul.f32 %v6786, %v6790
    %v6793 = vrcp.pop %v6791
    %v6794 = vmul.f32 %v6781, %v6793
    %v6795 = vrcp.pop %v6792
    %v6796 = vmul.f32 %v6782, %v6795
    %v6797 = vsel %vm81, %v6794, 0.0
    %v6798 = vsel %vm81, %v6796, 0.0
    %v6799 = vadd.f32 %v6797, %v6798
    %6800 = vadd.xlane.f32.xlu0 %v6799
    %v6801 = vpop.xlane.xlu0 %6800
    %v6802 = vrot.slane %v6801, 4
    %v6803 = vadd.f32 %v6801, %v6802
    %v6804 = vrot.slane %v6803, 2
    %v6805 = vadd.f32 %v6803, %v6804
    %v6806 = vrot.slane %v6805, 1
    %v6807 = vadd.f32 %v6805, %v6806
    %s6808 = vtos %v6807
    %v6809 = vstv %s6808
    %vm6810 = vcmask 7168
    %v6811 = vsel %vm6810, %v922, %v1763
    %vm6812 = vcmask 15360
    %v6813 = vsel %vm6812, %v6811, %v2604
    %vm6814 = vcmask 23552
    %v6815 = vsel %vm6814, %v6813, %v3445
    %vm6816 = vcmask 31744
    %v6817 = vsel %vm6816, %v6815, %v4286
    %vm6818 = vcmask 39936
    %v6819 = vsel %vm6818, %v6817, %v5127
    %vm6820 = vcmask 48128
    %v6821 = vsel %vm6820, %v6819, %v5968
    %vm6822 = vcmask 56320
    %v6823 = vsel %vm6822, %v6821, %v6809
    %vm6824 = vcmask 57344
    %6825 = vst.msk [vmem:[#allocation10] sm:$0x1] %vm6824, %v6823
    // Predicated region
    $region34: #{tpu_custom_call.1} parent=1 // pred_check
      _
    $region35: #{tpu_custom_call.1} parent=1 // pred_check_branch
      %6827 = sbr.rel (0) target = $region37
    $region36: #{tpu_custom_call.1} parent=1 // pred_region
      %s6829 = ssub.s32 16, 16
      %6830 = vsyncadd [#allocation4], %s6829
      %s6832 = sshll.u32 [#allocation10], 4
      %s6833 = int_to_ptr.vmem [resolvable:$true] %s6832
      %6835 = dma.vmem_to_hbm [thread:$0]  %s6833, 16, %s4, [#allocation4]
    $region37: #{tpu_custom_call.1} parent=1 // pred_fallthru
      _
    // Predicated region
    $region38: #{tpu_custom_call.1} parent=1 // pred_check
      _
    $region39: #{tpu_custom_call.1} parent=1 // pred_check_branch
      %6837 = sbr.rel (0) target = $region41
    $region40: #{tpu_custom_call.1} parent=1 // pred_region
      %6838 = dma.done [#allocation4], 16
    $region41: #{tpu_custom_call.1} parent=1 // pred_fallthru
      _
    %6839 = vsyncpa [#allocation3], 1
    %6840 = vsyncpa [#allocation6], 1
    %6841 = vsyncpa [#allocation9], 1
    %6842 = vsyncpa [#allocation4], 1

</llo_original>
